<compile_context>
chip_gen: v7x
topology: tpu7x:2x2x1
jax: 0.10.0
libtpu: 0.0.40
codegen_flags: <defaults>
</compile_context>

<pallas_src>
import functools
import math

import jax
import jax.numpy as jnp
from jax.experimental import pallas as pl
from jax.experimental.pallas import tpu as pltpu

BN_EPS = 1e-5


def _round_up(x, m):
    return ((x + m - 1) // m) * m


def _pick_tile(dim, preferred):
    """Return (tile, padded_dim). Full extent when small -> no padding."""
    if dim <= preferred:
        return dim, dim
    if dim % preferred == 0:
        return preferred, dim
    if dim % (preferred // 2) == 0:
        return preferred // 2, dim
    return preferred, _round_up(dim, preferred)


# ----------------------------------------------------------------------------
# Fused matmul kernel: y = act( (X @ W) * scale + shift [+ residual] )
# bf16 MXU inputs, f32 accumulation, f32 epilogue.
# Used for conv1, conv3 (+fused residual/ReLU) and the downsample 1x1 conv.
# ----------------------------------------------------------------------------
def _make_matmul_kernel(apply_relu, has_residual):
    def _epilogue(acc, scale_ref, shift_ref, res):
        y = acc * scale_ref[...] + shift_ref[...]
        if res is not None:
            y = y + res.astype(jnp.float32)
        if apply_relu:
            y = jnp.maximum(y, 0.0)
        return y

    if has_residual:
        def kernel(x_ref, w_ref, scale_ref, shift_ref, res_ref, o_ref, acc_ref):
            @pl.when(pl.program_id(2) == 0)
            def _init():
                acc_ref[...] = jnp.zeros_like(acc_ref)

            acc_ref[...] += jnp.dot(x_ref[...], w_ref[...],
                                    preferred_element_type=jnp.float32)

            @pl.when(pl.program_id(2) == pl.num_programs(2) - 1)
            def _finish():
                o_ref[...] = _epilogue(acc_ref[...], scale_ref, shift_ref,
                                       res_ref[...]).astype(o_ref.dtype)
    else:
        def kernel(x_ref, w_ref, scale_ref, shift_ref, o_ref, acc_ref):
            @pl.when(pl.program_id(2) == 0)
            def _init():
                acc_ref[...] = jnp.zeros_like(acc_ref)

            acc_ref[...] += jnp.dot(x_ref[...], w_ref[...],
                                    preferred_element_type=jnp.float32)

            @pl.when(pl.program_id(2) == pl.num_programs(2) - 1)
            def _finish():
                o_ref[...] = _epilogue(acc_ref[...], scale_ref, shift_ref,
                                       None).astype(o_ref.dtype)
    return kernel


def matmul_bn_act(x, w, scale, shift, *, apply_relu, residual=None,
                  out_dtype=jnp.bfloat16):
    """y[m, n] = act( sum_k x[m,k] w[k,n] * scale[n] + shift[n] (+ res[m,n]) )."""
    M, K = x.shape
    K2, N = w.shape
    assert K == K2
    tm, Mp = _pick_tile(M, 256)     # 256-wide M tiles feed the 256x256 MXU
    tn, Np = _pick_tile(N, 256)
    tk, Kp = _pick_tile(K, 2048)    # whole-K resident for these shapes

    def _pad2(a, r, c):
        if a.shape == (r, c):
            return a
        return jnp.pad(a, ((0, r - a.shape[0]), (0, c - a.shape[1])))

    operands = [_pad2(x, Mp, Kp), _pad2(w, Kp, Np),
                _pad2(scale, 1, Np), _pad2(shift, 1, Np)]
    in_specs = [
        pl.BlockSpec((tm, tk), lambda i, j, k: (i, k)),
        pl.BlockSpec((tk, tn), lambda i, j, k: (k, j)),
        pl.BlockSpec((1, tn), lambda i, j, k: (0, j)),
        pl.BlockSpec((1, tn), lambda i, j, k: (0, j)),
    ]
    if residual is not None:
        operands.append(_pad2(residual, Mp, Np))
        in_specs.append(pl.BlockSpec((tm, tn), lambda i, j, k: (i, j)))

    grid = (Mp // tm, Np // tn, Kp // tk)
    out = pl.pallas_call(
        _make_matmul_kernel(apply_relu, residual is not None),
        out_shape=jax.ShapeDtypeStruct((Mp, Np), out_dtype),
        grid_spec=pltpu.PrefetchScalarGridSpec(
            num_scalar_prefetch=0,
            grid=grid,
            in_specs=in_specs,
            out_specs=pl.BlockSpec((tm, tn), lambda i, j, k: (i, j)),
            scratch_shapes=[pltpu.VMEM((tm, tn), jnp.float32)],
        ),
        compiler_params=pltpu.CompilerParams(
            dimension_semantics=("parallel", "parallel", "arbitrary")),
    )(*operands)
    if (Mp, Np) != (M, N):
        out = out[:M, :N]
    return out


# ----------------------------------------------------------------------------
# 3x3 conv + BN + ReLU kernel: windows read directly from the padded NHWC
# activation in VMEM (no im2col matrix in HBM).
# ----------------------------------------------------------------------------
def _conv3x3_bn_relu_kernel(x_ref, w_ref, scale_ref, shift_ref, o_ref, *,
                            stride, ho, wo):
    cin = x_ref.shape[3]
    cout = o_ref.shape[2]
    acc = jnp.zeros((ho * wo, cout), jnp.float32)
    for dh in range(3):
        for dw in range(3):
            if stride == 1:
                win = x_ref[0, dh:dh + ho, dw:dw + wo, :]
            else:
                win = x_ref[0, pl.ds(dh, ho, stride), pl.ds(dw, wo, stride), :]
            acc = acc + jnp.dot(win.reshape(ho * wo, cin), w_ref[dh, dw],
                                preferred_element_type=jnp.float32)
    y = acc * scale_ref[...] + shift_ref[...]
    y = jnp.maximum(y, 0.0)
    o_ref[0] = y.astype(o_ref.dtype)


def conv3x3_bn_relu(x4, w, scale, shift, *, stride):
    """x4: [B,H,W,Cin] bf16; w: [3,3,Cin,Cout] bf16 -> [B, Ho*Wo, Cout] bf16."""
    B, H, W, Cin = x4.shape
    Cout = w.shape[-1]
    Ho = (H + 2 - 3) // stride + 1
    Wo = (W + 2 - 3) // stride + 1
    Hp, Wp = H + 2, W + 2
    xpad = jnp.pad(x4, ((0, 0), (1, 1), (1, 1), (0, 0)))
    # TODO(synk): for very large spatial planes this loads one whole padded
    #   image per batch element into VMEM; tile H / Cout for bigger models.
    kernel = functools.partial(_conv3x3_bn_relu_kernel,
                               stride=stride, ho=Ho, wo=Wo)
    return pl.pallas_call(
        kernel,
        out_shape=jax.ShapeDtypeStruct((B, Ho * Wo, Cout), jnp.bfloat16),
        grid=(B,),
        in_specs=[
            pl.BlockSpec((1, Hp, Wp, Cin), lambda b: (b, 0, 0, 0)),
            pl.BlockSpec((3, 3, Cin, Cout), lambda b: (0, 0, 0, 0)),
            pl.BlockSpec((1, Cout), lambda b: (0, 0)),
            pl.BlockSpec((1, Cout), lambda b: (0, 0)),
        ],
        out_specs=pl.BlockSpec((1, Ho * Wo, Cout), lambda b: (b, 0, 0)),
        compiler_params=pltpu.CompilerParams(
            dimension_semantics=("parallel",)),
    )(xpad, w, scale, shift)


# ----------------------------------------------------------------------------
# Parameters (deterministic; shapes/init matching the module, BN folded)
# ----------------------------------------------------------------------------
def _conv_weight(key, kh, kw, cin, cout):
    std = math.sqrt(2.0 / (kh * kw * cin))
    w = std * jax.random.normal(key, (kh, kw, cin, cout), jnp.float32)
    return w.astype(jnp.bfloat16)                      # pre-cast once at init


def _bn_fold(c):
    # eval-mode fold with PyTorch init stats: gamma=1, beta=0, mean=0, var=1
    scale = jnp.full((1, c), 1.0 / math.sqrt(1.0 + BN_EPS), jnp.float32)
    shift = jnp.zeros((1, c), jnp.float32)
    return scale, shift


def init_bottleneck_params(key, inplanes, planes, stride=1):
    expansion = 4
    k1, k2, k3, kd = jax.random.split(key, 4)
    p = {"stride": stride}
    p["w1"] = _conv_weight(k1, 1, 1, inplanes, planes).reshape(inplanes, planes)
    p["s1"], p["b1"] = _bn_fold(planes)
    p["w2"] = _conv_weight(k2, 3, 3, planes, planes)
    p["s2"], p["b2"] = _bn_fold(planes)
    p["w3"] = _conv_weight(k3, 1, 1, planes, planes * expansion
                           ).reshape(planes, planes * expansion)
    p["s3"], p["b3"] = _bn_fold(planes * expansion)
    if stride != 1 or inplanes != planes * expansion:
        p["wd"] = _conv_weight(kd, 1, 1, inplanes, planes * expansion
                               ).reshape(inplanes, planes * expansion)
        p["sd"], p["bd"] = _bn_fold(planes * expansion)
    return p


# ----------------------------------------------------------------------------
# Bottleneck forward
# ----------------------------------------------------------------------------
def bottleneck_forward(x_nchw, params):
    stride = params["stride"]
    x = jnp.transpose(x_nchw, (0, 2, 3, 1)).astype(jnp.bfloat16)   # NHWC bf16
    B, H, W, Cin = x.shape
    x2 = x.reshape(B * H * W, Cin)
    planes = params["w1"].shape[1]
    cout = params["w3"].shape[1]

    # conv1 (1x1) + bn1 + relu
    out = matmul_bn_act(x2, params["w1"], params["s1"], params["b1"],
                        apply_relu=True)

    # conv2 (3x3, stride) + bn2 + relu  -- direct windowed conv kernel
    out = conv3x3_bn_relu(out.reshape(B, H, W, planes),
                          params["w2"], params["s2"], params["b2"],
                          stride=stride)
    Ho = (H + 2 - 3) // stride + 1
    Wo = (W + 2 - 3) // stride + 1
    out = out.reshape(B * Ho * Wo, planes)

    # residual branch (downsample = 1x1 conv stride s + BN, or identity)
    if "wd" in params:
        xs = x if stride == 1 else x[:, ::stride, ::stride, :]
        residual = matmul_bn_act(xs.reshape(B * Ho * Wo, Cin),
                                 params["wd"], params["sd"], params["bd"],
                                 apply_relu=False)
    else:
        residual = x2

    # conv3 (1x1) + bn3 + residual add + relu, all fused into one epilogue
    y = matmul_bn_act(out, params["w3"], params["s3"], params["b3"],
                      apply_relu=True, residual=residual,
                      out_dtype=jnp.float32)                 # [B*Ho*Wo, 4p]
    y = y.reshape(B, Ho, Wo, cout)
    return jnp.transpose(y, (0, 3, 1, 2))                    # back to NCHW


if __name__ == "__main__":
    key = jax.random.PRNGKey(0)
    k_param, k_x = jax.random.split(key)

    # Small Bottleneck: inplanes=64, planes=32 (expansion 4 -> 128 output
    # channels), stride=1, downsample present (channel mismatch).
    inplanes, planes, stride = 64, 32, 1
    x = jax.random.normal(k_x, (2, inplanes, 16, 16), jnp.float32)  # NCHW

    params = init_bottleneck_params(k_param, inplanes, planes, stride)
    fwd = jax.jit(functools.partial(bottleneck_forward, params=params))
    out = jax.block_until_ready(fwd(x))

    assert out.shape == (2, planes * 4, 16, 16), out.shape
    assert bool(jnp.all(jnp.isfinite(out)))
    print("KERNEL_OK")
</pallas_src>

<mosaic_0001>
module attributes {stable_mosaic.version = 11 : i64} {
  func.func @kernel(%arg0: i32, %arg1: i32, %arg2: i32, %arg3: memref<256x64xbf16, #tpu.memory_space<vmem>>, %arg4: memref<64x128xbf16, #tpu.memory_space<vmem>>, %arg5: memref<1x128xf32, #tpu.memory_space<vmem>>, %arg6: memref<1x128xf32, #tpu.memory_space<vmem>>, %arg7: memref<256x128xbf16, #tpu.memory_space<vmem>>, %arg8: memref<256x128xf32, #tpu.memory_space<vmem>>) attributes {dimension_semantics = [#tpu.dimension_semantics<parallel>, #tpu.dimension_semantics<parallel>, #tpu.dimension_semantics<arbitrary>], iteration_bounds = array<i64: 2, 1, 1>, scalar_prefetch = 0 : i64, scratch_operands = 1 : i64, tpu.core_type = #tpu.core_type<tc>, window_params = [{transform_indices = @transform_0, window_bounds = array<i64: 256, 64>}, {transform_indices = @transform_1, window_bounds = array<i64: 64, 128>}, {transform_indices = @transform_2, window_bounds = array<i64: 1, 128>}, {transform_indices = @transform_3, window_bounds = array<i64: 1, 128>}, {transform_indices = @transform_4, window_bounds = array<i64: 256, 128>}]} {
    %c0_i32 = arith.constant 0 : i32
    %0 = arith.cmpi eq, %arg2, %c0_i32 : i32
    %1 = arith.extui %0 : i1 to i32
    %c0_i32_0 = arith.constant 0 : i32
    %2 = arith.cmpi ne, %1, %c0_i32_0 : i32
    scf.if %2 {
      %cst_10 = arith.constant 0.000000e+00 : f32
      %12 = vector.broadcast %cst_10 : f32 to vector<256x128xf32>
      %c0_11 = arith.constant 0 : index
      %c0_12 = arith.constant 0 : index
      %13 = vector.load %arg8[%c0_11, %c0_12] : memref<256x128xf32, #tpu.memory_space<vmem>>, vector<256x128xf32>
      tpu.vector_store %arg8[%c0_11, %c0_12], %12 {strides = array<i32>} : memref<256x128xf32, #tpu.memory_space<vmem>>, vector<256x128xf32>,
    } else {
    }
    %c0 = arith.constant 0 : index
    %c0_1 = arith.constant 0 : index
    %3 = vector.load %arg8[%c0, %c0_1] : memref<256x128xf32, #tpu.memory_space<vmem>>, vector<256x128xf32>
    %c0_2 = arith.constant 0 : index
    %c0_3 = arith.constant 0 : index
    %4 = vector.load %arg3[%c0_2, %c0_3] : memref<256x64xbf16, #tpu.memory_space<vmem>>, vector<256x64xbf16>
    %c0_4 = arith.constant 0 : index
    %c0_5 = arith.constant 0 : index
    %5 = vector.load %arg4[%c0_4, %c0_5] : memref<64x128xbf16, #tpu.memory_space<vmem>>, vector<64x128xbf16>
    %cst = arith.constant dense<0.000000e+00> : vector<256x128xf32>
    %6 = tpu.matmul %4, %5, %cst {dimension_numbers = #tpu.dot_dimension_numbers<[1], [0], [0], [1], [0, 0, 1, 1], [], []>} : vector<256x64xbf16>, vector<64x128xbf16>, vector<256x128xf32> -> vector<256x128xf32>
    %7 = arith.addf %3, %6 : vector<256x128xf32>
    %c0_6 = arith.constant 0 : index
    %c0_7 = arith.constant 0 : index
    %8 = vector.load %arg8[%c0_6, %c0_7] : memref<256x128xf32, #tpu.memory_space<vmem>>, vector<256x128xf32>
    tpu.vector_store %arg8[%c0_6, %c0_7], %7 {strides = array<i32>} : memref<256x128xf32, #tpu.memory_space<vmem>>, vector<256x128xf32>,
    %c0_i32_8 = arith.constant 0 : i32
    %9 = arith.cmpi eq, %arg2, %c0_i32_8 : i32
    %10 = arith.extui %9 : i1 to i32
    %c0_i32_9 = arith.constant 0 : i32
    %11 = arith.cmpi ne, %10, %c0_i32_9 : i32
    scf.if %11 {
      %c0_10 = arith.constant 0 : index
      %c0_11 = arith.constant 0 : index
      %12 = vector.load %arg8[%c0_10, %c0_11] : memref<256x128xf32, #tpu.memory_space<vmem>>, vector<256x128xf32>
      %c0_12 = arith.constant 0 : index
      %c0_13 = arith.constant 0 : index
      %13 = vector.load %arg5[%c0_12, %c0_13] : memref<1x128xf32, #tpu.memory_space<vmem>>, vector<1x128xf32>
      %14 = vector.broadcast %13 : vector<1x128xf32> to vector<256x128xf32>
      %15 = arith.mulf %12, %14 : vector<256x128xf32>
      %c0_14 = arith.constant 0 : index
      %c0_15 = arith.constant 0 : index
      %16 = vector.load %arg6[%c0_14, %c0_15] : memref<1x128xf32, #tpu.memory_space<vmem>>, vector<1x128xf32>
      %17 = vector.broadcast %16 : vector<1x128xf32> to vector<256x128xf32>
      %18 = arith.addf %15, %17 : vector<256x128xf32>
      %19 = arith.truncf %18 : vector<256x128xf32> to vector<256x128xbf16>
      %c0_16 = arith.constant 0 : index
      %c0_17 = arith.constant 0 : index
      %20 = vector.load %arg7[%c0_16, %c0_17] : memref<256x128xbf16, #tpu.memory_space<vmem>>, vector<256x128xbf16>
      tpu.vector_store %arg7[%c0_16, %c0_17], %19 {strides = array<i32>} : memref<256x128xbf16, #tpu.memory_space<vmem>>, vector<256x128xbf16>,
    } else {
    }
    return
  }
  func.func @transform_0(%arg0: i32, %arg1: i32, %arg2: i32) -> (i32, i32) {
    %c0_i32 = arith.constant 0 : i32
    return %arg0, %arg2 : i32, i32
  }
  func.func @transform_1(%arg0: i32, %arg1: i32, %arg2: i32) -> (i32, i32) {
    %c0_i32 = arith.constant 0 : i32
    return %arg2, %arg1 : i32, i32
  }
  func.func @transform_2(%arg0: i32, %arg1: i32, %arg2: i32) -> (i32, i32) {
    %c0_i32 = arith.constant 0 : i32
    %c0_i32_0 = arith.constant 0 : i32
    return %c0_i32, %arg1 : i32, i32
  }
  func.func @transform_3(%arg0: i32, %arg1: i32, %arg2: i32) -> (i32, i32) {
    %c0_i32 = arith.constant 0 : i32
    %c0_i32_0 = arith.constant 0 : i32
    return %c0_i32, %arg1 : i32, i32
  }
  func.func @transform_4(%arg0: i32, %arg1: i32, %arg2: i32) -> (i32, i32) {
    %c0_i32 = arith.constant 0 : i32
    return %arg0, %arg1 : i32, i32
  }
}

module attributes {stable_mosaic.version = 11 : i64} {
  func.func @kernel(%arg0: i32, %arg1: i32, %arg2: i32, %arg3: memref<256x64xbf16, #tpu.memory_space<vmem>>, %arg4: memref<64x32xbf16, #tpu.memory_space<vmem>>, %arg5: memref<1x32xf32, #tpu.memory_space<vmem>>, %arg6: memref<1x32xf32, #tpu.memory_space<vmem>>, %arg7: memref<256x32xbf16, #tpu.memory_space<vmem>>, %arg8: memref<256x32xf32, #tpu.memory_space<vmem>>) attributes {dimension_semantics = [#tpu.dimension_semantics<parallel>, #tpu.dimension_semantics<parallel>, #tpu.dimension_semantics<arbitrary>], iteration_bounds = array<i64: 2, 1, 1>, scalar_prefetch = 0 : i64, scratch_operands = 1 : i64, tpu.core_type = #tpu.core_type<tc>, window_params = [{transform_indices = @transform_0, window_bounds = array<i64: 256, 64>}, {transform_indices = @transform_1, window_bounds = array<i64: 64, 32>}, {transform_indices = @transform_2, window_bounds = array<i64: 1, 32>}, {transform_indices = @transform_3, window_bounds = array<i64: 1, 32>}, {transform_indices = @transform_4, window_bounds = array<i64: 256, 32>}]} {
    %c0_i32 = arith.constant 0 : i32
    %0 = arith.cmpi eq, %arg2, %c0_i32 : i32
    %1 = arith.extui %0 : i1 to i32
    %c0_i32_0 = arith.constant 0 : i32
    %2 = arith.cmpi ne, %1, %c0_i32_0 : i32
    scf.if %2 {
      %cst_10 = arith.constant 0.000000e+00 : f32
      %12 = vector.broadcast %cst_10 : f32 to vector<256x32xf32>
      %c0_11 = arith.constant 0 : index
      %c0_12 = arith.constant 0 : index
      %13 = vector.load %arg8[%c0_11, %c0_12] : memref<256x32xf32, #tpu.memory_space<vmem>>, vector<256x32xf32>
      tpu.vector_store %arg8[%c0_11, %c0_12], %12 {strides = array<i32>} : memref<256x32xf32, #tpu.memory_space<vmem>>, vector<256x32xf32>,
    } else {
    }
    %c0 = arith.constant 0 : index
    %c0_1 = arith.constant 0 : index
    %3 = vector.load %arg8[%c0, %c0_1] : memref<256x32xf32, #tpu.memory_space<vmem>>, vector<256x32xf32>
    %c0_2 = arith.constant 0 : index
    %c0_3 = arith.constant 0 : index
    %4 = vector.load %arg3[%c0_2, %c0_3] : memref<256x64xbf16, #tpu.memory_space<vmem>>, vector<256x64xbf16>
    %c0_4 = arith.constant 0 : index
    %c0_5 = arith.constant 0 : index
    %5 = vector.load %arg4[%c0_4, %c0_5] : memref<64x32xbf16, #tpu.memory_space<vmem>>, vector<64x32xbf16>
    %cst = arith.constant dense<0.000000e+00> : vector<256x32xf32>
    %6 = tpu.matmul %4, %5, %cst {dimension_numbers = #tpu.dot_dimension_numbers<[1], [0], [0], [1], [0, 0, 1, 1], [], []>} : vector<256x64xbf16>, vector<64x32xbf16>, vector<256x32xf32> -> vector<256x32xf32>
    %7 = arith.addf %3, %6 : vector<256x32xf32>
    %c0_6 = arith.constant 0 : index
    %c0_7 = arith.constant 0 : index
    %8 = vector.load %arg8[%c0_6, %c0_7] : memref<256x32xf32, #tpu.memory_space<vmem>>, vector<256x32xf32>
    tpu.vector_store %arg8[%c0_6, %c0_7], %7 {strides = array<i32>} : memref<256x32xf32, #tpu.memory_space<vmem>>, vector<256x32xf32>,
    %c0_i32_8 = arith.constant 0 : i32
    %9 = arith.cmpi eq, %arg2, %c0_i32_8 : i32
    %10 = arith.extui %9 : i1 to i32
    %c0_i32_9 = arith.constant 0 : i32
    %11 = arith.cmpi ne, %10, %c0_i32_9 : i32
    scf.if %11 {
      %c0_10 = arith.constant 0 : index
      %c0_11 = arith.constant 0 : index
      %12 = vector.load %arg8[%c0_10, %c0_11] : memref<256x32xf32, #tpu.memory_space<vmem>>, vector<256x32xf32>
      %c0_12 = arith.constant 0 : index
      %c0_13 = arith.constant 0 : index
      %13 = vector.load %arg5[%c0_12, %c0_13] : memref<1x32xf32, #tpu.memory_space<vmem>>, vector<1x32xf32>
      %14 = vector.broadcast %13 : vector<1x32xf32> to vector<256x32xf32>
      %15 = arith.mulf %12, %14 : vector<256x32xf32>
      %c0_14 = arith.constant 0 : index
      %c0_15 = arith.constant 0 : index
      %16 = vector.load %arg6[%c0_14, %c0_15] : memref<1x32xf32, #tpu.memory_space<vmem>>, vector<1x32xf32>
      %17 = vector.broadcast %16 : vector<1x32xf32> to vector<256x32xf32>
      %18 = arith.addf %15, %17 : vector<256x32xf32>
      %cst_16 = arith.constant 0.000000e+00 : f32
      %19 = vector.broadcast %cst_16 : f32 to vector<256x32xf32>
      %20 = arith.maximumf %18, %19 : vector<256x32xf32>
      %21 = arith.truncf %20 : vector<256x32xf32> to vector<256x32xbf16>
      %c0_17 = arith.constant 0 : index
      %c0_18 = arith.constant 0 : index
      %22 = vector.load %arg7[%c0_17, %c0_18] : memref<256x32xbf16, #tpu.memory_space<vmem>>, vector<256x32xbf16>
      tpu.vector_store %arg7[%c0_17, %c0_18], %21 {strides = array<i32>} : memref<256x32xbf16, #tpu.memory_space<vmem>>, vector<256x32xbf16>,
    } else {
    }
    return
  }
  func.func @transform_0(%arg0: i32, %arg1: i32, %arg2: i32) -> (i32, i32) {
    %c0_i32 = arith.constant 0 : i32
    return %arg0, %arg2 : i32, i32
  }
  func.func @transform_1(%arg0: i32, %arg1: i32, %arg2: i32) -> (i32, i32) {
    %c0_i32 = arith.constant 0 : i32
    return %arg2, %arg1 : i32, i32
  }
  func.func @transform_2(%arg0: i32, %arg1: i32, %arg2: i32) -> (i32, i32) {
    %c0_i32 = arith.constant 0 : i32
    %c0_i32_0 = arith.constant 0 : i32
    return %c0_i32, %arg1 : i32, i32
  }
  func.func @transform_3(%arg0: i32, %arg1: i32, %arg2: i32) -> (i32, i32) {
    %c0_i32 = arith.constant 0 : i32
    %c0_i32_0 = arith.constant 0 : i32
    return %c0_i32, %arg1 : i32, i32
  }
  func.func @transform_4(%arg0: i32, %arg1: i32, %arg2: i32) -> (i32, i32) {
    %c0_i32 = arith.constant 0 : i32
    return %arg0, %arg1 : i32, i32
  }
}

module attributes {stable_mosaic.version = 11 : i64} {
  func.func @_conv3x3_bn_relu_kernel(%arg0: i32, %arg1: memref<1x18x18x32xbf16, #tpu.memory_space<vmem>>, %arg2: memref<3x3x32x32xbf16, #tpu.memory_space<vmem>>, %arg3: memref<1x32xf32, #tpu.memory_space<vmem>>, %arg4: memref<1x32xf32, #tpu.memory_space<vmem>>, %arg5: memref<1x256x32xbf16, #tpu.memory_space<vmem>>) attributes {dimension_semantics = [#tpu.dimension_semantics<parallel>], iteration_bounds = array<i64: 2>, scalar_prefetch = 0 : i64, scratch_operands = 0 : i64, tpu.core_type = #tpu.core_type<tc>, window_params = [{transform_indices = @transform_0, window_bounds = array<i64: 1, 18, 18, 32>}, {pipeline_mode = #tpu.pipeline_mode<synchronous>, transform_indices = @transform_1, window_bounds = array<i64: 3, 3, 32, 32>}, {pipeline_mode = #tpu.pipeline_mode<synchronous>, transform_indices = @transform_2, window_bounds = array<i64: 1, 32>}, {pipeline_mode = #tpu.pipeline_mode<synchronous>, transform_indices = @transform_3, window_bounds = array<i64: 1, 32>}, {transform_indices = @transform_4, window_bounds = array<i64: 1, 256, 32>}]} {
    %cst = arith.constant 0.000000e+00 : f32
    %0 = vector.broadcast %cst : f32 to vector<256x32xf32>
    %c0 = arith.constant 0 : index
    %c0_0 = arith.constant 0 : index
    %c0_1 = arith.constant 0 : index
    %c0_2 = arith.constant 0 : index
    %1 = vector.load %arg1[%c0, %c0_0, %c0_1, %c0_2] : memref<1x18x18x32xbf16, #tpu.memory_space<vmem>>, vector<1x16x16x32xbf16>
    %2 = vector.shape_cast %1 : vector<1x16x16x32xbf16> to vector<16x16x32xbf16>
    %3 = vector.shape_cast %2 : vector<16x16x32xbf16> to vector<256x32xbf16>
    %c0_3 = arith.constant 0 : index
    %c0_4 = arith.constant 0 : index
    %c0_5 = arith.constant 0 : index
    %c0_6 = arith.constant 0 : index
    %4 = vector.load %arg2[%c0_3, %c0_4, %c0_5, %c0_6] : memref<3x3x32x32xbf16, #tpu.memory_space<vmem>>, vector<1x1x32x32xbf16>
    %5 = vector.shape_cast %4 : vector<1x1x32x32xbf16> to vector<32x32xbf16>
    %cst_7 = arith.constant dense<0.000000e+00> : vector<256x32xf32>
    %6 = tpu.matmul %3, %5, %cst_7 {dimension_numbers = #tpu.dot_dimension_numbers<[1], [0], [0], [1], [0, 0, 1, 1], [], []>} : vector<256x32xbf16>, vector<32x32xbf16>, vector<256x32xf32> -> vector<256x32xf32>
    %7 = arith.addf %0, %6 : vector<256x32xf32>
    %c0_8 = arith.constant 0 : index
    %c0_9 = arith.constant 0 : index
    %c1 = arith.constant 1 : index
    %c0_10 = arith.constant 0 : index
    %8 = vector.load %arg1[%c0_8, %c0_9, %c1, %c0_10] : memref<1x18x18x32xbf16, #tpu.memory_space<vmem>>, vector<1x16x16x32xbf16>
    %9 = vector.shape_cast %8 : vector<1x16x16x32xbf16> to vector<16x16x32xbf16>
    %10 = vector.shape_cast %9 : vector<16x16x32xbf16> to vector<256x32xbf16>
    %c0_11 = arith.constant 0 : index
    %c1_12 = arith.constant 1 : index
    %c0_13 = arith.constant 0 : index
    %c0_14 = arith.constant 0 : index
    %11 = vector.load %arg2[%c0_11, %c1_12, %c0_13, %c0_14] : memref<3x3x32x32xbf16, #tpu.memory_space<vmem>>, vector<1x1x32x32xbf16>
    %12 = vector.shape_cast %11 : vector<1x1x32x32xbf16> to vector<32x32xbf16>
    %cst_15 = arith.constant dense<0.000000e+00> : vector<256x32xf32>
    %13 = tpu.matmul %10, %12, %cst_15 {dimension_numbers = #tpu.dot_dimension_numbers<[1], [0], [0], [1], [0, 0, 1, 1], [], []>} : vector<256x32xbf16>, vector<32x32xbf16>, vector<256x32xf32> -> vector<256x32xf32>
    %14 = arith.addf %7, %13 : vector<256x32xf32>
    %c0_16 = arith.constant 0 : index
    %c0_17 = arith.constant 0 : index
    %c2 = arith.constant 2 : index
    %c0_18 = arith.constant 0 : index
    %15 = vector.load %arg1[%c0_16, %c0_17, %c2, %c0_18] : memref<1x18x18x32xbf16, #tpu.memory_space<vmem>>, vector<1x16x16x32xbf16>
    %16 = vector.shape_cast %15 : vector<1x16x16x32xbf16> to vector<16x16x32xbf16>
    %17 = vector.shape_cast %16 : vector<16x16x32xbf16> to vector<256x32xbf16>
    %c0_19 = arith.constant 0 : index
    %c2_20 = arith.constant 2 : index
    %c0_21 = arith.constant 0 : index
    %c0_22 = arith.constant 0 : index
    %18 = vector.load %arg2[%c0_19, %c2_20, %c0_21, %c0_22] : memref<3x3x32x32xbf16, #tpu.memory_space<vmem>>, vector<1x1x32x32xbf16>
    %19 = vector.shape_cast %18 : vector<1x1x32x32xbf16> to vector<32x32xbf16>
    %cst_23 = arith.constant dense<0.000000e+00> : vector<256x32xf32>
    %20 = tpu.matmul %17, %19, %cst_23 {dimension_numbers = #tpu.dot_dimension_numbers<[1], [0], [0], [1], [0, 0, 1, 1], [], []>} : vector<256x32xbf16>, vector<32x32xbf16>, vector<256x32xf32> -> vector<256x32xf32>
    %21 = arith.addf %14, %20 : vector<256x32xf32>
    %c0_24 = arith.constant 0 : index
    %c1_25 = arith.constant 1 : index
    %c0_26 = arith.constant 0 : index
    %c0_27 = arith.constant 0 : index
    %22 = vector.load %arg1[%c0_24, %c1_25, %c0_26, %c0_27] : memref<1x18x18x32xbf16, #tpu.memory_space<vmem>>, vector<1x16x16x32xbf16>
    %23 = vector.shape_cast %22 : vector<1x16x16x32xbf16> to vector<16x16x32xbf16>
    %24 = vector.shape_cast %23 : vector<16x16x32xbf16> to vector<256x32xbf16>
    %c1_28 = arith.constant 1 : index
    %c0_29 = arith.constant 0 : index
    %c0_30 = arith.constant 0 : index
    %c0_31 = arith.constant 0 : index
    %25 = vector.load %arg2[%c1_28, %c0_29, %c0_30, %c0_31] : memref<3x3x32x32xbf16, #tpu.memory_space<vmem>>, vector<1x1x32x32xbf16>
    %26 = vector.shape_cast %25 : vector<1x1x32x32xbf16> to vector<32x32xbf16>
    %cst_32 = arith.constant dense<0.000000e+00> : vector<256x32xf32>
    %27 = tpu.matmul %24, %26, %cst_32 {dimension_numbers = #tpu.dot_dimension_numbers<[1], [0], [0], [1], [0, 0, 1, 1], [], []>} : vector<256x32xbf16>, vector<32x32xbf16>, vector<256x32xf32> -> vector<256x32xf32>
    %28 = arith.addf %21, %27 : vector<256x32xf32>
    %c0_33 = arith.constant 0 : index
    %c1_34 = arith.constant 1 : index
    %c1_35 = arith.constant 1 : index
    %c0_36 = arith.constant 0 : index
    %29 = vector.load %arg1[%c0_33, %c1_34, %c1_35, %c0_36] : memref<1x18x18x32xbf16, #tpu.memory_space<vmem>>, vector<1x16x16x32xbf16>
    %30 = vector.shape_cast %29 : vector<1x16x16x32xbf16> to vector<16x16x32xbf16>
    %31 = vector.shape_cast %30 : vector<16x16x32xbf16> to vector<256x32xbf16>
    %c1_37 = arith.constant 1 : index
    %c1_38 = arith.constant 1 : index
    %c0_39 = arith.constant 0 : index
    %c0_40 = arith.constant 0 : index
    %32 = vector.load %arg2[%c1_37, %c1_38, %c0_39, %c0_40] : memref<3x3x32x32xbf16, #tpu.memory_space<vmem>>, vector<1x1x32x32xbf16>
    %33 = vector.shape_cast %32 : vector<1x1x32x32xbf16> to vector<32x32xbf16>
    %cst_41 = arith.constant dense<0.000000e+00> : vector<256x32xf32>
    %34 = tpu.matmul %31, %33, %cst_41 {dimension_numbers = #tpu.dot_dimension_numbers<[1], [0], [0], [1], [0, 0, 1, 1], [], []>} : vector<256x32xbf16>, vector<32x32xbf16>, vector<256x32xf32> -> vector<256x32xf32>
    %35 = arith.addf %28, %34 : vector<256x32xf32>
    %c0_42 = arith.constant 0 : index
    %c1_43 = arith.constant 1 : index
    %c2_44 = arith.constant 2 : index
    %c0_45 = arith.constant 0 : index
    %36 = vector.load %arg1[%c0_42, %c1_43, %c2_44, %c0_45] : memref<1x18x18x32xbf16, #tpu.memory_space<vmem>>, vector<1x16x16x32xbf16>
    %37 = vector.shape_cast %36 : vector<1x16x16x32xbf16> to vector<16x16x32xbf16>
    %38 = vector.shape_cast %37 : vector<16x16x32xbf16> to vector<256x32xbf16>
    %c1_46 = arith.constant 1 : index
    %c2_47 = arith.constant 2 : index
    %c0_48 = arith.constant 0 : index
    %c0_49 = arith.constant 0 : index
    %39 = vector.load %arg2[%c1_46, %c2_47, %c0_48, %c0_49] : memref<3x3x32x32xbf16, #tpu.memory_space<vmem>>, vector<1x1x32x32xbf16>
    %40 = vector.shape_cast %39 : vector<1x1x32x32xbf16> to vector<32x32xbf16>
    %cst_50 = arith.constant dense<0.000000e+00> : vector<256x32xf32>
    %41 = tpu.matmul %38, %40, %cst_50 {dimension_numbers = #tpu.dot_dimension_numbers<[1], [0], [0], [1], [0, 0, 1, 1], [], []>} : vector<256x32xbf16>, vector<32x32xbf16>, vector<256x32xf32> -> vector<256x32xf32>
    %42 = arith.addf %35, %41 : vector<256x32xf32>
    %c0_51 = arith.constant 0 : index
    %c2_52 = arith.constant 2 : index
    %c0_53 = arith.constant 0 : index
    %c0_54 = arith.constant 0 : index
    %43 = vector.load %arg1[%c0_51, %c2_52, %c0_53, %c0_54] : memref<1x18x18x32xbf16, #tpu.memory_space<vmem>>, vector<1x16x16x32xbf16>
    %44 = vector.shape_cast %43 : vector<1x16x16x32xbf16> to vector<16x16x32xbf16>
    %45 = vector.shape_cast %44 : vector<16x16x32xbf16> to vector<256x32xbf16>
    %c2_55 = arith.constant 2 : index
    %c0_56 = arith.constant 0 : index
    %c0_57 = arith.constant 0 : index
    %c0_58 = arith.constant 0 : index
    %46 = vector.load %arg2[%c2_55, %c0_56, %c0_57, %c0_58] : memref<3x3x32x32xbf16, #tpu.memory_space<vmem>>, vector<1x1x32x32xbf16>
    %47 = vector.shape_cast %46 : vector<1x1x32x32xbf16> to vector<32x32xbf16>
    %cst_59 = arith.constant dense<0.000000e+00> : vector<256x32xf32>
    %48 = tpu.matmul %45, %47, %cst_59 {dimension_numbers = #tpu.dot_dimension_numbers<[1], [0], [0], [1], [0, 0, 1, 1], [], []>} : vector<256x32xbf16>, vector<32x32xbf16>, vector<256x32xf32> -> vector<256x32xf32>
    %49 = arith.addf %42, %48 : vector<256x32xf32>
    %c0_60 = arith.constant 0 : index
    %c2_61 = arith.constant 2 : index
    %c1_62 = arith.constant 1 : index
    %c0_63 = arith.constant 0 : index
    %50 = vector.load %arg1[%c0_60, %c2_61, %c1_62, %c0_63] : memref<1x18x18x32xbf16, #tpu.memory_space<vmem>>, vector<1x16x16x32xbf16>
    %51 = vector.shape_cast %50 : vector<1x16x16x32xbf16> to vector<16x16x32xbf16>
    %52 = vector.shape_cast %51 : vector<16x16x32xbf16> to vector<256x32xbf16>
    %c2_64 = arith.constant 2 : index
    %c1_65 = arith.constant 1 : index
    %c0_66 = arith.constant 0 : index
    %c0_67 = arith.constant 0 : index
    %53 = vector.load %arg2[%c2_64, %c1_65, %c0_66, %c0_67] : memref<3x3x32x32xbf16, #tpu.memory_space<vmem>>, vector<1x1x32x32xbf16>
    %54 = vector.shape_cast %53 : vector<1x1x32x32xbf16> to vector<32x32xbf16>
    %cst_68 = arith.constant dense<0.000000e+00> : vector<256x32xf32>
    %55 = tpu.matmul %52, %54, %cst_68 {dimension_numbers = #tpu.dot_dimension_numbers<[1], [0], [0], [1], [0, 0, 1, 1], [], []>} : vector<256x32xbf16>, vector<32x32xbf16>, vector<256x32xf32> -> vector<256x32xf32>
    %56 = arith.addf %49, %55 : vector<256x32xf32>
    %c0_69 = arith.constant 0 : index
    %c2_70 = arith.constant 2 : index
    %c2_71 = arith.constant 2 : index
    %c0_72 = arith.constant 0 : index
    %57 = vector.load %arg1[%c0_69, %c2_70, %c2_71, %c0_72] : memref<1x18x18x32xbf16, #tpu.memory_space<vmem>>, vector<1x16x16x32xbf16>
    %58 = vector.shape_cast %57 : vector<1x16x16x32xbf16> to vector<16x16x32xbf16>
    %59 = vector.shape_cast %58 : vector<16x16x32xbf16> to vector<256x32xbf16>
    %c2_73 = arith.constant 2 : index
    %c2_74 = arith.constant 2 : index
    %c0_75 = arith.constant 0 : index
    %c0_76 = arith.constant 0 : index
    %60 = vector.load %arg2[%c2_73, %c2_74, %c0_75, %c0_76] : memref<3x3x32x32xbf16, #tpu.memory_space<vmem>>, vector<1x1x32x32xbf16>
    %61 = vector.shape_cast %60 : vector<1x1x32x32xbf16> to vector<32x32xbf16>
    %cst_77 = arith.constant dense<0.000000e+00> : vector<256x32xf32>
    %62 = tpu.matmul %59, %61, %cst_77 {dimension_numbers = #tpu.dot_dimension_numbers<[1], [0], [0], [1], [0, 0, 1, 1], [], []>} : vector<256x32xbf16>, vector<32x32xbf16>, vector<256x32xf32> -> vector<256x32xf32>
    %63 = arith.addf %56, %62 : vector<256x32xf32>
    %c0_78 = arith.constant 0 : index
    %c0_79 = arith.constant 0 : index
    %64 = vector.load %arg3[%c0_78, %c0_79] : memref<1x32xf32, #tpu.memory_space<vmem>>, vector<1x32xf32>
    %65 = vector.broadcast %64 : vector<1x32xf32> to vector<256x32xf32>
    %66 = arith.mulf %63, %65 : vector<256x32xf32>
    %c0_80 = arith.constant 0 : index
    %c0_81 = arith.constant 0 : index
    %67 = vector.load %arg4[%c0_80, %c0_81] : memref<1x32xf32, #tpu.memory_space<vmem>>, vector<1x32xf32>
    %68 = vector.broadcast %67 : vector<1x32xf32> to vector<256x32xf32>
    %69 = arith.addf %66, %68 : vector<256x32xf32>
    %cst_82 = arith.constant 0.000000e+00 : f32
    %70 = vector.broadcast %cst_82 : f32 to vector<256x32xf32>
    %71 = arith.maximumf %69, %70 : vector<256x32xf32>
    %72 = arith.truncf %71 : vector<256x32xf32> to vector<256x32xbf16>
    %c0_83 = arith.constant 0 : index
    %c0_84 = arith.constant 0 : index
    %c0_85 = arith.constant 0 : index
    %73 = vector.load %arg5[%c0_83, %c0_84, %c0_85] : memref<1x256x32xbf16, #tpu.memory_space<vmem>>, vector<1x256x32xbf16>
    %74 = vector.shape_cast %73 : vector<1x256x32xbf16> to vector<256x32xbf16>
    %75 = vector.shape_cast %72 : vector<256x32xbf16> to vector<1x256x32xbf16>
    tpu.vector_store %arg5[%c0_83, %c0_84, %c0_85], %75 {strides = array<i32>} : memref<1x256x32xbf16, #tpu.memory_space<vmem>>, vector<1x256x32xbf16>,
    return
  }
  func.func @transform_0(%arg0: i32) -> (i32, i32, i32, i32) {
    %c0_i32 = arith.constant 0 : i32
    %c0_i32_0 = arith.constant 0 : i32
    %c0_i32_1 = arith.constant 0 : i32
    %c0_i32_2 = arith.constant 0 : i32
    return %arg0, %c0_i32, %c0_i32_0, %c0_i32_1 : i32, i32, i32, i32
  }
  func.func @transform_1(%arg0: i32) -> (i32, i32, i32, i32) {
    %c0_i32 = arith.constant 0 : i32
    %c0_i32_0 = arith.constant 0 : i32
    %c0_i32_1 = arith.constant 0 : i32
    %c0_i32_2 = arith.constant 0 : i32
    %c0_i32_3 = arith.constant 0 : i32
    return %c0_i32, %c0_i32_0, %c0_i32_1, %c0_i32_2 : i32, i32, i32, i32
  }
  func.func @transform_2(%arg0: i32) -> (i32, i32) {
    %c0_i32 = arith.constant 0 : i32
    %c0_i32_0 = arith.constant 0 : i32
    %c0_i32_1 = arith.constant 0 : i32
    return %c0_i32, %c0_i32_0 : i32, i32
  }
  func.func @transform_3(%arg0: i32) -> (i32, i32) {
    %c0_i32 = arith.constant 0 : i32
    %c0_i32_0 = arith.constant 0 : i32
    %c0_i32_1 = arith.constant 0 : i32
    return %c0_i32, %c0_i32_0 : i32, i32
  }
  func.func @transform_4(%arg0: i32) -> (i32, i32, i32) {
    %c0_i32 = arith.constant 0 : i32
    %c0_i32_0 = arith.constant 0 : i32
    %c0_i32_1 = arith.constant 0 : i32
    return %arg0, %c0_i32, %c0_i32_0 : i32, i32, i32
  }
}

module attributes {stable_mosaic.version = 11 : i64} {
  func.func @kernel(%arg0: i32, %arg1: i32, %arg2: i32, %arg3: memref<256x32xbf16, #tpu.memory_space<vmem>>, %arg4: memref<32x128xbf16, #tpu.memory_space<vmem>>, %arg5: memref<1x128xf32, #tpu.memory_space<vmem>>, %arg6: memref<1x128xf32, #tpu.memory_space<vmem>>, %arg7: memref<256x128xbf16, #tpu.memory_space<vmem>>, %arg8: memref<256x128xf32, #tpu.memory_space<vmem>>, %arg9: memref<256x128xf32, #tpu.memory_space<vmem>>) attributes {dimension_semantics = [#tpu.dimension_semantics<parallel>, #tpu.dimension_semantics<parallel>, #tpu.dimension_semantics<arbitrary>], iteration_bounds = array<i64: 2, 1, 1>, scalar_prefetch = 0 : i64, scratch_operands = 1 : i64, tpu.core_type = #tpu.core_type<tc>, window_params = [{transform_indices = @transform_0, window_bounds = array<i64: 256, 32>}, {transform_indices = @transform_1, window_bounds = array<i64: 32, 128>}, {transform_indices = @transform_2, window_bounds = array<i64: 1, 128>}, {transform_indices = @transform_3, window_bounds = array<i64: 1, 128>}, {transform_indices = @transform_4, window_bounds = array<i64: 256, 128>}, {transform_indices = @transform_5, window_bounds = array<i64: 256, 128>}]} {
    %c0_i32 = arith.constant 0 : i32
    %0 = arith.cmpi eq, %arg2, %c0_i32 : i32
    %1 = arith.extui %0 : i1 to i32
    %c0_i32_0 = arith.constant 0 : i32
    %2 = arith.cmpi ne, %1, %c0_i32_0 : i32
    scf.if %2 {
      %cst_10 = arith.constant 0.000000e+00 : f32
      %12 = vector.broadcast %cst_10 : f32 to vector<256x128xf32>
      %c0_11 = arith.constant 0 : index
      %c0_12 = arith.constant 0 : index
      %13 = vector.load %arg9[%c0_11, %c0_12] : memref<256x128xf32, #tpu.memory_space<vmem>>, vector<256x128xf32>
      tpu.vector_store %arg9[%c0_11, %c0_12], %12 {strides = array<i32>} : memref<256x128xf32, #tpu.memory_space<vmem>>, vector<256x128xf32>,
    } else {
    }
    %c0 = arith.constant 0 : index
    %c0_1 = arith.constant 0 : index
    %3 = vector.load %arg9[%c0, %c0_1] : memref<256x128xf32, #tpu.memory_space<vmem>>, vector<256x128xf32>
    %c0_2 = arith.constant 0 : index
    %c0_3 = arith.constant 0 : index
    %4 = vector.load %arg3[%c0_2, %c0_3] : memref<256x32xbf16, #tpu.memory_space<vmem>>, vector<256x32xbf16>
    %c0_4 = arith.constant 0 : index
    %c0_5 = arith.constant 0 : index
    %5 = vector.load %arg4[%c0_4, %c0_5] : memref<32x128xbf16, #tpu.memory_space<vmem>>, vector<32x128xbf16>
    %cst = arith.constant dense<0.000000e+00> : vector<256x128xf32>
    %6 = tpu.matmul %4, %5, %cst {dimension_numbers = #tpu.dot_dimension_numbers<[1], [0], [0], [1], [0, 0, 1, 1], [], []>} : vector<256x32xbf16>, vector<32x128xbf16>, vector<256x128xf32> -> vector<256x128xf32>
    %7 = arith.addf %3, %6 : vector<256x128xf32>
    %c0_6 = arith.constant 0 : index
    %c0_7 = arith.constant 0 : index
    %8 = vector.load %arg9[%c0_6, %c0_7] : memref<256x128xf32, #tpu.memory_space<vmem>>, vector<256x128xf32>
    tpu.vector_store %arg9[%c0_6, %c0_7], %7 {strides = array<i32>} : memref<256x128xf32, #tpu.memory_space<vmem>>, vector<256x128xf32>,
    %c0_i32_8 = arith.constant 0 : i32
    %9 = arith.cmpi eq, %arg2, %c0_i32_8 : i32
    %10 = arith.extui %9 : i1 to i32
    %c0_i32_9 = arith.constant 0 : i32
    %11 = arith.cmpi ne, %10, %c0_i32_9 : i32
    scf.if %11 {
      %c0_10 = arith.constant 0 : index
      %c0_11 = arith.constant 0 : index
      %12 = vector.load %arg9[%c0_10, %c0_11] : memref<256x128xf32, #tpu.memory_space<vmem>>, vector<256x128xf32>
      %c0_12 = arith.constant 0 : index
      %c0_13 = arith.constant 0 : index
      %13 = vector.load %arg7[%c0_12, %c0_13] : memref<256x128xbf16, #tpu.memory_space<vmem>>, vector<256x128xbf16>
      %c0_14 = arith.constant 0 : index
      %c0_15 = arith.constant 0 : index
      %14 = vector.load %arg5[%c0_14, %c0_15] : memref<1x128xf32, #tpu.memory_space<vmem>>, vector<1x128xf32>
      %15 = vector.broadcast %14 : vector<1x128xf32> to vector<256x128xf32>
      %16 = arith.mulf %12, %15 : vector<256x128xf32>
      %c0_16 = arith.constant 0 : index
      %c0_17 = arith.constant 0 : index
      %17 = vector.load %arg6[%c0_16, %c0_17] : memref<1x128xf32, #tpu.memory_space<vmem>>, vector<1x128xf32>
      %18 = vector.broadcast %17 : vector<1x128xf32> to vector<256x128xf32>
      %19 = arith.addf %16, %18 : vector<256x128xf32>
      %20 = arith.extf %13 : vector<256x128xbf16> to vector<256x128xf32>
      %21 = arith.addf %19, %20 : vector<256x128xf32>
      %cst_18 = arith.constant 0.000000e+00 : f32
      %22 = vector.broadcast %cst_18 : f32 to vector<256x128xf32>
      %23 = arith.maximumf %21, %22 : vector<256x128xf32>
      %c0_19 = arith.constant 0 : index
      %c0_20 = arith.constant 0 : index
      %24 = vector.load %arg8[%c0_19, %c0_20] : memref<256x128xf32, #tpu.memory_space<vmem>>, vector<256x128xf32>
      tpu.vector_store %arg8[%c0_19, %c0_20], %23 {strides = array<i32>} : memref<256x128xf32, #tpu.memory_space<vmem>>, vector<256x128xf32>,
    } else {
    }
    return
  }
  func.func @transform_0(%arg0: i32, %arg1: i32, %arg2: i32) -> (i32, i32) {
    %c0_i32 = arith.constant 0 : i32
    return %arg0, %arg2 : i32, i32
  }
  func.func @transform_1(%arg0: i32, %arg1: i32, %arg2: i32) -> (i32, i32) {
    %c0_i32 = arith.constant 0 : i32
    return %arg2, %arg1 : i32, i32
  }
  func.func @transform_2(%arg0: i32, %arg1: i32, %arg2: i32) -> (i32, i32) {
    %c0_i32 = arith.constant 0 : i32
    %c0_i32_0 = arith.constant 0 : i32
    return %c0_i32, %arg1 : i32, i32
  }
  func.func @transform_3(%arg0: i32, %arg1: i32, %arg2: i32) -> (i32, i32) {
    %c0_i32 = arith.constant 0 : i32
    %c0_i32_0 = arith.constant 0 : i32
    return %c0_i32, %arg1 : i32, i32
  }
  func.func @transform_4(%arg0: i32, %arg1: i32, %arg2: i32) -> (i32, i32) {
    %c0_i32 = arith.constant 0 : i32
    return %arg0, %arg1 : i32, i32
  }
  func.func @transform_5(%arg0: i32, %arg1: i32, %arg2: i32) -> (i32, i32) {
    %c0_i32 = arith.constant 0 : i32
    return %arg0, %arg1 : i32, i32
  }
}

</mosaic_0001>

<llo_original>
// kernel: bottleneck_forward.6
$region0: #{bottleneck_forward.6}
  #allocation0 [shape = 'u32[]', space=smem, size = 0x4, offset = 0x4, fixed_abs, tag = 'smem constant byte address 0x4 - core index']
  #allocation1 [shape = 'u32[144,128]{1,0:T(1,128)}', space=vmem, size = 0x12000, scoped, tag = 'internal scratch']
  #allocation2 [shape = 'f32[256,128]{1,0:T(8,128)}', space=vmem, size = 0x20000, scoped, tag = 'scratch operand']
  %s0 = inlined_call_operand.vmem [shape: bf16[512,64], index: 0, kind: input, shape index: {}]
  %s1 = inlined_call_operand.vmem [shape: bf16[64,128], index: 1, kind: input, shape index: {}]
  %s2 = inlined_call_operand.vmem [shape: f32[1,128], index: 2, kind: input, shape index: {}]
  %s3 = inlined_call_operand.vmem [shape: f32[1,128], index: 3, kind: input, shape index: {}]
  %s4 = inlined_call_operand.vmem [shape: bf16[512,128], index: 4, kind: output, shape index: {}]
  %s5 = sld [smem:[#allocation0]]
  $region57: #{bottleneck_forward.6} parent=0
    _
  %s7 = ssub.s32 1, %s5
  %s8 = scalar_select 0, %s7, %s5
  loop: start=0, step=1, limit=4
  $region2: #{bottleneck_forward.6} parent=0 // loop_pre_header
    _
  $region3: #{bottleneck_forward.6} parent=0 // loop_header
    %s10 = sphi 0, %s14
    %p11 = scmp.ge.s32.totalorder %s10, 4
    %s17 = sphi 0, %s36
    %s18 = sphi 0, %s32
    %s19 = sphi 0, %s28
    %s20 = sphi 0, %s17
    %s21 = sphi 0, %s18
    %s22 = sphi 0, %s19
    %s23 = sphi 0, %s20
    %s24 = sphi 0, %s21
    %s25 = sphi 0, %s22
    %s41 = sphi 0, %s43
    %s44 = sphi 0, %s41
    %s45 = sphi 0, %s44
    %s61 = sphi 0, %s45
    %s69 = sphi 0, %s71
    %s72 = sphi 0, %s69
    %s73 = sphi 0, %s72
    %s89 = sphi 0, %s73
    %s95 = sphi 0, %s97
    %s98 = sphi 0, %s95
    %s99 = sphi 0, %s98
    %s115 = sphi 0, %s99
    %s121 = sphi 0, %s123
    %s124 = sphi 0, %s121
    %s125 = sphi 0, %s124
    %s141 = sphi 0, %s125
    %s149 = sphi 0, %s151
    %s152 = sphi 0, %s149
    %s153 = sphi 0, %s152
    %s169 = sphi 0, %s153
  $region4: #{bottleneck_forward.6} parent=0 // loop_header_branch
    %13 = sbr.rel (%p11) target = $region8
  $region5: #{bottleneck_forward.6} parent=0 // loop_body
    %s15 = ssub.s32 %s10, 1
    %s16 = ssub.s32 %s10, 2
    %s26 = sadd.s32 1, %s19
    %p27 = scmp.ge.s32.totalorder %s26, 1
    %s28 = scalar_select %p27, 0, %s26
    %s29 = sadd.s32 1, %s18
    %s30 = scalar_select %p27, %s29, %s18
    %p31 = scmp.ge.s32.totalorder %s30, 1
    %s32 = scalar_select %p31, 0, %s30
    %s33 = sadd.s32 1, %s17
    %s34 = scalar_select %p31, %s33, %s17
    %p35 = scmp.ge.s32.totalorder %s34, 2
    %s36 = scalar_select %p35, 0, %s34
    %s37 = ssub.s32 %s17, %s36
    %s38 = ssub.s32 %s19, %s28
    %s39 = sor.u32 %s37, %s38
    %p40 = scmp.eq.s32.totalorder %s39, 0
    %s42 = sadd.s32 %s41, 1
    %s43 = scalar_select %p40, %s41, %s42
    %p46 = pneg %p40
    %p47 = scmp.eq.s32.totalorder %s10, 1
    %p48 = por %p46, %p47
    %p49 = scmp.ne.s32.totalorder %s41, %s44
    %p50 = scmp.eq.s32.totalorder %s10, 0
    %p51 = por %p49, %p50
    %p52 = scmp.ne.s32.totalorder %s41, %s44
    %p53 = scmp.eq.s32.totalorder %s15, 1
    %p54 = por %p52, %p53
    %p55 = scmp.ne.s32.totalorder %s44, %s45
    %p56 = scmp.eq.s32.totalorder %s15, 0
    %p57 = por %p55, %p56
    %p58 = scmp.ne.s32.totalorder %s44, %s45
    %p59 = scmp.eq.s32.totalorder %s16, 1
    %p60 = por %p58, %p59
    %p62 = scmp.ne.s32.totalorder %s45, %s61
    %p63 = scmp.eq.s32.totalorder %s16, 0
    %p64 = por %p62, %p63
    %s65 = ssub.s32 %s19, %s28
    %s66 = ssub.s32 %s18, %s32
    %s67 = sor.u32 %s65, %s66
    %p68 = scmp.eq.s32.totalorder %s67, 0
    %s70 = sadd.s32 %s69, 1
    %s71 = scalar_select %p68, %s69, %s70
    %p74 = pneg %p68
    %p75 = scmp.eq.s32.totalorder %s10, 1
    %p76 = por %p74, %p75
    %p77 = scmp.ne.s32.totalorder %s69, %s72
    %p78 = scmp.eq.s32.totalorder %s10, 0
    %p79 = por %p77, %p78
    %p80 = scmp.ne.s32.totalorder %s69, %s72
    %p81 = scmp.eq.s32.totalorder %s15, 1
    %p82 = por %p80, %p81
    %p83 = scmp.ne.s32.totalorder %s72, %s73
    %p84 = scmp.eq.s32.totalorder %s15, 0
    %p85 = por %p83, %p84
    %p86 = scmp.ne.s32.totalorder %s72, %s73
    %p87 = scmp.eq.s32.totalorder %s16, 1
    %p88 = por %p86, %p87
    %p90 = scmp.ne.s32.totalorder %s73, %s89
    %p91 = scmp.eq.s32.totalorder %s16, 0
    %p92 = por %p90, %p91
    %s93 = ssub.s32 %s18, %s32
    %p94 = scmp.eq.s32.totalorder %s93, 0
    %s96 = sadd.s32 %s95, 1
    %s97 = scalar_select %p94, %s95, %s96
    %p100 = pneg %p94
    %p101 = scmp.eq.s32.totalorder %s10, 1
    %p102 = por %p100, %p101
    %p103 = scmp.ne.s32.totalorder %s95, %s98
    %p104 = scmp.eq.s32.totalorder %s10, 0
    %p105 = por %p103, %p104
    %p106 = scmp.ne.s32.totalorder %s95, %s98
    %p107 = scmp.eq.s32.totalorder %s15, 1
    %p108 = por %p106, %p107
    %p109 = scmp.ne.s32.totalorder %s98, %s99
    %p110 = scmp.eq.s32.totalorder %s15, 0
    %p111 = por %p109, %p110
    %p112 = scmp.ne.s32.totalorder %s98, %s99
    %p113 = scmp.eq.s32.totalorder %s16, 1
    %p114 = por %p112, %p113
    %p116 = scmp.ne.s32.totalorder %s99, %s115
    %p117 = scmp.eq.s32.totalorder %s16, 0
    %p118 = por %p116, %p117
    %s119 = ssub.s32 %s18, %s32
    %p120 = scmp.eq.s32.totalorder %s119, 0
    %s122 = sadd.s32 %s121, 1
    %s123 = scalar_select %p120, %s121, %s122
    %p126 = pneg %p120
    %p127 = scmp.eq.s32.totalorder %s10, 1
    %p128 = por %p126, %p127
    %p129 = scmp.ne.s32.totalorder %s121, %s124
    %p130 = scmp.eq.s32.totalorder %s10, 0
    %p131 = por %p129, %p130
    %p132 = scmp.ne.s32.totalorder %s121, %s124
    %p133 = scmp.eq.s32.totalorder %s15, 1
    %p134 = por %p132, %p133
    %p135 = scmp.ne.s32.totalorder %s124, %s125
    %p136 = scmp.eq.s32.totalorder %s15, 0
    %p137 = por %p135, %p136
    %p138 = scmp.ne.s32.totalorder %s124, %s125
    %p139 = scmp.eq.s32.totalorder %s16, 1
    %p140 = por %p138, %p139
    %p142 = scmp.ne.s32.totalorder %s125, %s141
    %p143 = scmp.eq.s32.totalorder %s16, 0
    %p144 = por %p142, %p143
    %s145 = ssub.s32 %s17, %s36
    %s146 = ssub.s32 %s18, %s32
    %s147 = sor.u32 %s145, %s146
    %p148 = scmp.eq.s32.totalorder %s147, 0
    %s150 = sadd.s32 %s149, 1
    %s151 = scalar_select %p148, %s149, %s150
    %p154 = pneg %p148
    %p155 = scmp.eq.s32.totalorder %s10, 1
    %p156 = por %p154, %p155
    %p157 = scmp.ne.s32.totalorder %s149, %s152
    %p158 = scmp.eq.s32.totalorder %s10, 0
    %p159 = por %p157, %p158
    %p160 = scmp.ne.s32.totalorder %s149, %s152
    %p161 = scmp.eq.s32.totalorder %s15, 1
    %p162 = por %p160, %p161
    %p163 = scmp.ne.s32.totalorder %s152, %s153
    %p164 = scmp.eq.s32.totalorder %s15, 0
    %p165 = por %p163, %p164
    %p166 = scmp.ne.s32.totalorder %s152, %s153
    %p167 = scmp.eq.s32.totalorder %s16, 1
    %p168 = por %p166, %p167
    %p170 = scmp.ne.s32.totalorder %s153, %s169
    %p171 = scmp.eq.s32.totalorder %s16, 0
    %p172 = por %p170, %p171
    %p173 = scmp.le.s32.totalorder 1, %s10
    %p174 = scmp.lt.s32.totalorder %s10, 3
    %p175 = pnand %p173, %p174
    %p176 = pneg %p175
    // Predicated region
    $region9: #{bottleneck_forward.6} parent=5 // pred_check
      _
    $region10: #{bottleneck_forward.6} parent=5 // pred_check_branch
      %178 = sbr.rel (%p175) target = $region12
    $region11: #{bottleneck_forward.6} parent=5 // pred_region
      %s179 = ssub.s32 %s10, 1
      // Predicated region
      $region13: #{bottleneck_forward.6} parent=11 // pred_check
        %p180 = pneg %p85
      $region14: #{bottleneck_forward.6} parent=11 // pred_check_branch
        %182 = sbr.rel (%p180) target = $region16
      $region15: #{bottleneck_forward.6} parent=11 // pred_region
        %s183 = smul.u32 8, %s22
        %p184 = scmp.lt.s32.totalorder %s183, 7
        %s185 = scalar_select %p184, %s183, 7
        %p186 = scmp.lt.s32.totalorder %s21, 0
        %s187 = scalar_select %p186, %s21, 0
        %s188 = sadd.s32 %s187, %s185
        %s189 = smul.addr %s188, 4
        %s190 = scalar_lea.vmem %s1, %s189
        %s191 = smul.u32 8, %s22
      $region16: #{bottleneck_forward.6} parent=11 // pred_fallthru
        _
      // Predicated region
      $region17: #{bottleneck_forward.6} parent=11 // pred_check
        %p192 = pneg %p111
      $region18: #{bottleneck_forward.6} parent=11 // pred_check_branch
        %194 = sbr.rel (%p192) target = $region20
      $region19: #{bottleneck_forward.6} parent=11 // pred_region
        %p195 = scmp.lt.s32.totalorder %s21, 0
        %s196 = scalar_select %p195, %s21, 0
        %s197 = scalar_lea.vmem %s2, %s196
      $region20: #{bottleneck_forward.6} parent=11 // pred_fallthru
        _
      // Predicated region
      $region21: #{bottleneck_forward.6} parent=11 // pred_check
        %p198 = pneg %p137
      $region22: #{bottleneck_forward.6} parent=11 // pred_check_branch
        %200 = sbr.rel (%p198) target = $region24
      $region23: #{bottleneck_forward.6} parent=11 // pred_region
        %p201 = scmp.lt.s32.totalorder %s21, 0
        %s202 = scalar_select %p201, %s21, 0
        %s203 = scalar_lea.vmem %s3, %s202
      $region24: #{bottleneck_forward.6} parent=11 // pred_fallthru
        _
    $region12: #{bottleneck_forward.6} parent=5 // pred_fallthru
      _
    %p204 = scmp.lt.s32.totalorder %s10, 2
    // Predicated region
    $region25: #{bottleneck_forward.6} parent=5 // pred_check
      %p205 = pneg %p204
    $region26: #{bottleneck_forward.6} parent=5 // pred_check_branch
      %207 = sbr.rel (%p205) target = $region28
    $region27: #{bottleneck_forward.6} parent=5 // pred_region
      // Predicated region
      $region29: #{bottleneck_forward.6} parent=27 // pred_check
        %p208 = pneg %p51
      $region30: #{bottleneck_forward.6} parent=27 // pred_check_branch
        %210 = sbr.rel (%p208) target = $region32
      $region31: #{bottleneck_forward.6} parent=27 // pred_region
        %s211 = smul.u32 32, %s17
        %p212 = scmp.lt.s32.totalorder %s211, 63
        %s213 = scalar_select %p212, %s211, 63
        %p214 = scmp.lt.s32.totalorder %s19, 0
        %s215 = scalar_select %p214, %s19, 0
        %s216 = sadd.s32 %s215, %s213
        %s217 = smul.addr %s216, 4
        %s218 = scalar_lea.vmem %s0, %s217
        %s219 = smul.u32 32, %s17
      $region32: #{bottleneck_forward.6} parent=27 // pred_fallthru
        _
    $region28: #{bottleneck_forward.6} parent=5 // pred_fallthru
      _
    %p220 = scmp.le.s32.totalorder 1, %s10
    %p221 = scmp.lt.s32.totalorder %s10, 3
    %p222 = pnand %p220, %p221
    %p223 = pneg %p222
    // Predicated region
    $region33: #{bottleneck_forward.6} parent=5 // pred_check
      _
    $region34: #{bottleneck_forward.6} parent=5 // pred_check_branch
      %225 = sbr.rel (%p222) target = $region36
    $region35: #{bottleneck_forward.6} parent=5 // pred_region
      %s226 = ssub.s32 %s10, 1
      %s227 = smul.u32 32, %s20
      %p228 = scmp.lt.s32.totalorder %s227, 63
      %s229 = scalar_select %p228, %s227, 63
      %p230 = scmp.lt.s32.totalorder %s22, 0
      %s231 = scalar_select %p230, %s22, 0
      %s232 = sadd.s32 %s231, %s229
      %s233 = smul.addr %s232, 4
      %s234 = scalar_lea.vmem %s0, %s233
      %p235 = pneg %p57
      %p236 = pneg %p54
      %s237 = smul.u32 8, %s22
      %p238 = scmp.lt.s32.totalorder %s237, 7
      %s239 = scalar_select %p238, %s237, 7
      %p240 = scmp.lt.s32.totalorder %s21, 0
      %s241 = scalar_select %p240, %s21, 0
      %s242 = sadd.s32 %s241, %s239
      %s243 = smul.addr %s242, 4
      %s244 = scalar_lea.vmem %s1, %s243
      %p245 = pneg %p85
      %p246 = pneg %p82
      %p247 = scmp.lt.s32.totalorder %s21, 0
      %s248 = scalar_select %p247, %s21, 0
      %s249 = scalar_lea.vmem %s2, %s248
      %p250 = pneg %p111
      %p251 = pneg %p108
      %p252 = scmp.lt.s32.totalorder %s21, 0
      %s253 = scalar_select %p252, %s21, 0
      %s254 = scalar_lea.vmem %s3, %s253
      %p255 = pneg %p137
      %p256 = pneg %p134
      %p257 = pneg %p165
      %p258 = pneg %p162
      %s259 = smul.u32 32, %s20
      %p260 = scmp.lt.s32.totalorder %s259, 63
      %s261 = scalar_select %p260, %s259, 63
      %p262 = scmp.lt.s32.totalorder %s21, 0
      %s263 = scalar_select %p262, %s21, 0
      %s264 = sadd.s32 %s263, %s261
      %s265 = smul.addr %s264, 4
      %s266 = scalar_lea.vmem %s4, %s265
      %s267 = smul.u32 32, %s20
      %p268 = scmp.lt.s32.totalorder %s267, 63
      %s269 = scalar_select %p268, %s267, 63
      %p270 = scmp.lt.s32.totalorder %s22, 0
      %s271 = scalar_select %p270, %s22, 0
      %s272 = sadd.s32 %s271, %s269
      %s273 = smul.addr %s272, 4
      %s274 = scalar_lea.vmem %s0, %s273
      %s275 = smul.u32 32, %s20
      %s276 = smul.u32 8, %s22
      %p277 = scmp.lt.s32.totalorder %s276, 7
      %s278 = scalar_select %p277, %s276, 7
      %p279 = scmp.lt.s32.totalorder %s21, 0
      %s280 = scalar_select %p279, %s21, 0
      %s281 = sadd.s32 %s280, %s278
      %s282 = smul.addr %s281, 4
      %s283 = scalar_lea.vmem %s1, %s282
      %s284 = smul.u32 8, %s22
      %p285 = scmp.lt.s32.totalorder %s21, 0
      %s286 = scalar_select %p285, %s21, 0
      %s287 = scalar_lea.vmem %s2, %s286
      %p288 = scmp.lt.s32.totalorder %s21, 0
      %s289 = scalar_select %p288, %s21, 0
      %s290 = scalar_lea.vmem %s3, %s289
      %s291 = smul.u32 32, %s20
      %p292 = scmp.lt.s32.totalorder %s291, 63
      %s293 = scalar_select %p292, %s291, 63
      %p294 = scmp.lt.s32.totalorder %s21, 0
      %s295 = scalar_select %p294, %s21, 0
      %s296 = sadd.s32 %s295, %s293
      %s297 = smul.addr %s296, 4
      %s298 = scalar_lea.vmem %s4, %s297
      %s299 = smul.u32 32, %s20
      %p301 = scmp.eq.s32.totalorder %s22, 0
      // Predicated region
      $region37: #{bottleneck_forward.6} parent=35 // pred_check
        %p302 = pneg %p301
      $region38: #{bottleneck_forward.6} parent=35 // pred_check_branch
        %304 = sbr.rel (%p302) target = $region40
      $region39: #{bottleneck_forward.6} parent=35 // pred_region
        %305 = vst [vmem:[#allocation2] sm:$0xff] 0.0
        %306 = vst [vmem:[#allocation2 + $0x8] sm:$0xff] 0.0
        %307 = vst [vmem:[#allocation2 + $0x10] sm:$0xff] 0.0
        %308 = vst [vmem:[#allocation2 + $0x18] sm:$0xff] 0.0
        %309 = vst [vmem:[#allocation2 + $0x20] sm:$0xff] 0.0
        %310 = vst [vmem:[#allocation2 + $0x28] sm:$0xff] 0.0
        %311 = vst [vmem:[#allocation2 + $0x30] sm:$0xff] 0.0
        %312 = vst [vmem:[#allocation2 + $0x38] sm:$0xff] 0.0
        %313 = vst [vmem:[#allocation2 + $0x40] sm:$0xff] 0.0
        %314 = vst [vmem:[#allocation2 + $0x48] sm:$0xff] 0.0
        %315 = vst [vmem:[#allocation2 + $0x50] sm:$0xff] 0.0
        %316 = vst [vmem:[#allocation2 + $0x58] sm:$0xff] 0.0
        %317 = vst [vmem:[#allocation2 + $0x60] sm:$0xff] 0.0
        %318 = vst [vmem:[#allocation2 + $0x68] sm:$0xff] 0.0
        %319 = vst [vmem:[#allocation2 + $0x70] sm:$0xff] 0.0
        %320 = vst [vmem:[#allocation2 + $0x78] sm:$0xff] 0.0
        %321 = vst [vmem:[#allocation2 + $0x80] sm:$0xff] 0.0
        %322 = vst [vmem:[#allocation2 + $0x88] sm:$0xff] 0.0
        %323 = vst [vmem:[#allocation2 + $0x90] sm:$0xff] 0.0
        %324 = vst [vmem:[#allocation2 + $0x98] sm:$0xff] 0.0
        %325 = vst [vmem:[#allocation2 + $0xa0] sm:$0xff] 0.0
        %326 = vst [vmem:[#allocation2 + $0xa8] sm:$0xff] 0.0
        %327 = vst [vmem:[#allocation2 + $0xb0] sm:$0xff] 0.0
        %328 = vst [vmem:[#allocation2 + $0xb8] sm:$0xff] 0.0
        %329 = vst [vmem:[#allocation2 + $0xc0] sm:$0xff] 0.0
        %330 = vst [vmem:[#allocation2 + $0xc8] sm:$0xff] 0.0
        %331 = vst [vmem:[#allocation2 + $0xd0] sm:$0xff] 0.0
        %332 = vst [vmem:[#allocation2 + $0xd8] sm:$0xff] 0.0
        %333 = vst [vmem:[#allocation2 + $0xe0] sm:$0xff] 0.0
        %334 = vst [vmem:[#allocation2 + $0xe8] sm:$0xff] 0.0
        %335 = vst [vmem:[#allocation2 + $0xf0] sm:$0xff] 0.0
        %336 = vst [vmem:[#allocation2 + $0xf8] sm:$0xff] 0.0
      $region40: #{bottleneck_forward.6} parent=35 // pred_fallthru
        _
      %v337 = vld [vmem:[#allocation2] sm:$0xff]
      %v338 = vld [vmem:[#allocation2 + $0x8] sm:$0xff]
      %v339 = vld [vmem:[#allocation2 + $0x10] sm:$0xff]
      %v340 = vld [vmem:[#allocation2 + $0x18] sm:$0xff]
      %v341 = vld [vmem:[#allocation2 + $0x20] sm:$0xff]
      %v342 = vld [vmem:[#allocation2 + $0x28] sm:$0xff]
      %v343 = vld [vmem:[#allocation2 + $0x30] sm:$0xff]
      %v344 = vld [vmem:[#allocation2 + $0x38] sm:$0xff]
      %v345 = vld [vmem:[#allocation2 + $0x40] sm:$0xff]
      %v346 = vld [vmem:[#allocation2 + $0x48] sm:$0xff]
      %v347 = vld [vmem:[#allocation2 + $0x50] sm:$0xff]
      %v348 = vld [vmem:[#allocation2 + $0x58] sm:$0xff]
      %v349 = vld [vmem:[#allocation2 + $0x60] sm:$0xff]
      %v350 = vld [vmem:[#allocation2 + $0x68] sm:$0xff]
      %v351 = vld [vmem:[#allocation2 + $0x70] sm:$0xff]
      %v352 = vld [vmem:[#allocation2 + $0x78] sm:$0xff]
      %v353 = vld [vmem:[#allocation2 + $0x80] sm:$0xff]
      %v354 = vld [vmem:[#allocation2 + $0x88] sm:$0xff]
      %v355 = vld [vmem:[#allocation2 + $0x90] sm:$0xff]
      %v356 = vld [vmem:[#allocation2 + $0x98] sm:$0xff]
      %v357 = vld [vmem:[#allocation2 + $0xa0] sm:$0xff]
      %v358 = vld [vmem:[#allocation2 + $0xa8] sm:$0xff]
      %v359 = vld [vmem:[#allocation2 + $0xb0] sm:$0xff]
      %v360 = vld [vmem:[#allocation2 + $0xb8] sm:$0xff]
      %v361 = vld [vmem:[#allocation2 + $0xc0] sm:$0xff]
      %v362 = vld [vmem:[#allocation2 + $0xc8] sm:$0xff]
      %v363 = vld [vmem:[#allocation2 + $0xd0] sm:$0xff]
      %v364 = vld [vmem:[#allocation2 + $0xd8] sm:$0xff]
      %v365 = vld [vmem:[#allocation2 + $0xe0] sm:$0xff]
      %v366 = vld [vmem:[#allocation2 + $0xe8] sm:$0xff]
      %v367 = vld [vmem:[#allocation2 + $0xf0] sm:$0xff]
      %v368 = vld [vmem:[#allocation2 + $0xf8] sm:$0xff]
      %v369 = vld [vmem:[%s274] sm:$0xf]
      %v370 = vld [vmem:[%s274 + $0x4] sm:$0xf]
      %v371 = vld [vmem:[%s274 + $0x8] sm:$0xf]
      %v372 = vld [vmem:[%s274 + $0xc] sm:$0xf]
      %v373 = vld [vmem:[%s274 + $0x10] sm:$0xf]
      %v374 = vld [vmem:[%s274 + $0x14] sm:$0xf]
      %v375 = vld [vmem:[%s274 + $0x18] sm:$0xf]
      %v376 = vld [vmem:[%s274 + $0x1c] sm:$0xf]
      %v377 = vld [vmem:[%s274 + $0x20] sm:$0xf]
      %v378 = vld [vmem:[%s274 + $0x24] sm:$0xf]
      %v379 = vld [vmem:[%s274 + $0x28] sm:$0xf]
      %v380 = vld [vmem:[%s274 + $0x2c] sm:$0xf]
      %v381 = vld [vmem:[%s274 + $0x30] sm:$0xf]
      %v382 = vld [vmem:[%s274 + $0x34] sm:$0xf]
      %v383 = vld [vmem:[%s274 + $0x38] sm:$0xf]
      %v384 = vld [vmem:[%s274 + $0x3c] sm:$0xf]
      %v385 = vld [vmem:[%s274 + $0x40] sm:$0xf]
      %v386 = vld [vmem:[%s274 + $0x44] sm:$0xf]
      %v387 = vld [vmem:[%s274 + $0x48] sm:$0xf]
      %v388 = vld [vmem:[%s274 + $0x4c] sm:$0xf]
      %v389 = vld [vmem:[%s274 + $0x50] sm:$0xf]
      %v390 = vld [vmem:[%s274 + $0x54] sm:$0xf]
      %v391 = vld [vmem:[%s274 + $0x58] sm:$0xf]
      %v392 = vld [vmem:[%s274 + $0x5c] sm:$0xf]
      %v393 = vld [vmem:[%s274 + $0x60] sm:$0xf]
      %v394 = vld [vmem:[%s274 + $0x64] sm:$0xf]
      %v395 = vld [vmem:[%s274 + $0x68] sm:$0xf]
      %v396 = vld [vmem:[%s274 + $0x6c] sm:$0xf]
      %v397 = vld [vmem:[%s274 + $0x70] sm:$0xf]
      %v398 = vld [vmem:[%s274 + $0x74] sm:$0xf]
      %v399 = vld [vmem:[%s274 + $0x78] sm:$0xf]
      %v400 = vld [vmem:[%s274 + $0x7c] sm:$0xf]
      %v401 = vld [vmem:[%s283] sm:$0xf]
      %v402 = vld [vmem:[%s283 + $0x4] sm:$0xf]
      %v403 = vld [vmem:[%s283 + $0x8] sm:$0xf]
      %v404 = vld [vmem:[%s283 + $0xc] sm:$0xf]
      %v405 = vld [vmem:[%s283 + $0x10] sm:$0xf]
      %v406 = vld [vmem:[%s283 + $0x14] sm:$0xf]
      %v407 = vld [vmem:[%s283 + $0x18] sm:$0xf]
      %v408 = vld [vmem:[%s283 + $0x1c] sm:$0xf]
      %v441 = vunpack.c.l.b16 %v369
      %v442 = vunpack.c.l.b16 %v370
      %v443 = vunpack.c.l.b16 %v371
      %v444 = vunpack.c.l.b16 %v372
      %v445 = vunpack.c.l.b16 %v373
      %v446 = vunpack.c.l.b16 %v374
      %v447 = vunpack.c.l.b16 %v375
      %v448 = vunpack.c.l.b16 %v376
      %v449 = vunpack.c.l.b16 %v377
      %v450 = vunpack.c.l.b16 %v378
      %v451 = vunpack.c.l.b16 %v379
      %v452 = vunpack.c.l.b16 %v380
      %v453 = vunpack.c.l.b16 %v381
      %v454 = vunpack.c.l.b16 %v382
      %v455 = vunpack.c.l.b16 %v383
      %v456 = vunpack.c.l.b16 %v384
      %v457 = vunpack.c.l.b16 %v385
      %v458 = vunpack.c.l.b16 %v386
      %v459 = vunpack.c.l.b16 %v387
      %v460 = vunpack.c.l.b16 %v388
      %v461 = vunpack.c.l.b16 %v389
      %v462 = vunpack.c.l.b16 %v390
      %v463 = vunpack.c.l.b16 %v391
      %v464 = vunpack.c.l.b16 %v392
      %v465 = vunpack.c.l.b16 %v393
      %v466 = vunpack.c.l.b16 %v394
      %v467 = vunpack.c.l.b16 %v395
      %v468 = vunpack.c.l.b16 %v396
      %v469 = vunpack.c.l.b16 %v397
      %v470 = vunpack.c.l.b16 %v398
      %v471 = vunpack.c.l.b16 %v399
      %v472 = vunpack.c.l.b16 %v400
      %v473 = vpack.c.b16 %v442, %v441
      %v474 = vpack.c.b16 %v444, %v443
      %v475 = vpack.c.b16 %v446, %v445
      %v476 = vpack.c.b16 %v448, %v447
      %v477 = vpack.c.b16 %v450, %v449
      %v478 = vpack.c.b16 %v452, %v451
      %v479 = vpack.c.b16 %v454, %v453
      %v480 = vpack.c.b16 %v456, %v455
      %v481 = vpack.c.b16 %v458, %v457
      %v482 = vpack.c.b16 %v460, %v459
      %v483 = vpack.c.b16 %v462, %v461
      %v484 = vpack.c.b16 %v464, %v463
      %v485 = vpack.c.b16 %v466, %v465
      %v486 = vpack.c.b16 %v468, %v467
      %v487 = vpack.c.b16 %v470, %v469
      %v488 = vpack.c.b16 %v472, %v471
      %v497 = vunpack.c.l.b16 %v401
      %v498 = vunpack.c.l.b16 %v402
      %v499 = vunpack.c.l.b16 %v403
      %v500 = vunpack.c.l.b16 %v404
      %v501 = vunpack.c.l.b16 %v405
      %v502 = vunpack.c.l.b16 %v406
      %v503 = vunpack.c.l.b16 %v407
      %v504 = vunpack.c.l.b16 %v408
      %v505 = vpack.c.b16 %v498, %v497
      %v506 = vpack.c.b16 %v500, %v499
      %v507 = vpack.c.b16 %v502, %v501
      %v508 = vpack.c.b16 %v504, %v503
      %vm513 = vcmask 523264
      %v515 = vsel %vm513, %v473, 0
      %v518 = vsel %vm513, %v474, 0
      %v521 = vsel %vm513, %v475, 0
      %v524 = vsel %vm513, %v476, 0
      %v527 = vsel %vm513, %v477, 0
      %v530 = vsel %vm513, %v478, 0
      %v533 = vsel %vm513, %v479, 0
      %v536 = vsel %vm513, %v480, 0
      %v539 = vsel %vm513, %v481, 0
      %v542 = vsel %vm513, %v482, 0
      %v545 = vsel %vm513, %v483, 0
      %v548 = vsel %vm513, %v484, 0
      %v551 = vsel %vm513, %v485, 0
      %v554 = vsel %vm513, %v486, 0
      %v557 = vsel %vm513, %v487, 0
      %v560 = vsel %vm513, %v488, 0
      %562 = vmatprep.subr.bf16.mxu0 0
      %563 = vmatpush1.bf16.msra.mxu0 %v505
      %564 = vmatprep.subr.bf16.mxu0 0
      %565 = vmatpush1.bf16.msra.mxu0 %v506
      %566 = vmatprep.subr.bf16.mxu0 0
      %567 = vmatpush1.bf16.msra.mxu0 %v507
      %568 = vmatprep.subr.bf16.mxu0 0
      %569 = vmatpush1.bf16.msra.mxu0 %v508
      %570 = vmatprep.subr.bf16.mxu0 0
      %571 = vmatpush1.bf16.msra.mxu0 0
      %572 = vmatprep.subr.bf16.mxu0 0
      %573 = vmatpush1.bf16.msra.mxu0 0
      %574 = vmatprep.subr.bf16.mxu0 0
      %575 = vmatpush1.bf16.msra.mxu0 0
      %576 = vmatprep.subr.bf16.mxu0 0
      %577 = vmatpush1.bf16.msra.mxu0 0
      %578 = vmatprep.subr.bf16.mxu0 0
      %579 = vmatpush1.bf16.msra.mxu0 0
      %580 = vmatprep.subr.bf16.mxu0 0
      %581 = vmatpush1.bf16.msra.mxu0 0
      %582 = vmatprep.subr.bf16.mxu0 0
      %583 = vmatpush1.bf16.msra.mxu0 0
      %584 = vmatprep.subr.bf16.mxu0 0
      %585 = vmatpush1.bf16.msra.mxu0 0
      %586 = vmatprep.subr.bf16.mxu0 0
      %587 = vmatpush1.bf16.msra.mxu0 0
      %588 = vmatprep.subr.bf16.mxu0 0
      %589 = vmatpush1.bf16.msra.mxu0 0
      %590 = vmatprep.subr.bf16.mxu0 0
      %591 = vmatpush1.bf16.msra.mxu0 0
      %592 = vmatprep.subr.bf16.mxu0 0
      %593 = vmatpush1.bf16.msra.mxu0 0
      %594 = vmatprep.mubr.bf16.mxu0 0
      %595 = vmatmul.mubr.bf16.gmra.mrb[0].mxu0 %v515
      %v596 = vpop.f32.mrb[0].mxu0
      %v597 = vadd.f32 0.0, %v596
      %v598 = vpop.f32.mrb[0].mxu0
      %v599 = vpop.f32.mrb[0].mxu0
      %v600 = vadd.f32 0.0, %v599
      %v601 = vpop.f32.mrb[0].mxu0
      %602 = vmatprep.mubr.bf16.mxu0 0
      %603 = vmatmul.mubr.bf16.gmra.mrb[0].mxu0 %v518
      %v604 = vpop.f32.mrb[0].mxu0
      %v605 = vadd.f32 0.0, %v604
      %v606 = vpop.f32.mrb[0].mxu0
      %v607 = vpop.f32.mrb[0].mxu0
      %v608 = vadd.f32 0.0, %v607
      %v609 = vpop.f32.mrb[0].mxu0
      %610 = vmatprep.mubr.bf16.mxu0 0
      %611 = vmatmul.mubr.bf16.gmra.mrb[0].mxu0 %v521
      %v612 = vpop.f32.mrb[0].mxu0
      %v613 = vadd.f32 0.0, %v612
      %v614 = vpop.f32.mrb[0].mxu0
      %v615 = vpop.f32.mrb[0].mxu0
      %v616 = vadd.f32 0.0, %v615
      %v617 = vpop.f32.mrb[0].mxu0
      %618 = vmatprep.mubr.bf16.mxu0 0
      %619 = vmatmul.mubr.bf16.gmra.mrb[0].mxu0 %v524
      %v620 = vpop.f32.mrb[0].mxu0
      %v621 = vadd.f32 0.0, %v620
      %v622 = vpop.f32.mrb[0].mxu0
      %v623 = vpop.f32.mrb[0].mxu0
      %v624 = vadd.f32 0.0, %v623
      %v625 = vpop.f32.mrb[0].mxu0
      %626 = vmatprep.mubr.bf16.mxu0 0
      %627 = vmatmul.mubr.bf16.gmra.mrb[0].mxu0 %v527
      %v628 = vpop.f32.mrb[0].mxu0
      %v629 = vadd.f32 0.0, %v628
      %v630 = vpop.f32.mrb[0].mxu0
      %v631 = vpop.f32.mrb[0].mxu0
      %v632 = vadd.f32 0.0, %v631
      %v633 = vpop.f32.mrb[0].mxu0
      %634 = vmatprep.mubr.bf16.mxu0 0
      %635 = vmatmul.mubr.bf16.gmra.mrb[0].mxu0 %v530
      %v636 = vpop.f32.mrb[0].mxu0
      %v637 = vadd.f32 0.0, %v636
      %v638 = vpop.f32.mrb[0].mxu0
      %v639 = vpop.f32.mrb[0].mxu0
      %v640 = vadd.f32 0.0, %v639
      %v641 = vpop.f32.mrb[0].mxu0
      %642 = vmatprep.mubr.bf16.mxu0 0
      %643 = vmatmul.mubr.bf16.gmra.mrb[0].mxu0 %v533
      %v644 = vpop.f32.mrb[0].mxu0
      %v645 = vadd.f32 0.0, %v644
      %v646 = vpop.f32.mrb[0].mxu0
      %v647 = vpop.f32.mrb[0].mxu0
      %v648 = vadd.f32 0.0, %v647
      %v649 = vpop.f32.mrb[0].mxu0
      %650 = vmatprep.mubr.bf16.mxu0 0
      %651 = vmatmul.mubr.bf16.gmra.mrb[0].mxu0 %v536
      %v652 = vpop.f32.mrb[0].mxu0
      %v653 = vadd.f32 0.0, %v652
      %v654 = vpop.f32.mrb[0].mxu0
      %v655 = vpop.f32.mrb[0].mxu0
      %v656 = vadd.f32 0.0, %v655
      %v657 = vpop.f32.mrb[0].mxu0
      %658 = vmatprep.mubr.bf16.mxu0 0
      %659 = vmatmul.mubr.bf16.gmra.mrb[0].mxu0 %v539
      %v660 = vpop.f32.mrb[0].mxu0
      %v661 = vadd.f32 0.0, %v660
      %v662 = vpop.f32.mrb[0].mxu0
      %v663 = vpop.f32.mrb[0].mxu0
      %v664 = vadd.f32 0.0, %v663
      %v665 = vpop.f32.mrb[0].mxu0
      %666 = vmatprep.mubr.bf16.mxu0 0
      %667 = vmatmul.mubr.bf16.gmra.mrb[0].mxu0 %v542
      %v668 = vpop.f32.mrb[0].mxu0
      %v669 = vadd.f32 0.0, %v668
      %v670 = vpop.f32.mrb[0].mxu0
      %v671 = vpop.f32.mrb[0].mxu0
      %v672 = vadd.f32 0.0, %v671
      %v673 = vpop.f32.mrb[0].mxu0
      %674 = vmatprep.mubr.bf16.mxu0 0
      %675 = vmatmul.mubr.bf16.gmra.mrb[0].mxu0 %v545
      %v676 = vpop.f32.mrb[0].mxu0
      %v677 = vadd.f32 0.0, %v676
      %v678 = vpop.f32.mrb[0].mxu0
      %v679 = vpop.f32.mrb[0].mxu0
      %v680 = vadd.f32 0.0, %v679
      %v681 = vpop.f32.mrb[0].mxu0
      %682 = vmatprep.mubr.bf16.mxu0 0
      %683 = vmatmul.mubr.bf16.gmra.mrb[0].mxu0 %v548
      %v684 = vpop.f32.mrb[0].mxu0
      %v685 = vadd.f32 0.0, %v684
      %v686 = vpop.f32.mrb[0].mxu0
      %v687 = vpop.f32.mrb[0].mxu0
      %v688 = vadd.f32 0.0, %v687
      %v689 = vpop.f32.mrb[0].mxu0
      %690 = vmatprep.mubr.bf16.mxu0 0
      %691 = vmatmul.mubr.bf16.gmra.mrb[0].mxu0 %v551
      %v692 = vpop.f32.mrb[0].mxu0
      %v693 = vadd.f32 0.0, %v692
      %v694 = vpop.f32.mrb[0].mxu0
      %v695 = vpop.f32.mrb[0].mxu0
      %v696 = vadd.f32 0.0, %v695
      %v697 = vpop.f32.mrb[0].mxu0
      %698 = vmatprep.mubr.bf16.mxu0 0
      %699 = vmatmul.mubr.bf16.gmra.mrb[0].mxu0 %v554
      %v700 = vpop.f32.mrb[0].mxu0
      %v701 = vadd.f32 0.0, %v700
      %v702 = vpop.f32.mrb[0].mxu0
      %v703 = vpop.f32.mrb[0].mxu0
      %v704 = vadd.f32 0.0, %v703
      %v705 = vpop.f32.mrb[0].mxu0
      %706 = vmatprep.mubr.bf16.mxu0 0
      %707 = vmatmul.mubr.bf16.gmra.mrb[0].mxu0 %v557
      %v708 = vpop.f32.mrb[0].mxu0
      %v709 = vadd.f32 0.0, %v708
      %v710 = vpop.f32.mrb[0].mxu0
      %v711 = vpop.f32.mrb[0].mxu0
      %v712 = vadd.f32 0.0, %v711
      %v713 = vpop.f32.mrb[0].mxu0
      %714 = vmatprep.mubr.bf16.mxu0 0
      %715 = vmatmul.mubr.bf16.gmra.mrb[0].mxu0 %v560
      %v716 = vpop.f32.mrb[0].mxu0
      %v717 = vadd.f32 0.0, %v716
      %v718 = vpop.f32.mrb[0].mxu0
      %v719 = vpop.f32.mrb[0].mxu0
      %v720 = vadd.f32 0.0, %v719
      %v721 = vpop.f32.mrb[0].mxu0
      %722 = vdwg.mxu0
      %v723 = vadd.f32 %v337, %v597
      %v724 = vadd.f32 %v338, %v600
      %v725 = vadd.f32 %v339, %v605
      %v726 = vadd.f32 %v340, %v608
      %v727 = vadd.f32 %v341, %v613
      %v728 = vadd.f32 %v342, %v616
      %v729 = vadd.f32 %v343, %v621
      %v730 = vadd.f32 %v344, %v624
      %v731 = vadd.f32 %v345, %v629
      %v732 = vadd.f32 %v346, %v632
      %v733 = vadd.f32 %v347, %v637
      %v734 = vadd.f32 %v348, %v640
      %v735 = vadd.f32 %v349, %v645
      %v736 = vadd.f32 %v350, %v648
      %v737 = vadd.f32 %v351, %v653
      %v738 = vadd.f32 %v352, %v656
      %v739 = vadd.f32 %v353, %v661
      %v740 = vadd.f32 %v354, %v664
      %v741 = vadd.f32 %v355, %v669
      %v742 = vadd.f32 %v356, %v672
      %v743 = vadd.f32 %v357, %v677
      %v744 = vadd.f32 %v358, %v680
      %v745 = vadd.f32 %v359, %v685
      %v746 = vadd.f32 %v360, %v688
      %v747 = vadd.f32 %v361, %v693
      %v748 = vadd.f32 %v362, %v696
      %v749 = vadd.f32 %v363, %v701
      %v750 = vadd.f32 %v364, %v704
      %v751 = vadd.f32 %v365, %v709
      %v752 = vadd.f32 %v366, %v712
      %v753 = vadd.f32 %v367, %v717
      %v754 = vadd.f32 %v368, %v720
      %755 = vst [vmem:[#allocation2] sm:$0xff] %v723
      %756 = vst [vmem:[#allocation2 + $0x8] sm:$0xff] %v724
      %757 = vst [vmem:[#allocation2 + $0x10] sm:$0xff] %v725
      %758 = vst [vmem:[#allocation2 + $0x18] sm:$0xff] %v726
      %759 = vst [vmem:[#allocation2 + $0x20] sm:$0xff] %v727
      %760 = vst [vmem:[#allocation2 + $0x28] sm:$0xff] %v728
      %761 = vst [vmem:[#allocation2 + $0x30] sm:$0xff] %v729
      %762 = vst [vmem:[#allocation2 + $0x38] sm:$0xff] %v730
      %763 = vst [vmem:[#allocation2 + $0x40] sm:$0xff] %v731
      %764 = vst [vmem:[#allocation2 + $0x48] sm:$0xff] %v732
      %765 = vst [vmem:[#allocation2 + $0x50] sm:$0xff] %v733
      %766 = vst [vmem:[#allocation2 + $0x58] sm:$0xff] %v734
      %767 = vst [vmem:[#allocation2 + $0x60] sm:$0xff] %v735
      %768 = vst [vmem:[#allocation2 + $0x68] sm:$0xff] %v736
      %769 = vst [vmem:[#allocation2 + $0x70] sm:$0xff] %v737
      %770 = vst [vmem:[#allocation2 + $0x78] sm:$0xff] %v738
      %771 = vst [vmem:[#allocation2 + $0x80] sm:$0xff] %v739
      %772 = vst [vmem:[#allocation2 + $0x88] sm:$0xff] %v740
      %773 = vst [vmem:[#allocation2 + $0x90] sm:$0xff] %v741
      %774 = vst [vmem:[#allocation2 + $0x98] sm:$0xff] %v742
      %775 = vst [vmem:[#allocation2 + $0xa0] sm:$0xff] %v743
      %776 = vst [vmem:[#allocation2 + $0xa8] sm:$0xff] %v744
      %777 = vst [vmem:[#allocation2 + $0xb0] sm:$0xff] %v745
      %778 = vst [vmem:[#allocation2 + $0xb8] sm:$0xff] %v746
      %779 = vst [vmem:[#allocation2 + $0xc0] sm:$0xff] %v747
      %780 = vst [vmem:[#allocation2 + $0xc8] sm:$0xff] %v748
      %781 = vst [vmem:[#allocation2 + $0xd0] sm:$0xff] %v749
      %782 = vst [vmem:[#allocation2 + $0xd8] sm:$0xff] %v750
      %783 = vst [vmem:[#allocation2 + $0xe0] sm:$0xff] %v751
      %784 = vst [vmem:[#allocation2 + $0xe8] sm:$0xff] %v752
      %785 = vst [vmem:[#allocation2 + $0xf0] sm:$0xff] %v753
      %786 = vst [vmem:[#allocation2 + $0xf8] sm:$0xff] %v754
      // Predicated region
      $region41: #{bottleneck_forward.6} parent=35 // pred_check
        %p787 = pneg %p301
      $region42: #{bottleneck_forward.6} parent=35 // pred_check_branch
        %789 = sbr.rel (%p787) target = $region44
      $region43: #{bottleneck_forward.6} parent=35 // pred_region
        %v790 = vld [vmem:[#allocation2] sm:$0xff]
        %v791 = vld [vmem:[#allocation2 + $0x8] sm:$0xff]
        %v792 = vld [vmem:[#allocation2 + $0x10] sm:$0xff]
        %v793 = vld [vmem:[#allocation2 + $0x18] sm:$0xff]
        %v794 = vld [vmem:[#allocation2 + $0x20] sm:$0xff]
        %v795 = vld [vmem:[#allocation2 + $0x28] sm:$0xff]
        %v796 = vld [vmem:[#allocation2 + $0x30] sm:$0xff]
        %v797 = vld [vmem:[#allocation2 + $0x38] sm:$0xff]
        %v798 = vld [vmem:[#allocation2 + $0x40] sm:$0xff]
        %v799 = vld [vmem:[#allocation2 + $0x48] sm:$0xff]
        %v800 = vld [vmem:[#allocation2 + $0x50] sm:$0xff]
        %v801 = vld [vmem:[#allocation2 + $0x58] sm:$0xff]
        %v802 = vld [vmem:[#allocation2 + $0x60] sm:$0xff]
        %v803 = vld [vmem:[#allocation2 + $0x68] sm:$0xff]
        %v804 = vld [vmem:[#allocation2 + $0x70] sm:$0xff]
        %v805 = vld [vmem:[#allocation2 + $0x78] sm:$0xff]
        %v806 = vld [vmem:[#allocation2 + $0x80] sm:$0xff]
        %v807 = vld [vmem:[#allocation2 + $0x88] sm:$0xff]
        %v808 = vld [vmem:[#allocation2 + $0x90] sm:$0xff]
        %v809 = vld [vmem:[#allocation2 + $0x98] sm:$0xff]
        %v810 = vld [vmem:[#allocation2 + $0xa0] sm:$0xff]
        %v811 = vld [vmem:[#allocation2 + $0xa8] sm:$0xff]
        %v812 = vld [vmem:[#allocation2 + $0xb0] sm:$0xff]
        %v813 = vld [vmem:[#allocation2 + $0xb8] sm:$0xff]
        %v814 = vld [vmem:[#allocation2 + $0xc0] sm:$0xff]
        %v815 = vld [vmem:[#allocation2 + $0xc8] sm:$0xff]
        %v816 = vld [vmem:[#allocation2 + $0xd0] sm:$0xff]
        %v817 = vld [vmem:[#allocation2 + $0xd8] sm:$0xff]
        %v818 = vld [vmem:[#allocation2 + $0xe0] sm:$0xff]
        %v819 = vld [vmem:[#allocation2 + $0xe8] sm:$0xff]
        %v820 = vld [vmem:[#allocation2 + $0xf0] sm:$0xff]
        %v821 = vld [vmem:[#allocation2 + $0xf8] sm:$0xff]
        %v822 = vld [vmem:[%s287] sm:$0x1]
        %v824 = vlaneseq
        %v825 = vshrl.u32 %v824, 7
        %v826 = vsub.s32 0, %v825
        %v827 = vrot.slane %v822, %v826
        %v829 = vmul.f32 %v790, %v827
        %v830 = vmul.f32 %v791, %v827
        %v831 = vmul.f32 %v792, %v827
        %v832 = vmul.f32 %v793, %v827
        %v833 = vmul.f32 %v794, %v827
        %v834 = vmul.f32 %v795, %v827
        %v835 = vmul.f32 %v796, %v827
        %v836 = vmul.f32 %v797, %v827
        %v837 = vmul.f32 %v798, %v827
        %v838 = vmul.f32 %v799, %v827
        %v839 = vmul.f32 %v800, %v827
        %v840 = vmul.f32 %v801, %v827
        %v841 = vmul.f32 %v802, %v827
        %v842 = vmul.f32 %v803, %v827
        %v843 = vmul.f32 %v804, %v827
        %v844 = vmul.f32 %v805, %v827
        %v845 = vmul.f32 %v806, %v827
        %v846 = vmul.f32 %v807, %v827
        %v847 = vmul.f32 %v808, %v827
        %v848 = vmul.f32 %v809, %v827
        %v849 = vmul.f32 %v810, %v827
        %v850 = vmul.f32 %v811, %v827
        %v851 = vmul.f32 %v812, %v827
        %v852 = vmul.f32 %v813, %v827
        %v853 = vmul.f32 %v814, %v827
        %v854 = vmul.f32 %v815, %v827
        %v855 = vmul.f32 %v816, %v827
        %v856 = vmul.f32 %v817, %v827
        %v857 = vmul.f32 %v818, %v827
        %v858 = vmul.f32 %v819, %v827
        %v859 = vmul.f32 %v820, %v827
        %v860 = vmul.f32 %v821, %v827
        %v861 = vld [vmem:[%s290] sm:$0x1]
        %v863 = vlaneseq
        %v864 = vshrl.u32 %v863, 7
        %v865 = vsub.s32 0, %v864
        %v866 = vrot.slane %v861, %v865
        %v868 = vadd.f32 %v829, %v866
        %v869 = vadd.f32 %v830, %v866
        %v870 = vadd.f32 %v831, %v866
        %v871 = vadd.f32 %v832, %v866
        %v872 = vadd.f32 %v833, %v866
        %v873 = vadd.f32 %v834, %v866
        %v874 = vadd.f32 %v835, %v866
        %v875 = vadd.f32 %v836, %v866
        %v876 = vadd.f32 %v837, %v866
        %v877 = vadd.f32 %v838, %v866
        %v878 = vadd.f32 %v839, %v866
        %v879 = vadd.f32 %v840, %v866
        %v880 = vadd.f32 %v841, %v866
        %v881 = vadd.f32 %v842, %v866
        %v882 = vadd.f32 %v843, %v866
        %v883 = vadd.f32 %v844, %v866
        %v884 = vadd.f32 %v845, %v866
        %v885 = vadd.f32 %v846, %v866
        %v886 = vadd.f32 %v847, %v866
        %v887 = vadd.f32 %v848, %v866
        %v888 = vadd.f32 %v849, %v866
        %v889 = vadd.f32 %v850, %v866
        %v890 = vadd.f32 %v851, %v866
        %v891 = vadd.f32 %v852, %v866
        %v892 = vadd.f32 %v853, %v866
        %v893 = vadd.f32 %v854, %v866
        %v894 = vadd.f32 %v855, %v866
        %v895 = vadd.f32 %v856, %v866
        %v896 = vadd.f32 %v857, %v866
        %v897 = vadd.f32 %v858, %v866
        %v898 = vadd.f32 %v859, %v866
        %v899 = vadd.f32 %v860, %v866
        %v900 = vpack.c.bf16 %v869, %v868
        %v901 = vpack.c.bf16 %v871, %v870
        %v902 = vpack.c.bf16 %v873, %v872
        %v903 = vpack.c.bf16 %v875, %v874
        %v904 = vpack.c.bf16 %v877, %v876
        %v905 = vpack.c.bf16 %v879, %v878
        %v906 = vpack.c.bf16 %v881, %v880
        %v907 = vpack.c.bf16 %v883, %v882
        %v908 = vpack.c.bf16 %v885, %v884
        %v909 = vpack.c.bf16 %v887, %v886
        %v910 = vpack.c.bf16 %v889, %v888
        %v911 = vpack.c.bf16 %v891, %v890
        %v912 = vpack.c.bf16 %v893, %v892
        %v913 = vpack.c.bf16 %v895, %v894
        %v914 = vpack.c.bf16 %v897, %v896
        %v915 = vpack.c.bf16 %v899, %v898
        %v932 = vunpack.c.l.b16 %v900
        %v933 = vunpack.c.h.b16 %v900
        %v934 = vunpack.c.l.b16 %v901
        %v935 = vunpack.c.h.b16 %v901
        %v936 = vunpack.c.l.b16 %v902
        %v937 = vunpack.c.h.b16 %v902
        %v938 = vunpack.c.l.b16 %v903
        %v939 = vunpack.c.h.b16 %v903
        %v940 = vunpack.c.l.b16 %v904
        %v941 = vunpack.c.h.b16 %v904
        %v942 = vunpack.c.l.b16 %v905
        %v943 = vunpack.c.h.b16 %v905
        %v944 = vunpack.c.l.b16 %v906
        %v945 = vunpack.c.h.b16 %v906
        %v946 = vunpack.c.l.b16 %v907
        %v947 = vunpack.c.h.b16 %v907
        %v948 = vunpack.c.l.b16 %v908
        %v949 = vunpack.c.h.b16 %v908
        %v950 = vunpack.c.l.b16 %v909
        %v951 = vunpack.c.h.b16 %v909
        %v952 = vunpack.c.l.b16 %v910
        %v953 = vunpack.c.h.b16 %v910
        %v954 = vunpack.c.l.b16 %v911
        %v955 = vunpack.c.h.b16 %v911
        %v956 = vunpack.c.l.b16 %v912
        %v957 = vunpack.c.h.b16 %v912
        %v958 = vunpack.c.l.b16 %v913
        %v959 = vunpack.c.h.b16 %v913
        %v960 = vunpack.c.l.b16 %v914
        %v961 = vunpack.c.h.b16 %v914
        %v962 = vunpack.c.l.b16 %v915
        %v963 = vunpack.c.h.b16 %v915
        %v964 = vpack.c.b16 %v932, %v932
        %v965 = vpack.c.b16 %v933, %v933
        %v966 = vpack.c.b16 %v934, %v934
        %v967 = vpack.c.b16 %v935, %v935
        %v968 = vpack.c.b16 %v936, %v936
        %v969 = vpack.c.b16 %v937, %v937
        %v970 = vpack.c.b16 %v938, %v938
        %v971 = vpack.c.b16 %v939, %v939
        %v972 = vpack.c.b16 %v940, %v940
        %v973 = vpack.c.b16 %v941, %v941
        %v974 = vpack.c.b16 %v942, %v942
        %v975 = vpack.c.b16 %v943, %v943
        %v976 = vpack.c.b16 %v944, %v944
        %v977 = vpack.c.b16 %v945, %v945
        %v978 = vpack.c.b16 %v946, %v946
        %v979 = vpack.c.b16 %v947, %v947
        %v980 = vpack.c.b16 %v948, %v948
        %v981 = vpack.c.b16 %v949, %v949
        %v982 = vpack.c.b16 %v950, %v950
        %v983 = vpack.c.b16 %v951, %v951
        %v984 = vpack.c.b16 %v952, %v952
        %v985 = vpack.c.b16 %v953, %v953
        %v986 = vpack.c.b16 %v954, %v954
        %v987 = vpack.c.b16 %v955, %v955
        %v988 = vpack.c.b16 %v956, %v956
        %v989 = vpack.c.b16 %v957, %v957
        %v990 = vpack.c.b16 %v958, %v958
        %v991 = vpack.c.b16 %v959, %v959
        %v992 = vpack.c.b16 %v960, %v960
        %v993 = vpack.c.b16 %v961, %v961
        %v994 = vpack.c.b16 %v962, %v962
        %v995 = vpack.c.b16 %v963, %v963
        %1028 = vst [vmem:[%s298] sm:$0xf] %v964
        %1029 = vst [vmem:[%s298 + $0x4] sm:$0xf] %v965
        %1030 = vst [vmem:[%s298 + $0x8] sm:$0xf] %v966
        %1031 = vst [vmem:[%s298 + $0xc] sm:$0xf] %v967
        %1032 = vst [vmem:[%s298 + $0x10] sm:$0xf] %v968
        %1033 = vst [vmem:[%s298 + $0x14] sm:$0xf] %v969
        %1034 = vst [vmem:[%s298 + $0x18] sm:$0xf] %v970
        %1035 = vst [vmem:[%s298 + $0x1c] sm:$0xf] %v971
        %1036 = vst [vmem:[%s298 + $0x20] sm:$0xf] %v972
        %1037 = vst [vmem:[%s298 + $0x24] sm:$0xf] %v973
        %1038 = vst [vmem:[%s298 + $0x28] sm:$0xf] %v974
        %1039 = vst [vmem:[%s298 + $0x2c] sm:$0xf] %v975
        %1040 = vst [vmem:[%s298 + $0x30] sm:$0xf] %v976
        %1041 = vst [vmem:[%s298 + $0x34] sm:$0xf] %v977
        %1042 = vst [vmem:[%s298 + $0x38] sm:$0xf] %v978
        %1043 = vst [vmem:[%s298 + $0x3c] sm:$0xf] %v979
        %1044 = vst [vmem:[%s298 + $0x40] sm:$0xf] %v980
        %1045 = vst [vmem:[%s298 + $0x44] sm:$0xf] %v981
        %1046 = vst [vmem:[%s298 + $0x48] sm:$0xf] %v982
        %1047 = vst [vmem:[%s298 + $0x4c] sm:$0xf] %v983
        %1048 = vst [vmem:[%s298 + $0x50] sm:$0xf] %v984
        %1049 = vst [vmem:[%s298 + $0x54] sm:$0xf] %v985
        %1050 = vst [vmem:[%s298 + $0x58] sm:$0xf] %v986
        %1051 = vst [vmem:[%s298 + $0x5c] sm:$0xf] %v987
        %1052 = vst [vmem:[%s298 + $0x60] sm:$0xf] %v988
        %1053 = vst [vmem:[%s298 + $0x64] sm:$0xf] %v989
        %1054 = vst [vmem:[%s298 + $0x68] sm:$0xf] %v990
        %1055 = vst [vmem:[%s298 + $0x6c] sm:$0xf] %v991
        %1056 = vst [vmem:[%s298 + $0x70] sm:$0xf] %v992
        %1057 = vst [vmem:[%s298 + $0x74] sm:$0xf] %v993
        %1058 = vst [vmem:[%s298 + $0x78] sm:$0xf] %v994
        %1059 = vst [vmem:[%s298 + $0x7c] sm:$0xf] %v995
      $region44: #{bottleneck_forward.6} parent=35 // pred_fallthru
        _
      %s1060 = smul.u32 32, %s20
      %p1061 = scmp.lt.s32.totalorder %s1060, 63
      %s1062 = scalar_select %p1061, %s1060, 63
      %p1063 = scmp.lt.s32.totalorder %s21, 0
      %s1064 = scalar_select %p1063, %s21, 0
      %s1065 = sadd.s32 %s1064, %s1062
      %s1066 = smul.addr %s1065, 4
      %s1067 = scalar_lea.vmem %s4, %s1066
      // Predicated region
      $region45: #{bottleneck_forward.6} parent=35 // pred_check
        %p1068 = pneg %p162
      $region46: #{bottleneck_forward.6} parent=35 // pred_check_branch
        %1070 = sbr.rel (%p1068) target = $region48
      $region47: #{bottleneck_forward.6} parent=35 // pred_region
        %s1071 = smul.u32 32, %s20
      $region48: #{bottleneck_forward.6} parent=35 // pred_fallthru
        _
    $region36: #{bottleneck_forward.6} parent=5 // pred_fallthru
      _
    %p1072 = scmp.le.s32.totalorder 2, %s10
    // Predicated region
    $region49: #{bottleneck_forward.6} parent=5 // pred_check
      %p1073 = pneg %p1072
    $region50: #{bottleneck_forward.6} parent=5 // pred_check_branch
      %1075 = sbr.rel (%p1073) target = $region52
    $region51: #{bottleneck_forward.6} parent=5 // pred_region
      %s1076 = ssub.s32 %s10, 2
      // Predicated region
      $region53: #{bottleneck_forward.6} parent=51 // pred_check
        %p1077 = pneg %p168
      $region54: #{bottleneck_forward.6} parent=51 // pred_check_branch
        %1079 = sbr.rel (%p1077) target = $region56
      $region55: #{bottleneck_forward.6} parent=51 // pred_region
        %s1080 = smul.u32 32, %s23
        %p1081 = scmp.lt.s32.totalorder %s1080, 63
        %s1082 = scalar_select %p1081, %s1080, 63
        %p1083 = scmp.lt.s32.totalorder %s24, 0
        %s1084 = scalar_select %p1083, %s24, 0
        %s1085 = sadd.s32 %s1084, %s1082
        %s1086 = smul.addr %s1085, 4
        %s1087 = scalar_lea.vmem %s4, %s1086
      $region56: #{bottleneck_forward.6} parent=51 // pred_fallthru
        _
    $region52: #{bottleneck_forward.6} parent=5 // pred_fallthru
      _
  $region6: #{bottleneck_forward.6} parent=0 // loop_footer
    %s14 = sadd.s32 1, %s10
  $region7: #{bottleneck_forward.6} parent=0 // loop_footer_branch
    %9 = sbr.rel target = $region3
  $region8: #{bottleneck_forward.6} parent=0 // loop_exit
    _

// kernel: bottleneck_forward.4
$region0: #{bottleneck_forward.4}
  #allocation0 [shape = 'u32[]', space=smem, size = 0x4, offset = 0x4, fixed_abs, tag = 'smem constant byte address 0x4 - core index']
  #allocation1 [shape = 'u32[144,128]{1,0:T(1,128)}', space=vmem, size = 0x12000, scoped, tag = 'internal scratch']
  #allocation2 [shape = 'f32[256,32]{1,0:T(8,128)}', space=vmem, size = 0x20000, scoped, tag = 'scratch operand']
  %s0 = inlined_call_operand.vmem [shape: bf16[512,64], index: 0, kind: input, shape index: {}]
  %s1 = inlined_call_operand.vmem [shape: bf16[64,32], index: 1, kind: input, shape index: {}]
  %s2 = inlined_call_operand.vmem [shape: f32[1,32], index: 2, kind: input, shape index: {}]
  %s3 = inlined_call_operand.vmem [shape: f32[1,32], index: 3, kind: input, shape index: {}]
  %s4 = inlined_call_operand.vmem [shape: bf16[512,32], index: 4, kind: output, shape index: {}]
  %s5 = sld [smem:[#allocation0]]
  $region57: #{bottleneck_forward.4} parent=0
    _
  %s7 = ssub.s32 1, %s5
  %s8 = scalar_select 0, %s7, %s5
  loop: start=0, step=1, limit=4
  $region2: #{bottleneck_forward.4} parent=0 // loop_pre_header
    _
  $region3: #{bottleneck_forward.4} parent=0 // loop_header
    %s10 = sphi 0, %s14
    %p11 = scmp.ge.s32.totalorder %s10, 4
    %s17 = sphi 0, %s36
    %s18 = sphi 0, %s32
    %s19 = sphi 0, %s28
    %s20 = sphi 0, %s17
    %s21 = sphi 0, %s18
    %s22 = sphi 0, %s19
    %s23 = sphi 0, %s20
    %s24 = sphi 0, %s21
    %s25 = sphi 0, %s22
    %s41 = sphi 0, %s43
    %s44 = sphi 0, %s41
    %s45 = sphi 0, %s44
    %s61 = sphi 0, %s45
    %s69 = sphi 0, %s71
    %s72 = sphi 0, %s69
    %s73 = sphi 0, %s72
    %s89 = sphi 0, %s73
    %s95 = sphi 0, %s97
    %s98 = sphi 0, %s95
    %s99 = sphi 0, %s98
    %s115 = sphi 0, %s99
    %s121 = sphi 0, %s123
    %s124 = sphi 0, %s121
    %s125 = sphi 0, %s124
    %s141 = sphi 0, %s125
    %s149 = sphi 0, %s151
    %s152 = sphi 0, %s149
    %s153 = sphi 0, %s152
    %s169 = sphi 0, %s153
  $region4: #{bottleneck_forward.4} parent=0 // loop_header_branch
    %13 = sbr.rel (%p11) target = $region8
  $region5: #{bottleneck_forward.4} parent=0 // loop_body
    %s15 = ssub.s32 %s10, 1
    %s16 = ssub.s32 %s10, 2
    %s26 = sadd.s32 1, %s19
    %p27 = scmp.ge.s32.totalorder %s26, 1
    %s28 = scalar_select %p27, 0, %s26
    %s29 = sadd.s32 1, %s18
    %s30 = scalar_select %p27, %s29, %s18
    %p31 = scmp.ge.s32.totalorder %s30, 1
    %s32 = scalar_select %p31, 0, %s30
    %s33 = sadd.s32 1, %s17
    %s34 = scalar_select %p31, %s33, %s17
    %p35 = scmp.ge.s32.totalorder %s34, 2
    %s36 = scalar_select %p35, 0, %s34
    %s37 = ssub.s32 %s17, %s36
    %s38 = ssub.s32 %s19, %s28
    %s39 = sor.u32 %s37, %s38
    %p40 = scmp.eq.s32.totalorder %s39, 0
    %s42 = sadd.s32 %s41, 1
    %s43 = scalar_select %p40, %s41, %s42
    %p46 = pneg %p40
    %p47 = scmp.eq.s32.totalorder %s10, 1
    %p48 = por %p46, %p47
    %p49 = scmp.ne.s32.totalorder %s41, %s44
    %p50 = scmp.eq.s32.totalorder %s10, 0
    %p51 = por %p49, %p50
    %p52 = scmp.ne.s32.totalorder %s41, %s44
    %p53 = scmp.eq.s32.totalorder %s15, 1
    %p54 = por %p52, %p53
    %p55 = scmp.ne.s32.totalorder %s44, %s45
    %p56 = scmp.eq.s32.totalorder %s15, 0
    %p57 = por %p55, %p56
    %p58 = scmp.ne.s32.totalorder %s44, %s45
    %p59 = scmp.eq.s32.totalorder %s16, 1
    %p60 = por %p58, %p59
    %p62 = scmp.ne.s32.totalorder %s45, %s61
    %p63 = scmp.eq.s32.totalorder %s16, 0
    %p64 = por %p62, %p63
    %s65 = ssub.s32 %s19, %s28
    %s66 = ssub.s32 %s18, %s32
    %s67 = sor.u32 %s65, %s66
    %p68 = scmp.eq.s32.totalorder %s67, 0
    %s70 = sadd.s32 %s69, 1
    %s71 = scalar_select %p68, %s69, %s70
    %p74 = pneg %p68
    %p75 = scmp.eq.s32.totalorder %s10, 1
    %p76 = por %p74, %p75
    %p77 = scmp.ne.s32.totalorder %s69, %s72
    %p78 = scmp.eq.s32.totalorder %s10, 0
    %p79 = por %p77, %p78
    %p80 = scmp.ne.s32.totalorder %s69, %s72
    %p81 = scmp.eq.s32.totalorder %s15, 1
    %p82 = por %p80, %p81
    %p83 = scmp.ne.s32.totalorder %s72, %s73
    %p84 = scmp.eq.s32.totalorder %s15, 0
    %p85 = por %p83, %p84
    %p86 = scmp.ne.s32.totalorder %s72, %s73
    %p87 = scmp.eq.s32.totalorder %s16, 1
    %p88 = por %p86, %p87
    %p90 = scmp.ne.s32.totalorder %s73, %s89
    %p91 = scmp.eq.s32.totalorder %s16, 0
    %p92 = por %p90, %p91
    %s93 = ssub.s32 %s18, %s32
    %p94 = scmp.eq.s32.totalorder %s93, 0
    %s96 = sadd.s32 %s95, 1
    %s97 = scalar_select %p94, %s95, %s96
    %p100 = pneg %p94
    %p101 = scmp.eq.s32.totalorder %s10, 1
    %p102 = por %p100, %p101
    %p103 = scmp.ne.s32.totalorder %s95, %s98
    %p104 = scmp.eq.s32.totalorder %s10, 0
    %p105 = por %p103, %p104
    %p106 = scmp.ne.s32.totalorder %s95, %s98
    %p107 = scmp.eq.s32.totalorder %s15, 1
    %p108 = por %p106, %p107
    %p109 = scmp.ne.s32.totalorder %s98, %s99
    %p110 = scmp.eq.s32.totalorder %s15, 0
    %p111 = por %p109, %p110
    %p112 = scmp.ne.s32.totalorder %s98, %s99
    %p113 = scmp.eq.s32.totalorder %s16, 1
    %p114 = por %p112, %p113
    %p116 = scmp.ne.s32.totalorder %s99, %s115
    %p117 = scmp.eq.s32.totalorder %s16, 0
    %p118 = por %p116, %p117
    %s119 = ssub.s32 %s18, %s32
    %p120 = scmp.eq.s32.totalorder %s119, 0
    %s122 = sadd.s32 %s121, 1
    %s123 = scalar_select %p120, %s121, %s122
    %p126 = pneg %p120
    %p127 = scmp.eq.s32.totalorder %s10, 1
    %p128 = por %p126, %p127
    %p129 = scmp.ne.s32.totalorder %s121, %s124
    %p130 = scmp.eq.s32.totalorder %s10, 0
    %p131 = por %p129, %p130
    %p132 = scmp.ne.s32.totalorder %s121, %s124
    %p133 = scmp.eq.s32.totalorder %s15, 1
    %p134 = por %p132, %p133
    %p135 = scmp.ne.s32.totalorder %s124, %s125
    %p136 = scmp.eq.s32.totalorder %s15, 0
    %p137 = por %p135, %p136
    %p138 = scmp.ne.s32.totalorder %s124, %s125
    %p139 = scmp.eq.s32.totalorder %s16, 1
    %p140 = por %p138, %p139
    %p142 = scmp.ne.s32.totalorder %s125, %s141
    %p143 = scmp.eq.s32.totalorder %s16, 0
    %p144 = por %p142, %p143
    %s145 = ssub.s32 %s17, %s36
    %s146 = ssub.s32 %s18, %s32
    %s147 = sor.u32 %s145, %s146
    %p148 = scmp.eq.s32.totalorder %s147, 0
    %s150 = sadd.s32 %s149, 1
    %s151 = scalar_select %p148, %s149, %s150
    %p154 = pneg %p148
    %p155 = scmp.eq.s32.totalorder %s10, 1
    %p156 = por %p154, %p155
    %p157 = scmp.ne.s32.totalorder %s149, %s152
    %p158 = scmp.eq.s32.totalorder %s10, 0
    %p159 = por %p157, %p158
    %p160 = scmp.ne.s32.totalorder %s149, %s152
    %p161 = scmp.eq.s32.totalorder %s15, 1
    %p162 = por %p160, %p161
    %p163 = scmp.ne.s32.totalorder %s152, %s153
    %p164 = scmp.eq.s32.totalorder %s15, 0
    %p165 = por %p163, %p164
    %p166 = scmp.ne.s32.totalorder %s152, %s153
    %p167 = scmp.eq.s32.totalorder %s16, 1
    %p168 = por %p166, %p167
    %p170 = scmp.ne.s32.totalorder %s153, %s169
    %p171 = scmp.eq.s32.totalorder %s16, 0
    %p172 = por %p170, %p171
    %p173 = scmp.le.s32.totalorder 1, %s10
    %p174 = scmp.lt.s32.totalorder %s10, 3
    %p175 = pnand %p173, %p174
    %p176 = pneg %p175
    // Predicated region
    $region9: #{bottleneck_forward.4} parent=5 // pred_check
      _
    $region10: #{bottleneck_forward.4} parent=5 // pred_check_branch
      %178 = sbr.rel (%p175) target = $region12
    $region11: #{bottleneck_forward.4} parent=5 // pred_region
      %s179 = ssub.s32 %s10, 1
      // Predicated region
      $region13: #{bottleneck_forward.4} parent=11 // pred_check
        %p180 = pneg %p85
      $region14: #{bottleneck_forward.4} parent=11 // pred_check_branch
        %182 = sbr.rel (%p180) target = $region16
      $region15: #{bottleneck_forward.4} parent=11 // pred_region
        %s183 = smul.u32 8, %s22
        %p184 = scmp.lt.s32.totalorder %s183, 7
        %s185 = scalar_select %p184, %s183, 7
        %p186 = scmp.lt.s32.totalorder %s21, 0
        %s187 = scalar_select %p186, %s21, 0
        %s188 = sadd.s32 %s187, %s185
        %s189 = smul.addr %s188, 4
        %s190 = scalar_lea.vmem %s1, %s189
        %s191 = smul.u32 8, %s22
      $region16: #{bottleneck_forward.4} parent=11 // pred_fallthru
        _
      // Predicated region
      $region17: #{bottleneck_forward.4} parent=11 // pred_check
        %p192 = pneg %p111
      $region18: #{bottleneck_forward.4} parent=11 // pred_check_branch
        %194 = sbr.rel (%p192) target = $region20
      $region19: #{bottleneck_forward.4} parent=11 // pred_region
        %p195 = scmp.lt.s32.totalorder %s21, 0
        %s196 = scalar_select %p195, %s21, 0
        %s197 = scalar_lea.vmem %s2, %s196
      $region20: #{bottleneck_forward.4} parent=11 // pred_fallthru
        _
      // Predicated region
      $region21: #{bottleneck_forward.4} parent=11 // pred_check
        %p198 = pneg %p137
      $region22: #{bottleneck_forward.4} parent=11 // pred_check_branch
        %200 = sbr.rel (%p198) target = $region24
      $region23: #{bottleneck_forward.4} parent=11 // pred_region
        %p201 = scmp.lt.s32.totalorder %s21, 0
        %s202 = scalar_select %p201, %s21, 0
        %s203 = scalar_lea.vmem %s3, %s202
      $region24: #{bottleneck_forward.4} parent=11 // pred_fallthru
        _
    $region12: #{bottleneck_forward.4} parent=5 // pred_fallthru
      _
    %p204 = scmp.lt.s32.totalorder %s10, 2
    // Predicated region
    $region25: #{bottleneck_forward.4} parent=5 // pred_check
      %p205 = pneg %p204
    $region26: #{bottleneck_forward.4} parent=5 // pred_check_branch
      %207 = sbr.rel (%p205) target = $region28
    $region27: #{bottleneck_forward.4} parent=5 // pred_region
      // Predicated region
      $region29: #{bottleneck_forward.4} parent=27 // pred_check
        %p208 = pneg %p51
      $region30: #{bottleneck_forward.4} parent=27 // pred_check_branch
        %210 = sbr.rel (%p208) target = $region32
      $region31: #{bottleneck_forward.4} parent=27 // pred_region
        %s211 = smul.u32 32, %s17
        %p212 = scmp.lt.s32.totalorder %s211, 63
        %s213 = scalar_select %p212, %s211, 63
        %p214 = scmp.lt.s32.totalorder %s19, 0
        %s215 = scalar_select %p214, %s19, 0
        %s216 = sadd.s32 %s215, %s213
        %s217 = smul.addr %s216, 4
        %s218 = scalar_lea.vmem %s0, %s217
        %s219 = smul.u32 32, %s17
      $region32: #{bottleneck_forward.4} parent=27 // pred_fallthru
        _
    $region28: #{bottleneck_forward.4} parent=5 // pred_fallthru
      _
    %p220 = scmp.le.s32.totalorder 1, %s10
    %p221 = scmp.lt.s32.totalorder %s10, 3
    %p222 = pnand %p220, %p221
    %p223 = pneg %p222
    // Predicated region
    $region33: #{bottleneck_forward.4} parent=5 // pred_check
      _
    $region34: #{bottleneck_forward.4} parent=5 // pred_check_branch
      %225 = sbr.rel (%p222) target = $region36
    $region35: #{bottleneck_forward.4} parent=5 // pred_region
      %s226 = ssub.s32 %s10, 1
      %s227 = smul.u32 32, %s20
      %p228 = scmp.lt.s32.totalorder %s227, 63
      %s229 = scalar_select %p228, %s227, 63
      %p230 = scmp.lt.s32.totalorder %s22, 0
      %s231 = scalar_select %p230, %s22, 0
      %s232 = sadd.s32 %s231, %s229
      %s233 = smul.addr %s232, 4
      %s234 = scalar_lea.vmem %s0, %s233
      %p235 = pneg %p57
      %p236 = pneg %p54
      %s237 = smul.u32 8, %s22
      %p238 = scmp.lt.s32.totalorder %s237, 7
      %s239 = scalar_select %p238, %s237, 7
      %p240 = scmp.lt.s32.totalorder %s21, 0
      %s241 = scalar_select %p240, %s21, 0
      %s242 = sadd.s32 %s241, %s239
      %s243 = smul.addr %s242, 4
      %s244 = scalar_lea.vmem %s1, %s243
      %p245 = pneg %p85
      %p246 = pneg %p82
      %p247 = scmp.lt.s32.totalorder %s21, 0
      %s248 = scalar_select %p247, %s21, 0
      %s249 = scalar_lea.vmem %s2, %s248
      %p250 = pneg %p111
      %p251 = pneg %p108
      %p252 = scmp.lt.s32.totalorder %s21, 0
      %s253 = scalar_select %p252, %s21, 0
      %s254 = scalar_lea.vmem %s3, %s253
      %p255 = pneg %p137
      %p256 = pneg %p134
      %p257 = pneg %p165
      %p258 = pneg %p162
      %s259 = smul.u32 32, %s20
      %p260 = scmp.lt.s32.totalorder %s259, 63
      %s261 = scalar_select %p260, %s259, 63
      %p262 = scmp.lt.s32.totalorder %s21, 0
      %s263 = scalar_select %p262, %s21, 0
      %s264 = sadd.s32 %s263, %s261
      %s265 = smul.addr %s264, 4
      %s266 = scalar_lea.vmem %s4, %s265
      %s267 = smul.u32 32, %s20
      %p268 = scmp.lt.s32.totalorder %s267, 63
      %s269 = scalar_select %p268, %s267, 63
      %p270 = scmp.lt.s32.totalorder %s22, 0
      %s271 = scalar_select %p270, %s22, 0
      %s272 = sadd.s32 %s271, %s269
      %s273 = smul.addr %s272, 4
      %s274 = scalar_lea.vmem %s0, %s273
      %s275 = smul.u32 32, %s20
      %s276 = smul.u32 8, %s22
      %p277 = scmp.lt.s32.totalorder %s276, 7
      %s278 = scalar_select %p277, %s276, 7
      %p279 = scmp.lt.s32.totalorder %s21, 0
      %s280 = scalar_select %p279, %s21, 0
      %s281 = sadd.s32 %s280, %s278
      %s282 = smul.addr %s281, 4
      %s283 = scalar_lea.vmem %s1, %s282
      %s284 = smul.u32 8, %s22
      %p285 = scmp.lt.s32.totalorder %s21, 0
      %s286 = scalar_select %p285, %s21, 0
      %s287 = scalar_lea.vmem %s2, %s286
      %p288 = scmp.lt.s32.totalorder %s21, 0
      %s289 = scalar_select %p288, %s21, 0
      %s290 = scalar_lea.vmem %s3, %s289
      %s291 = smul.u32 32, %s20
      %p292 = scmp.lt.s32.totalorder %s291, 63
      %s293 = scalar_select %p292, %s291, 63
      %p294 = scmp.lt.s32.totalorder %s21, 0
      %s295 = scalar_select %p294, %s21, 0
      %s296 = sadd.s32 %s295, %s293
      %s297 = smul.addr %s296, 4
      %s298 = scalar_lea.vmem %s4, %s297
      %s299 = smul.u32 32, %s20
      %p301 = scmp.eq.s32.totalorder %s22, 0
      // Predicated region
      $region37: #{bottleneck_forward.4} parent=35 // pred_check
        %p302 = pneg %p301
      $region38: #{bottleneck_forward.4} parent=35 // pred_check_branch
        %304 = sbr.rel (%p302) target = $region40
      $region39: #{bottleneck_forward.4} parent=35 // pred_region
        %vm305 = vcmask 261120
        %306 = vst.msk [vmem:[#allocation2] sm:$0xff] %vm305, 0.0
        %307 = vst.msk [vmem:[#allocation2 + $0x8] sm:$0xff] %vm305, 0.0
        %308 = vst.msk [vmem:[#allocation2 + $0x10] sm:$0xff] %vm305, 0.0
        %309 = vst.msk [vmem:[#allocation2 + $0x18] sm:$0xff] %vm305, 0.0
        %310 = vst.msk [vmem:[#allocation2 + $0x20] sm:$0xff] %vm305, 0.0
        %311 = vst.msk [vmem:[#allocation2 + $0x28] sm:$0xff] %vm305, 0.0
        %312 = vst.msk [vmem:[#allocation2 + $0x30] sm:$0xff] %vm305, 0.0
        %313 = vst.msk [vmem:[#allocation2 + $0x38] sm:$0xff] %vm305, 0.0
        %314 = vst.msk [vmem:[#allocation2 + $0x40] sm:$0xff] %vm305, 0.0
        %315 = vst.msk [vmem:[#allocation2 + $0x48] sm:$0xff] %vm305, 0.0
        %316 = vst.msk [vmem:[#allocation2 + $0x50] sm:$0xff] %vm305, 0.0
        %317 = vst.msk [vmem:[#allocation2 + $0x58] sm:$0xff] %vm305, 0.0
        %318 = vst.msk [vmem:[#allocation2 + $0x60] sm:$0xff] %vm305, 0.0
        %319 = vst.msk [vmem:[#allocation2 + $0x68] sm:$0xff] %vm305, 0.0
        %320 = vst.msk [vmem:[#allocation2 + $0x70] sm:$0xff] %vm305, 0.0
        %321 = vst.msk [vmem:[#allocation2 + $0x78] sm:$0xff] %vm305, 0.0
        %322 = vst.msk [vmem:[#allocation2 + $0x80] sm:$0xff] %vm305, 0.0
        %323 = vst.msk [vmem:[#allocation2 + $0x88] sm:$0xff] %vm305, 0.0
        %324 = vst.msk [vmem:[#allocation2 + $0x90] sm:$0xff] %vm305, 0.0
        %325 = vst.msk [vmem:[#allocation2 + $0x98] sm:$0xff] %vm305, 0.0
        %326 = vst.msk [vmem:[#allocation2 + $0xa0] sm:$0xff] %vm305, 0.0
        %327 = vst.msk [vmem:[#allocation2 + $0xa8] sm:$0xff] %vm305, 0.0
        %328 = vst.msk [vmem:[#allocation2 + $0xb0] sm:$0xff] %vm305, 0.0
        %329 = vst.msk [vmem:[#allocation2 + $0xb8] sm:$0xff] %vm305, 0.0
        %330 = vst.msk [vmem:[#allocation2 + $0xc0] sm:$0xff] %vm305, 0.0
        %331 = vst.msk [vmem:[#allocation2 + $0xc8] sm:$0xff] %vm305, 0.0
        %332 = vst.msk [vmem:[#allocation2 + $0xd0] sm:$0xff] %vm305, 0.0
        %333 = vst.msk [vmem:[#allocation2 + $0xd8] sm:$0xff] %vm305, 0.0
        %334 = vst.msk [vmem:[#allocation2 + $0xe0] sm:$0xff] %vm305, 0.0
        %335 = vst.msk [vmem:[#allocation2 + $0xe8] sm:$0xff] %vm305, 0.0
        %336 = vst.msk [vmem:[#allocation2 + $0xf0] sm:$0xff] %vm305, 0.0
        %337 = vst.msk [vmem:[#allocation2 + $0xf8] sm:$0xff] %vm305, 0.0
      $region40: #{bottleneck_forward.4} parent=35 // pred_fallthru
        _
      %v338 = vld [vmem:[#allocation2] sm:$0xff]
      %v339 = vld [vmem:[#allocation2 + $0x8] sm:$0xff]
      %v340 = vld [vmem:[#allocation2 + $0x10] sm:$0xff]
      %v341 = vld [vmem:[#allocation2 + $0x18] sm:$0xff]
      %v342 = vld [vmem:[#allocation2 + $0x20] sm:$0xff]
      %v343 = vld [vmem:[#allocation2 + $0x28] sm:$0xff]
      %v344 = vld [vmem:[#allocation2 + $0x30] sm:$0xff]
      %v345 = vld [vmem:[#allocation2 + $0x38] sm:$0xff]
      %v346 = vld [vmem:[#allocation2 + $0x40] sm:$0xff]
      %v347 = vld [vmem:[#allocation2 + $0x48] sm:$0xff]
      %v348 = vld [vmem:[#allocation2 + $0x50] sm:$0xff]
      %v349 = vld [vmem:[#allocation2 + $0x58] sm:$0xff]
      %v350 = vld [vmem:[#allocation2 + $0x60] sm:$0xff]
      %v351 = vld [vmem:[#allocation2 + $0x68] sm:$0xff]
      %v352 = vld [vmem:[#allocation2 + $0x70] sm:$0xff]
      %v353 = vld [vmem:[#allocation2 + $0x78] sm:$0xff]
      %v354 = vld [vmem:[#allocation2 + $0x80] sm:$0xff]
      %v355 = vld [vmem:[#allocation2 + $0x88] sm:$0xff]
      %v356 = vld [vmem:[#allocation2 + $0x90] sm:$0xff]
      %v357 = vld [vmem:[#allocation2 + $0x98] sm:$0xff]
      %v358 = vld [vmem:[#allocation2 + $0xa0] sm:$0xff]
      %v359 = vld [vmem:[#allocation2 + $0xa8] sm:$0xff]
      %v360 = vld [vmem:[#allocation2 + $0xb0] sm:$0xff]
      %v361 = vld [vmem:[#allocation2 + $0xb8] sm:$0xff]
      %v362 = vld [vmem:[#allocation2 + $0xc0] sm:$0xff]
      %v363 = vld [vmem:[#allocation2 + $0xc8] sm:$0xff]
      %v364 = vld [vmem:[#allocation2 + $0xd0] sm:$0xff]
      %v365 = vld [vmem:[#allocation2 + $0xd8] sm:$0xff]
      %v366 = vld [vmem:[#allocation2 + $0xe0] sm:$0xff]
      %v367 = vld [vmem:[#allocation2 + $0xe8] sm:$0xff]
      %v368 = vld [vmem:[#allocation2 + $0xf0] sm:$0xff]
      %v369 = vld [vmem:[#allocation2 + $0xf8] sm:$0xff]
      %v370 = vld [vmem:[%s274] sm:$0xf]
      %v371 = vld [vmem:[%s274 + $0x4] sm:$0xf]
      %v372 = vld [vmem:[%s274 + $0x8] sm:$0xf]
      %v373 = vld [vmem:[%s274 + $0xc] sm:$0xf]
      %v374 = vld [vmem:[%s274 + $0x10] sm:$0xf]
      %v375 = vld [vmem:[%s274 + $0x14] sm:$0xf]
      %v376 = vld [vmem:[%s274 + $0x18] sm:$0xf]
      %v377 = vld [vmem:[%s274 + $0x1c] sm:$0xf]
      %v378 = vld [vmem:[%s274 + $0x20] sm:$0xf]
      %v379 = vld [vmem:[%s274 + $0x24] sm:$0xf]
      %v380 = vld [vmem:[%s274 + $0x28] sm:$0xf]
      %v381 = vld [vmem:[%s274 + $0x2c] sm:$0xf]
      %v382 = vld [vmem:[%s274 + $0x30] sm:$0xf]
      %v383 = vld [vmem:[%s274 + $0x34] sm:$0xf]
      %v384 = vld [vmem:[%s274 + $0x38] sm:$0xf]
      %v385 = vld [vmem:[%s274 + $0x3c] sm:$0xf]
      %v386 = vld [vmem:[%s274 + $0x40] sm:$0xf]
      %v387 = vld [vmem:[%s274 + $0x44] sm:$0xf]
      %v388 = vld [vmem:[%s274 + $0x48] sm:$0xf]
      %v389 = vld [vmem:[%s274 + $0x4c] sm:$0xf]
      %v390 = vld [vmem:[%s274 + $0x50] sm:$0xf]
      %v391 = vld [vmem:[%s274 + $0x54] sm:$0xf]
      %v392 = vld [vmem:[%s274 + $0x58] sm:$0xf]
      %v393 = vld [vmem:[%s274 + $0x5c] sm:$0xf]
      %v394 = vld [vmem:[%s274 + $0x60] sm:$0xf]
      %v395 = vld [vmem:[%s274 + $0x64] sm:$0xf]
      %v396 = vld [vmem:[%s274 + $0x68] sm:$0xf]
      %v397 = vld [vmem:[%s274 + $0x6c] sm:$0xf]
      %v398 = vld [vmem:[%s274 + $0x70] sm:$0xf]
      %v399 = vld [vmem:[%s274 + $0x74] sm:$0xf]
      %v400 = vld [vmem:[%s274 + $0x78] sm:$0xf]
      %v401 = vld [vmem:[%s274 + $0x7c] sm:$0xf]
      %v402 = vld [vmem:[%s283] sm:$0xf]
      %v403 = vld [vmem:[%s283 + $0x4] sm:$0xf]
      %v404 = vld [vmem:[%s283 + $0x8] sm:$0xf]
      %v405 = vld [vmem:[%s283 + $0xc] sm:$0xf]
      %v406 = vld [vmem:[%s283 + $0x10] sm:$0xf]
      %v407 = vld [vmem:[%s283 + $0x14] sm:$0xf]
      %v408 = vld [vmem:[%s283 + $0x18] sm:$0xf]
      %v409 = vld [vmem:[%s283 + $0x1c] sm:$0xf]
      %v442 = vunpack.c.l.b16 %v370
      %v443 = vunpack.c.l.b16 %v371
      %v444 = vunpack.c.l.b16 %v372
      %v445 = vunpack.c.l.b16 %v373
      %v446 = vunpack.c.l.b16 %v374
      %v447 = vunpack.c.l.b16 %v375
      %v448 = vunpack.c.l.b16 %v376
      %v449 = vunpack.c.l.b16 %v377
      %v450 = vunpack.c.l.b16 %v378
      %v451 = vunpack.c.l.b16 %v379
      %v452 = vunpack.c.l.b16 %v380
      %v453 = vunpack.c.l.b16 %v381
      %v454 = vunpack.c.l.b16 %v382
      %v455 = vunpack.c.l.b16 %v383
      %v456 = vunpack.c.l.b16 %v384
      %v457 = vunpack.c.l.b16 %v385
      %v458 = vunpack.c.l.b16 %v386
      %v459 = vunpack.c.l.b16 %v387
      %v460 = vunpack.c.l.b16 %v388
      %v461 = vunpack.c.l.b16 %v389
      %v462 = vunpack.c.l.b16 %v390
      %v463 = vunpack.c.l.b16 %v391
      %v464 = vunpack.c.l.b16 %v392
      %v465 = vunpack.c.l.b16 %v393
      %v466 = vunpack.c.l.b16 %v394
      %v467 = vunpack.c.l.b16 %v395
      %v468 = vunpack.c.l.b16 %v396
      %v469 = vunpack.c.l.b16 %v397
      %v470 = vunpack.c.l.b16 %v398
      %v471 = vunpack.c.l.b16 %v399
      %v472 = vunpack.c.l.b16 %v400
      %v473 = vunpack.c.l.b16 %v401
      %v474 = vpack.c.b16 %v443, %v442
      %v475 = vpack.c.b16 %v445, %v444
      %v476 = vpack.c.b16 %v447, %v446
      %v477 = vpack.c.b16 %v449, %v448
      %v478 = vpack.c.b16 %v451, %v450
      %v479 = vpack.c.b16 %v453, %v452
      %v480 = vpack.c.b16 %v455, %v454
      %v481 = vpack.c.b16 %v457, %v456
      %v482 = vpack.c.b16 %v459, %v458
      %v483 = vpack.c.b16 %v461, %v460
      %v484 = vpack.c.b16 %v463, %v462
      %v485 = vpack.c.b16 %v465, %v464
      %v486 = vpack.c.b16 %v467, %v466
      %v487 = vpack.c.b16 %v469, %v468
      %v488 = vpack.c.b16 %v471, %v470
      %v489 = vpack.c.b16 %v473, %v472
      %v498 = vunpack.c.l.b16 %v402
      %v499 = vunpack.c.l.b16 %v403
      %v500 = vunpack.c.l.b16 %v404
      %v501 = vunpack.c.l.b16 %v405
      %v502 = vunpack.c.l.b16 %v406
      %v503 = vunpack.c.l.b16 %v407
      %v504 = vunpack.c.l.b16 %v408
      %v505 = vunpack.c.l.b16 %v409
      %v506 = vpack.c.b16 %v499, %v498
      %v507 = vpack.c.b16 %v501, %v500
      %v508 = vpack.c.b16 %v503, %v502
      %v509 = vpack.c.b16 %v505, %v504
      %vm514 = vcmask 523264
      %v516 = vsel %vm514, %v474, 0
      %v519 = vsel %vm514, %v475, 0
      %v522 = vsel %vm514, %v476, 0
      %v525 = vsel %vm514, %v477, 0
      %v528 = vsel %vm514, %v478, 0
      %v531 = vsel %vm514, %v479, 0
      %v534 = vsel %vm514, %v480, 0
      %v537 = vsel %vm514, %v481, 0
      %v540 = vsel %vm514, %v482, 0
      %v543 = vsel %vm514, %v483, 0
      %v546 = vsel %vm514, %v484, 0
      %v549 = vsel %vm514, %v485, 0
      %v552 = vsel %vm514, %v486, 0
      %v555 = vsel %vm514, %v487, 0
      %v558 = vsel %vm514, %v488, 0
      %v561 = vsel %vm514, %v489, 0
      %563 = vmatprep.subr.bf16.mxu0 0
      %564 = vmatpush1.bf16.msra.mxu0 %v506
      %565 = vmatprep.subr.bf16.mxu0 0
      %566 = vmatpush1.bf16.msra.mxu0 %v507
      %567 = vmatprep.subr.bf16.mxu0 0
      %568 = vmatpush1.bf16.msra.mxu0 %v508
      %569 = vmatprep.subr.bf16.mxu0 0
      %570 = vmatpush1.bf16.msra.mxu0 %v509
      %571 = vmatprep.subr.bf16.mxu0 0
      %572 = vmatpush1.bf16.msra.mxu0 0
      %573 = vmatprep.subr.bf16.mxu0 0
      %574 = vmatpush1.bf16.msra.mxu0 0
      %575 = vmatprep.subr.bf16.mxu0 0
      %576 = vmatpush1.bf16.msra.mxu0 0
      %577 = vmatprep.subr.bf16.mxu0 0
      %578 = vmatpush1.bf16.msra.mxu0 0
      %579 = vmatprep.subr.bf16.mxu0 0
      %580 = vmatpush1.bf16.msra.mxu0 0
      %581 = vmatprep.subr.bf16.mxu0 0
      %582 = vmatpush1.bf16.msra.mxu0 0
      %583 = vmatprep.subr.bf16.mxu0 0
      %584 = vmatpush1.bf16.msra.mxu0 0
      %585 = vmatprep.subr.bf16.mxu0 0
      %586 = vmatpush1.bf16.msra.mxu0 0
      %587 = vmatprep.subr.bf16.mxu0 0
      %588 = vmatpush1.bf16.msra.mxu0 0
      %589 = vmatprep.subr.bf16.mxu0 0
      %590 = vmatpush1.bf16.msra.mxu0 0
      %591 = vmatprep.subr.bf16.mxu0 0
      %592 = vmatpush1.bf16.msra.mxu0 0
      %593 = vmatprep.subr.bf16.mxu0 0
      %594 = vmatpush1.bf16.msra.mxu0 0
      %595 = vmatprep.mubr.bf16.mxu0 0
      %596 = vmatmul.mubr.bf16.gmra.mrb[0].mxu0 %v516
      %v597 = vpop.f32.mrb[0].mxu0
      %v598 = vadd.f32 0.0, %v597
      %v599 = vpop.f32.mrb[0].mxu0
      %v600 = vpop.f32.mrb[0].mxu0
      %v601 = vadd.f32 0.0, %v600
      %v602 = vpop.f32.mrb[0].mxu0
      %603 = vmatprep.mubr.bf16.mxu0 0
      %604 = vmatmul.mubr.bf16.gmra.mrb[0].mxu0 %v519
      %v605 = vpop.f32.mrb[0].mxu0
      %v606 = vadd.f32 0.0, %v605
      %v607 = vpop.f32.mrb[0].mxu0
      %v608 = vpop.f32.mrb[0].mxu0
      %v609 = vadd.f32 0.0, %v608
      %v610 = vpop.f32.mrb[0].mxu0
      %611 = vmatprep.mubr.bf16.mxu0 0
      %612 = vmatmul.mubr.bf16.gmra.mrb[0].mxu0 %v522
      %v613 = vpop.f32.mrb[0].mxu0
      %v614 = vadd.f32 0.0, %v613
      %v615 = vpop.f32.mrb[0].mxu0
      %v616 = vpop.f32.mrb[0].mxu0
      %v617 = vadd.f32 0.0, %v616
      %v618 = vpop.f32.mrb[0].mxu0
      %619 = vmatprep.mubr.bf16.mxu0 0
      %620 = vmatmul.mubr.bf16.gmra.mrb[0].mxu0 %v525
      %v621 = vpop.f32.mrb[0].mxu0
      %v622 = vadd.f32 0.0, %v621
      %v623 = vpop.f32.mrb[0].mxu0
      %v624 = vpop.f32.mrb[0].mxu0
      %v625 = vadd.f32 0.0, %v624
      %v626 = vpop.f32.mrb[0].mxu0
      %627 = vmatprep.mubr.bf16.mxu0 0
      %628 = vmatmul.mubr.bf16.gmra.mrb[0].mxu0 %v528
      %v629 = vpop.f32.mrb[0].mxu0
      %v630 = vadd.f32 0.0, %v629
      %v631 = vpop.f32.mrb[0].mxu0
      %v632 = vpop.f32.mrb[0].mxu0
      %v633 = vadd.f32 0.0, %v632
      %v634 = vpop.f32.mrb[0].mxu0
      %635 = vmatprep.mubr.bf16.mxu0 0
      %636 = vmatmul.mubr.bf16.gmra.mrb[0].mxu0 %v531
      %v637 = vpop.f32.mrb[0].mxu0
      %v638 = vadd.f32 0.0, %v637
      %v639 = vpop.f32.mrb[0].mxu0
      %v640 = vpop.f32.mrb[0].mxu0
      %v641 = vadd.f32 0.0, %v640
      %v642 = vpop.f32.mrb[0].mxu0
      %643 = vmatprep.mubr.bf16.mxu0 0
      %644 = vmatmul.mubr.bf16.gmra.mrb[0].mxu0 %v534
      %v645 = vpop.f32.mrb[0].mxu0
      %v646 = vadd.f32 0.0, %v645
      %v647 = vpop.f32.mrb[0].mxu0
      %v648 = vpop.f32.mrb[0].mxu0
      %v649 = vadd.f32 0.0, %v648
      %v650 = vpop.f32.mrb[0].mxu0
      %651 = vmatprep.mubr.bf16.mxu0 0
      %652 = vmatmul.mubr.bf16.gmra.mrb[0].mxu0 %v537
      %v653 = vpop.f32.mrb[0].mxu0
      %v654 = vadd.f32 0.0, %v653
      %v655 = vpop.f32.mrb[0].mxu0
      %v656 = vpop.f32.mrb[0].mxu0
      %v657 = vadd.f32 0.0, %v656
      %v658 = vpop.f32.mrb[0].mxu0
      %659 = vmatprep.mubr.bf16.mxu0 0
      %660 = vmatmul.mubr.bf16.gmra.mrb[0].mxu0 %v540
      %v661 = vpop.f32.mrb[0].mxu0
      %v662 = vadd.f32 0.0, %v661
      %v663 = vpop.f32.mrb[0].mxu0
      %v664 = vpop.f32.mrb[0].mxu0
      %v665 = vadd.f32 0.0, %v664
      %v666 = vpop.f32.mrb[0].mxu0
      %667 = vmatprep.mubr.bf16.mxu0 0
      %668 = vmatmul.mubr.bf16.gmra.mrb[0].mxu0 %v543
      %v669 = vpop.f32.mrb[0].mxu0
      %v670 = vadd.f32 0.0, %v669
      %v671 = vpop.f32.mrb[0].mxu0
      %v672 = vpop.f32.mrb[0].mxu0
      %v673 = vadd.f32 0.0, %v672
      %v674 = vpop.f32.mrb[0].mxu0
      %675 = vmatprep.mubr.bf16.mxu0 0
      %676 = vmatmul.mubr.bf16.gmra.mrb[0].mxu0 %v546
      %v677 = vpop.f32.mrb[0].mxu0
      %v678 = vadd.f32 0.0, %v677
      %v679 = vpop.f32.mrb[0].mxu0
      %v680 = vpop.f32.mrb[0].mxu0
      %v681 = vadd.f32 0.0, %v680
      %v682 = vpop.f32.mrb[0].mxu0
      %683 = vmatprep.mubr.bf16.mxu0 0
      %684 = vmatmul.mubr.bf16.gmra.mrb[0].mxu0 %v549
      %v685 = vpop.f32.mrb[0].mxu0
      %v686 = vadd.f32 0.0, %v685
      %v687 = vpop.f32.mrb[0].mxu0
      %v688 = vpop.f32.mrb[0].mxu0
      %v689 = vadd.f32 0.0, %v688
      %v690 = vpop.f32.mrb[0].mxu0
      %691 = vmatprep.mubr.bf16.mxu0 0
      %692 = vmatmul.mubr.bf16.gmra.mrb[0].mxu0 %v552
      %v693 = vpop.f32.mrb[0].mxu0
      %v694 = vadd.f32 0.0, %v693
      %v695 = vpop.f32.mrb[0].mxu0
      %v696 = vpop.f32.mrb[0].mxu0
      %v697 = vadd.f32 0.0, %v696
      %v698 = vpop.f32.mrb[0].mxu0
      %699 = vmatprep.mubr.bf16.mxu0 0
      %700 = vmatmul.mubr.bf16.gmra.mrb[0].mxu0 %v555
      %v701 = vpop.f32.mrb[0].mxu0
      %v702 = vadd.f32 0.0, %v701
      %v703 = vpop.f32.mrb[0].mxu0
      %v704 = vpop.f32.mrb[0].mxu0
      %v705 = vadd.f32 0.0, %v704
      %v706 = vpop.f32.mrb[0].mxu0
      %707 = vmatprep.mubr.bf16.mxu0 0
      %708 = vmatmul.mubr.bf16.gmra.mrb[0].mxu0 %v558
      %v709 = vpop.f32.mrb[0].mxu0
      %v710 = vadd.f32 0.0, %v709
      %v711 = vpop.f32.mrb[0].mxu0
      %v712 = vpop.f32.mrb[0].mxu0
      %v713 = vadd.f32 0.0, %v712
      %v714 = vpop.f32.mrb[0].mxu0
      %715 = vmatprep.mubr.bf16.mxu0 0
      %716 = vmatmul.mubr.bf16.gmra.mrb[0].mxu0 %v561
      %v717 = vpop.f32.mrb[0].mxu0
      %v718 = vadd.f32 0.0, %v717
      %v719 = vpop.f32.mrb[0].mxu0
      %v720 = vpop.f32.mrb[0].mxu0
      %v721 = vadd.f32 0.0, %v720
      %v722 = vpop.f32.mrb[0].mxu0
      %723 = vdwg.mxu0
      %v724 = vadd.f32 %v338, %v598
      %v725 = vadd.f32 %v339, %v601
      %v726 = vadd.f32 %v340, %v606
      %v727 = vadd.f32 %v341, %v609
      %v728 = vadd.f32 %v342, %v614
      %v729 = vadd.f32 %v343, %v617
      %v730 = vadd.f32 %v344, %v622
      %v731 = vadd.f32 %v345, %v625
      %v732 = vadd.f32 %v346, %v630
      %v733 = vadd.f32 %v347, %v633
      %v734 = vadd.f32 %v348, %v638
      %v735 = vadd.f32 %v349, %v641
      %v736 = vadd.f32 %v350, %v646
      %v737 = vadd.f32 %v351, %v649
      %v738 = vadd.f32 %v352, %v654
      %v739 = vadd.f32 %v353, %v657
      %v740 = vadd.f32 %v354, %v662
      %v741 = vadd.f32 %v355, %v665
      %v742 = vadd.f32 %v356, %v670
      %v743 = vadd.f32 %v357, %v673
      %v744 = vadd.f32 %v358, %v678
      %v745 = vadd.f32 %v359, %v681
      %v746 = vadd.f32 %v360, %v686
      %v747 = vadd.f32 %v361, %v689
      %v748 = vadd.f32 %v362, %v694
      %v749 = vadd.f32 %v363, %v697
      %v750 = vadd.f32 %v364, %v702
      %v751 = vadd.f32 %v365, %v705
      %v752 = vadd.f32 %v366, %v710
      %v753 = vadd.f32 %v367, %v713
      %v754 = vadd.f32 %v368, %v718
      %v755 = vadd.f32 %v369, %v721
      %vm756 = vcmask 261120
      %757 = vst.msk [vmem:[#allocation2] sm:$0xff] %vm756, %v724
      %758 = vst.msk [vmem:[#allocation2 + $0x8] sm:$0xff] %vm756, %v725
      %759 = vst.msk [vmem:[#allocation2 + $0x10] sm:$0xff] %vm756, %v726
      %760 = vst.msk [vmem:[#allocation2 + $0x18] sm:$0xff] %vm756, %v727
      %761 = vst.msk [vmem:[#allocation2 + $0x20] sm:$0xff] %vm756, %v728
      %762 = vst.msk [vmem:[#allocation2 + $0x28] sm:$0xff] %vm756, %v729
      %763 = vst.msk [vmem:[#allocation2 + $0x30] sm:$0xff] %vm756, %v730
      %764 = vst.msk [vmem:[#allocation2 + $0x38] sm:$0xff] %vm756, %v731
      %765 = vst.msk [vmem:[#allocation2 + $0x40] sm:$0xff] %vm756, %v732
      %766 = vst.msk [vmem:[#allocation2 + $0x48] sm:$0xff] %vm756, %v733
      %767 = vst.msk [vmem:[#allocation2 + $0x50] sm:$0xff] %vm756, %v734
      %768 = vst.msk [vmem:[#allocation2 + $0x58] sm:$0xff] %vm756, %v735
      %769 = vst.msk [vmem:[#allocation2 + $0x60] sm:$0xff] %vm756, %v736
      %770 = vst.msk [vmem:[#allocation2 + $0x68] sm:$0xff] %vm756, %v737
      %771 = vst.msk [vmem:[#allocation2 + $0x70] sm:$0xff] %vm756, %v738
      %772 = vst.msk [vmem:[#allocation2 + $0x78] sm:$0xff] %vm756, %v739
      %773 = vst.msk [vmem:[#allocation2 + $0x80] sm:$0xff] %vm756, %v740
      %774 = vst.msk [vmem:[#allocation2 + $0x88] sm:$0xff] %vm756, %v741
      %775 = vst.msk [vmem:[#allocation2 + $0x90] sm:$0xff] %vm756, %v742
      %776 = vst.msk [vmem:[#allocation2 + $0x98] sm:$0xff] %vm756, %v743
      %777 = vst.msk [vmem:[#allocation2 + $0xa0] sm:$0xff] %vm756, %v744
      %778 = vst.msk [vmem:[#allocation2 + $0xa8] sm:$0xff] %vm756, %v745
      %779 = vst.msk [vmem:[#allocation2 + $0xb0] sm:$0xff] %vm756, %v746
      %780 = vst.msk [vmem:[#allocation2 + $0xb8] sm:$0xff] %vm756, %v747
      %781 = vst.msk [vmem:[#allocation2 + $0xc0] sm:$0xff] %vm756, %v748
      %782 = vst.msk [vmem:[#allocation2 + $0xc8] sm:$0xff] %vm756, %v749
      %783 = vst.msk [vmem:[#allocation2 + $0xd0] sm:$0xff] %vm756, %v750
      %784 = vst.msk [vmem:[#allocation2 + $0xd8] sm:$0xff] %vm756, %v751
      %785 = vst.msk [vmem:[#allocation2 + $0xe0] sm:$0xff] %vm756, %v752
      %786 = vst.msk [vmem:[#allocation2 + $0xe8] sm:$0xff] %vm756, %v753
      %787 = vst.msk [vmem:[#allocation2 + $0xf0] sm:$0xff] %vm756, %v754
      %788 = vst.msk [vmem:[#allocation2 + $0xf8] sm:$0xff] %vm756, %v755
      // Predicated region
      $region41: #{bottleneck_forward.4} parent=35 // pred_check
        %p789 = pneg %p301
      $region42: #{bottleneck_forward.4} parent=35 // pred_check_branch
        %791 = sbr.rel (%p789) target = $region44
      $region43: #{bottleneck_forward.4} parent=35 // pred_region
        %v792 = vld [vmem:[#allocation2] sm:$0xff]
        %v793 = vld [vmem:[#allocation2 + $0x8] sm:$0xff]
        %v794 = vld [vmem:[#allocation2 + $0x10] sm:$0xff]
        %v795 = vld [vmem:[#allocation2 + $0x18] sm:$0xff]
        %v796 = vld [vmem:[#allocation2 + $0x20] sm:$0xff]
        %v797 = vld [vmem:[#allocation2 + $0x28] sm:$0xff]
        %v798 = vld [vmem:[#allocation2 + $0x30] sm:$0xff]
        %v799 = vld [vmem:[#allocation2 + $0x38] sm:$0xff]
        %v800 = vld [vmem:[#allocation2 + $0x40] sm:$0xff]
        %v801 = vld [vmem:[#allocation2 + $0x48] sm:$0xff]
        %v802 = vld [vmem:[#allocation2 + $0x50] sm:$0xff]
        %v803 = vld [vmem:[#allocation2 + $0x58] sm:$0xff]
        %v804 = vld [vmem:[#allocation2 + $0x60] sm:$0xff]
        %v805 = vld [vmem:[#allocation2 + $0x68] sm:$0xff]
        %v806 = vld [vmem:[#allocation2 + $0x70] sm:$0xff]
        %v807 = vld [vmem:[#allocation2 + $0x78] sm:$0xff]
        %v808 = vld [vmem:[#allocation2 + $0x80] sm:$0xff]
        %v809 = vld [vmem:[#allocation2 + $0x88] sm:$0xff]
        %v810 = vld [vmem:[#allocation2 + $0x90] sm:$0xff]
        %v811 = vld [vmem:[#allocation2 + $0x98] sm:$0xff]
        %v812 = vld [vmem:[#allocation2 + $0xa0] sm:$0xff]
        %v813 = vld [vmem:[#allocation2 + $0xa8] sm:$0xff]
        %v814 = vld [vmem:[#allocation2 + $0xb0] sm:$0xff]
        %v815 = vld [vmem:[#allocation2 + $0xb8] sm:$0xff]
        %v816 = vld [vmem:[#allocation2 + $0xc0] sm:$0xff]
        %v817 = vld [vmem:[#allocation2 + $0xc8] sm:$0xff]
        %v818 = vld [vmem:[#allocation2 + $0xd0] sm:$0xff]
        %v819 = vld [vmem:[#allocation2 + $0xd8] sm:$0xff]
        %v820 = vld [vmem:[#allocation2 + $0xe0] sm:$0xff]
        %v821 = vld [vmem:[#allocation2 + $0xe8] sm:$0xff]
        %v822 = vld [vmem:[#allocation2 + $0xf0] sm:$0xff]
        %v823 = vld [vmem:[#allocation2 + $0xf8] sm:$0xff]
        %v824 = vld [vmem:[%s287] sm:$0x1]
        %v826 = vlaneseq
        %v827 = vshrl.u32 %v826, 7
        %v828 = vsub.s32 0, %v827
        %v829 = vrot.slane %v824, %v828
        %v831 = vmul.f32 %v792, %v829
        %v832 = vmul.f32 %v793, %v829
        %v833 = vmul.f32 %v794, %v829
        %v834 = vmul.f32 %v795, %v829
        %v835 = vmul.f32 %v796, %v829
        %v836 = vmul.f32 %v797, %v829
        %v837 = vmul.f32 %v798, %v829
        %v838 = vmul.f32 %v799, %v829
        %v839 = vmul.f32 %v800, %v829
        %v840 = vmul.f32 %v801, %v829
        %v841 = vmul.f32 %v802, %v829
        %v842 = vmul.f32 %v803, %v829
        %v843 = vmul.f32 %v804, %v829
        %v844 = vmul.f32 %v805, %v829
        %v845 = vmul.f32 %v806, %v829
        %v846 = vmul.f32 %v807, %v829
        %v847 = vmul.f32 %v808, %v829
        %v848 = vmul.f32 %v809, %v829
        %v849 = vmul.f32 %v810, %v829
        %v850 = vmul.f32 %v811, %v829
        %v851 = vmul.f32 %v812, %v829
        %v852 = vmul.f32 %v813, %v829
        %v853 = vmul.f32 %v814, %v829
        %v854 = vmul.f32 %v815, %v829
        %v855 = vmul.f32 %v816, %v829
        %v856 = vmul.f32 %v817, %v829
        %v857 = vmul.f32 %v818, %v829
        %v858 = vmul.f32 %v819, %v829
        %v859 = vmul.f32 %v820, %v829
        %v860 = vmul.f32 %v821, %v829
        %v861 = vmul.f32 %v822, %v829
        %v862 = vmul.f32 %v823, %v829
        %v863 = vld [vmem:[%s290] sm:$0x1]
        %v865 = vlaneseq
        %v866 = vshrl.u32 %v865, 7
        %v867 = vsub.s32 0, %v866
        %v868 = vrot.slane %v863, %v867
        %v870 = vadd.f32 %v831, %v868
        %v871 = vadd.f32 %v832, %v868
        %v872 = vadd.f32 %v833, %v868
        %v873 = vadd.f32 %v834, %v868
        %v874 = vadd.f32 %v835, %v868
        %v875 = vadd.f32 %v836, %v868
        %v876 = vadd.f32 %v837, %v868
        %v877 = vadd.f32 %v838, %v868
        %v878 = vadd.f32 %v839, %v868
        %v879 = vadd.f32 %v840, %v868
        %v880 = vadd.f32 %v841, %v868
        %v881 = vadd.f32 %v842, %v868
        %v882 = vadd.f32 %v843, %v868
        %v883 = vadd.f32 %v844, %v868
        %v884 = vadd.f32 %v845, %v868
        %v885 = vadd.f32 %v846, %v868
        %v886 = vadd.f32 %v847, %v868
        %v887 = vadd.f32 %v848, %v868
        %v888 = vadd.f32 %v849, %v868
        %v889 = vadd.f32 %v850, %v868
        %v890 = vadd.f32 %v851, %v868
        %v891 = vadd.f32 %v852, %v868
        %v892 = vadd.f32 %v853, %v868
        %v893 = vadd.f32 %v854, %v868
        %v894 = vadd.f32 %v855, %v868
        %v895 = vadd.f32 %v856, %v868
        %v896 = vadd.f32 %v857, %v868
        %v897 = vadd.f32 %v858, %v868
        %v898 = vadd.f32 %v859, %v868
        %v899 = vadd.f32 %v860, %v868
        %v900 = vadd.f32 %v861, %v868
        %v901 = vadd.f32 %v862, %v868
        %v902 = vmax.f32 %v870, 0.0
        %v903 = vmax.f32 %v871, 0.0
        %v904 = vmax.f32 %v872, 0.0
        %v905 = vmax.f32 %v873, 0.0
        %v906 = vmax.f32 %v874, 0.0
        %v907 = vmax.f32 %v875, 0.0
        %v908 = vmax.f32 %v876, 0.0
        %v909 = vmax.f32 %v877, 0.0
        %v910 = vmax.f32 %v878, 0.0
        %v911 = vmax.f32 %v879, 0.0
        %v912 = vmax.f32 %v880, 0.0
        %v913 = vmax.f32 %v881, 0.0
        %v914 = vmax.f32 %v882, 0.0
        %v915 = vmax.f32 %v883, 0.0
        %v916 = vmax.f32 %v884, 0.0
        %v917 = vmax.f32 %v885, 0.0
        %v918 = vmax.f32 %v886, 0.0
        %v919 = vmax.f32 %v887, 0.0
        %v920 = vmax.f32 %v888, 0.0
        %v921 = vmax.f32 %v889, 0.0
        %v922 = vmax.f32 %v890, 0.0
        %v923 = vmax.f32 %v891, 0.0
        %v924 = vmax.f32 %v892, 0.0
        %v925 = vmax.f32 %v893, 0.0
        %v926 = vmax.f32 %v894, 0.0
        %v927 = vmax.f32 %v895, 0.0
        %v928 = vmax.f32 %v896, 0.0
        %v929 = vmax.f32 %v897, 0.0
        %v930 = vmax.f32 %v898, 0.0
        %v931 = vmax.f32 %v899, 0.0
        %v932 = vmax.f32 %v900, 0.0
        %v933 = vmax.f32 %v901, 0.0
        %v934 = vpack.c.bf16 %v903, %v902
        %v935 = vpack.c.bf16 %v905, %v904
        %v936 = vpack.c.bf16 %v907, %v906
        %v937 = vpack.c.bf16 %v909, %v908
        %v938 = vpack.c.bf16 %v911, %v910
        %v939 = vpack.c.bf16 %v913, %v912
        %v940 = vpack.c.bf16 %v915, %v914
        %v941 = vpack.c.bf16 %v917, %v916
        %v942 = vpack.c.bf16 %v919, %v918
        %v943 = vpack.c.bf16 %v921, %v920
        %v944 = vpack.c.bf16 %v923, %v922
        %v945 = vpack.c.bf16 %v925, %v924
        %v946 = vpack.c.bf16 %v927, %v926
        %v947 = vpack.c.bf16 %v929, %v928
        %v948 = vpack.c.bf16 %v931, %v930
        %v949 = vpack.c.bf16 %v933, %v932
        %v966 = vunpack.c.l.b16 %v934
        %v967 = vunpack.c.h.b16 %v934
        %v968 = vunpack.c.l.b16 %v935
        %v969 = vunpack.c.h.b16 %v935
        %v970 = vunpack.c.l.b16 %v936
        %v971 = vunpack.c.h.b16 %v936
        %v972 = vunpack.c.l.b16 %v937
        %v973 = vunpack.c.h.b16 %v937
        %v974 = vunpack.c.l.b16 %v938
        %v975 = vunpack.c.h.b16 %v938
        %v976 = vunpack.c.l.b16 %v939
        %v977 = vunpack.c.h.b16 %v939
        %v978 = vunpack.c.l.b16 %v940
        %v979 = vunpack.c.h.b16 %v940
        %v980 = vunpack.c.l.b16 %v941
        %v981 = vunpack.c.h.b16 %v941
        %v982 = vunpack.c.l.b16 %v942
        %v983 = vunpack.c.h.b16 %v942
        %v984 = vunpack.c.l.b16 %v943
        %v985 = vunpack.c.h.b16 %v943
        %v986 = vunpack.c.l.b16 %v944
        %v987 = vunpack.c.h.b16 %v944
        %v988 = vunpack.c.l.b16 %v945
        %v989 = vunpack.c.h.b16 %v945
        %v990 = vunpack.c.l.b16 %v946
        %v991 = vunpack.c.h.b16 %v946
        %v992 = vunpack.c.l.b16 %v947
        %v993 = vunpack.c.h.b16 %v947
        %v994 = vunpack.c.l.b16 %v948
        %v995 = vunpack.c.h.b16 %v948
        %v996 = vunpack.c.l.b16 %v949
        %v997 = vunpack.c.h.b16 %v949
        %v998 = vpack.c.b16 %v966, %v966
        %v999 = vpack.c.b16 %v967, %v967
        %v1000 = vpack.c.b16 %v968, %v968
        %v1001 = vpack.c.b16 %v969, %v969
        %v1002 = vpack.c.b16 %v970, %v970
        %v1003 = vpack.c.b16 %v971, %v971
        %v1004 = vpack.c.b16 %v972, %v972
        %v1005 = vpack.c.b16 %v973, %v973
        %v1006 = vpack.c.b16 %v974, %v974
        %v1007 = vpack.c.b16 %v975, %v975
        %v1008 = vpack.c.b16 %v976, %v976
        %v1009 = vpack.c.b16 %v977, %v977
        %v1010 = vpack.c.b16 %v978, %v978
        %v1011 = vpack.c.b16 %v979, %v979
        %v1012 = vpack.c.b16 %v980, %v980
        %v1013 = vpack.c.b16 %v981, %v981
        %v1014 = vpack.c.b16 %v982, %v982
        %v1015 = vpack.c.b16 %v983, %v983
        %v1016 = vpack.c.b16 %v984, %v984
        %v1017 = vpack.c.b16 %v985, %v985
        %v1018 = vpack.c.b16 %v986, %v986
        %v1019 = vpack.c.b16 %v987, %v987
        %v1020 = vpack.c.b16 %v988, %v988
        %v1021 = vpack.c.b16 %v989, %v989
        %v1022 = vpack.c.b16 %v990, %v990
        %v1023 = vpack.c.b16 %v991, %v991
        %v1024 = vpack.c.b16 %v992, %v992
        %v1025 = vpack.c.b16 %v993, %v993
        %v1026 = vpack.c.b16 %v994, %v994
        %v1027 = vpack.c.b16 %v995, %v995
        %v1028 = vpack.c.b16 %v996, %v996
        %v1029 = vpack.c.b16 %v997, %v997
        %vm1062 = vcmask 257024
        %1063 = vst.msk [vmem:[%s298] sm:$0xf] %vm1062, %v998
        %1064 = vst.msk [vmem:[%s298 + $0x4] sm:$0xf] %vm1062, %v999
        %1065 = vst.msk [vmem:[%s298 + $0x8] sm:$0xf] %vm1062, %v1000
        %1066 = vst.msk [vmem:[%s298 + $0xc] sm:$0xf] %vm1062, %v1001
        %1067 = vst.msk [vmem:[%s298 + $0x10] sm:$0xf] %vm1062, %v1002
        %1068 = vst.msk [vmem:[%s298 + $0x14] sm:$0xf] %vm1062, %v1003
        %1069 = vst.msk [vmem:[%s298 + $0x18] sm:$0xf] %vm1062, %v1004
        %1070 = vst.msk [vmem:[%s298 + $0x1c] sm:$0xf] %vm1062, %v1005
        %1071 = vst.msk [vmem:[%s298 + $0x20] sm:$0xf] %vm1062, %v1006
        %1072 = vst.msk [vmem:[%s298 + $0x24] sm:$0xf] %vm1062, %v1007
        %1073 = vst.msk [vmem:[%s298 + $0x28] sm:$0xf] %vm1062, %v1008
        %1074 = vst.msk [vmem:[%s298 + $0x2c] sm:$0xf] %vm1062, %v1009
        %1075 = vst.msk [vmem:[%s298 + $0x30] sm:$0xf] %vm1062, %v1010
        %1076 = vst.msk [vmem:[%s298 + $0x34] sm:$0xf] %vm1062, %v1011
        %1077 = vst.msk [vmem:[%s298 + $0x38] sm:$0xf] %vm1062, %v1012
        %1078 = vst.msk [vmem:[%s298 + $0x3c] sm:$0xf] %vm1062, %v1013
        %1079 = vst.msk [vmem:[%s298 + $0x40] sm:$0xf] %vm1062, %v1014
        %1080 = vst.msk [vmem:[%s298 + $0x44] sm:$0xf] %vm1062, %v1015
        %1081 = vst.msk [vmem:[%s298 + $0x48] sm:$0xf] %vm1062, %v1016
        %1082 = vst.msk [vmem:[%s298 + $0x4c] sm:$0xf] %vm1062, %v1017
        %1083 = vst.msk [vmem:[%s298 + $0x50] sm:$0xf] %vm1062, %v1018
        %1084 = vst.msk [vmem:[%s298 + $0x54] sm:$0xf] %vm1062, %v1019
        %1085 = vst.msk [vmem:[%s298 + $0x58] sm:$0xf] %vm1062, %v1020
        %1086 = vst.msk [vmem:[%s298 + $0x5c] sm:$0xf] %vm1062, %v1021
        %1087 = vst.msk [vmem:[%s298 + $0x60] sm:$0xf] %vm1062, %v1022
        %1088 = vst.msk [vmem:[%s298 + $0x64] sm:$0xf] %vm1062, %v1023
        %1089 = vst.msk [vmem:[%s298 + $0x68] sm:$0xf] %vm1062, %v1024
        %1090 = vst.msk [vmem:[%s298 + $0x6c] sm:$0xf] %vm1062, %v1025
        %1091 = vst.msk [vmem:[%s298 + $0x70] sm:$0xf] %vm1062, %v1026
        %1092 = vst.msk [vmem:[%s298 + $0x74] sm:$0xf] %vm1062, %v1027
        %1093 = vst.msk [vmem:[%s298 + $0x78] sm:$0xf] %vm1062, %v1028
        %1094 = vst.msk [vmem:[%s298 + $0x7c] sm:$0xf] %vm1062, %v1029
      $region44: #{bottleneck_forward.4} parent=35 // pred_fallthru
        _
      %s1095 = smul.u32 32, %s20
      %p1096 = scmp.lt.s32.totalorder %s1095, 63
      %s1097 = scalar_select %p1096, %s1095, 63
      %p1098 = scmp.lt.s32.totalorder %s21, 0
      %s1099 = scalar_select %p1098, %s21, 0
      %s1100 = sadd.s32 %s1099, %s1097
      %s1101 = smul.addr %s1100, 4
      %s1102 = scalar_lea.vmem %s4, %s1101
      // Predicated region
      $region45: #{bottleneck_forward.4} parent=35 // pred_check
        %p1103 = pneg %p162
      $region46: #{bottleneck_forward.4} parent=35 // pred_check_branch
        %1105 = sbr.rel (%p1103) target = $region48
      $region47: #{bottleneck_forward.4} parent=35 // pred_region
        %s1106 = smul.u32 32, %s20
      $region48: #{bottleneck_forward.4} parent=35 // pred_fallthru
        _
    $region36: #{bottleneck_forward.4} parent=5 // pred_fallthru
      _
    %p1107 = scmp.le.s32.totalorder 2, %s10
    // Predicated region
    $region49: #{bottleneck_forward.4} parent=5 // pred_check
      %p1108 = pneg %p1107
    $region50: #{bottleneck_forward.4} parent=5 // pred_check_branch
      %1110 = sbr.rel (%p1108) target = $region52
    $region51: #{bottleneck_forward.4} parent=5 // pred_region
      %s1111 = ssub.s32 %s10, 2
      // Predicated region
      $region53: #{bottleneck_forward.4} parent=51 // pred_check
        %p1112 = pneg %p168
      $region54: #{bottleneck_forward.4} parent=51 // pred_check_branch
        %1114 = sbr.rel (%p1112) target = $region56
      $region55: #{bottleneck_forward.4} parent=51 // pred_region
        %s1115 = smul.u32 32, %s23
        %p1116 = scmp.lt.s32.totalorder %s1115, 63
        %s1117 = scalar_select %p1116, %s1115, 63
        %p1118 = scmp.lt.s32.totalorder %s24, 0
        %s1119 = scalar_select %p1118, %s24, 0
        %s1120 = sadd.s32 %s1119, %s1117
        %s1121 = smul.addr %s1120, 4
        %s1122 = scalar_lea.vmem %s4, %s1121
      $region56: #{bottleneck_forward.4} parent=51 // pred_fallthru
        _
    $region52: #{bottleneck_forward.4} parent=5 // pred_fallthru
      _
  $region6: #{bottleneck_forward.4} parent=0 // loop_footer
    %s14 = sadd.s32 1, %s10
  $region7: #{bottleneck_forward.4} parent=0 // loop_footer_branch
    %9 = sbr.rel target = $region3
  $region8: #{bottleneck_forward.4} parent=0 // loop_exit
    _

// kernel: bottleneck_forward.7
$region0: #{bottleneck_forward.7}
  #allocation0 [shape = 'u32[]', space=smem, size = 0x4, offset = 0x4, fixed_abs, tag = 'smem constant byte address 0x4 - core index']
  #allocation1 [shape = 'u32[144,128]{1,0:T(1,128)}', space=vmem, size = 0x12000, scoped, tag = 'internal scratch']
  #allocation2 [shape = 'f32[256,128]{1,0:T(8,128)}', space=vmem, size = 0x20000, scoped, tag = 'scratch operand']
  %s0 = inlined_call_operand.vmem [shape: bf16[512,32], index: 0, kind: input, shape index: {}]
  %s1 = inlined_call_operand.vmem [shape: bf16[32,128], index: 1, kind: input, shape index: {}]
  %s2 = inlined_call_operand.vmem [shape: f32[1,128], index: 2, kind: input, shape index: {}]
  %s3 = inlined_call_operand.vmem [shape: f32[1,128], index: 3, kind: input, shape index: {}]
  %s4 = inlined_call_operand.vmem [shape: bf16[512,128], index: 4, kind: input, shape index: {}]
  %s5 = inlined_call_operand.hbm [shape: f32[512,128], index: 5, kind: output, shape index: {}]
  %s6 = sld [smem:[#allocation0]]
  $region61: #{bottleneck_forward.7} parent=0
    _
  %s8 = ssub.s32 1, %s6
  %s9 = scalar_select 0, %s8, %s6
  $region1: #{bottleneck_forward.7} parent=0
    #allocation3 [shape = 'u8[262144]{0}', space=vmem, size = 0x40000, scoped, tag = 'output window, operand 0']
    #allocation4 [shape = 's32[2]{0}', space=sflag, size = 0x8, scoped, tag = 'scoped memory for bottleneck_forward.7']
    %10 = vsyncpa [#allocation4], 0
    %s11 = scalar_lea.sflag [#allocation4], 1
    %12 = vsyncpa %s11, 0
    loop: start=0, step=1, limit=4
    $region2: #{bottleneck_forward.7} parent=1 // loop_pre_header
      _
    $region3: #{bottleneck_forward.7} parent=1 // loop_header
      %s14 = sphi 0, %s18
      %p15 = scmp.ge.s32.totalorder %s14, 4
      %s21 = sphi 0, %s40
      %s22 = sphi 0, %s36
      %s23 = sphi 0, %s32
      %s24 = sphi 0, %s21
      %s25 = sphi 0, %s22
      %s26 = sphi 0, %s23
      %s27 = sphi 0, %s24
      %s28 = sphi 0, %s25
      %s29 = sphi 0, %s26
      %s45 = sphi 0, %s47
      %s48 = sphi 0, %s45
      %s49 = sphi 0, %s48
      %s65 = sphi 0, %s49
      %s73 = sphi 0, %s75
      %s76 = sphi 0, %s73
      %s77 = sphi 0, %s76
      %s93 = sphi 0, %s77
      %s99 = sphi 0, %s101
      %s102 = sphi 0, %s99
      %s103 = sphi 0, %s102
      %s119 = sphi 0, %s103
      %s125 = sphi 0, %s127
      %s128 = sphi 0, %s125
      %s129 = sphi 0, %s128
      %s145 = sphi 0, %s129
      %s153 = sphi 0, %s155
      %s156 = sphi 0, %s153
      %s157 = sphi 0, %s156
      %s173 = sphi 0, %s157
      %s181 = sphi 0, %s183
      %s184 = sphi 0, %s181
      %s185 = sphi 0, %s184
      %s201 = sphi 0, %s185
    $region4: #{bottleneck_forward.7} parent=1 // loop_header_branch
      %17 = sbr.rel (%p15) target = $region8
    $region5: #{bottleneck_forward.7} parent=1 // loop_body
      %s19 = ssub.s32 %s14, 1
      %s20 = ssub.s32 %s14, 2
      %s30 = sadd.s32 1, %s23
      %p31 = scmp.ge.s32.totalorder %s30, 1
      %s32 = scalar_select %p31, 0, %s30
      %s33 = sadd.s32 1, %s22
      %s34 = scalar_select %p31, %s33, %s22
      %p35 = scmp.ge.s32.totalorder %s34, 1
      %s36 = scalar_select %p35, 0, %s34
      %s37 = sadd.s32 1, %s21
      %s38 = scalar_select %p35, %s37, %s21
      %p39 = scmp.ge.s32.totalorder %s38, 2
      %s40 = scalar_select %p39, 0, %s38
      %s41 = ssub.s32 %s21, %s40
      %s42 = ssub.s32 %s23, %s32
      %s43 = sor.u32 %s41, %s42
      %p44 = scmp.eq.s32.totalorder %s43, 0
      %s46 = sadd.s32 %s45, 1
      %s47 = scalar_select %p44, %s45, %s46
      %p50 = pneg %p44
      %p51 = scmp.eq.s32.totalorder %s14, 1
      %p52 = por %p50, %p51
      %p53 = scmp.ne.s32.totalorder %s45, %s48
      %p54 = scmp.eq.s32.totalorder %s14, 0
      %p55 = por %p53, %p54
      %p56 = scmp.ne.s32.totalorder %s45, %s48
      %p57 = scmp.eq.s32.totalorder %s19, 1
      %p58 = por %p56, %p57
      %p59 = scmp.ne.s32.totalorder %s48, %s49
      %p60 = scmp.eq.s32.totalorder %s19, 0
      %p61 = por %p59, %p60
      %p62 = scmp.ne.s32.totalorder %s48, %s49
      %p63 = scmp.eq.s32.totalorder %s20, 1
      %p64 = por %p62, %p63
      %p66 = scmp.ne.s32.totalorder %s49, %s65
      %p67 = scmp.eq.s32.totalorder %s20, 0
      %p68 = por %p66, %p67
      %s69 = ssub.s32 %s23, %s32
      %s70 = ssub.s32 %s22, %s36
      %s71 = sor.u32 %s69, %s70
      %p72 = scmp.eq.s32.totalorder %s71, 0
      %s74 = sadd.s32 %s73, 1
      %s75 = scalar_select %p72, %s73, %s74
      %p78 = pneg %p72
      %p79 = scmp.eq.s32.totalorder %s14, 1
      %p80 = por %p78, %p79
      %p81 = scmp.ne.s32.totalorder %s73, %s76
      %p82 = scmp.eq.s32.totalorder %s14, 0
      %p83 = por %p81, %p82
      %p84 = scmp.ne.s32.totalorder %s73, %s76
      %p85 = scmp.eq.s32.totalorder %s19, 1
      %p86 = por %p84, %p85
      %p87 = scmp.ne.s32.totalorder %s76, %s77
      %p88 = scmp.eq.s32.totalorder %s19, 0
      %p89 = por %p87, %p88
      %p90 = scmp.ne.s32.totalorder %s76, %s77
      %p91 = scmp.eq.s32.totalorder %s20, 1
      %p92 = por %p90, %p91
      %p94 = scmp.ne.s32.totalorder %s77, %s93
      %p95 = scmp.eq.s32.totalorder %s20, 0
      %p96 = por %p94, %p95
      %s97 = ssub.s32 %s22, %s36
      %p98 = scmp.eq.s32.totalorder %s97, 0
      %s100 = sadd.s32 %s99, 1
      %s101 = scalar_select %p98, %s99, %s100
      %p104 = pneg %p98
      %p105 = scmp.eq.s32.totalorder %s14, 1
      %p106 = por %p104, %p105
      %p107 = scmp.ne.s32.totalorder %s99, %s102
      %p108 = scmp.eq.s32.totalorder %s14, 0
      %p109 = por %p107, %p108
      %p110 = scmp.ne.s32.totalorder %s99, %s102
      %p111 = scmp.eq.s32.totalorder %s19, 1
      %p112 = por %p110, %p111
      %p113 = scmp.ne.s32.totalorder %s102, %s103
      %p114 = scmp.eq.s32.totalorder %s19, 0
      %p115 = por %p113, %p114
      %p116 = scmp.ne.s32.totalorder %s102, %s103
      %p117 = scmp.eq.s32.totalorder %s20, 1
      %p118 = por %p116, %p117
      %p120 = scmp.ne.s32.totalorder %s103, %s119
      %p121 = scmp.eq.s32.totalorder %s20, 0
      %p122 = por %p120, %p121
      %s123 = ssub.s32 %s22, %s36
      %p124 = scmp.eq.s32.totalorder %s123, 0
      %s126 = sadd.s32 %s125, 1
      %s127 = scalar_select %p124, %s125, %s126
      %p130 = pneg %p124
      %p131 = scmp.eq.s32.totalorder %s14, 1
      %p132 = por %p130, %p131
      %p133 = scmp.ne.s32.totalorder %s125, %s128
      %p134 = scmp.eq.s32.totalorder %s14, 0
      %p135 = por %p133, %p134
      %p136 = scmp.ne.s32.totalorder %s125, %s128
      %p137 = scmp.eq.s32.totalorder %s19, 1
      %p138 = por %p136, %p137
      %p139 = scmp.ne.s32.totalorder %s128, %s129
      %p140 = scmp.eq.s32.totalorder %s19, 0
      %p141 = por %p139, %p140
      %p142 = scmp.ne.s32.totalorder %s128, %s129
      %p143 = scmp.eq.s32.totalorder %s20, 1
      %p144 = por %p142, %p143
      %p146 = scmp.ne.s32.totalorder %s129, %s145
      %p147 = scmp.eq.s32.totalorder %s20, 0
      %p148 = por %p146, %p147
      %s149 = ssub.s32 %s21, %s40
      %s150 = ssub.s32 %s22, %s36
      %s151 = sor.u32 %s149, %s150
      %p152 = scmp.eq.s32.totalorder %s151, 0
      %s154 = sadd.s32 %s153, 1
      %s155 = scalar_select %p152, %s153, %s154
      %p158 = pneg %p152
      %p159 = scmp.eq.s32.totalorder %s14, 1
      %p160 = por %p158, %p159
      %p161 = scmp.ne.s32.totalorder %s153, %s156
      %p162 = scmp.eq.s32.totalorder %s14, 0
      %p163 = por %p161, %p162
      %p164 = scmp.ne.s32.totalorder %s153, %s156
      %p165 = scmp.eq.s32.totalorder %s19, 1
      %p166 = por %p164, %p165
      %p167 = scmp.ne.s32.totalorder %s156, %s157
      %p168 = scmp.eq.s32.totalorder %s19, 0
      %p169 = por %p167, %p168
      %p170 = scmp.ne.s32.totalorder %s156, %s157
      %p171 = scmp.eq.s32.totalorder %s20, 1
      %p172 = por %p170, %p171
      %p174 = scmp.ne.s32.totalorder %s157, %s173
      %p175 = scmp.eq.s32.totalorder %s20, 0
      %p176 = por %p174, %p175
      %s177 = ssub.s32 %s21, %s40
      %s178 = ssub.s32 %s22, %s36
      %s179 = sor.u32 %s177, %s178
      %p180 = scmp.eq.s32.totalorder %s179, 0
      %s182 = sadd.s32 %s181, 1
      %s183 = scalar_select %p180, %s181, %s182
      %p186 = pneg %p180
      %p187 = scmp.eq.s32.totalorder %s14, 1
      %p188 = por %p186, %p187
      %p189 = scmp.ne.s32.totalorder %s181, %s184
      %p190 = scmp.eq.s32.totalorder %s14, 0
      %p191 = por %p189, %p190
      %p192 = scmp.ne.s32.totalorder %s181, %s184
      %p193 = scmp.eq.s32.totalorder %s19, 1
      %p194 = por %p192, %p193
      %p195 = scmp.ne.s32.totalorder %s184, %s185
      %p196 = scmp.eq.s32.totalorder %s19, 0
      %p197 = por %p195, %p196
      %p198 = scmp.ne.s32.totalorder %s184, %s185
      %p199 = scmp.eq.s32.totalorder %s20, 1
      %p200 = por %p198, %p199
      %p202 = scmp.ne.s32.totalorder %s185, %s201
      %p203 = scmp.eq.s32.totalorder %s20, 0
      %p204 = por %p202, %p203
      %p205 = scmp.le.s32.totalorder 1, %s14
      %p206 = scmp.lt.s32.totalorder %s14, 3
      %p207 = pnand %p205, %p206
      %p208 = pneg %p207
      // Predicated region
      $region9: #{bottleneck_forward.7} parent=5 // pred_check
        _
      $region10: #{bottleneck_forward.7} parent=5 // pred_check_branch
        %210 = sbr.rel (%p207) target = $region12
      $region11: #{bottleneck_forward.7} parent=5 // pred_region
        %s211 = ssub.s32 %s14, 1
        // Predicated region
        $region13: #{bottleneck_forward.7} parent=11 // pred_check
          %p212 = pneg %p89
        $region14: #{bottleneck_forward.7} parent=11 // pred_check_branch
          %214 = sbr.rel (%p212) target = $region16
        $region15: #{bottleneck_forward.7} parent=11 // pred_region
          %s215 = smul.u32 4, %s26
          %p216 = scmp.lt.s32.totalorder %s215, 3
          %s217 = scalar_select %p216, %s215, 3
          %p218 = scmp.lt.s32.totalorder %s25, 0
          %s219 = scalar_select %p218, %s25, 0
          %s220 = sadd.s32 %s219, %s217
          %s221 = smul.addr %s220, 4
          %s222 = scalar_lea.vmem %s1, %s221
          %s223 = smul.u32 4, %s26
        $region16: #{bottleneck_forward.7} parent=11 // pred_fallthru
          _
        // Predicated region
        $region17: #{bottleneck_forward.7} parent=11 // pred_check
          %p224 = pneg %p115
        $region18: #{bottleneck_forward.7} parent=11 // pred_check_branch
          %226 = sbr.rel (%p224) target = $region20
        $region19: #{bottleneck_forward.7} parent=11 // pred_region
          %p227 = scmp.lt.s32.totalorder %s25, 0
          %s228 = scalar_select %p227, %s25, 0
          %s229 = scalar_lea.vmem %s2, %s228
        $region20: #{bottleneck_forward.7} parent=11 // pred_fallthru
          _
        // Predicated region
        $region21: #{bottleneck_forward.7} parent=11 // pred_check
          %p230 = pneg %p141
        $region22: #{bottleneck_forward.7} parent=11 // pred_check_branch
          %232 = sbr.rel (%p230) target = $region24
        $region23: #{bottleneck_forward.7} parent=11 // pred_region
          %p233 = scmp.lt.s32.totalorder %s25, 0
          %s234 = scalar_select %p233, %s25, 0
          %s235 = scalar_lea.vmem %s3, %s234
        $region24: #{bottleneck_forward.7} parent=11 // pred_fallthru
          _
      $region12: #{bottleneck_forward.7} parent=5 // pred_fallthru
        _
      %p236 = scmp.lt.s32.totalorder %s14, 2
      // Predicated region
      $region25: #{bottleneck_forward.7} parent=5 // pred_check
        %p237 = pneg %p236
      $region26: #{bottleneck_forward.7} parent=5 // pred_check_branch
        %239 = sbr.rel (%p237) target = $region28
      $region27: #{bottleneck_forward.7} parent=5 // pred_region
        // Predicated region
        $region29: #{bottleneck_forward.7} parent=27 // pred_check
          %p240 = pneg %p55
        $region30: #{bottleneck_forward.7} parent=27 // pred_check_branch
          %242 = sbr.rel (%p240) target = $region32
        $region31: #{bottleneck_forward.7} parent=27 // pred_region
          %s243 = smul.u32 32, %s21
          %p244 = scmp.lt.s32.totalorder %s243, 63
          %s245 = scalar_select %p244, %s243, 63
          %p246 = scmp.lt.s32.totalorder %s23, 0
          %s247 = scalar_select %p246, %s23, 0
          %s248 = sadd.s32 %s247, %s245
          %s249 = smul.addr %s248, 4
          %s250 = scalar_lea.vmem %s0, %s249
          %s251 = smul.u32 32, %s21
        $region32: #{bottleneck_forward.7} parent=27 // pred_fallthru
          _
        // Predicated region
        $region33: #{bottleneck_forward.7} parent=27 // pred_check
          %p252 = pneg %p163
        $region34: #{bottleneck_forward.7} parent=27 // pred_check_branch
          %254 = sbr.rel (%p252) target = $region36
        $region35: #{bottleneck_forward.7} parent=27 // pred_region
          %s255 = smul.u32 32, %s21
          %p256 = scmp.lt.s32.totalorder %s255, 63
          %s257 = scalar_select %p256, %s255, 63
          %p258 = scmp.lt.s32.totalorder %s22, 0
          %s259 = scalar_select %p258, %s22, 0
          %s260 = sadd.s32 %s259, %s257
          %s261 = smul.addr %s260, 4
          %s262 = scalar_lea.vmem %s4, %s261
          %s263 = smul.u32 32, %s21
        $region36: #{bottleneck_forward.7} parent=27 // pred_fallthru
          _
      $region28: #{bottleneck_forward.7} parent=5 // pred_fallthru
        _
      %p264 = scmp.le.s32.totalorder 1, %s14
      %p265 = scmp.lt.s32.totalorder %s14, 3
      %p266 = pnand %p264, %p265
      %p267 = pneg %p266
      // Predicated region
      $region37: #{bottleneck_forward.7} parent=5 // pred_check
        _
      $region38: #{bottleneck_forward.7} parent=5 // pred_check_branch
        %269 = sbr.rel (%p266) target = $region40
      $region39: #{bottleneck_forward.7} parent=5 // pred_region
        %s270 = ssub.s32 %s14, 1
        %s271 = smul.u32 32, %s24
        %p272 = scmp.lt.s32.totalorder %s271, 63
        %s273 = scalar_select %p272, %s271, 63
        %p274 = scmp.lt.s32.totalorder %s26, 0
        %s275 = scalar_select %p274, %s26, 0
        %s276 = sadd.s32 %s275, %s273
        %s277 = smul.addr %s276, 4
        %s278 = scalar_lea.vmem %s0, %s277
        %p279 = pneg %p61
        %p280 = pneg %p58
        %s281 = smul.u32 4, %s26
        %p282 = scmp.lt.s32.totalorder %s281, 3
        %s283 = scalar_select %p282, %s281, 3
        %p284 = scmp.lt.s32.totalorder %s25, 0
        %s285 = scalar_select %p284, %s25, 0
        %s286 = sadd.s32 %s285, %s283
        %s287 = smul.addr %s286, 4
        %s288 = scalar_lea.vmem %s1, %s287
        %p289 = pneg %p89
        %p290 = pneg %p86
        %p291 = scmp.lt.s32.totalorder %s25, 0
        %s292 = scalar_select %p291, %s25, 0
        %s293 = scalar_lea.vmem %s2, %s292
        %p294 = pneg %p115
        %p295 = pneg %p112
        %p296 = scmp.lt.s32.totalorder %s25, 0
        %s297 = scalar_select %p296, %s25, 0
        %s298 = scalar_lea.vmem %s3, %s297
        %p299 = pneg %p141
        %p300 = pneg %p138
        %s301 = smul.u32 32, %s24
        %p302 = scmp.lt.s32.totalorder %s301, 63
        %s303 = scalar_select %p302, %s301, 63
        %p304 = scmp.lt.s32.totalorder %s25, 0
        %s305 = scalar_select %p304, %s25, 0
        %s306 = sadd.s32 %s305, %s303
        %s307 = smul.addr %s306, 4
        %s308 = scalar_lea.vmem %s4, %s307
        %p309 = pneg %p169
        %p310 = pneg %p166
        %p311 = pneg %p197
        %p312 = pneg %p194
        %s313 = sand.u32 %s184, 1
        %s314 = scalar_lea.sflag [#allocation4], %s313
        %s315 = sand.u32 %s184, 1
        %s316 = smul.addr %s315, 256
        %s317 = scalar_lea.vmem [#allocation3], %s316
        %s318 = smul.u32 32, %s24
        %p319 = scmp.lt.s32.totalorder %s318, 63
        %s320 = scalar_select %p319, %s318, 63
        %p321 = scmp.lt.s32.totalorder %s26, 0
        %s322 = scalar_select %p321, %s26, 0
        %s323 = sadd.s32 %s322, %s320
        %s324 = smul.addr %s323, 4
        %s325 = scalar_lea.vmem %s0, %s324
        %s326 = smul.u32 32, %s24
        %s327 = smul.u32 4, %s26
        %p328 = scmp.lt.s32.totalorder %s327, 3
        %s329 = scalar_select %p328, %s327, 3
        %p330 = scmp.lt.s32.totalorder %s25, 0
        %s331 = scalar_select %p330, %s25, 0
        %s332 = sadd.s32 %s331, %s329
        %s333 = smul.addr %s332, 4
        %s334 = scalar_lea.vmem %s1, %s333
        %s335 = smul.u32 4, %s26
        %p336 = scmp.lt.s32.totalorder %s25, 0
        %s337 = scalar_select %p336, %s25, 0
        %s338 = scalar_lea.vmem %s2, %s337
        %p339 = scmp.lt.s32.totalorder %s25, 0
        %s340 = scalar_select %p339, %s25, 0
        %s341 = scalar_lea.vmem %s3, %s340
        %s342 = smul.u32 32, %s24
        %p343 = scmp.lt.s32.totalorder %s342, 63
        %s344 = scalar_select %p343, %s342, 63
        %p345 = scmp.lt.s32.totalorder %s25, 0
        %s346 = scalar_select %p345, %s25, 0
        %s347 = sadd.s32 %s346, %s344
        %s348 = smul.addr %s347, 4
        %s349 = scalar_lea.vmem %s4, %s348
        %s350 = smul.u32 32, %s24
        %s351 = smul.u32 32, %s24
        %p353 = scmp.eq.s32.totalorder %s26, 0
        // Predicated region
        $region41: #{bottleneck_forward.7} parent=39 // pred_check
          %p354 = pneg %p353
        $region42: #{bottleneck_forward.7} parent=39 // pred_check_branch
          %356 = sbr.rel (%p354) target = $region44
        $region43: #{bottleneck_forward.7} parent=39 // pred_region
          %357 = vst [vmem:[#allocation2] sm:$0xff] 0.0
          %358 = vst [vmem:[#allocation2 + $0x8] sm:$0xff] 0.0
          %359 = vst [vmem:[#allocation2 + $0x10] sm:$0xff] 0.0
          %360 = vst [vmem:[#allocation2 + $0x18] sm:$0xff] 0.0
          %361 = vst [vmem:[#allocation2 + $0x20] sm:$0xff] 0.0
          %362 = vst [vmem:[#allocation2 + $0x28] sm:$0xff] 0.0
          %363 = vst [vmem:[#allocation2 + $0x30] sm:$0xff] 0.0
          %364 = vst [vmem:[#allocation2 + $0x38] sm:$0xff] 0.0
          %365 = vst [vmem:[#allocation2 + $0x40] sm:$0xff] 0.0
          %366 = vst [vmem:[#allocation2 + $0x48] sm:$0xff] 0.0
          %367 = vst [vmem:[#allocation2 + $0x50] sm:$0xff] 0.0
          %368 = vst [vmem:[#allocation2 + $0x58] sm:$0xff] 0.0
          %369 = vst [vmem:[#allocation2 + $0x60] sm:$0xff] 0.0
          %370 = vst [vmem:[#allocation2 + $0x68] sm:$0xff] 0.0
          %371 = vst [vmem:[#allocation2 + $0x70] sm:$0xff] 0.0
          %372 = vst [vmem:[#allocation2 + $0x78] sm:$0xff] 0.0
          %373 = vst [vmem:[#allocation2 + $0x80] sm:$0xff] 0.0
          %374 = vst [vmem:[#allocation2 + $0x88] sm:$0xff] 0.0
          %375 = vst [vmem:[#allocation2 + $0x90] sm:$0xff] 0.0
          %376 = vst [vmem:[#allocation2 + $0x98] sm:$0xff] 0.0
          %377 = vst [vmem:[#allocation2 + $0xa0] sm:$0xff] 0.0
          %378 = vst [vmem:[#allocation2 + $0xa8] sm:$0xff] 0.0
          %379 = vst [vmem:[#allocation2 + $0xb0] sm:$0xff] 0.0
          %380 = vst [vmem:[#allocation2 + $0xb8] sm:$0xff] 0.0
          %381 = vst [vmem:[#allocation2 + $0xc0] sm:$0xff] 0.0
          %382 = vst [vmem:[#allocation2 + $0xc8] sm:$0xff] 0.0
          %383 = vst [vmem:[#allocation2 + $0xd0] sm:$0xff] 0.0
          %384 = vst [vmem:[#allocation2 + $0xd8] sm:$0xff] 0.0
          %385 = vst [vmem:[#allocation2 + $0xe0] sm:$0xff] 0.0
          %386 = vst [vmem:[#allocation2 + $0xe8] sm:$0xff] 0.0
          %387 = vst [vmem:[#allocation2 + $0xf0] sm:$0xff] 0.0
          %388 = vst [vmem:[#allocation2 + $0xf8] sm:$0xff] 0.0
        $region44: #{bottleneck_forward.7} parent=39 // pred_fallthru
          _
        %v389 = vld [vmem:[#allocation2] sm:$0xff]
        %v390 = vld [vmem:[#allocation2 + $0x8] sm:$0xff]
        %v391 = vld [vmem:[#allocation2 + $0x10] sm:$0xff]
        %v392 = vld [vmem:[#allocation2 + $0x18] sm:$0xff]
        %v393 = vld [vmem:[#allocation2 + $0x20] sm:$0xff]
        %v394 = vld [vmem:[#allocation2 + $0x28] sm:$0xff]
        %v395 = vld [vmem:[#allocation2 + $0x30] sm:$0xff]
        %v396 = vld [vmem:[#allocation2 + $0x38] sm:$0xff]
        %v397 = vld [vmem:[#allocation2 + $0x40] sm:$0xff]
        %v398 = vld [vmem:[#allocation2 + $0x48] sm:$0xff]
        %v399 = vld [vmem:[#allocation2 + $0x50] sm:$0xff]
        %v400 = vld [vmem:[#allocation2 + $0x58] sm:$0xff]
        %v401 = vld [vmem:[#allocation2 + $0x60] sm:$0xff]
        %v402 = vld [vmem:[#allocation2 + $0x68] sm:$0xff]
        %v403 = vld [vmem:[#allocation2 + $0x70] sm:$0xff]
        %v404 = vld [vmem:[#allocation2 + $0x78] sm:$0xff]
        %v405 = vld [vmem:[#allocation2 + $0x80] sm:$0xff]
        %v406 = vld [vmem:[#allocation2 + $0x88] sm:$0xff]
        %v407 = vld [vmem:[#allocation2 + $0x90] sm:$0xff]
        %v408 = vld [vmem:[#allocation2 + $0x98] sm:$0xff]
        %v409 = vld [vmem:[#allocation2 + $0xa0] sm:$0xff]
        %v410 = vld [vmem:[#allocation2 + $0xa8] sm:$0xff]
        %v411 = vld [vmem:[#allocation2 + $0xb0] sm:$0xff]
        %v412 = vld [vmem:[#allocation2 + $0xb8] sm:$0xff]
        %v413 = vld [vmem:[#allocation2 + $0xc0] sm:$0xff]
        %v414 = vld [vmem:[#allocation2 + $0xc8] sm:$0xff]
        %v415 = vld [vmem:[#allocation2 + $0xd0] sm:$0xff]
        %v416 = vld [vmem:[#allocation2 + $0xd8] sm:$0xff]
        %v417 = vld [vmem:[#allocation2 + $0xe0] sm:$0xff]
        %v418 = vld [vmem:[#allocation2 + $0xe8] sm:$0xff]
        %v419 = vld [vmem:[#allocation2 + $0xf0] sm:$0xff]
        %v420 = vld [vmem:[#allocation2 + $0xf8] sm:$0xff]
        %v421 = vld [vmem:[%s325] sm:$0xf]
        %v422 = vld [vmem:[%s325 + $0x4] sm:$0xf]
        %v423 = vld [vmem:[%s325 + $0x8] sm:$0xf]
        %v424 = vld [vmem:[%s325 + $0xc] sm:$0xf]
        %v425 = vld [vmem:[%s325 + $0x10] sm:$0xf]
        %v426 = vld [vmem:[%s325 + $0x14] sm:$0xf]
        %v427 = vld [vmem:[%s325 + $0x18] sm:$0xf]
        %v428 = vld [vmem:[%s325 + $0x1c] sm:$0xf]
        %v429 = vld [vmem:[%s325 + $0x20] sm:$0xf]
        %v430 = vld [vmem:[%s325 + $0x24] sm:$0xf]
        %v431 = vld [vmem:[%s325 + $0x28] sm:$0xf]
        %v432 = vld [vmem:[%s325 + $0x2c] sm:$0xf]
        %v433 = vld [vmem:[%s325 + $0x30] sm:$0xf]
        %v434 = vld [vmem:[%s325 + $0x34] sm:$0xf]
        %v435 = vld [vmem:[%s325 + $0x38] sm:$0xf]
        %v436 = vld [vmem:[%s325 + $0x3c] sm:$0xf]
        %v437 = vld [vmem:[%s325 + $0x40] sm:$0xf]
        %v438 = vld [vmem:[%s325 + $0x44] sm:$0xf]
        %v439 = vld [vmem:[%s325 + $0x48] sm:$0xf]
        %v440 = vld [vmem:[%s325 + $0x4c] sm:$0xf]
        %v441 = vld [vmem:[%s325 + $0x50] sm:$0xf]
        %v442 = vld [vmem:[%s325 + $0x54] sm:$0xf]
        %v443 = vld [vmem:[%s325 + $0x58] sm:$0xf]
        %v444 = vld [vmem:[%s325 + $0x5c] sm:$0xf]
        %v445 = vld [vmem:[%s325 + $0x60] sm:$0xf]
        %v446 = vld [vmem:[%s325 + $0x64] sm:$0xf]
        %v447 = vld [vmem:[%s325 + $0x68] sm:$0xf]
        %v448 = vld [vmem:[%s325 + $0x6c] sm:$0xf]
        %v449 = vld [vmem:[%s325 + $0x70] sm:$0xf]
        %v450 = vld [vmem:[%s325 + $0x74] sm:$0xf]
        %v451 = vld [vmem:[%s325 + $0x78] sm:$0xf]
        %v452 = vld [vmem:[%s325 + $0x7c] sm:$0xf]
        %v453 = vld [vmem:[%s334] sm:$0xf]
        %v454 = vld [vmem:[%s334 + $0x4] sm:$0xf]
        %v455 = vld [vmem:[%s334 + $0x8] sm:$0xf]
        %v456 = vld [vmem:[%s334 + $0xc] sm:$0xf]
        %v489 = vunpack.c.l.b16 %v421
        %v490 = vunpack.c.l.b16 %v422
        %v491 = vunpack.c.l.b16 %v423
        %v492 = vunpack.c.l.b16 %v424
        %v493 = vunpack.c.l.b16 %v425
        %v494 = vunpack.c.l.b16 %v426
        %v495 = vunpack.c.l.b16 %v427
        %v496 = vunpack.c.l.b16 %v428
        %v497 = vunpack.c.l.b16 %v429
        %v498 = vunpack.c.l.b16 %v430
        %v499 = vunpack.c.l.b16 %v431
        %v500 = vunpack.c.l.b16 %v432
        %v501 = vunpack.c.l.b16 %v433
        %v502 = vunpack.c.l.b16 %v434
        %v503 = vunpack.c.l.b16 %v435
        %v504 = vunpack.c.l.b16 %v436
        %v505 = vunpack.c.l.b16 %v437
        %v506 = vunpack.c.l.b16 %v438
        %v507 = vunpack.c.l.b16 %v439
        %v508 = vunpack.c.l.b16 %v440
        %v509 = vunpack.c.l.b16 %v441
        %v510 = vunpack.c.l.b16 %v442
        %v511 = vunpack.c.l.b16 %v443
        %v512 = vunpack.c.l.b16 %v444
        %v513 = vunpack.c.l.b16 %v445
        %v514 = vunpack.c.l.b16 %v446
        %v515 = vunpack.c.l.b16 %v447
        %v516 = vunpack.c.l.b16 %v448
        %v517 = vunpack.c.l.b16 %v449
        %v518 = vunpack.c.l.b16 %v450
        %v519 = vunpack.c.l.b16 %v451
        %v520 = vunpack.c.l.b16 %v452
        %v521 = vpack.c.b16 %v490, %v489
        %v522 = vpack.c.b16 %v492, %v491
        %v523 = vpack.c.b16 %v494, %v493
        %v524 = vpack.c.b16 %v496, %v495
        %v525 = vpack.c.b16 %v498, %v497
        %v526 = vpack.c.b16 %v500, %v499
        %v527 = vpack.c.b16 %v502, %v501
        %v528 = vpack.c.b16 %v504, %v503
        %v529 = vpack.c.b16 %v506, %v505
        %v530 = vpack.c.b16 %v508, %v507
        %v531 = vpack.c.b16 %v510, %v509
        %v532 = vpack.c.b16 %v512, %v511
        %v533 = vpack.c.b16 %v514, %v513
        %v534 = vpack.c.b16 %v516, %v515
        %v535 = vpack.c.b16 %v518, %v517
        %v536 = vpack.c.b16 %v520, %v519
        %v541 = vunpack.c.l.b16 %v453
        %v542 = vunpack.c.l.b16 %v454
        %v543 = vunpack.c.l.b16 %v455
        %v544 = vunpack.c.l.b16 %v456
        %v545 = vpack.c.b16 %v542, %v541
        %v546 = vpack.c.b16 %v544, %v543
        %vm549 = vcmask 261120
        %v551 = vsel %vm549, %v521, 0
        %v554 = vsel %vm549, %v522, 0
        %v557 = vsel %vm549, %v523, 0
        %v560 = vsel %vm549, %v524, 0
        %v563 = vsel %vm549, %v525, 0
        %v566 = vsel %vm549, %v526, 0
        %v569 = vsel %vm549, %v527, 0
        %v572 = vsel %vm549, %v528, 0
        %v575 = vsel %vm549, %v529, 0
        %v578 = vsel %vm549, %v530, 0
        %v581 = vsel %vm549, %v531, 0
        %v584 = vsel %vm549, %v532, 0
        %v587 = vsel %vm549, %v533, 0
        %v590 = vsel %vm549, %v534, 0
        %v593 = vsel %vm549, %v535, 0
        %v596 = vsel %vm549, %v536, 0
        %598 = vmatprep.subr.bf16.mxu0 0
        %599 = vmatpush1.bf16.msra.mxu0 %v545
        %600 = vmatprep.subr.bf16.mxu0 0
        %601 = vmatpush1.bf16.msra.mxu0 %v546
        %602 = vmatprep.subr.bf16.mxu0 0
        %603 = vmatpush1.bf16.msra.mxu0 0
        %604 = vmatprep.subr.bf16.mxu0 0
        %605 = vmatpush1.bf16.msra.mxu0 0
        %606 = vmatprep.subr.bf16.mxu0 0
        %607 = vmatpush1.bf16.msra.mxu0 0
        %608 = vmatprep.subr.bf16.mxu0 0
        %609 = vmatpush1.bf16.msra.mxu0 0
        %610 = vmatprep.subr.bf16.mxu0 0
        %611 = vmatpush1.bf16.msra.mxu0 0
        %612 = vmatprep.subr.bf16.mxu0 0
        %613 = vmatpush1.bf16.msra.mxu0 0
        %614 = vmatprep.subr.bf16.mxu0 0
        %615 = vmatpush1.bf16.msra.mxu0 0
        %616 = vmatprep.subr.bf16.mxu0 0
        %617 = vmatpush1.bf16.msra.mxu0 0
        %618 = vmatprep.subr.bf16.mxu0 0
        %619 = vmatpush1.bf16.msra.mxu0 0
        %620 = vmatprep.subr.bf16.mxu0 0
        %621 = vmatpush1.bf16.msra.mxu0 0
        %622 = vmatprep.subr.bf16.mxu0 0
        %623 = vmatpush1.bf16.msra.mxu0 0
        %624 = vmatprep.subr.bf16.mxu0 0
        %625 = vmatpush1.bf16.msra.mxu0 0
        %626 = vmatprep.subr.bf16.mxu0 0
        %627 = vmatpush1.bf16.msra.mxu0 0
        %628 = vmatprep.subr.bf16.mxu0 0
        %629 = vmatpush1.bf16.msra.mxu0 0
        %630 = vmatprep.mubr.bf16.mxu0 0
        %631 = vmatmul.mubr.bf16.gmra.mrb[0].mxu0 %v551
        %v632 = vpop.f32.mrb[0].mxu0
        %v633 = vadd.f32 0.0, %v632
        %v634 = vpop.f32.mrb[0].mxu0
        %v635 = vpop.f32.mrb[0].mxu0
        %v636 = vadd.f32 0.0, %v635
        %v637 = vpop.f32.mrb[0].mxu0
        %638 = vmatprep.mubr.bf16.mxu0 0
        %639 = vmatmul.mubr.bf16.gmra.mrb[0].mxu0 %v554
        %v640 = vpop.f32.mrb[0].mxu0
        %v641 = vadd.f32 0.0, %v640
        %v642 = vpop.f32.mrb[0].mxu0
        %v643 = vpop.f32.mrb[0].mxu0
        %v644 = vadd.f32 0.0, %v643
        %v645 = vpop.f32.mrb[0].mxu0
        %646 = vmatprep.mubr.bf16.mxu0 0
        %647 = vmatmul.mubr.bf16.gmra.mrb[0].mxu0 %v557
        %v648 = vpop.f32.mrb[0].mxu0
        %v649 = vadd.f32 0.0, %v648
        %v650 = vpop.f32.mrb[0].mxu0
        %v651 = vpop.f32.mrb[0].mxu0
        %v652 = vadd.f32 0.0, %v651
        %v653 = vpop.f32.mrb[0].mxu0
        %654 = vmatprep.mubr.bf16.mxu0 0
        %655 = vmatmul.mubr.bf16.gmra.mrb[0].mxu0 %v560
        %v656 = vpop.f32.mrb[0].mxu0
        %v657 = vadd.f32 0.0, %v656
        %v658 = vpop.f32.mrb[0].mxu0
        %v659 = vpop.f32.mrb[0].mxu0
        %v660 = vadd.f32 0.0, %v659
        %v661 = vpop.f32.mrb[0].mxu0
        %662 = vmatprep.mubr.bf16.mxu0 0
        %663 = vmatmul.mubr.bf16.gmra.mrb[0].mxu0 %v563
        %v664 = vpop.f32.mrb[0].mxu0
        %v665 = vadd.f32 0.0, %v664
        %v666 = vpop.f32.mrb[0].mxu0
        %v667 = vpop.f32.mrb[0].mxu0
        %v668 = vadd.f32 0.0, %v667
        %v669 = vpop.f32.mrb[0].mxu0
        %670 = vmatprep.mubr.bf16.mxu0 0
        %671 = vmatmul.mubr.bf16.gmra.mrb[0].mxu0 %v566
        %v672 = vpop.f32.mrb[0].mxu0
        %v673 = vadd.f32 0.0, %v672
        %v674 = vpop.f32.mrb[0].mxu0
        %v675 = vpop.f32.mrb[0].mxu0
        %v676 = vadd.f32 0.0, %v675
        %v677 = vpop.f32.mrb[0].mxu0
        %678 = vmatprep.mubr.bf16.mxu0 0
        %679 = vmatmul.mubr.bf16.gmra.mrb[0].mxu0 %v569
        %v680 = vpop.f32.mrb[0].mxu0
        %v681 = vadd.f32 0.0, %v680
        %v682 = vpop.f32.mrb[0].mxu0
        %v683 = vpop.f32.mrb[0].mxu0
        %v684 = vadd.f32 0.0, %v683
        %v685 = vpop.f32.mrb[0].mxu0
        %686 = vmatprep.mubr.bf16.mxu0 0
        %687 = vmatmul.mubr.bf16.gmra.mrb[0].mxu0 %v572
        %v688 = vpop.f32.mrb[0].mxu0
        %v689 = vadd.f32 0.0, %v688
        %v690 = vpop.f32.mrb[0].mxu0
        %v691 = vpop.f32.mrb[0].mxu0
        %v692 = vadd.f32 0.0, %v691
        %v693 = vpop.f32.mrb[0].mxu0
        %694 = vmatprep.mubr.bf16.mxu0 0
        %695 = vmatmul.mubr.bf16.gmra.mrb[0].mxu0 %v575
        %v696 = vpop.f32.mrb[0].mxu0
        %v697 = vadd.f32 0.0, %v696
        %v698 = vpop.f32.mrb[0].mxu0
        %v699 = vpop.f32.mrb[0].mxu0
        %v700 = vadd.f32 0.0, %v699
        %v701 = vpop.f32.mrb[0].mxu0
        %702 = vmatprep.mubr.bf16.mxu0 0
        %703 = vmatmul.mubr.bf16.gmra.mrb[0].mxu0 %v578
        %v704 = vpop.f32.mrb[0].mxu0
        %v705 = vadd.f32 0.0, %v704
        %v706 = vpop.f32.mrb[0].mxu0
        %v707 = vpop.f32.mrb[0].mxu0
        %v708 = vadd.f32 0.0, %v707
        %v709 = vpop.f32.mrb[0].mxu0
        %710 = vmatprep.mubr.bf16.mxu0 0
        %711 = vmatmul.mubr.bf16.gmra.mrb[0].mxu0 %v581
        %v712 = vpop.f32.mrb[0].mxu0
        %v713 = vadd.f32 0.0, %v712
        %v714 = vpop.f32.mrb[0].mxu0
        %v715 = vpop.f32.mrb[0].mxu0
        %v716 = vadd.f32 0.0, %v715
        %v717 = vpop.f32.mrb[0].mxu0
        %718 = vmatprep.mubr.bf16.mxu0 0
        %719 = vmatmul.mubr.bf16.gmra.mrb[0].mxu0 %v584
        %v720 = vpop.f32.mrb[0].mxu0
        %v721 = vadd.f32 0.0, %v720
        %v722 = vpop.f32.mrb[0].mxu0
        %v723 = vpop.f32.mrb[0].mxu0
        %v724 = vadd.f32 0.0, %v723
        %v725 = vpop.f32.mrb[0].mxu0
        %726 = vmatprep.mubr.bf16.mxu0 0
        %727 = vmatmul.mubr.bf16.gmra.mrb[0].mxu0 %v587
        %v728 = vpop.f32.mrb[0].mxu0
        %v729 = vadd.f32 0.0, %v728
        %v730 = vpop.f32.mrb[0].mxu0
        %v731 = vpop.f32.mrb[0].mxu0
        %v732 = vadd.f32 0.0, %v731
        %v733 = vpop.f32.mrb[0].mxu0
        %734 = vmatprep.mubr.bf16.mxu0 0
        %735 = vmatmul.mubr.bf16.gmra.mrb[0].mxu0 %v590
        %v736 = vpop.f32.mrb[0].mxu0
        %v737 = vadd.f32 0.0, %v736
        %v738 = vpop.f32.mrb[0].mxu0
        %v739 = vpop.f32.mrb[0].mxu0
        %v740 = vadd.f32 0.0, %v739
        %v741 = vpop.f32.mrb[0].mxu0
        %742 = vmatprep.mubr.bf16.mxu0 0
        %743 = vmatmul.mubr.bf16.gmra.mrb[0].mxu0 %v593
        %v744 = vpop.f32.mrb[0].mxu0
        %v745 = vadd.f32 0.0, %v744
        %v746 = vpop.f32.mrb[0].mxu0
        %v747 = vpop.f32.mrb[0].mxu0
        %v748 = vadd.f32 0.0, %v747
        %v749 = vpop.f32.mrb[0].mxu0
        %750 = vmatprep.mubr.bf16.mxu0 0
        %751 = vmatmul.mubr.bf16.gmra.mrb[0].mxu0 %v596
        %v752 = vpop.f32.mrb[0].mxu0
        %v753 = vadd.f32 0.0, %v752
        %v754 = vpop.f32.mrb[0].mxu0
        %v755 = vpop.f32.mrb[0].mxu0
        %v756 = vadd.f32 0.0, %v755
        %v757 = vpop.f32.mrb[0].mxu0
        %758 = vdwg.mxu0
        %v759 = vadd.f32 %v389, %v633
        %v760 = vadd.f32 %v390, %v636
        %v761 = vadd.f32 %v391, %v641
        %v762 = vadd.f32 %v392, %v644
        %v763 = vadd.f32 %v393, %v649
        %v764 = vadd.f32 %v394, %v652
        %v765 = vadd.f32 %v395, %v657
        %v766 = vadd.f32 %v396, %v660
        %v767 = vadd.f32 %v397, %v665
        %v768 = vadd.f32 %v398, %v668
        %v769 = vadd.f32 %v399, %v673
        %v770 = vadd.f32 %v400, %v676
        %v771 = vadd.f32 %v401, %v681
        %v772 = vadd.f32 %v402, %v684
        %v773 = vadd.f32 %v403, %v689
        %v774 = vadd.f32 %v404, %v692
        %v775 = vadd.f32 %v405, %v697
        %v776 = vadd.f32 %v406, %v700
        %v777 = vadd.f32 %v407, %v705
        %v778 = vadd.f32 %v408, %v708
        %v779 = vadd.f32 %v409, %v713
        %v780 = vadd.f32 %v410, %v716
        %v781 = vadd.f32 %v411, %v721
        %v782 = vadd.f32 %v412, %v724
        %v783 = vadd.f32 %v413, %v729
        %v784 = vadd.f32 %v414, %v732
        %v785 = vadd.f32 %v415, %v737
        %v786 = vadd.f32 %v416, %v740
        %v787 = vadd.f32 %v417, %v745
        %v788 = vadd.f32 %v418, %v748
        %v789 = vadd.f32 %v419, %v753
        %v790 = vadd.f32 %v420, %v756
        %791 = vst [vmem:[#allocation2] sm:$0xff] %v759
        %792 = vst [vmem:[#allocation2 + $0x8] sm:$0xff] %v760
        %793 = vst [vmem:[#allocation2 + $0x10] sm:$0xff] %v761
        %794 = vst [vmem:[#allocation2 + $0x18] sm:$0xff] %v762
        %795 = vst [vmem:[#allocation2 + $0x20] sm:$0xff] %v763
        %796 = vst [vmem:[#allocation2 + $0x28] sm:$0xff] %v764
        %797 = vst [vmem:[#allocation2 + $0x30] sm:$0xff] %v765
        %798 = vst [vmem:[#allocation2 + $0x38] sm:$0xff] %v766
        %799 = vst [vmem:[#allocation2 + $0x40] sm:$0xff] %v767
        %800 = vst [vmem:[#allocation2 + $0x48] sm:$0xff] %v768
        %801 = vst [vmem:[#allocation2 + $0x50] sm:$0xff] %v769
        %802 = vst [vmem:[#allocation2 + $0x58] sm:$0xff] %v770
        %803 = vst [vmem:[#allocation2 + $0x60] sm:$0xff] %v771
        %804 = vst [vmem:[#allocation2 + $0x68] sm:$0xff] %v772
        %805 = vst [vmem:[#allocation2 + $0x70] sm:$0xff] %v773
        %806 = vst [vmem:[#allocation2 + $0x78] sm:$0xff] %v774
        %807 = vst [vmem:[#allocation2 + $0x80] sm:$0xff] %v775
        %808 = vst [vmem:[#allocation2 + $0x88] sm:$0xff] %v776
        %809 = vst [vmem:[#allocation2 + $0x90] sm:$0xff] %v777
        %810 = vst [vmem:[#allocation2 + $0x98] sm:$0xff] %v778
        %811 = vst [vmem:[#allocation2 + $0xa0] sm:$0xff] %v779
        %812 = vst [vmem:[#allocation2 + $0xa8] sm:$0xff] %v780
        %813 = vst [vmem:[#allocation2 + $0xb0] sm:$0xff] %v781
        %814 = vst [vmem:[#allocation2 + $0xb8] sm:$0xff] %v782
        %815 = vst [vmem:[#allocation2 + $0xc0] sm:$0xff] %v783
        %816 = vst [vmem:[#allocation2 + $0xc8] sm:$0xff] %v784
        %817 = vst [vmem:[#allocation2 + $0xd0] sm:$0xff] %v785
        %818 = vst [vmem:[#allocation2 + $0xd8] sm:$0xff] %v786
        %819 = vst [vmem:[#allocation2 + $0xe0] sm:$0xff] %v787
        %820 = vst [vmem:[#allocation2 + $0xe8] sm:$0xff] %v788
        %821 = vst [vmem:[#allocation2 + $0xf0] sm:$0xff] %v789
        %822 = vst [vmem:[#allocation2 + $0xf8] sm:$0xff] %v790
        // Predicated region
        $region45: #{bottleneck_forward.7} parent=39 // pred_check
          %p823 = pneg %p353
        $region46: #{bottleneck_forward.7} parent=39 // pred_check_branch
          %825 = sbr.rel (%p823) target = $region48
        $region47: #{bottleneck_forward.7} parent=39 // pred_region
          %v826 = vld [vmem:[#allocation2] sm:$0xff]
          %v827 = vld [vmem:[#allocation2 + $0x8] sm:$0xff]
          %v828 = vld [vmem:[#allocation2 + $0x10] sm:$0xff]
          %v829 = vld [vmem:[#allocation2 + $0x18] sm:$0xff]
          %v830 = vld [vmem:[#allocation2 + $0x20] sm:$0xff]
          %v831 = vld [vmem:[#allocation2 + $0x28] sm:$0xff]
          %v832 = vld [vmem:[#allocation2 + $0x30] sm:$0xff]
          %v833 = vld [vmem:[#allocation2 + $0x38] sm:$0xff]
          %v834 = vld [vmem:[#allocation2 + $0x40] sm:$0xff]
          %v835 = vld [vmem:[#allocation2 + $0x48] sm:$0xff]
          %v836 = vld [vmem:[#allocation2 + $0x50] sm:$0xff]
          %v837 = vld [vmem:[#allocation2 + $0x58] sm:$0xff]
          %v838 = vld [vmem:[#allocation2 + $0x60] sm:$0xff]
          %v839 = vld [vmem:[#allocation2 + $0x68] sm:$0xff]
          %v840 = vld [vmem:[#allocation2 + $0x70] sm:$0xff]
          %v841 = vld [vmem:[#allocation2 + $0x78] sm:$0xff]
          %v842 = vld [vmem:[#allocation2 + $0x80] sm:$0xff]
          %v843 = vld [vmem:[#allocation2 + $0x88] sm:$0xff]
          %v844 = vld [vmem:[#allocation2 + $0x90] sm:$0xff]
          %v845 = vld [vmem:[#allocation2 + $0x98] sm:$0xff]
          %v846 = vld [vmem:[#allocation2 + $0xa0] sm:$0xff]
          %v847 = vld [vmem:[#allocation2 + $0xa8] sm:$0xff]
          %v848 = vld [vmem:[#allocation2 + $0xb0] sm:$0xff]
          %v849 = vld [vmem:[#allocation2 + $0xb8] sm:$0xff]
          %v850 = vld [vmem:[#allocation2 + $0xc0] sm:$0xff]
          %v851 = vld [vmem:[#allocation2 + $0xc8] sm:$0xff]
          %v852 = vld [vmem:[#allocation2 + $0xd0] sm:$0xff]
          %v853 = vld [vmem:[#allocation2 + $0xd8] sm:$0xff]
          %v854 = vld [vmem:[#allocation2 + $0xe0] sm:$0xff]
          %v855 = vld [vmem:[#allocation2 + $0xe8] sm:$0xff]
          %v856 = vld [vmem:[#allocation2 + $0xf0] sm:$0xff]
          %v857 = vld [vmem:[#allocation2 + $0xf8] sm:$0xff]
          %v858 = vld [vmem:[%s349] sm:$0xf]
          %v859 = vld [vmem:[%s349 + $0x4] sm:$0xf]
          %v860 = vld [vmem:[%s349 + $0x8] sm:$0xf]
          %v861 = vld [vmem:[%s349 + $0xc] sm:$0xf]
          %v862 = vld [vmem:[%s349 + $0x10] sm:$0xf]
          %v863 = vld [vmem:[%s349 + $0x14] sm:$0xf]
          %v864 = vld [vmem:[%s349 + $0x18] sm:$0xf]
          %v865 = vld [vmem:[%s349 + $0x1c] sm:$0xf]
          %v866 = vld [vmem:[%s349 + $0x20] sm:$0xf]
          %v867 = vld [vmem:[%s349 + $0x24] sm:$0xf]
          %v868 = vld [vmem:[%s349 + $0x28] sm:$0xf]
          %v869 = vld [vmem:[%s349 + $0x2c] sm:$0xf]
          %v870 = vld [vmem:[%s349 + $0x30] sm:$0xf]
          %v871 = vld [vmem:[%s349 + $0x34] sm:$0xf]
          %v872 = vld [vmem:[%s349 + $0x38] sm:$0xf]
          %v873 = vld [vmem:[%s349 + $0x3c] sm:$0xf]
          %v874 = vld [vmem:[%s349 + $0x40] sm:$0xf]
          %v875 = vld [vmem:[%s349 + $0x44] sm:$0xf]
          %v876 = vld [vmem:[%s349 + $0x48] sm:$0xf]
          %v877 = vld [vmem:[%s349 + $0x4c] sm:$0xf]
          %v878 = vld [vmem:[%s349 + $0x50] sm:$0xf]
          %v879 = vld [vmem:[%s349 + $0x54] sm:$0xf]
          %v880 = vld [vmem:[%s349 + $0x58] sm:$0xf]
          %v881 = vld [vmem:[%s349 + $0x5c] sm:$0xf]
          %v882 = vld [vmem:[%s349 + $0x60] sm:$0xf]
          %v883 = vld [vmem:[%s349 + $0x64] sm:$0xf]
          %v884 = vld [vmem:[%s349 + $0x68] sm:$0xf]
          %v885 = vld [vmem:[%s349 + $0x6c] sm:$0xf]
          %v886 = vld [vmem:[%s349 + $0x70] sm:$0xf]
          %v887 = vld [vmem:[%s349 + $0x74] sm:$0xf]
          %v888 = vld [vmem:[%s349 + $0x78] sm:$0xf]
          %v889 = vld [vmem:[%s349 + $0x7c] sm:$0xf]
          %v890 = vld [vmem:[%s338] sm:$0x1]
          %v892 = vlaneseq
          %v893 = vshrl.u32 %v892, 7
          %v894 = vsub.s32 0, %v893
          %v895 = vrot.slane %v890, %v894
          %v897 = vmul.f32 %v826, %v895
          %v898 = vmul.f32 %v827, %v895
          %v899 = vmul.f32 %v828, %v895
          %v900 = vmul.f32 %v829, %v895
          %v901 = vmul.f32 %v830, %v895
          %v902 = vmul.f32 %v831, %v895
          %v903 = vmul.f32 %v832, %v895
          %v904 = vmul.f32 %v833, %v895
          %v905 = vmul.f32 %v834, %v895
          %v906 = vmul.f32 %v835, %v895
          %v907 = vmul.f32 %v836, %v895
          %v908 = vmul.f32 %v837, %v895
          %v909 = vmul.f32 %v838, %v895
          %v910 = vmul.f32 %v839, %v895
          %v911 = vmul.f32 %v840, %v895
          %v912 = vmul.f32 %v841, %v895
          %v913 = vmul.f32 %v842, %v895
          %v914 = vmul.f32 %v843, %v895
          %v915 = vmul.f32 %v844, %v895
          %v916 = vmul.f32 %v845, %v895
          %v917 = vmul.f32 %v846, %v895
          %v918 = vmul.f32 %v847, %v895
          %v919 = vmul.f32 %v848, %v895
          %v920 = vmul.f32 %v849, %v895
          %v921 = vmul.f32 %v850, %v895
          %v922 = vmul.f32 %v851, %v895
          %v923 = vmul.f32 %v852, %v895
          %v924 = vmul.f32 %v853, %v895
          %v925 = vmul.f32 %v854, %v895
          %v926 = vmul.f32 %v855, %v895
          %v927 = vmul.f32 %v856, %v895
          %v928 = vmul.f32 %v857, %v895
          %v929 = vld [vmem:[%s341] sm:$0x1]
          %v931 = vlaneseq
          %v932 = vshrl.u32 %v931, 7
          %v933 = vsub.s32 0, %v932
          %v934 = vrot.slane %v929, %v933
          %v936 = vadd.f32 %v897, %v934
          %v937 = vadd.f32 %v898, %v934
          %v938 = vadd.f32 %v899, %v934
          %v939 = vadd.f32 %v900, %v934
          %v940 = vadd.f32 %v901, %v934
          %v941 = vadd.f32 %v902, %v934
          %v942 = vadd.f32 %v903, %v934
          %v943 = vadd.f32 %v904, %v934
          %v944 = vadd.f32 %v905, %v934
          %v945 = vadd.f32 %v906, %v934
          %v946 = vadd.f32 %v907, %v934
          %v947 = vadd.f32 %v908, %v934
          %v948 = vadd.f32 %v909, %v934
          %v949 = vadd.f32 %v910, %v934
          %v950 = vadd.f32 %v911, %v934
          %v951 = vadd.f32 %v912, %v934
          %v952 = vadd.f32 %v913, %v934
          %v953 = vadd.f32 %v914, %v934
          %v954 = vadd.f32 %v915, %v934
          %v955 = vadd.f32 %v916, %v934
          %v956 = vadd.f32 %v917, %v934
          %v957 = vadd.f32 %v918, %v934
          %v958 = vadd.f32 %v919, %v934
          %v959 = vadd.f32 %v920, %v934
          %v960 = vadd.f32 %v921, %v934
          %v961 = vadd.f32 %v922, %v934
          %v962 = vadd.f32 %v923, %v934
          %v963 = vadd.f32 %v924, %v934
          %v964 = vadd.f32 %v925, %v934
          %v965 = vadd.f32 %v926, %v934
          %v966 = vadd.f32 %v927, %v934
          %v967 = vadd.f32 %v928, %v934
          %v968 = vunpack.c.l.bf16 %v858
          %v969 = vunpack.c.l.bf16 %v859
          %v970 = vunpack.c.l.bf16 %v860
          %v971 = vunpack.c.l.bf16 %v861
          %v972 = vunpack.c.l.bf16 %v862
          %v973 = vunpack.c.l.bf16 %v863
          %v974 = vunpack.c.l.bf16 %v864
          %v975 = vunpack.c.l.bf16 %v865
          %v976 = vunpack.c.l.bf16 %v866
          %v977 = vunpack.c.l.bf16 %v867
          %v978 = vunpack.c.l.bf16 %v868
          %v979 = vunpack.c.l.bf16 %v869
          %v980 = vunpack.c.l.bf16 %v870
          %v981 = vunpack.c.l.bf16 %v871
          %v982 = vunpack.c.l.bf16 %v872
          %v983 = vunpack.c.l.bf16 %v873
          %v984 = vunpack.c.l.bf16 %v874
          %v985 = vunpack.c.l.bf16 %v875
          %v986 = vunpack.c.l.bf16 %v876
          %v987 = vunpack.c.l.bf16 %v877
          %v988 = vunpack.c.l.bf16 %v878
          %v989 = vunpack.c.l.bf16 %v879
          %v990 = vunpack.c.l.bf16 %v880
          %v991 = vunpack.c.l.bf16 %v881
          %v992 = vunpack.c.l.bf16 %v882
          %v993 = vunpack.c.l.bf16 %v883
          %v994 = vunpack.c.l.bf16 %v884
          %v995 = vunpack.c.l.bf16 %v885
          %v996 = vunpack.c.l.bf16 %v886
          %v997 = vunpack.c.l.bf16 %v887
          %v998 = vunpack.c.l.bf16 %v888
          %v999 = vunpack.c.l.bf16 %v889
          %v1000 = vadd.f32 %v936, %v968
          %v1001 = vadd.f32 %v937, %v969
          %v1002 = vadd.f32 %v938, %v970
          %v1003 = vadd.f32 %v939, %v971
          %v1004 = vadd.f32 %v940, %v972
          %v1005 = vadd.f32 %v941, %v973
          %v1006 = vadd.f32 %v942, %v974
          %v1007 = vadd.f32 %v943, %v975
          %v1008 = vadd.f32 %v944, %v976
          %v1009 = vadd.f32 %v945, %v977
          %v1010 = vadd.f32 %v946, %v978
          %v1011 = vadd.f32 %v947, %v979
          %v1012 = vadd.f32 %v948, %v980
          %v1013 = vadd.f32 %v949, %v981
          %v1014 = vadd.f32 %v950, %v982
          %v1015 = vadd.f32 %v951, %v983
          %v1016 = vadd.f32 %v952, %v984
          %v1017 = vadd.f32 %v953, %v985
          %v1018 = vadd.f32 %v954, %v986
          %v1019 = vadd.f32 %v955, %v987
          %v1020 = vadd.f32 %v956, %v988
          %v1021 = vadd.f32 %v957, %v989
          %v1022 = vadd.f32 %v958, %v990
          %v1023 = vadd.f32 %v959, %v991
          %v1024 = vadd.f32 %v960, %v992
          %v1025 = vadd.f32 %v961, %v993
          %v1026 = vadd.f32 %v962, %v994
          %v1027 = vadd.f32 %v963, %v995
          %v1028 = vadd.f32 %v964, %v996
          %v1029 = vadd.f32 %v965, %v997
          %v1030 = vadd.f32 %v966, %v998
          %v1031 = vadd.f32 %v967, %v999
          %v1032 = vmax.f32 %v1000, 0.0
          %v1033 = vmax.f32 %v1001, 0.0
          %v1034 = vmax.f32 %v1002, 0.0
          %v1035 = vmax.f32 %v1003, 0.0
          %v1036 = vmax.f32 %v1004, 0.0
          %v1037 = vmax.f32 %v1005, 0.0
          %v1038 = vmax.f32 %v1006, 0.0
          %v1039 = vmax.f32 %v1007, 0.0
          %v1040 = vmax.f32 %v1008, 0.0
          %v1041 = vmax.f32 %v1009, 0.0
          %v1042 = vmax.f32 %v1010, 0.0
          %v1043 = vmax.f32 %v1011, 0.0
          %v1044 = vmax.f32 %v1012, 0.0
          %v1045 = vmax.f32 %v1013, 0.0
          %v1046 = vmax.f32 %v1014, 0.0
          %v1047 = vmax.f32 %v1015, 0.0
          %v1048 = vmax.f32 %v1016, 0.0
          %v1049 = vmax.f32 %v1017, 0.0
          %v1050 = vmax.f32 %v1018, 0.0
          %v1051 = vmax.f32 %v1019, 0.0
          %v1052 = vmax.f32 %v1020, 0.0
          %v1053 = vmax.f32 %v1021, 0.0
          %v1054 = vmax.f32 %v1022, 0.0
          %v1055 = vmax.f32 %v1023, 0.0
          %v1056 = vmax.f32 %v1024, 0.0
          %v1057 = vmax.f32 %v1025, 0.0
          %v1058 = vmax.f32 %v1026, 0.0
          %v1059 = vmax.f32 %v1027, 0.0
          %v1060 = vmax.f32 %v1028, 0.0
          %v1061 = vmax.f32 %v1029, 0.0
          %v1062 = vmax.f32 %v1030, 0.0
          %v1063 = vmax.f32 %v1031, 0.0
          %1064 = vst [vmem:[%s317] sm:$0xff] %v1032
          %1065 = vst [vmem:[%s317 + $0x8] sm:$0xff] %v1033
          %1066 = vst [vmem:[%s317 + $0x10] sm:$0xff] %v1034
          %1067 = vst [vmem:[%s317 + $0x18] sm:$0xff] %v1035
          %1068 = vst [vmem:[%s317 + $0x20] sm:$0xff] %v1036
          %1069 = vst [vmem:[%s317 + $0x28] sm:$0xff] %v1037
          %1070 = vst [vmem:[%s317 + $0x30] sm:$0xff] %v1038
          %1071 = vst [vmem:[%s317 + $0x38] sm:$0xff] %v1039
          %1072 = vst [vmem:[%s317 + $0x40] sm:$0xff] %v1040
          %1073 = vst [vmem:[%s317 + $0x48] sm:$0xff] %v1041
          %1074 = vst [vmem:[%s317 + $0x50] sm:$0xff] %v1042
          %1075 = vst [vmem:[%s317 + $0x58] sm:$0xff] %v1043
          %1076 = vst [vmem:[%s317 + $0x60] sm:$0xff] %v1044
          %1077 = vst [vmem:[%s317 + $0x68] sm:$0xff] %v1045
          %1078 = vst [vmem:[%s317 + $0x70] sm:$0xff] %v1046
          %1079 = vst [vmem:[%s317 + $0x78] sm:$0xff] %v1047
          %1080 = vst [vmem:[%s317 + $0x80] sm:$0xff] %v1048
          %1081 = vst [vmem:[%s317 + $0x88] sm:$0xff] %v1049
          %1082 = vst [vmem:[%s317 + $0x90] sm:$0xff] %v1050
          %1083 = vst [vmem:[%s317 + $0x98] sm:$0xff] %v1051
          %1084 = vst [vmem:[%s317 + $0xa0] sm:$0xff] %v1052
          %1085 = vst [vmem:[%s317 + $0xa8] sm:$0xff] %v1053
          %1086 = vst [vmem:[%s317 + $0xb0] sm:$0xff] %v1054
          %1087 = vst [vmem:[%s317 + $0xb8] sm:$0xff] %v1055
          %1088 = vst [vmem:[%s317 + $0xc0] sm:$0xff] %v1056
          %1089 = vst [vmem:[%s317 + $0xc8] sm:$0xff] %v1057
          %1090 = vst [vmem:[%s317 + $0xd0] sm:$0xff] %v1058
          %1091 = vst [vmem:[%s317 + $0xd8] sm:$0xff] %v1059
          %1092 = vst [vmem:[%s317 + $0xe0] sm:$0xff] %v1060
          %1093 = vst [vmem:[%s317 + $0xe8] sm:$0xff] %v1061
          %1094 = vst [vmem:[%s317 + $0xf0] sm:$0xff] %v1062
          %1095 = vst [vmem:[%s317 + $0xf8] sm:$0xff] %v1063
        $region48: #{bottleneck_forward.7} parent=39 // pred_fallthru
          _
        %s1096 = sand.u32 %s184, 1
        %s1097 = scalar_lea.sflag [#allocation4], %s1096
        %s1098 = sand.u32 %s184, 1
        %s1099 = smul.addr %s1098, 256
        %s1100 = scalar_lea.vmem [#allocation3], %s1099
        // Predicated region
        $region49: #{bottleneck_forward.7} parent=39 // pred_check
          %p1101 = pneg %p194
        $region50: #{bottleneck_forward.7} parent=39 // pred_check_branch
          %1103 = sbr.rel (%p1101) target = $region52
        $region51: #{bottleneck_forward.7} parent=39 // pred_region
          %s1104 = smul.u32 32, %s24
          %s1106 = ssub.s32 4096, 4096
          %1107 = vsyncadd %s1097, %s1106
          %s1108 = sadd.s32 %s25, %s1104
          %s1109 = smul.addr %s1108, 128
          %s1110 = scalar_lea.hbm %s5, %s1109
          %s1111 = sshll.u32 %s1100, 4
          %s1112 = int_to_ptr.vmem [resolvable:$true] %s1111
          %1117 = dma.vmem_to_hbm [thread:$0]  %s1112, 4096, %s1110, %s1097, 128, 128, 8
        $region52: #{bottleneck_forward.7} parent=39 // pred_fallthru
          _
      $region40: #{bottleneck_forward.7} parent=5 // pred_fallthru
        _
      %p1118 = scmp.le.s32.totalorder 2, %s14
      // Predicated region
      $region53: #{bottleneck_forward.7} parent=5 // pred_check
        %p1119 = pneg %p1118
      $region54: #{bottleneck_forward.7} parent=5 // pred_check_branch
        %1121 = sbr.rel (%p1119) target = $region56
      $region55: #{bottleneck_forward.7} parent=5 // pred_region
        %s1122 = ssub.s32 %s14, 2
        // Predicated region
        $region57: #{bottleneck_forward.7} parent=55 // pred_check
          %p1123 = pneg %p200
        $region58: #{bottleneck_forward.7} parent=55 // pred_check_branch
          %1125 = sbr.rel (%p1123) target = $region60
        $region59: #{bottleneck_forward.7} parent=55 // pred_region
          %s1126 = sand.u32 %s185, 1
          %s1127 = scalar_lea.sflag [#allocation4], %s1126
          %s1128 = sand.u32 %s185, 1
          %s1129 = smul.addr %s1128, 256
          %s1130 = scalar_lea.vmem [#allocation3], %s1129
          %1131 = dma.done %s1127, 4096
        $region60: #{bottleneck_forward.7} parent=55 // pred_fallthru
          _
      $region56: #{bottleneck_forward.7} parent=5 // pred_fallthru
        _
    $region6: #{bottleneck_forward.7} parent=1 // loop_footer
      %s18 = sadd.s32 1, %s14
    $region7: #{bottleneck_forward.7} parent=1 // loop_footer_branch
      %13 = sbr.rel target = $region3
    $region8: #{bottleneck_forward.7} parent=1 // loop_exit
      _
    %1132 = vsyncpa [#allocation4], 1
    %s1133 = scalar_lea.sflag [#allocation4], 1
    %1134 = vsyncpa %s1133, 1

// kernel: bottleneck_forward.5
$region0: #{bottleneck_forward.5}
  #allocation0 [shape = 'u32[]', space=smem, size = 0x4, offset = 0x4, fixed_abs, tag = 'smem constant byte address 0x4 - core index']
  #allocation1 [shape = 'u32[144,128]{1,0:T(1,128)}', space=vmem, size = 0x12000, scoped, tag = 'internal scratch']
  %s0 = inlined_call_operand.vmem [shape: bf16[2,18,18,32], index: 0, kind: input, shape index: {}]
  %s1 = inlined_call_operand.vmem [shape: bf16[3,3,32,32], index: 1, kind: input, shape index: {}]
  %s2 = inlined_call_operand.vmem [shape: f32[1,32], index: 2, kind: input, shape index: {}]
  %s3 = inlined_call_operand.vmem [shape: f32[1,32], index: 3, kind: input, shape index: {}]
  %s4 = inlined_call_operand.vmem [shape: bf16[2,256,32], index: 4, kind: output, shape index: {}]
  %s5 = sld [smem:[#allocation0]]
  $region49: #{bottleneck_forward.5} parent=0
    _
  %s7 = ssub.s32 1, %s5
  %s8 = scalar_select 0, %s7, %s5
  loop: start=0, step=1, limit=4
  $region2: #{bottleneck_forward.5} parent=0 // loop_pre_header
    _
  $region3: #{bottleneck_forward.5} parent=0 // loop_header
    %s10 = sphi 0, %s14
    %p11 = scmp.ge.s32.totalorder %s10, 4
    %s20 = sphi 0, %s22
    %s23 = sphi 0, %s20
    %s24 = sphi 0, %s23
    %s40 = sphi 0, %s24
    %s44 = sphi 0, %s44
    %s46 = sphi 0, %s44
    %s47 = sphi 0, %s46
    %s61 = sphi 0, %s47
    %s65 = sphi 0, %s65
    %s67 = sphi 0, %s65
    %s68 = sphi 0, %s67
    %s82 = sphi 0, %s68
    %s86 = sphi 0, %s86
    %s88 = sphi 0, %s86
    %s89 = sphi 0, %s88
    %s103 = sphi 0, %s89
    %s109 = sphi 0, %s111
    %s112 = sphi 0, %s109
    %s113 = sphi 0, %s112
    %s129 = sphi 0, %s113
  $region4: #{bottleneck_forward.5} parent=0 // loop_header_branch
    %13 = sbr.rel (%p11) target = $region8
  $region5: #{bottleneck_forward.5} parent=0 // loop_body
    %s15 = ssub.s32 %s10, 1
    %s16 = ssub.s32 %s10, 2
    %s17 = sadd.s32 %s10, 1
    %s18 = ssub.s32 %s10, %s17
    %p19 = scmp.eq.s32.totalorder %s18, 0
    %s21 = sadd.s32 %s20, 1
    %s22 = scalar_select %p19, %s20, %s21
    %p25 = pneg %p19
    %p26 = scmp.eq.s32.totalorder %s10, 1
    %p27 = por %p25, %p26
    %p28 = scmp.ne.s32.totalorder %s20, %s23
    %p29 = scmp.eq.s32.totalorder %s10, 0
    %p30 = por %p28, %p29
    %p31 = scmp.ne.s32.totalorder %s20, %s23
    %p32 = scmp.eq.s32.totalorder %s15, 1
    %p33 = por %p31, %p32
    %p34 = scmp.ne.s32.totalorder %s23, %s24
    %p35 = scmp.eq.s32.totalorder %s15, 0
    %p36 = por %p34, %p35
    %p37 = scmp.ne.s32.totalorder %s23, %s24
    %p38 = scmp.eq.s32.totalorder %s16, 1
    %p39 = por %p37, %p38
    %p41 = scmp.ne.s32.totalorder %s24, %s40
    %p42 = scmp.eq.s32.totalorder %s16, 0
    %p43 = por %p41, %p42
    %s45 = sadd.s32 %s44, 1
    %p48 = scmp.eq.s32.totalorder %s10, 1
    %p49 = scmp.ne.s32.totalorder %s44, %s46
    %p50 = scmp.eq.s32.totalorder %s10, 0
    %p51 = por %p49, %p50
    %p52 = scmp.ne.s32.totalorder %s44, %s46
    %p53 = scmp.eq.s32.totalorder %s15, 1
    %p54 = por %p52, %p53
    %p55 = scmp.ne.s32.totalorder %s46, %s47
    %p56 = scmp.eq.s32.totalorder %s15, 0
    %p57 = por %p55, %p56
    %p58 = scmp.ne.s32.totalorder %s46, %s47
    %p59 = scmp.eq.s32.totalorder %s16, 1
    %p60 = por %p58, %p59
    %p62 = scmp.ne.s32.totalorder %s47, %s61
    %p63 = scmp.eq.s32.totalorder %s16, 0
    %p64 = por %p62, %p63
    %s66 = sadd.s32 %s65, 1
    %p69 = scmp.eq.s32.totalorder %s10, 1
    %p70 = scmp.ne.s32.totalorder %s65, %s67
    %p71 = scmp.eq.s32.totalorder %s10, 0
    %p72 = por %p70, %p71
    %p73 = scmp.ne.s32.totalorder %s65, %s67
    %p74 = scmp.eq.s32.totalorder %s15, 1
    %p75 = por %p73, %p74
    %p76 = scmp.ne.s32.totalorder %s67, %s68
    %p77 = scmp.eq.s32.totalorder %s15, 0
    %p78 = por %p76, %p77
    %p79 = scmp.ne.s32.totalorder %s67, %s68
    %p80 = scmp.eq.s32.totalorder %s16, 1
    %p81 = por %p79, %p80
    %p83 = scmp.ne.s32.totalorder %s68, %s82
    %p84 = scmp.eq.s32.totalorder %s16, 0
    %p85 = por %p83, %p84
    %s87 = sadd.s32 %s86, 1
    %p90 = scmp.eq.s32.totalorder %s10, 1
    %p91 = scmp.ne.s32.totalorder %s86, %s88
    %p92 = scmp.eq.s32.totalorder %s10, 0
    %p93 = por %p91, %p92
    %p94 = scmp.ne.s32.totalorder %s86, %s88
    %p95 = scmp.eq.s32.totalorder %s15, 1
    %p96 = por %p94, %p95
    %p97 = scmp.ne.s32.totalorder %s88, %s89
    %p98 = scmp.eq.s32.totalorder %s15, 0
    %p99 = por %p97, %p98
    %p100 = scmp.ne.s32.totalorder %s88, %s89
    %p101 = scmp.eq.s32.totalorder %s16, 1
    %p102 = por %p100, %p101
    %p104 = scmp.ne.s32.totalorder %s89, %s103
    %p105 = scmp.eq.s32.totalorder %s16, 0
    %p106 = por %p104, %p105
    %s107 = ssub.s32 %s10, %s17
    %p108 = scmp.eq.s32.totalorder %s107, 0
    %s110 = sadd.s32 %s109, 1
    %s111 = scalar_select %p108, %s109, %s110
    %p114 = pneg %p108
    %p115 = scmp.eq.s32.totalorder %s10, 1
    %p116 = por %p114, %p115
    %p117 = scmp.ne.s32.totalorder %s109, %s112
    %p118 = scmp.eq.s32.totalorder %s10, 0
    %p119 = por %p117, %p118
    %p120 = scmp.ne.s32.totalorder %s109, %s112
    %p121 = scmp.eq.s32.totalorder %s15, 1
    %p122 = por %p120, %p121
    %p123 = scmp.ne.s32.totalorder %s112, %s113
    %p124 = scmp.eq.s32.totalorder %s15, 0
    %p125 = por %p123, %p124
    %p126 = scmp.ne.s32.totalorder %s112, %s113
    %p127 = scmp.eq.s32.totalorder %s16, 1
    %p128 = por %p126, %p127
    %p130 = scmp.ne.s32.totalorder %s113, %s129
    %p131 = scmp.eq.s32.totalorder %s16, 0
    %p132 = por %p130, %p131
    %p133 = scmp.le.s32.totalorder 1, %s10
    %p134 = scmp.lt.s32.totalorder %s10, 3
    %p135 = pnand %p133, %p134
    %p136 = pneg %p135
    // Predicated region
    $region9: #{bottleneck_forward.5} parent=5 // pred_check
      _
    $region10: #{bottleneck_forward.5} parent=5 // pred_check_branch
      %138 = sbr.rel (%p135) target = $region12
    $region11: #{bottleneck_forward.5} parent=5 // pred_region
      %s139 = ssub.s32 %s10, 1
      // Predicated region
      $region13: #{bottleneck_forward.5} parent=11 // pred_check
        %p140 = pneg %p57
      $region14: #{bottleneck_forward.5} parent=11 // pred_check_branch
        %142 = sbr.rel (%p140) target = $region16
      $region15: #{bottleneck_forward.5} parent=11 // pred_region
        _
      $region16: #{bottleneck_forward.5} parent=11 // pred_fallthru
        _
      // Predicated region
      $region17: #{bottleneck_forward.5} parent=11 // pred_check
        %p143 = pneg %p78
      $region18: #{bottleneck_forward.5} parent=11 // pred_check_branch
        %145 = sbr.rel (%p143) target = $region20
      $region19: #{bottleneck_forward.5} parent=11 // pred_region
        _
      $region20: #{bottleneck_forward.5} parent=11 // pred_fallthru
        _
      // Predicated region
      $region21: #{bottleneck_forward.5} parent=11 // pred_check
        %p146 = pneg %p99
      $region22: #{bottleneck_forward.5} parent=11 // pred_check_branch
        %148 = sbr.rel (%p146) target = $region24
      $region23: #{bottleneck_forward.5} parent=11 // pred_region
        _
      $region24: #{bottleneck_forward.5} parent=11 // pred_fallthru
        _
    $region12: #{bottleneck_forward.5} parent=5 // pred_fallthru
      _
    %p149 = scmp.lt.s32.totalorder %s10, 2
    // Predicated region
    $region25: #{bottleneck_forward.5} parent=5 // pred_check
      %p150 = pneg %p149
    $region26: #{bottleneck_forward.5} parent=5 // pred_check_branch
      %152 = sbr.rel (%p150) target = $region28
    $region27: #{bottleneck_forward.5} parent=5 // pred_region
      // Predicated region
      $region29: #{bottleneck_forward.5} parent=27 // pred_check
        %p153 = pneg %p30
      $region30: #{bottleneck_forward.5} parent=27 // pred_check_branch
        %155 = sbr.rel (%p153) target = $region32
      $region31: #{bottleneck_forward.5} parent=27 // pred_region
        %p156 = scmp.lt.s32.totalorder %s10, 1
        %s157 = scalar_select %p156, %s10, 1
        %s158 = smul.addr %s157, 54
        %s159 = smul.addr %s158, 4
        %s160 = scalar_lea.vmem %s0, %s159
      $region32: #{bottleneck_forward.5} parent=27 // pred_fallthru
        _
    $region28: #{bottleneck_forward.5} parent=5 // pred_fallthru
      _
    %p161 = scmp.le.s32.totalorder 1, %s10
    %p162 = scmp.lt.s32.totalorder %s10, 3
    %p163 = pnand %p161, %p162
    %p164 = pneg %p163
    // Predicated region
    $region33: #{bottleneck_forward.5} parent=5 // pred_check
      _
    $region34: #{bottleneck_forward.5} parent=5 // pred_check_branch
      %166 = sbr.rel (%p163) target = $region36
    $region35: #{bottleneck_forward.5} parent=5 // pred_region
      %s167 = ssub.s32 %s10, 1
      %p168 = scmp.lt.s32.totalorder %s15, 1
      %s169 = scalar_select %p168, %s15, 1
      %s170 = smul.addr %s169, 54
      %s171 = smul.addr %s170, 4
      %s172 = scalar_lea.vmem %s0, %s171
      %p173 = pneg %p36
      %p174 = pneg %p33
      %p175 = pneg %p57
      %p176 = pneg %p54
      %p177 = pneg %p78
      %p178 = pneg %p75
      %p179 = pneg %p99
      %p180 = pneg %p96
      %p181 = pneg %p125
      %p182 = pneg %p122
      %p183 = scmp.lt.s32.totalorder %s15, 1
      %s184 = scalar_select %p183, %s15, 1
      %s185 = smul.addr %s184, 32
      %s186 = smul.addr %s185, 4
      %s187 = scalar_lea.vmem %s4, %s186
      %p188 = scmp.lt.s32.totalorder %s15, 1
      %s189 = scalar_select %p188, %s15, 1
      %s190 = smul.addr %s189, 54
      %s191 = smul.addr %s190, 4
      %s192 = scalar_lea.vmem %s0, %s191
      %p193 = scmp.lt.s32.totalorder %s15, 1
      %s194 = scalar_select %p193, %s15, 1
      %s195 = smul.addr %s194, 32
      %s196 = smul.addr %s195, 4
      %s197 = scalar_lea.vmem %s4, %s196
      %v199 = vld [vmem:[%s192] sm:$0xf]
      %v200 = vld [vmem:[%s192 + $0x4] sm:$0xf]
      %v201 = vld [vmem:[%s192 + $0xc] sm:$0xf]
      %v202 = vld [vmem:[%s192 + $0x10] sm:$0xf]
      %v203 = vld [vmem:[%s192 + $0x18] sm:$0xf]
      %v204 = vld [vmem:[%s192 + $0x1c] sm:$0xf]
      %v205 = vld [vmem:[%s192 + $0x24] sm:$0xf]
      %v206 = vld [vmem:[%s192 + $0x28] sm:$0xf]
      %v207 = vld [vmem:[%s192 + $0x30] sm:$0xf]
      %v208 = vld [vmem:[%s192 + $0x34] sm:$0xf]
      %v209 = vld [vmem:[%s192 + $0x3c] sm:$0xf]
      %v210 = vld [vmem:[%s192 + $0x40] sm:$0xf]
      %v211 = vld [vmem:[%s192 + $0x48] sm:$0xf]
      %v212 = vld [vmem:[%s192 + $0x4c] sm:$0xf]
      %v213 = vld [vmem:[%s192 + $0x54] sm:$0xf]
      %v214 = vld [vmem:[%s192 + $0x58] sm:$0xf]
      %v215 = vld [vmem:[%s192 + $0x60] sm:$0xf]
      %v216 = vld [vmem:[%s192 + $0x64] sm:$0xf]
      %v217 = vld [vmem:[%s192 + $0x6c] sm:$0xf]
      %v218 = vld [vmem:[%s192 + $0x70] sm:$0xf]
      %v219 = vld [vmem:[%s192 + $0x78] sm:$0xf]
      %v220 = vld [vmem:[%s192 + $0x7c] sm:$0xf]
      %v221 = vld [vmem:[%s192 + $0x84] sm:$0xf]
      %v222 = vld [vmem:[%s192 + $0x88] sm:$0xf]
      %v223 = vld [vmem:[%s192 + $0x90] sm:$0xf]
      %v224 = vld [vmem:[%s192 + $0x94] sm:$0xf]
      %v225 = vld [vmem:[%s192 + $0x9c] sm:$0xf]
      %v226 = vld [vmem:[%s192 + $0xa0] sm:$0xf]
      %v227 = vld [vmem:[%s192 + $0xa8] sm:$0xf]
      %v228 = vld [vmem:[%s192 + $0xac] sm:$0xf]
      %v229 = vld [vmem:[%s192 + $0xb4] sm:$0xf]
      %v230 = vld [vmem:[%s192 + $0xb8] sm:$0xf]
      %v231 = vld [vmem:[%s1] sm:$0xf]
      %v232 = vld [vmem:[%s1 + $0x4] sm:$0xf]
      %v233 = vld [vmem:[%s1 + $0x8] sm:$0xf]
      %v234 = vld [vmem:[%s1 + $0xc] sm:$0xf]
      %v235 = vld [vmem:[%s192 + $0x8] sm:$0x1]
      %v236 = vld [vmem:[%s192 + $0x14] sm:$0x1]
      %v237 = vld [vmem:[%s192 + $0x20] sm:$0x1]
      %v238 = vld [vmem:[%s192 + $0x2c] sm:$0x1]
      %v239 = vld [vmem:[%s192 + $0x38] sm:$0x1]
      %v240 = vld [vmem:[%s192 + $0x44] sm:$0x1]
      %v241 = vld [vmem:[%s192 + $0x50] sm:$0x1]
      %v242 = vld [vmem:[%s192 + $0x5c] sm:$0x1]
      %v243 = vld [vmem:[%s192 + $0x68] sm:$0x1]
      %v244 = vld [vmem:[%s192 + $0x74] sm:$0x1]
      %v245 = vld [vmem:[%s192 + $0x80] sm:$0x1]
      %v246 = vld [vmem:[%s192 + $0x8c] sm:$0x1]
      %v247 = vld [vmem:[%s192 + $0x98] sm:$0x1]
      %v248 = vld [vmem:[%s192 + $0xa4] sm:$0x1]
      %v249 = vld [vmem:[%s192 + $0xb0] sm:$0x1]
      %v250 = vld [vmem:[%s192 + $0xbc] sm:$0x1]
      %vm251 = vsmask.f32 3328
      %vm252 = vsmask.f32 7440
      %vm253 = vmor %vm251, %vm252
      %v255 = vshrl.u32 %v199, 16
      %v257 = vrot.slane %v255, 4
      %v258 = vshll.u32 %v199, 16
      %v260 = vrot.slane %v258, 5
      %v261 = vor.u32 %v257, %v260
      %v262 = vrot.slane %v261, 4
      %v264 = vshll.u32 %v200, 16
      %v266 = vrot.slane %v264, 5
      %v267 = vsel %vm253, %v262, %v266
      %v268 = vshrl.u32 %v200, 16
      %v270 = vrot.slane %v268, 4
      %v271 = vor.u32 %v270, %v266
      %v272 = vrot.slane %v271, 4
      %v274 = vshll.u32 %v235, 16
      %v276 = vrot.slane %v274, 5
      %v277 = vsel %vm253, %v272, %v276
      %v279 = vshrl.u32 %v201, 16
      %v281 = vrot.slane %v279, 4
      %v282 = vshll.u32 %v201, 16
      %v284 = vrot.slane %v282, 5
      %v285 = vor.u32 %v281, %v284
      %v286 = vrot.slane %v285, 4
      %v288 = vshll.u32 %v202, 16
      %v290 = vrot.slane %v288, 5
      %v291 = vsel %vm253, %v286, %v290
      %v292 = vshrl.u32 %v202, 16
      %v294 = vrot.slane %v292, 4
      %v295 = vor.u32 %v294, %v290
      %v296 = vrot.slane %v295, 4
      %v298 = vshll.u32 %v236, 16
      %v300 = vrot.slane %v298, 5
      %v301 = vsel %vm253, %v296, %v300
      %v303 = vshrl.u32 %v203, 16
      %v305 = vrot.slane %v303, 4
      %v306 = vshll.u32 %v203, 16
      %v308 = vrot.slane %v306, 5
      %v309 = vor.u32 %v305, %v308
      %v310 = vrot.slane %v309, 4
      %v312 = vshll.u32 %v204, 16
      %v314 = vrot.slane %v312, 5
      %v315 = vsel %vm253, %v310, %v314
      %v316 = vshrl.u32 %v204, 16
      %v318 = vrot.slane %v316, 4
      %v319 = vor.u32 %v318, %v314
      %v320 = vrot.slane %v319, 4
      %v322 = vshll.u32 %v237, 16
      %v324 = vrot.slane %v322, 5
      %v325 = vsel %vm253, %v320, %v324
      %v327 = vshrl.u32 %v205, 16
      %v329 = vrot.slane %v327, 4
      %v330 = vshll.u32 %v205, 16
      %v332 = vrot.slane %v330, 5
      %v333 = vor.u32 %v329, %v332
      %v334 = vrot.slane %v333, 4
      %v336 = vshll.u32 %v206, 16
      %v338 = vrot.slane %v336, 5
      %v339 = vsel %vm253, %v334, %v338
      %v340 = vshrl.u32 %v206, 16
      %v342 = vrot.slane %v340, 4
      %v343 = vor.u32 %v342, %v338
      %v344 = vrot.slane %v343, 4
      %v346 = vshll.u32 %v238, 16
      %v348 = vrot.slane %v346, 5
      %v349 = vsel %vm253, %v344, %v348
      %v351 = vshrl.u32 %v207, 16
      %v353 = vrot.slane %v351, 4
      %v354 = vshll.u32 %v207, 16
      %v356 = vrot.slane %v354, 5
      %v357 = vor.u32 %v353, %v356
      %v358 = vrot.slane %v357, 4
      %v360 = vshll.u32 %v208, 16
      %v362 = vrot.slane %v360, 5
      %v363 = vsel %vm253, %v358, %v362
      %v364 = vshrl.u32 %v208, 16
      %v366 = vrot.slane %v364, 4
      %v367 = vor.u32 %v366, %v362
      %v368 = vrot.slane %v367, 4
      %v370 = vshll.u32 %v239, 16
      %v372 = vrot.slane %v370, 5
      %v373 = vsel %vm253, %v368, %v372
      %v375 = vshrl.u32 %v209, 16
      %v377 = vrot.slane %v375, 4
      %v378 = vshll.u32 %v209, 16
      %v380 = vrot.slane %v378, 5
      %v381 = vor.u32 %v377, %v380
      %v382 = vrot.slane %v381, 4
      %v384 = vshll.u32 %v210, 16
      %v386 = vrot.slane %v384, 5
      %v387 = vsel %vm253, %v382, %v386
      %v388 = vshrl.u32 %v210, 16
      %v390 = vrot.slane %v388, 4
      %v391 = vor.u32 %v390, %v386
      %v392 = vrot.slane %v391, 4
      %v394 = vshll.u32 %v240, 16
      %v396 = vrot.slane %v394, 5
      %v397 = vsel %vm253, %v392, %v396
      %v399 = vshrl.u32 %v211, 16
      %v401 = vrot.slane %v399, 4
      %v402 = vshll.u32 %v211, 16
      %v404 = vrot.slane %v402, 5
      %v405 = vor.u32 %v401, %v404
      %v406 = vrot.slane %v405, 4
      %v408 = vshll.u32 %v212, 16
      %v410 = vrot.slane %v408, 5
      %v411 = vsel %vm253, %v406, %v410
      %v412 = vshrl.u32 %v212, 16
      %v414 = vrot.slane %v412, 4
      %v415 = vor.u32 %v414, %v410
      %v416 = vrot.slane %v415, 4
      %v418 = vshll.u32 %v241, 16
      %v420 = vrot.slane %v418, 5
      %v421 = vsel %vm253, %v416, %v420
      %v423 = vshrl.u32 %v213, 16
      %v425 = vrot.slane %v423, 4
      %v426 = vshll.u32 %v213, 16
      %v428 = vrot.slane %v426, 5
      %v429 = vor.u32 %v425, %v428
      %v430 = vrot.slane %v429, 4
      %v432 = vshll.u32 %v214, 16
      %v434 = vrot.slane %v432, 5
      %v435 = vsel %vm253, %v430, %v434
      %v436 = vshrl.u32 %v214, 16
      %v438 = vrot.slane %v436, 4
      %v439 = vor.u32 %v438, %v434
      %v440 = vrot.slane %v439, 4
      %v442 = vshll.u32 %v242, 16
      %v444 = vrot.slane %v442, 5
      %v445 = vsel %vm253, %v440, %v444
      %v447 = vshrl.u32 %v215, 16
      %v449 = vrot.slane %v447, 4
      %v450 = vshll.u32 %v215, 16
      %v452 = vrot.slane %v450, 5
      %v453 = vor.u32 %v449, %v452
      %v454 = vrot.slane %v453, 4
      %v456 = vshll.u32 %v216, 16
      %v458 = vrot.slane %v456, 5
      %v459 = vsel %vm253, %v454, %v458
      %v460 = vshrl.u32 %v216, 16
      %v462 = vrot.slane %v460, 4
      %v463 = vor.u32 %v462, %v458
      %v464 = vrot.slane %v463, 4
      %v466 = vshll.u32 %v243, 16
      %v468 = vrot.slane %v466, 5
      %v469 = vsel %vm253, %v464, %v468
      %v471 = vshrl.u32 %v217, 16
      %v473 = vrot.slane %v471, 4
      %v474 = vshll.u32 %v217, 16
      %v476 = vrot.slane %v474, 5
      %v477 = vor.u32 %v473, %v476
      %v478 = vrot.slane %v477, 4
      %v480 = vshll.u32 %v218, 16
      %v482 = vrot.slane %v480, 5
      %v483 = vsel %vm253, %v478, %v482
      %v484 = vshrl.u32 %v218, 16
      %v486 = vrot.slane %v484, 4
      %v487 = vor.u32 %v486, %v482
      %v488 = vrot.slane %v487, 4
      %v490 = vshll.u32 %v244, 16
      %v492 = vrot.slane %v490, 5
      %v493 = vsel %vm253, %v488, %v492
      %v495 = vshrl.u32 %v219, 16
      %v497 = vrot.slane %v495, 4
      %v498 = vshll.u32 %v219, 16
      %v500 = vrot.slane %v498, 5
      %v501 = vor.u32 %v497, %v500
      %v502 = vrot.slane %v501, 4
      %v504 = vshll.u32 %v220, 16
      %v506 = vrot.slane %v504, 5
      %v507 = vsel %vm253, %v502, %v506
      %v508 = vshrl.u32 %v220, 16
      %v510 = vrot.slane %v508, 4
      %v511 = vor.u32 %v510, %v506
      %v512 = vrot.slane %v511, 4
      %v514 = vshll.u32 %v245, 16
      %v516 = vrot.slane %v514, 5
      %v517 = vsel %vm253, %v512, %v516
      %v519 = vshrl.u32 %v221, 16
      %v521 = vrot.slane %v519, 4
      %v522 = vshll.u32 %v221, 16
      %v524 = vrot.slane %v522, 5
      %v525 = vor.u32 %v521, %v524
      %v526 = vrot.slane %v525, 4
      %v528 = vshll.u32 %v222, 16
      %v530 = vrot.slane %v528, 5
      %v531 = vsel %vm253, %v526, %v530
      %v532 = vshrl.u32 %v222, 16
      %v534 = vrot.slane %v532, 4
      %v535 = vor.u32 %v534, %v530
      %v536 = vrot.slane %v535, 4
      %v538 = vshll.u32 %v246, 16
      %v540 = vrot.slane %v538, 5
      %v541 = vsel %vm253, %v536, %v540
      %v543 = vshrl.u32 %v223, 16
      %v545 = vrot.slane %v543, 4
      %v546 = vshll.u32 %v223, 16
      %v548 = vrot.slane %v546, 5
      %v549 = vor.u32 %v545, %v548
      %v550 = vrot.slane %v549, 4
      %v552 = vshll.u32 %v224, 16
      %v554 = vrot.slane %v552, 5
      %v555 = vsel %vm253, %v550, %v554
      %v556 = vshrl.u32 %v224, 16
      %v558 = vrot.slane %v556, 4
      %v559 = vor.u32 %v558, %v554
      %v560 = vrot.slane %v559, 4
      %v562 = vshll.u32 %v247, 16
      %v564 = vrot.slane %v562, 5
      %v565 = vsel %vm253, %v560, %v564
      %v567 = vshrl.u32 %v225, 16
      %v569 = vrot.slane %v567, 4
      %v570 = vshll.u32 %v225, 16
      %v572 = vrot.slane %v570, 5
      %v573 = vor.u32 %v569, %v572
      %v574 = vrot.slane %v573, 4
      %v576 = vshll.u32 %v226, 16
      %v578 = vrot.slane %v576, 5
      %v579 = vsel %vm253, %v574, %v578
      %v580 = vshrl.u32 %v226, 16
      %v582 = vrot.slane %v580, 4
      %v583 = vor.u32 %v582, %v578
      %v584 = vrot.slane %v583, 4
      %v586 = vshll.u32 %v248, 16
      %v588 = vrot.slane %v586, 5
      %v589 = vsel %vm253, %v584, %v588
      %v591 = vshrl.u32 %v227, 16
      %v593 = vrot.slane %v591, 4
      %v594 = vshll.u32 %v227, 16
      %v596 = vrot.slane %v594, 5
      %v597 = vor.u32 %v593, %v596
      %v598 = vrot.slane %v597, 4
      %v600 = vshll.u32 %v228, 16
      %v602 = vrot.slane %v600, 5
      %v603 = vsel %vm253, %v598, %v602
      %v604 = vshrl.u32 %v228, 16
      %v606 = vrot.slane %v604, 4
      %v607 = vor.u32 %v606, %v602
      %v608 = vrot.slane %v607, 4
      %v610 = vshll.u32 %v249, 16
      %v612 = vrot.slane %v610, 5
      %v613 = vsel %vm253, %v608, %v612
      %v615 = vshrl.u32 %v229, 16
      %v617 = vrot.slane %v615, 4
      %v618 = vshll.u32 %v229, 16
      %v620 = vrot.slane %v618, 5
      %v621 = vor.u32 %v617, %v620
      %v622 = vrot.slane %v621, 4
      %v624 = vshll.u32 %v230, 16
      %v626 = vrot.slane %v624, 5
      %v627 = vsel %vm253, %v622, %v626
      %v628 = vshrl.u32 %v230, 16
      %v630 = vrot.slane %v628, 4
      %v631 = vor.u32 %v630, %v626
      %v632 = vrot.slane %v631, 4
      %v634 = vshll.u32 %v250, 16
      %v636 = vrot.slane %v634, 5
      %v637 = vsel %vm253, %v632, %v636
      %s638 = scalar_lea.vmem %s1, 16
      %v639 = vld [vmem:[%s638] sm:$0xf]
      %v640 = vld [vmem:[%s638 + $0x4] sm:$0xf]
      %v641 = vld [vmem:[%s638 + $0x8] sm:$0xf]
      %v642 = vld [vmem:[%s638 + $0xc] sm:$0xf]
      %v643 = vunpack.c.l.b16 %v267
      %v644 = vunpack.c.l.b16 %v277
      %v645 = vunpack.c.l.b16 %v291
      %v646 = vunpack.c.l.b16 %v301
      %v647 = vunpack.c.l.b16 %v315
      %v648 = vunpack.c.l.b16 %v325
      %v649 = vunpack.c.l.b16 %v339
      %v650 = vunpack.c.l.b16 %v349
      %v651 = vunpack.c.l.b16 %v363
      %v652 = vunpack.c.l.b16 %v373
      %v653 = vunpack.c.l.b16 %v387
      %v654 = vunpack.c.l.b16 %v397
      %v655 = vunpack.c.l.b16 %v411
      %v656 = vunpack.c.l.b16 %v421
      %v657 = vunpack.c.l.b16 %v435
      %v658 = vunpack.c.l.b16 %v445
      %v659 = vunpack.c.l.b16 %v459
      %v660 = vunpack.c.l.b16 %v469
      %v661 = vunpack.c.l.b16 %v483
      %v662 = vunpack.c.l.b16 %v493
      %v663 = vunpack.c.l.b16 %v507
      %v664 = vunpack.c.l.b16 %v517
      %v665 = vunpack.c.l.b16 %v531
      %v666 = vunpack.c.l.b16 %v541
      %v667 = vunpack.c.l.b16 %v555
      %v668 = vunpack.c.l.b16 %v565
      %v669 = vunpack.c.l.b16 %v579
      %v670 = vunpack.c.l.b16 %v589
      %v671 = vunpack.c.l.b16 %v603
      %v672 = vunpack.c.l.b16 %v613
      %v673 = vunpack.c.l.b16 %v627
      %v674 = vunpack.c.l.b16 %v637
      %v675 = vpack.c.b16 %v644, %v643
      %v676 = vpack.c.b16 %v646, %v645
      %v677 = vpack.c.b16 %v648, %v647
      %v678 = vpack.c.b16 %v650, %v649
      %v679 = vpack.c.b16 %v652, %v651
      %v680 = vpack.c.b16 %v654, %v653
      %v681 = vpack.c.b16 %v656, %v655
      %v682 = vpack.c.b16 %v658, %v657
      %v683 = vpack.c.b16 %v660, %v659
      %v684 = vpack.c.b16 %v662, %v661
      %v685 = vpack.c.b16 %v664, %v663
      %v686 = vpack.c.b16 %v666, %v665
      %v687 = vpack.c.b16 %v668, %v667
      %v688 = vpack.c.b16 %v670, %v669
      %v689 = vpack.c.b16 %v672, %v671
      %v690 = vpack.c.b16 %v674, %v673
      %v695 = vunpack.c.l.b16 %v639
      %v696 = vunpack.c.l.b16 %v640
      %v697 = vunpack.c.l.b16 %v641
      %v698 = vunpack.c.l.b16 %v642
      %v699 = vpack.c.b16 %v696, %v695
      %v700 = vpack.c.b16 %v698, %v697
      %vm703 = vcmask 261120
      %v705 = vsel %vm703, %v675, 0
      %v708 = vsel %vm703, %v676, 0
      %v711 = vsel %vm703, %v677, 0
      %v714 = vsel %vm703, %v678, 0
      %v717 = vsel %vm703, %v679, 0
      %v720 = vsel %vm703, %v680, 0
      %v723 = vsel %vm703, %v681, 0
      %v726 = vsel %vm703, %v682, 0
      %v729 = vsel %vm703, %v683, 0
      %v732 = vsel %vm703, %v684, 0
      %v735 = vsel %vm703, %v685, 0
      %v738 = vsel %vm703, %v686, 0
      %v741 = vsel %vm703, %v687, 0
      %v744 = vsel %vm703, %v688, 0
      %v747 = vsel %vm703, %v689, 0
      %v750 = vsel %vm703, %v690, 0
      %752 = vmatprep.subr.bf16.mxu0 0
      %753 = vmatpush1.bf16.msra.mxu0 %v699
      %754 = vmatprep.subr.bf16.mxu0 0
      %755 = vmatpush1.bf16.msra.mxu0 %v700
      %756 = vmatprep.subr.bf16.mxu0 0
      %757 = vmatpush1.bf16.msra.mxu0 0
      %758 = vmatprep.subr.bf16.mxu0 0
      %759 = vmatpush1.bf16.msra.mxu0 0
      %760 = vmatprep.subr.bf16.mxu0 0
      %761 = vmatpush1.bf16.msra.mxu0 0
      %762 = vmatprep.subr.bf16.mxu0 0
      %763 = vmatpush1.bf16.msra.mxu0 0
      %764 = vmatprep.subr.bf16.mxu0 0
      %765 = vmatpush1.bf16.msra.mxu0 0
      %766 = vmatprep.subr.bf16.mxu0 0
      %767 = vmatpush1.bf16.msra.mxu0 0
      %768 = vmatprep.subr.bf16.mxu0 0
      %769 = vmatpush1.bf16.msra.mxu0 0
      %770 = vmatprep.subr.bf16.mxu0 0
      %771 = vmatpush1.bf16.msra.mxu0 0
      %772 = vmatprep.subr.bf16.mxu0 0
      %773 = vmatpush1.bf16.msra.mxu0 0
      %774 = vmatprep.subr.bf16.mxu0 0
      %775 = vmatpush1.bf16.msra.mxu0 0
      %776 = vmatprep.subr.bf16.mxu0 0
      %777 = vmatpush1.bf16.msra.mxu0 0
      %778 = vmatprep.subr.bf16.mxu0 0
      %779 = vmatpush1.bf16.msra.mxu0 0
      %780 = vmatprep.subr.bf16.mxu0 0
      %781 = vmatpush1.bf16.msra.mxu0 0
      %782 = vmatprep.subr.bf16.mxu0 0
      %783 = vmatpush1.bf16.msra.mxu0 0
      %784 = vmatprep.mubr.bf16.mxu0 0
      %785 = vmatmul.mubr.bf16.gmra.mrb[0].mxu0 %v705
      %v786 = vpop.f32.mrb[0].mxu0
      %v787 = vadd.f32 0.0, %v786
      %v788 = vpop.f32.mrb[0].mxu0
      %v789 = vpop.f32.mrb[0].mxu0
      %v790 = vadd.f32 0.0, %v789
      %v791 = vpop.f32.mrb[0].mxu0
      %792 = vmatprep.mubr.bf16.mxu0 0
      %793 = vmatmul.mubr.bf16.gmra.mrb[0].mxu0 %v708
      %v794 = vpop.f32.mrb[0].mxu0
      %v795 = vadd.f32 0.0, %v794
      %v796 = vpop.f32.mrb[0].mxu0
      %v797 = vpop.f32.mrb[0].mxu0
      %v798 = vadd.f32 0.0, %v797
      %v799 = vpop.f32.mrb[0].mxu0
      %800 = vmatprep.mubr.bf16.mxu0 0
      %801 = vmatmul.mubr.bf16.gmra.mrb[0].mxu0 %v711
      %v802 = vpop.f32.mrb[0].mxu0
      %v803 = vadd.f32 0.0, %v802
      %v804 = vpop.f32.mrb[0].mxu0
      %v805 = vpop.f32.mrb[0].mxu0
      %v806 = vadd.f32 0.0, %v805
      %v807 = vpop.f32.mrb[0].mxu0
      %808 = vmatprep.mubr.bf16.mxu0 0
      %809 = vmatmul.mubr.bf16.gmra.mrb[0].mxu0 %v714
      %v810 = vpop.f32.mrb[0].mxu0
      %v811 = vadd.f32 0.0, %v810
      %v812 = vpop.f32.mrb[0].mxu0
      %v813 = vpop.f32.mrb[0].mxu0
      %v814 = vadd.f32 0.0, %v813
      %v815 = vpop.f32.mrb[0].mxu0
      %816 = vmatprep.mubr.bf16.mxu0 0
      %817 = vmatmul.mubr.bf16.gmra.mrb[0].mxu0 %v717
      %v818 = vpop.f32.mrb[0].mxu0
      %v819 = vadd.f32 0.0, %v818
      %v820 = vpop.f32.mrb[0].mxu0
      %v821 = vpop.f32.mrb[0].mxu0
      %v822 = vadd.f32 0.0, %v821
      %v823 = vpop.f32.mrb[0].mxu0
      %824 = vmatprep.mubr.bf16.mxu0 0
      %825 = vmatmul.mubr.bf16.gmra.mrb[0].mxu0 %v720
      %v826 = vpop.f32.mrb[0].mxu0
      %v827 = vadd.f32 0.0, %v826
      %v828 = vpop.f32.mrb[0].mxu0
      %v829 = vpop.f32.mrb[0].mxu0
      %v830 = vadd.f32 0.0, %v829
      %v831 = vpop.f32.mrb[0].mxu0
      %832 = vmatprep.mubr.bf16.mxu0 0
      %833 = vmatmul.mubr.bf16.gmra.mrb[0].mxu0 %v723
      %v834 = vpop.f32.mrb[0].mxu0
      %v835 = vadd.f32 0.0, %v834
      %v836 = vpop.f32.mrb[0].mxu0
      %v837 = vpop.f32.mrb[0].mxu0
      %v838 = vadd.f32 0.0, %v837
      %v839 = vpop.f32.mrb[0].mxu0
      %840 = vmatprep.mubr.bf16.mxu0 0
      %841 = vmatmul.mubr.bf16.gmra.mrb[0].mxu0 %v726
      %v842 = vpop.f32.mrb[0].mxu0
      %v843 = vadd.f32 0.0, %v842
      %v844 = vpop.f32.mrb[0].mxu0
      %v845 = vpop.f32.mrb[0].mxu0
      %v846 = vadd.f32 0.0, %v845
      %v847 = vpop.f32.mrb[0].mxu0
      %848 = vmatprep.mubr.bf16.mxu0 0
      %849 = vmatmul.mubr.bf16.gmra.mrb[0].mxu0 %v729
      %v850 = vpop.f32.mrb[0].mxu0
      %v851 = vadd.f32 0.0, %v850
      %v852 = vpop.f32.mrb[0].mxu0
      %v853 = vpop.f32.mrb[0].mxu0
      %v854 = vadd.f32 0.0, %v853
      %v855 = vpop.f32.mrb[0].mxu0
      %856 = vmatprep.mubr.bf16.mxu0 0
      %857 = vmatmul.mubr.bf16.gmra.mrb[0].mxu0 %v732
      %v858 = vpop.f32.mrb[0].mxu0
      %v859 = vadd.f32 0.0, %v858
      %v860 = vpop.f32.mrb[0].mxu0
      %v861 = vpop.f32.mrb[0].mxu0
      %v862 = vadd.f32 0.0, %v861
      %v863 = vpop.f32.mrb[0].mxu0
      %864 = vmatprep.mubr.bf16.mxu0 0
      %865 = vmatmul.mubr.bf16.gmra.mrb[0].mxu0 %v735
      %v866 = vpop.f32.mrb[0].mxu0
      %v867 = vadd.f32 0.0, %v866
      %v868 = vpop.f32.mrb[0].mxu0
      %v869 = vpop.f32.mrb[0].mxu0
      %v870 = vadd.f32 0.0, %v869
      %v871 = vpop.f32.mrb[0].mxu0
      %872 = vmatprep.mubr.bf16.mxu0 0
      %873 = vmatmul.mubr.bf16.gmra.mrb[0].mxu0 %v738
      %v874 = vpop.f32.mrb[0].mxu0
      %v875 = vadd.f32 0.0, %v874
      %v876 = vpop.f32.mrb[0].mxu0
      %v877 = vpop.f32.mrb[0].mxu0
      %v878 = vadd.f32 0.0, %v877
      %v879 = vpop.f32.mrb[0].mxu0
      %880 = vmatprep.mubr.bf16.mxu0 0
      %881 = vmatmul.mubr.bf16.gmra.mrb[0].mxu0 %v741
      %v882 = vpop.f32.mrb[0].mxu0
      %v883 = vadd.f32 0.0, %v882
      %v884 = vpop.f32.mrb[0].mxu0
      %v885 = vpop.f32.mrb[0].mxu0
      %v886 = vadd.f32 0.0, %v885
      %v887 = vpop.f32.mrb[0].mxu0
      %888 = vmatprep.mubr.bf16.mxu0 0
      %889 = vmatmul.mubr.bf16.gmra.mrb[0].mxu0 %v744
      %v890 = vpop.f32.mrb[0].mxu0
      %v891 = vadd.f32 0.0, %v890
      %v892 = vpop.f32.mrb[0].mxu0
      %v893 = vpop.f32.mrb[0].mxu0
      %v894 = vadd.f32 0.0, %v893
      %v895 = vpop.f32.mrb[0].mxu0
      %896 = vmatprep.mubr.bf16.mxu0 0
      %897 = vmatmul.mubr.bf16.gmra.mrb[0].mxu0 %v747
      %v898 = vpop.f32.mrb[0].mxu0
      %v899 = vadd.f32 0.0, %v898
      %v900 = vpop.f32.mrb[0].mxu0
      %v901 = vpop.f32.mrb[0].mxu0
      %v902 = vadd.f32 0.0, %v901
      %v903 = vpop.f32.mrb[0].mxu0
      %904 = vmatprep.mubr.bf16.mxu0 0
      %905 = vmatmul.mubr.bf16.gmra.mrb[0].mxu0 %v750
      %v906 = vpop.f32.mrb[0].mxu0
      %v907 = vadd.f32 0.0, %v906
      %v908 = vpop.f32.mrb[0].mxu0
      %v909 = vpop.f32.mrb[0].mxu0
      %v910 = vadd.f32 0.0, %v909
      %v911 = vpop.f32.mrb[0].mxu0
      %912 = vdwg.mxu0
      %v945 = vunpack.c.l.b16 %v199
      %v946 = vunpack.c.l.b16 %v200
      %v947 = vunpack.c.l.b16 %v201
      %v948 = vunpack.c.l.b16 %v202
      %v949 = vunpack.c.l.b16 %v203
      %v950 = vunpack.c.l.b16 %v204
      %v951 = vunpack.c.l.b16 %v205
      %v952 = vunpack.c.l.b16 %v206
      %v953 = vunpack.c.l.b16 %v207
      %v954 = vunpack.c.l.b16 %v208
      %v955 = vunpack.c.l.b16 %v209
      %v956 = vunpack.c.l.b16 %v210
      %v957 = vunpack.c.l.b16 %v211
      %v958 = vunpack.c.l.b16 %v212
      %v959 = vunpack.c.l.b16 %v213
      %v960 = vunpack.c.l.b16 %v214
      %v961 = vunpack.c.l.b16 %v215
      %v962 = vunpack.c.l.b16 %v216
      %v963 = vunpack.c.l.b16 %v217
      %v964 = vunpack.c.l.b16 %v218
      %v965 = vunpack.c.l.b16 %v219
      %v966 = vunpack.c.l.b16 %v220
      %v967 = vunpack.c.l.b16 %v221
      %v968 = vunpack.c.l.b16 %v222
      %v969 = vunpack.c.l.b16 %v223
      %v970 = vunpack.c.l.b16 %v224
      %v971 = vunpack.c.l.b16 %v225
      %v972 = vunpack.c.l.b16 %v226
      %v973 = vunpack.c.l.b16 %v227
      %v974 = vunpack.c.l.b16 %v228
      %v975 = vunpack.c.l.b16 %v229
      %v976 = vunpack.c.l.b16 %v230
      %v977 = vpack.c.b16 %v946, %v945
      %v978 = vpack.c.b16 %v948, %v947
      %v979 = vpack.c.b16 %v950, %v949
      %v980 = vpack.c.b16 %v952, %v951
      %v981 = vpack.c.b16 %v954, %v953
      %v982 = vpack.c.b16 %v956, %v955
      %v983 = vpack.c.b16 %v958, %v957
      %v984 = vpack.c.b16 %v960, %v959
      %v985 = vpack.c.b16 %v962, %v961
      %v986 = vpack.c.b16 %v964, %v963
      %v987 = vpack.c.b16 %v966, %v965
      %v988 = vpack.c.b16 %v968, %v967
      %v989 = vpack.c.b16 %v970, %v969
      %v990 = vpack.c.b16 %v972, %v971
      %v991 = vpack.c.b16 %v974, %v973
      %v992 = vpack.c.b16 %v976, %v975
      %v997 = vunpack.c.l.b16 %v231
      %v998 = vunpack.c.l.b16 %v232
      %v999 = vunpack.c.l.b16 %v233
      %v1000 = vunpack.c.l.b16 %v234
      %v1001 = vpack.c.b16 %v998, %v997
      %v1002 = vpack.c.b16 %v1000, %v999
      %v1006 = vsel %vm703, %v977, 0
      %v1009 = vsel %vm703, %v978, 0
      %v1012 = vsel %vm703, %v979, 0
      %v1015 = vsel %vm703, %v980, 0
      %v1018 = vsel %vm703, %v981, 0
      %v1021 = vsel %vm703, %v982, 0
      %v1024 = vsel %vm703, %v983, 0
      %v1027 = vsel %vm703, %v984, 0
      %v1030 = vsel %vm703, %v985, 0
      %v1033 = vsel %vm703, %v986, 0
      %v1036 = vsel %vm703, %v987, 0
      %v1039 = vsel %vm703, %v988, 0
      %v1042 = vsel %vm703, %v989, 0
      %v1045 = vsel %vm703, %v990, 0
      %v1048 = vsel %vm703, %v991, 0
      %v1051 = vsel %vm703, %v992, 0
      %1053 = vmatprep.subr.bf16.mxu0 0
      %1054 = vmatpush1.bf16.msra.mxu0 %v1001
      %1055 = vmatprep.subr.bf16.mxu0 0
      %1056 = vmatpush1.bf16.msra.mxu0 %v1002
      %1057 = vmatprep.subr.bf16.mxu0 0
      %1058 = vmatpush1.bf16.msra.mxu0 0
      %1059 = vmatprep.subr.bf16.mxu0 0
      %1060 = vmatpush1.bf16.msra.mxu0 0
      %1061 = vmatprep.subr.bf16.mxu0 0
      %1062 = vmatpush1.bf16.msra.mxu0 0
      %1063 = vmatprep.subr.bf16.mxu0 0
      %1064 = vmatpush1.bf16.msra.mxu0 0
      %1065 = vmatprep.subr.bf16.mxu0 0
      %1066 = vmatpush1.bf16.msra.mxu0 0
      %1067 = vmatprep.subr.bf16.mxu0 0
      %1068 = vmatpush1.bf16.msra.mxu0 0
      %1069 = vmatprep.subr.bf16.mxu0 0
      %1070 = vmatpush1.bf16.msra.mxu0 0
      %1071 = vmatprep.subr.bf16.mxu0 0
      %1072 = vmatpush1.bf16.msra.mxu0 0
      %1073 = vmatprep.subr.bf16.mxu0 0
      %1074 = vmatpush1.bf16.msra.mxu0 0
      %1075 = vmatprep.subr.bf16.mxu0 0
      %1076 = vmatpush1.bf16.msra.mxu0 0
      %1077 = vmatprep.subr.bf16.mxu0 0
      %1078 = vmatpush1.bf16.msra.mxu0 0
      %1079 = vmatprep.subr.bf16.mxu0 0
      %1080 = vmatpush1.bf16.msra.mxu0 0
      %1081 = vmatprep.subr.bf16.mxu0 0
      %1082 = vmatpush1.bf16.msra.mxu0 0
      %1083 = vmatprep.subr.bf16.mxu0 0
      %1084 = vmatpush1.bf16.msra.mxu0 0
      %1085 = vmatprep.mubr.bf16.mxu0 0
      %1086 = vmatmul.mubr.bf16.gmra.mrb[0].mxu0 %v1006
      %v1087 = vpop.f32.mrb[0].mxu0
      %v1088 = vadd.f32 %v787, %v1087
      %v1089 = vpop.f32.mrb[0].mxu0
      %v1090 = vpop.f32.mrb[0].mxu0
      %v1091 = vadd.f32 %v790, %v1090
      %v1092 = vpop.f32.mrb[0].mxu0
      %1093 = vmatprep.mubr.bf16.mxu0 0
      %1094 = vmatmul.mubr.bf16.gmra.mrb[0].mxu0 %v1009
      %v1095 = vpop.f32.mrb[0].mxu0
      %v1096 = vadd.f32 %v795, %v1095
      %v1097 = vpop.f32.mrb[0].mxu0
      %v1098 = vpop.f32.mrb[0].mxu0
      %v1099 = vadd.f32 %v798, %v1098
      %v1100 = vpop.f32.mrb[0].mxu0
      %1101 = vmatprep.mubr.bf16.mxu0 0
      %1102 = vmatmul.mubr.bf16.gmra.mrb[0].mxu0 %v1012
      %v1103 = vpop.f32.mrb[0].mxu0
      %v1104 = vadd.f32 %v803, %v1103
      %v1105 = vpop.f32.mrb[0].mxu0
      %v1106 = vpop.f32.mrb[0].mxu0
      %v1107 = vadd.f32 %v806, %v1106
      %v1108 = vpop.f32.mrb[0].mxu0
      %1109 = vmatprep.mubr.bf16.mxu0 0
      %1110 = vmatmul.mubr.bf16.gmra.mrb[0].mxu0 %v1015
      %v1111 = vpop.f32.mrb[0].mxu0
      %v1112 = vadd.f32 %v811, %v1111
      %v1113 = vpop.f32.mrb[0].mxu0
      %v1114 = vpop.f32.mrb[0].mxu0
      %v1115 = vadd.f32 %v814, %v1114
      %v1116 = vpop.f32.mrb[0].mxu0
      %1117 = vmatprep.mubr.bf16.mxu0 0
      %1118 = vmatmul.mubr.bf16.gmra.mrb[0].mxu0 %v1018
      %v1119 = vpop.f32.mrb[0].mxu0
      %v1120 = vadd.f32 %v819, %v1119
      %v1121 = vpop.f32.mrb[0].mxu0
      %v1122 = vpop.f32.mrb[0].mxu0
      %v1123 = vadd.f32 %v822, %v1122
      %v1124 = vpop.f32.mrb[0].mxu0
      %1125 = vmatprep.mubr.bf16.mxu0 0
      %1126 = vmatmul.mubr.bf16.gmra.mrb[0].mxu0 %v1021
      %v1127 = vpop.f32.mrb[0].mxu0
      %v1128 = vadd.f32 %v827, %v1127
      %v1129 = vpop.f32.mrb[0].mxu0
      %v1130 = vpop.f32.mrb[0].mxu0
      %v1131 = vadd.f32 %v830, %v1130
      %v1132 = vpop.f32.mrb[0].mxu0
      %1133 = vmatprep.mubr.bf16.mxu0 0
      %1134 = vmatmul.mubr.bf16.gmra.mrb[0].mxu0 %v1024
      %v1135 = vpop.f32.mrb[0].mxu0
      %v1136 = vadd.f32 %v835, %v1135
      %v1137 = vpop.f32.mrb[0].mxu0
      %v1138 = vpop.f32.mrb[0].mxu0
      %v1139 = vadd.f32 %v838, %v1138
      %v1140 = vpop.f32.mrb[0].mxu0
      %1141 = vmatprep.mubr.bf16.mxu0 0
      %1142 = vmatmul.mubr.bf16.gmra.mrb[0].mxu0 %v1027
      %v1143 = vpop.f32.mrb[0].mxu0
      %v1144 = vadd.f32 %v843, %v1143
      %v1145 = vpop.f32.mrb[0].mxu0
      %v1146 = vpop.f32.mrb[0].mxu0
      %v1147 = vadd.f32 %v846, %v1146
      %v1148 = vpop.f32.mrb[0].mxu0
      %1149 = vmatprep.mubr.bf16.mxu0 0
      %1150 = vmatmul.mubr.bf16.gmra.mrb[0].mxu0 %v1030
      %v1151 = vpop.f32.mrb[0].mxu0
      %v1152 = vadd.f32 %v851, %v1151
      %v1153 = vpop.f32.mrb[0].mxu0
      %v1154 = vpop.f32.mrb[0].mxu0
      %v1155 = vadd.f32 %v854, %v1154
      %v1156 = vpop.f32.mrb[0].mxu0
      %1157 = vmatprep.mubr.bf16.mxu0 0
      %1158 = vmatmul.mubr.bf16.gmra.mrb[0].mxu0 %v1033
      %v1159 = vpop.f32.mrb[0].mxu0
      %v1160 = vadd.f32 %v859, %v1159
      %v1161 = vpop.f32.mrb[0].mxu0
      %v1162 = vpop.f32.mrb[0].mxu0
      %v1163 = vadd.f32 %v862, %v1162
      %v1164 = vpop.f32.mrb[0].mxu0
      %1165 = vmatprep.mubr.bf16.mxu0 0
      %1166 = vmatmul.mubr.bf16.gmra.mrb[0].mxu0 %v1036
      %v1167 = vpop.f32.mrb[0].mxu0
      %v1168 = vadd.f32 %v867, %v1167
      %v1169 = vpop.f32.mrb[0].mxu0
      %v1170 = vpop.f32.mrb[0].mxu0
      %v1171 = vadd.f32 %v870, %v1170
      %v1172 = vpop.f32.mrb[0].mxu0
      %1173 = vmatprep.mubr.bf16.mxu0 0
      %1174 = vmatmul.mubr.bf16.gmra.mrb[0].mxu0 %v1039
      %v1175 = vpop.f32.mrb[0].mxu0
      %v1176 = vadd.f32 %v875, %v1175
      %v1177 = vpop.f32.mrb[0].mxu0
      %v1178 = vpop.f32.mrb[0].mxu0
      %v1179 = vadd.f32 %v878, %v1178
      %v1180 = vpop.f32.mrb[0].mxu0
      %1181 = vmatprep.mubr.bf16.mxu0 0
      %1182 = vmatmul.mubr.bf16.gmra.mrb[0].mxu0 %v1042
      %v1183 = vpop.f32.mrb[0].mxu0
      %v1184 = vadd.f32 %v883, %v1183
      %v1185 = vpop.f32.mrb[0].mxu0
      %v1186 = vpop.f32.mrb[0].mxu0
      %v1187 = vadd.f32 %v886, %v1186
      %v1188 = vpop.f32.mrb[0].mxu0
      %1189 = vmatprep.mubr.bf16.mxu0 0
      %1190 = vmatmul.mubr.bf16.gmra.mrb[0].mxu0 %v1045
      %v1191 = vpop.f32.mrb[0].mxu0
      %v1192 = vadd.f32 %v891, %v1191
      %v1193 = vpop.f32.mrb[0].mxu0
      %v1194 = vpop.f32.mrb[0].mxu0
      %v1195 = vadd.f32 %v894, %v1194
      %v1196 = vpop.f32.mrb[0].mxu0
      %1197 = vmatprep.mubr.bf16.mxu0 0
      %1198 = vmatmul.mubr.bf16.gmra.mrb[0].mxu0 %v1048
      %v1199 = vpop.f32.mrb[0].mxu0
      %v1200 = vadd.f32 %v899, %v1199
      %v1201 = vpop.f32.mrb[0].mxu0
      %v1202 = vpop.f32.mrb[0].mxu0
      %v1203 = vadd.f32 %v902, %v1202
      %v1204 = vpop.f32.mrb[0].mxu0
      %1205 = vmatprep.mubr.bf16.mxu0 0
      %1206 = vmatmul.mubr.bf16.gmra.mrb[0].mxu0 %v1051
      %v1207 = vpop.f32.mrb[0].mxu0
      %v1208 = vadd.f32 %v907, %v1207
      %v1209 = vpop.f32.mrb[0].mxu0
      %v1210 = vpop.f32.mrb[0].mxu0
      %v1211 = vadd.f32 %v910, %v1210
      %v1212 = vpop.f32.mrb[0].mxu0
      %1213 = vdwg.mxu0
      %v1214 = vld [vmem:[%s192] sm:$0xe]
      %v1215 = vld [vmem:[%s192 + $0xc] sm:$0xe]
      %v1216 = vld [vmem:[%s192 + $0x18] sm:$0xe]
      %v1217 = vld [vmem:[%s192 + $0x24] sm:$0xe]
      %v1218 = vld [vmem:[%s192 + $0x30] sm:$0xe]
      %v1219 = vld [vmem:[%s192 + $0x3c] sm:$0xe]
      %v1220 = vld [vmem:[%s192 + $0x48] sm:$0xe]
      %v1221 = vld [vmem:[%s192 + $0x54] sm:$0xe]
      %v1222 = vld [vmem:[%s192 + $0x60] sm:$0xe]
      %v1223 = vld [vmem:[%s192 + $0x6c] sm:$0xe]
      %v1224 = vld [vmem:[%s192 + $0x78] sm:$0xe]
      %v1225 = vld [vmem:[%s192 + $0x84] sm:$0xe]
      %v1226 = vld [vmem:[%s192 + $0x90] sm:$0xe]
      %v1227 = vld [vmem:[%s192 + $0x9c] sm:$0xe]
      %v1228 = vld [vmem:[%s192 + $0xa8] sm:$0xe]
      %v1229 = vld [vmem:[%s192 + $0xb4] sm:$0xe]
      %vm1262 = vcmask 1042432
      %vm1263 = vcmask 1046532
      %vm1264 = vmor %vm1262, %vm1263
      %v1265 = vrot.slane %v1214, 5
      %v1266 = vrot.slane %v1265, 4
      %v1267 = vrot.slane %v200, 5
      %v1268 = vsel %vm1264, %v1266, %v1267
      %v1269 = vrot.slane %v1267, 4
      %v1270 = vrot.slane %v235, 5
      %v1271 = vsel %vm1264, %v1269, %v1270
      %v1272 = vrot.slane %v1215, 5
      %v1273 = vrot.slane %v1272, 4
      %v1274 = vrot.slane %v202, 5
      %v1275 = vsel %vm1264, %v1273, %v1274
      %v1276 = vrot.slane %v1274, 4
      %v1277 = vrot.slane %v236, 5
      %v1278 = vsel %vm1264, %v1276, %v1277
      %v1279 = vrot.slane %v1216, 5
      %v1280 = vrot.slane %v1279, 4
      %v1281 = vrot.slane %v204, 5
      %v1282 = vsel %vm1264, %v1280, %v1281
      %v1283 = vrot.slane %v1281, 4
      %v1284 = vrot.slane %v237, 5
      %v1285 = vsel %vm1264, %v1283, %v1284
      %v1286 = vrot.slane %v1217, 5
      %v1287 = vrot.slane %v1286, 4
      %v1288 = vrot.slane %v206, 5
      %v1289 = vsel %vm1264, %v1287, %v1288
      %v1290 = vrot.slane %v1288, 4
      %v1291 = vrot.slane %v238, 5
      %v1292 = vsel %vm1264, %v1290, %v1291
      %v1293 = vrot.slane %v1218, 5
      %v1294 = vrot.slane %v1293, 4
      %v1295 = vrot.slane %v208, 5
      %v1296 = vsel %vm1264, %v1294, %v1295
      %v1297 = vrot.slane %v1295, 4
      %v1298 = vrot.slane %v239, 5
      %v1299 = vsel %vm1264, %v1297, %v1298
      %v1300 = vrot.slane %v1219, 5
      %v1301 = vrot.slane %v1300, 4
      %v1302 = vrot.slane %v210, 5
      %v1303 = vsel %vm1264, %v1301, %v1302
      %v1304 = vrot.slane %v1302, 4
      %v1305 = vrot.slane %v240, 5
      %v1306 = vsel %vm1264, %v1304, %v1305
      %v1307 = vrot.slane %v1220, 5
      %v1308 = vrot.slane %v1307, 4
      %v1309 = vrot.slane %v212, 5
      %v1310 = vsel %vm1264, %v1308, %v1309
      %v1311 = vrot.slane %v1309, 4
      %v1312 = vrot.slane %v241, 5
      %v1313 = vsel %vm1264, %v1311, %v1312
      %v1314 = vrot.slane %v1221, 5
      %v1315 = vrot.slane %v1314, 4
      %v1316 = vrot.slane %v214, 5
      %v1317 = vsel %vm1264, %v1315, %v1316
      %v1318 = vrot.slane %v1316, 4
      %v1319 = vrot.slane %v242, 5
      %v1320 = vsel %vm1264, %v1318, %v1319
      %v1321 = vrot.slane %v1222, 5
      %v1322 = vrot.slane %v1321, 4
      %v1323 = vrot.slane %v216, 5
      %v1324 = vsel %vm1264, %v1322, %v1323
      %v1325 = vrot.slane %v1323, 4
      %v1326 = vrot.slane %v243, 5
      %v1327 = vsel %vm1264, %v1325, %v1326
      %v1328 = vrot.slane %v1223, 5
      %v1329 = vrot.slane %v1328, 4
      %v1330 = vrot.slane %v218, 5
      %v1331 = vsel %vm1264, %v1329, %v1330
      %v1332 = vrot.slane %v1330, 4
      %v1333 = vrot.slane %v244, 5
      %v1334 = vsel %vm1264, %v1332, %v1333
      %v1335 = vrot.slane %v1224, 5
      %v1336 = vrot.slane %v1335, 4
      %v1337 = vrot.slane %v220, 5
      %v1338 = vsel %vm1264, %v1336, %v1337
      %v1339 = vrot.slane %v1337, 4
      %v1340 = vrot.slane %v245, 5
      %v1341 = vsel %vm1264, %v1339, %v1340
      %v1342 = vrot.slane %v1225, 5
      %v1343 = vrot.slane %v1342, 4
      %v1344 = vrot.slane %v222, 5
      %v1345 = vsel %vm1264, %v1343, %v1344
      %v1346 = vrot.slane %v1344, 4
      %v1347 = vrot.slane %v246, 5
      %v1348 = vsel %vm1264, %v1346, %v1347
      %v1349 = vrot.slane %v1226, 5
      %v1350 = vrot.slane %v1349, 4
      %v1351 = vrot.slane %v224, 5
      %v1352 = vsel %vm1264, %v1350, %v1351
      %v1353 = vrot.slane %v1351, 4
      %v1354 = vrot.slane %v247, 5
      %v1355 = vsel %vm1264, %v1353, %v1354
      %v1356 = vrot.slane %v1227, 5
      %v1357 = vrot.slane %v1356, 4
      %v1358 = vrot.slane %v226, 5
      %v1359 = vsel %vm1264, %v1357, %v1358
      %v1360 = vrot.slane %v1358, 4
      %v1361 = vrot.slane %v248, 5
      %v1362 = vsel %vm1264, %v1360, %v1361
      %v1363 = vrot.slane %v1228, 5
      %v1364 = vrot.slane %v1363, 4
      %v1365 = vrot.slane %v228, 5
      %v1366 = vsel %vm1264, %v1364, %v1365
      %v1367 = vrot.slane %v1365, 4
      %v1368 = vrot.slane %v249, 5
      %v1369 = vsel %vm1264, %v1367, %v1368
      %v1370 = vrot.slane %v1229, 5
      %v1371 = vrot.slane %v1370, 4
      %v1372 = vrot.slane %v230, 5
      %v1373 = vsel %vm1264, %v1371, %v1372
      %v1374 = vrot.slane %v1372, 4
      %v1375 = vrot.slane %v250, 5
      %v1376 = vsel %vm1264, %v1374, %v1375
      %s1377 = scalar_lea.vmem %s1, 32
      %v1378 = vld [vmem:[%s1377] sm:$0xf]
      %v1379 = vld [vmem:[%s1377 + $0x4] sm:$0xf]
      %v1380 = vld [vmem:[%s1377 + $0x8] sm:$0xf]
      %v1381 = vld [vmem:[%s1377 + $0xc] sm:$0xf]
      %v1382 = vunpack.c.l.b16 %v1268
      %v1383 = vunpack.c.l.b16 %v1271
      %v1384 = vunpack.c.l.b16 %v1275
      %v1385 = vunpack.c.l.b16 %v1278
      %v1386 = vunpack.c.l.b16 %v1282
      %v1387 = vunpack.c.l.b16 %v1285
      %v1388 = vunpack.c.l.b16 %v1289
      %v1389 = vunpack.c.l.b16 %v1292
      %v1390 = vunpack.c.l.b16 %v1296
      %v1391 = vunpack.c.l.b16 %v1299
      %v1392 = vunpack.c.l.b16 %v1303
      %v1393 = vunpack.c.l.b16 %v1306
      %v1394 = vunpack.c.l.b16 %v1310
      %v1395 = vunpack.c.l.b16 %v1313
      %v1396 = vunpack.c.l.b16 %v1317
      %v1397 = vunpack.c.l.b16 %v1320
      %v1398 = vunpack.c.l.b16 %v1324
      %v1399 = vunpack.c.l.b16 %v1327
      %v1400 = vunpack.c.l.b16 %v1331
      %v1401 = vunpack.c.l.b16 %v1334
      %v1402 = vunpack.c.l.b16 %v1338
      %v1403 = vunpack.c.l.b16 %v1341
      %v1404 = vunpack.c.l.b16 %v1345
      %v1405 = vunpack.c.l.b16 %v1348
      %v1406 = vunpack.c.l.b16 %v1352
      %v1407 = vunpack.c.l.b16 %v1355
      %v1408 = vunpack.c.l.b16 %v1359
      %v1409 = vunpack.c.l.b16 %v1362
      %v1410 = vunpack.c.l.b16 %v1366
      %v1411 = vunpack.c.l.b16 %v1369
      %v1412 = vunpack.c.l.b16 %v1373
      %v1413 = vunpack.c.l.b16 %v1376
      %v1414 = vpack.c.b16 %v1383, %v1382
      %v1415 = vpack.c.b16 %v1385, %v1384
      %v1416 = vpack.c.b16 %v1387, %v1386
      %v1417 = vpack.c.b16 %v1389, %v1388
      %v1418 = vpack.c.b16 %v1391, %v1390
      %v1419 = vpack.c.b16 %v1393, %v1392
      %v1420 = vpack.c.b16 %v1395, %v1394
      %v1421 = vpack.c.b16 %v1397, %v1396
      %v1422 = vpack.c.b16 %v1399, %v1398
      %v1423 = vpack.c.b16 %v1401, %v1400
      %v1424 = vpack.c.b16 %v1403, %v1402
      %v1425 = vpack.c.b16 %v1405, %v1404
      %v1426 = vpack.c.b16 %v1407, %v1406
      %v1427 = vpack.c.b16 %v1409, %v1408
      %v1428 = vpack.c.b16 %v1411, %v1410
      %v1429 = vpack.c.b16 %v1413, %v1412
      %v1434 = vunpack.c.l.b16 %v1378
      %v1435 = vunpack.c.l.b16 %v1379
      %v1436 = vunpack.c.l.b16 %v1380
      %v1437 = vunpack.c.l.b16 %v1381
      %v1438 = vpack.c.b16 %v1435, %v1434
      %v1439 = vpack.c.b16 %v1437, %v1436
      %v1443 = vsel %vm703, %v1414, 0
      %v1446 = vsel %vm703, %v1415, 0
      %v1449 = vsel %vm703, %v1416, 0
      %v1452 = vsel %vm703, %v1417, 0
      %v1455 = vsel %vm703, %v1418, 0
      %v1458 = vsel %vm703, %v1419, 0
      %v1461 = vsel %vm703, %v1420, 0
      %v1464 = vsel %vm703, %v1421, 0
      %v1467 = vsel %vm703, %v1422, 0
      %v1470 = vsel %vm703, %v1423, 0
      %v1473 = vsel %vm703, %v1424, 0
      %v1476 = vsel %vm703, %v1425, 0
      %v1479 = vsel %vm703, %v1426, 0
      %v1482 = vsel %vm703, %v1427, 0
      %v1485 = vsel %vm703, %v1428, 0
      %v1488 = vsel %vm703, %v1429, 0
      %1490 = vmatprep.subr.bf16.mxu0 0
      %1491 = vmatpush1.bf16.msra.mxu0 %v1438
      %1492 = vmatprep.subr.bf16.mxu0 0
      %1493 = vmatpush1.bf16.msra.mxu0 %v1439
      %1494 = vmatprep.subr.bf16.mxu0 0
      %1495 = vmatpush1.bf16.msra.mxu0 0
      %1496 = vmatprep.subr.bf16.mxu0 0
      %1497 = vmatpush1.bf16.msra.mxu0 0
      %1498 = vmatprep.subr.bf16.mxu0 0
      %1499 = vmatpush1.bf16.msra.mxu0 0
      %1500 = vmatprep.subr.bf16.mxu0 0
      %1501 = vmatpush1.bf16.msra.mxu0 0
      %1502 = vmatprep.subr.bf16.mxu0 0
      %1503 = vmatpush1.bf16.msra.mxu0 0
      %1504 = vmatprep.subr.bf16.mxu0 0
      %1505 = vmatpush1.bf16.msra.mxu0 0
      %1506 = vmatprep.subr.bf16.mxu0 0
      %1507 = vmatpush1.bf16.msra.mxu0 0
      %1508 = vmatprep.subr.bf16.mxu0 0
      %1509 = vmatpush1.bf16.msra.mxu0 0
      %1510 = vmatprep.subr.bf16.mxu0 0
      %1511 = vmatpush1.bf16.msra.mxu0 0
      %1512 = vmatprep.subr.bf16.mxu0 0
      %1513 = vmatpush1.bf16.msra.mxu0 0
      %1514 = vmatprep.subr.bf16.mxu0 0
      %1515 = vmatpush1.bf16.msra.mxu0 0
      %1516 = vmatprep.subr.bf16.mxu0 0
      %1517 = vmatpush1.bf16.msra.mxu0 0
      %1518 = vmatprep.subr.bf16.mxu0 0
      %1519 = vmatpush1.bf16.msra.mxu0 0
      %1520 = vmatprep.subr.bf16.mxu0 0
      %1521 = vmatpush1.bf16.msra.mxu0 0
      %1522 = vmatprep.mubr.bf16.mxu0 0
      %1523 = vmatmul.mubr.bf16.gmra.mrb[0].mxu0 %v1443
      %v1524 = vpop.f32.mrb[0].mxu0
      %v1525 = vadd.f32 0.0, %v1524
      %v1526 = vpop.f32.mrb[0].mxu0
      %v1527 = vpop.f32.mrb[0].mxu0
      %v1528 = vadd.f32 0.0, %v1527
      %v1529 = vpop.f32.mrb[0].mxu0
      %1530 = vmatprep.mubr.bf16.mxu0 0
      %1531 = vmatmul.mubr.bf16.gmra.mrb[0].mxu0 %v1446
      %v1532 = vpop.f32.mrb[0].mxu0
      %v1533 = vadd.f32 0.0, %v1532
      %v1534 = vpop.f32.mrb[0].mxu0
      %v1535 = vpop.f32.mrb[0].mxu0
      %v1536 = vadd.f32 0.0, %v1535
      %v1537 = vpop.f32.mrb[0].mxu0
      %1538 = vmatprep.mubr.bf16.mxu0 0
      %1539 = vmatmul.mubr.bf16.gmra.mrb[0].mxu0 %v1449
      %v1540 = vpop.f32.mrb[0].mxu0
      %v1541 = vadd.f32 0.0, %v1540
      %v1542 = vpop.f32.mrb[0].mxu0
      %v1543 = vpop.f32.mrb[0].mxu0
      %v1544 = vadd.f32 0.0, %v1543
      %v1545 = vpop.f32.mrb[0].mxu0
      %1546 = vmatprep.mubr.bf16.mxu0 0
      %1547 = vmatmul.mubr.bf16.gmra.mrb[0].mxu0 %v1452
      %v1548 = vpop.f32.mrb[0].mxu0
      %v1549 = vadd.f32 0.0, %v1548
      %v1550 = vpop.f32.mrb[0].mxu0
      %v1551 = vpop.f32.mrb[0].mxu0
      %v1552 = vadd.f32 0.0, %v1551
      %v1553 = vpop.f32.mrb[0].mxu0
      %1554 = vmatprep.mubr.bf16.mxu0 0
      %1555 = vmatmul.mubr.bf16.gmra.mrb[0].mxu0 %v1455
      %v1556 = vpop.f32.mrb[0].mxu0
      %v1557 = vadd.f32 0.0, %v1556
      %v1558 = vpop.f32.mrb[0].mxu0
      %v1559 = vpop.f32.mrb[0].mxu0
      %v1560 = vadd.f32 0.0, %v1559
      %v1561 = vpop.f32.mrb[0].mxu0
      %1562 = vmatprep.mubr.bf16.mxu0 0
      %1563 = vmatmul.mubr.bf16.gmra.mrb[0].mxu0 %v1458
      %v1564 = vpop.f32.mrb[0].mxu0
      %v1565 = vadd.f32 0.0, %v1564
      %v1566 = vpop.f32.mrb[0].mxu0
      %v1567 = vpop.f32.mrb[0].mxu0
      %v1568 = vadd.f32 0.0, %v1567
      %v1569 = vpop.f32.mrb[0].mxu0
      %1570 = vmatprep.mubr.bf16.mxu0 0
      %1571 = vmatmul.mubr.bf16.gmra.mrb[0].mxu0 %v1461
      %v1572 = vpop.f32.mrb[0].mxu0
      %v1573 = vadd.f32 0.0, %v1572
      %v1574 = vpop.f32.mrb[0].mxu0
      %v1575 = vpop.f32.mrb[0].mxu0
      %v1576 = vadd.f32 0.0, %v1575
      %v1577 = vpop.f32.mrb[0].mxu0
      %1578 = vmatprep.mubr.bf16.mxu0 0
      %1579 = vmatmul.mubr.bf16.gmra.mrb[0].mxu0 %v1464
      %v1580 = vpop.f32.mrb[0].mxu0
      %v1581 = vadd.f32 0.0, %v1580
      %v1582 = vpop.f32.mrb[0].mxu0
      %v1583 = vpop.f32.mrb[0].mxu0
      %v1584 = vadd.f32 0.0, %v1583
      %v1585 = vpop.f32.mrb[0].mxu0
      %1586 = vmatprep.mubr.bf16.mxu0 0
      %1587 = vmatmul.mubr.bf16.gmra.mrb[0].mxu0 %v1467
      %v1588 = vpop.f32.mrb[0].mxu0
      %v1589 = vadd.f32 0.0, %v1588
      %v1590 = vpop.f32.mrb[0].mxu0
      %v1591 = vpop.f32.mrb[0].mxu0
      %v1592 = vadd.f32 0.0, %v1591
      %v1593 = vpop.f32.mrb[0].mxu0
      %1594 = vmatprep.mubr.bf16.mxu0 0
      %1595 = vmatmul.mubr.bf16.gmra.mrb[0].mxu0 %v1470
      %v1596 = vpop.f32.mrb[0].mxu0
      %v1597 = vadd.f32 0.0, %v1596
      %v1598 = vpop.f32.mrb[0].mxu0
      %v1599 = vpop.f32.mrb[0].mxu0
      %v1600 = vadd.f32 0.0, %v1599
      %v1601 = vpop.f32.mrb[0].mxu0
      %1602 = vmatprep.mubr.bf16.mxu0 0
      %1603 = vmatmul.mubr.bf16.gmra.mrb[0].mxu0 %v1473
      %v1604 = vpop.f32.mrb[0].mxu0
      %v1605 = vadd.f32 0.0, %v1604
      %v1606 = vpop.f32.mrb[0].mxu0
      %v1607 = vpop.f32.mrb[0].mxu0
      %v1608 = vadd.f32 0.0, %v1607
      %v1609 = vpop.f32.mrb[0].mxu0
      %1610 = vmatprep.mubr.bf16.mxu0 0
      %1611 = vmatmul.mubr.bf16.gmra.mrb[0].mxu0 %v1476
      %v1612 = vpop.f32.mrb[0].mxu0
      %v1613 = vadd.f32 0.0, %v1612
      %v1614 = vpop.f32.mrb[0].mxu0
      %v1615 = vpop.f32.mrb[0].mxu0
      %v1616 = vadd.f32 0.0, %v1615
      %v1617 = vpop.f32.mrb[0].mxu0
      %1618 = vmatprep.mubr.bf16.mxu0 0
      %1619 = vmatmul.mubr.bf16.gmra.mrb[0].mxu0 %v1479
      %v1620 = vpop.f32.mrb[0].mxu0
      %v1621 = vadd.f32 0.0, %v1620
      %v1622 = vpop.f32.mrb[0].mxu0
      %v1623 = vpop.f32.mrb[0].mxu0
      %v1624 = vadd.f32 0.0, %v1623
      %v1625 = vpop.f32.mrb[0].mxu0
      %1626 = vmatprep.mubr.bf16.mxu0 0
      %1627 = vmatmul.mubr.bf16.gmra.mrb[0].mxu0 %v1482
      %v1628 = vpop.f32.mrb[0].mxu0
      %v1629 = vadd.f32 0.0, %v1628
      %v1630 = vpop.f32.mrb[0].mxu0
      %v1631 = vpop.f32.mrb[0].mxu0
      %v1632 = vadd.f32 0.0, %v1631
      %v1633 = vpop.f32.mrb[0].mxu0
      %1634 = vmatprep.mubr.bf16.mxu0 0
      %1635 = vmatmul.mubr.bf16.gmra.mrb[0].mxu0 %v1485
      %v1636 = vpop.f32.mrb[0].mxu0
      %v1637 = vadd.f32 0.0, %v1636
      %v1638 = vpop.f32.mrb[0].mxu0
      %v1639 = vpop.f32.mrb[0].mxu0
      %v1640 = vadd.f32 0.0, %v1639
      %v1641 = vpop.f32.mrb[0].mxu0
      %1642 = vmatprep.mubr.bf16.mxu0 0
      %1643 = vmatmul.mubr.bf16.gmra.mrb[0].mxu0 %v1488
      %v1644 = vpop.f32.mrb[0].mxu0
      %v1645 = vadd.f32 0.0, %v1644
      %v1646 = vpop.f32.mrb[0].mxu0
      %v1647 = vpop.f32.mrb[0].mxu0
      %v1648 = vadd.f32 0.0, %v1647
      %v1649 = vpop.f32.mrb[0].mxu0
      %1650 = vdwg.mxu0
      %v1651 = vadd.f32 %v1088, %v1525
      %v1652 = vadd.f32 %v1091, %v1528
      %v1653 = vadd.f32 %v1096, %v1533
      %v1654 = vadd.f32 %v1099, %v1536
      %v1655 = vadd.f32 %v1104, %v1541
      %v1656 = vadd.f32 %v1107, %v1544
      %v1657 = vadd.f32 %v1112, %v1549
      %v1658 = vadd.f32 %v1115, %v1552
      %v1659 = vadd.f32 %v1120, %v1557
      %v1660 = vadd.f32 %v1123, %v1560
      %v1661 = vadd.f32 %v1128, %v1565
      %v1662 = vadd.f32 %v1131, %v1568
      %v1663 = vadd.f32 %v1136, %v1573
      %v1664 = vadd.f32 %v1139, %v1576
      %v1665 = vadd.f32 %v1144, %v1581
      %v1666 = vadd.f32 %v1147, %v1584
      %v1667 = vadd.f32 %v1152, %v1589
      %v1668 = vadd.f32 %v1155, %v1592
      %v1669 = vadd.f32 %v1160, %v1597
      %v1670 = vadd.f32 %v1163, %v1600
      %v1671 = vadd.f32 %v1168, %v1605
      %v1672 = vadd.f32 %v1171, %v1608
      %v1673 = vadd.f32 %v1176, %v1613
      %v1674 = vadd.f32 %v1179, %v1616
      %v1675 = vadd.f32 %v1184, %v1621
      %v1676 = vadd.f32 %v1187, %v1624
      %v1677 = vadd.f32 %v1192, %v1629
      %v1678 = vadd.f32 %v1195, %v1632
      %v1679 = vadd.f32 %v1200, %v1637
      %v1680 = vadd.f32 %v1203, %v1640
      %v1681 = vadd.f32 %v1208, %v1645
      %v1682 = vadd.f32 %v1211, %v1648
      %s1683 = scalar_lea.vmem %s192, 12
      %v1684 = vld [vmem:[%s1683] sm:$0xf]
      %v1685 = vld [vmem:[%s1683 + $0x4] sm:$0xf]
      %v1686 = vld [vmem:[%s1683 + $0xc] sm:$0xf]
      %v1687 = vld [vmem:[%s1683 + $0x10] sm:$0xf]
      %v1688 = vld [vmem:[%s1683 + $0x18] sm:$0xf]
      %v1689 = vld [vmem:[%s1683 + $0x1c] sm:$0xf]
      %v1690 = vld [vmem:[%s1683 + $0x24] sm:$0xf]
      %v1691 = vld [vmem:[%s1683 + $0x28] sm:$0xf]
      %v1692 = vld [vmem:[%s1683 + $0x30] sm:$0xf]
      %v1693 = vld [vmem:[%s1683 + $0x34] sm:$0xf]
      %v1694 = vld [vmem:[%s1683 + $0x3c] sm:$0xf]
      %v1695 = vld [vmem:[%s1683 + $0x40] sm:$0xf]
      %v1696 = vld [vmem:[%s1683 + $0x48] sm:$0xf]
      %v1697 = vld [vmem:[%s1683 + $0x4c] sm:$0xf]
      %v1698 = vld [vmem:[%s1683 + $0x54] sm:$0xf]
      %v1699 = vld [vmem:[%s1683 + $0x58] sm:$0xf]
      %v1700 = vld [vmem:[%s1683 + $0x60] sm:$0xf]
      %v1701 = vld [vmem:[%s1683 + $0x64] sm:$0xf]
      %v1702 = vld [vmem:[%s1683 + $0x6c] sm:$0xf]
      %v1703 = vld [vmem:[%s1683 + $0x70] sm:$0xf]
      %v1704 = vld [vmem:[%s1683 + $0x78] sm:$0xf]
      %v1705 = vld [vmem:[%s1683 + $0x7c] sm:$0xf]
      %v1706 = vld [vmem:[%s1683 + $0x84] sm:$0xf]
      %v1707 = vld [vmem:[%s1683 + $0x88] sm:$0xf]
      %v1708 = vld [vmem:[%s1683 + $0x90] sm:$0xf]
      %v1709 = vld [vmem:[%s1683 + $0x94] sm:$0xf]
      %v1710 = vld [vmem:[%s1683 + $0x9c] sm:$0xf]
      %v1711 = vld [vmem:[%s1683 + $0xa0] sm:$0xf]
      %v1712 = vld [vmem:[%s1683 + $0xa8] sm:$0xf]
      %v1713 = vld [vmem:[%s1683 + $0xac] sm:$0xf]
      %v1714 = vld [vmem:[%s1683 + $0xb4] sm:$0xf]
      %v1715 = vld [vmem:[%s1683 + $0xb8] sm:$0xf]
      %s1716 = scalar_lea.vmem %s1, 48
      %v1717 = vld [vmem:[%s1716] sm:$0xf]
      %v1718 = vld [vmem:[%s1716 + $0x4] sm:$0xf]
      %v1719 = vld [vmem:[%s1716 + $0x8] sm:$0xf]
      %v1720 = vld [vmem:[%s1716 + $0xc] sm:$0xf]
      %v1753 = vunpack.c.l.b16 %v1684
      %v1754 = vunpack.c.l.b16 %v1685
      %v1755 = vunpack.c.l.b16 %v1686
      %v1756 = vunpack.c.l.b16 %v1687
      %v1757 = vunpack.c.l.b16 %v1688
      %v1758 = vunpack.c.l.b16 %v1689
      %v1759 = vunpack.c.l.b16 %v1690
      %v1760 = vunpack.c.l.b16 %v1691
      %v1761 = vunpack.c.l.b16 %v1692
      %v1762 = vunpack.c.l.b16 %v1693
      %v1763 = vunpack.c.l.b16 %v1694
      %v1764 = vunpack.c.l.b16 %v1695
      %v1765 = vunpack.c.l.b16 %v1696
      %v1766 = vunpack.c.l.b16 %v1697
      %v1767 = vunpack.c.l.b16 %v1698
      %v1768 = vunpack.c.l.b16 %v1699
      %v1769 = vunpack.c.l.b16 %v1700
      %v1770 = vunpack.c.l.b16 %v1701
      %v1771 = vunpack.c.l.b16 %v1702
      %v1772 = vunpack.c.l.b16 %v1703
      %v1773 = vunpack.c.l.b16 %v1704
      %v1774 = vunpack.c.l.b16 %v1705
      %v1775 = vunpack.c.l.b16 %v1706
      %v1776 = vunpack.c.l.b16 %v1707
      %v1777 = vunpack.c.l.b16 %v1708
      %v1778 = vunpack.c.l.b16 %v1709
      %v1779 = vunpack.c.l.b16 %v1710
      %v1780 = vunpack.c.l.b16 %v1711
      %v1781 = vunpack.c.l.b16 %v1712
      %v1782 = vunpack.c.l.b16 %v1713
      %v1783 = vunpack.c.l.b16 %v1714
      %v1784 = vunpack.c.l.b16 %v1715
      %v1785 = vpack.c.b16 %v1754, %v1753
      %v1786 = vpack.c.b16 %v1756, %v1755
      %v1787 = vpack.c.b16 %v1758, %v1757
      %v1788 = vpack.c.b16 %v1760, %v1759
      %v1789 = vpack.c.b16 %v1762, %v1761
      %v1790 = vpack.c.b16 %v1764, %v1763
      %v1791 = vpack.c.b16 %v1766, %v1765
      %v1792 = vpack.c.b16 %v1768, %v1767
      %v1793 = vpack.c.b16 %v1770, %v1769
      %v1794 = vpack.c.b16 %v1772, %v1771
      %v1795 = vpack.c.b16 %v1774, %v1773
      %v1796 = vpack.c.b16 %v1776, %v1775
      %v1797 = vpack.c.b16 %v1778, %v1777
      %v1798 = vpack.c.b16 %v1780, %v1779
      %v1799 = vpack.c.b16 %v1782, %v1781
      %v1800 = vpack.c.b16 %v1784, %v1783
      %v1805 = vunpack.c.l.b16 %v1717
      %v1806 = vunpack.c.l.b16 %v1718
      %v1807 = vunpack.c.l.b16 %v1719
      %v1808 = vunpack.c.l.b16 %v1720
      %v1809 = vpack.c.b16 %v1806, %v1805
      %v1810 = vpack.c.b16 %v1808, %v1807
      %v1814 = vsel %vm703, %v1785, 0
      %v1817 = vsel %vm703, %v1786, 0
      %v1820 = vsel %vm703, %v1787, 0
      %v1823 = vsel %vm703, %v1788, 0
      %v1826 = vsel %vm703, %v1789, 0
      %v1829 = vsel %vm703, %v1790, 0
      %v1832 = vsel %vm703, %v1791, 0
      %v1835 = vsel %vm703, %v1792, 0
      %v1838 = vsel %vm703, %v1793, 0
      %v1841 = vsel %vm703, %v1794, 0
      %v1844 = vsel %vm703, %v1795, 0
      %v1847 = vsel %vm703, %v1796, 0
      %v1850 = vsel %vm703, %v1797, 0
      %v1853 = vsel %vm703, %v1798, 0
      %v1856 = vsel %vm703, %v1799, 0
      %v1859 = vsel %vm703, %v1800, 0
      %1861 = vmatprep.subr.bf16.mxu0 0
      %1862 = vmatpush1.bf16.msra.mxu0 %v1809
      %1863 = vmatprep.subr.bf16.mxu0 0
      %1864 = vmatpush1.bf16.msra.mxu0 %v1810
      %1865 = vmatprep.subr.bf16.mxu0 0
      %1866 = vmatpush1.bf16.msra.mxu0 0
      %1867 = vmatprep.subr.bf16.mxu0 0
      %1868 = vmatpush1.bf16.msra.mxu0 0
      %1869 = vmatprep.subr.bf16.mxu0 0
      %1870 = vmatpush1.bf16.msra.mxu0 0
      %1871 = vmatprep.subr.bf16.mxu0 0
      %1872 = vmatpush1.bf16.msra.mxu0 0
      %1873 = vmatprep.subr.bf16.mxu0 0
      %1874 = vmatpush1.bf16.msra.mxu0 0
      %1875 = vmatprep.subr.bf16.mxu0 0
      %1876 = vmatpush1.bf16.msra.mxu0 0
      %1877 = vmatprep.subr.bf16.mxu0 0
      %1878 = vmatpush1.bf16.msra.mxu0 0
      %1879 = vmatprep.subr.bf16.mxu0 0
      %1880 = vmatpush1.bf16.msra.mxu0 0
      %1881 = vmatprep.subr.bf16.mxu0 0
      %1882 = vmatpush1.bf16.msra.mxu0 0
      %1883 = vmatprep.subr.bf16.mxu0 0
      %1884 = vmatpush1.bf16.msra.mxu0 0
      %1885 = vmatprep.subr.bf16.mxu0 0
      %1886 = vmatpush1.bf16.msra.mxu0 0
      %1887 = vmatprep.subr.bf16.mxu0 0
      %1888 = vmatpush1.bf16.msra.mxu0 0
      %1889 = vmatprep.subr.bf16.mxu0 0
      %1890 = vmatpush1.bf16.msra.mxu0 0
      %1891 = vmatprep.subr.bf16.mxu0 0
      %1892 = vmatpush1.bf16.msra.mxu0 0
      %1893 = vmatprep.mubr.bf16.mxu0 0
      %1894 = vmatmul.mubr.bf16.gmra.mrb[0].mxu0 %v1814
      %v1895 = vpop.f32.mrb[0].mxu0
      %v1896 = vadd.f32 0.0, %v1895
      %v1897 = vpop.f32.mrb[0].mxu0
      %v1898 = vpop.f32.mrb[0].mxu0
      %v1899 = vadd.f32 0.0, %v1898
      %v1900 = vpop.f32.mrb[0].mxu0
      %1901 = vmatprep.mubr.bf16.mxu0 0
      %1902 = vmatmul.mubr.bf16.gmra.mrb[0].mxu0 %v1817
      %v1903 = vpop.f32.mrb[0].mxu0
      %v1904 = vadd.f32 0.0, %v1903
      %v1905 = vpop.f32.mrb[0].mxu0
      %v1906 = vpop.f32.mrb[0].mxu0
      %v1907 = vadd.f32 0.0, %v1906
      %v1908 = vpop.f32.mrb[0].mxu0
      %1909 = vmatprep.mubr.bf16.mxu0 0
      %1910 = vmatmul.mubr.bf16.gmra.mrb[0].mxu0 %v1820
      %v1911 = vpop.f32.mrb[0].mxu0
      %v1912 = vadd.f32 0.0, %v1911
      %v1913 = vpop.f32.mrb[0].mxu0
      %v1914 = vpop.f32.mrb[0].mxu0
      %v1915 = vadd.f32 0.0, %v1914
      %v1916 = vpop.f32.mrb[0].mxu0
      %1917 = vmatprep.mubr.bf16.mxu0 0
      %1918 = vmatmul.mubr.bf16.gmra.mrb[0].mxu0 %v1823
      %v1919 = vpop.f32.mrb[0].mxu0
      %v1920 = vadd.f32 0.0, %v1919
      %v1921 = vpop.f32.mrb[0].mxu0
      %v1922 = vpop.f32.mrb[0].mxu0
      %v1923 = vadd.f32 0.0, %v1922
      %v1924 = vpop.f32.mrb[0].mxu0
      %1925 = vmatprep.mubr.bf16.mxu0 0
      %1926 = vmatmul.mubr.bf16.gmra.mrb[0].mxu0 %v1826
      %v1927 = vpop.f32.mrb[0].mxu0
      %v1928 = vadd.f32 0.0, %v1927
      %v1929 = vpop.f32.mrb[0].mxu0
      %v1930 = vpop.f32.mrb[0].mxu0
      %v1931 = vadd.f32 0.0, %v1930
      %v1932 = vpop.f32.mrb[0].mxu0
      %1933 = vmatprep.mubr.bf16.mxu0 0
      %1934 = vmatmul.mubr.bf16.gmra.mrb[0].mxu0 %v1829
      %v1935 = vpop.f32.mrb[0].mxu0
      %v1936 = vadd.f32 0.0, %v1935
      %v1937 = vpop.f32.mrb[0].mxu0
      %v1938 = vpop.f32.mrb[0].mxu0
      %v1939 = vadd.f32 0.0, %v1938
      %v1940 = vpop.f32.mrb[0].mxu0
      %1941 = vmatprep.mubr.bf16.mxu0 0
      %1942 = vmatmul.mubr.bf16.gmra.mrb[0].mxu0 %v1832
      %v1943 = vpop.f32.mrb[0].mxu0
      %v1944 = vadd.f32 0.0, %v1943
      %v1945 = vpop.f32.mrb[0].mxu0
      %v1946 = vpop.f32.mrb[0].mxu0
      %v1947 = vadd.f32 0.0, %v1946
      %v1948 = vpop.f32.mrb[0].mxu0
      %1949 = vmatprep.mubr.bf16.mxu0 0
      %1950 = vmatmul.mubr.bf16.gmra.mrb[0].mxu0 %v1835
      %v1951 = vpop.f32.mrb[0].mxu0
      %v1952 = vadd.f32 0.0, %v1951
      %v1953 = vpop.f32.mrb[0].mxu0
      %v1954 = vpop.f32.mrb[0].mxu0
      %v1955 = vadd.f32 0.0, %v1954
      %v1956 = vpop.f32.mrb[0].mxu0
      %1957 = vmatprep.mubr.bf16.mxu0 0
      %1958 = vmatmul.mubr.bf16.gmra.mrb[0].mxu0 %v1838
      %v1959 = vpop.f32.mrb[0].mxu0
      %v1960 = vadd.f32 0.0, %v1959
      %v1961 = vpop.f32.mrb[0].mxu0
      %v1962 = vpop.f32.mrb[0].mxu0
      %v1963 = vadd.f32 0.0, %v1962
      %v1964 = vpop.f32.mrb[0].mxu0
      %1965 = vmatprep.mubr.bf16.mxu0 0
      %1966 = vmatmul.mubr.bf16.gmra.mrb[0].mxu0 %v1841
      %v1967 = vpop.f32.mrb[0].mxu0
      %v1968 = vadd.f32 0.0, %v1967
      %v1969 = vpop.f32.mrb[0].mxu0
      %v1970 = vpop.f32.mrb[0].mxu0
      %v1971 = vadd.f32 0.0, %v1970
      %v1972 = vpop.f32.mrb[0].mxu0
      %1973 = vmatprep.mubr.bf16.mxu0 0
      %1974 = vmatmul.mubr.bf16.gmra.mrb[0].mxu0 %v1844
      %v1975 = vpop.f32.mrb[0].mxu0
      %v1976 = vadd.f32 0.0, %v1975
      %v1977 = vpop.f32.mrb[0].mxu0
      %v1978 = vpop.f32.mrb[0].mxu0
      %v1979 = vadd.f32 0.0, %v1978
      %v1980 = vpop.f32.mrb[0].mxu0
      %1981 = vmatprep.mubr.bf16.mxu0 0
      %1982 = vmatmul.mubr.bf16.gmra.mrb[0].mxu0 %v1847
      %v1983 = vpop.f32.mrb[0].mxu0
      %v1984 = vadd.f32 0.0, %v1983
      %v1985 = vpop.f32.mrb[0].mxu0
      %v1986 = vpop.f32.mrb[0].mxu0
      %v1987 = vadd.f32 0.0, %v1986
      %v1988 = vpop.f32.mrb[0].mxu0
      %1989 = vmatprep.mubr.bf16.mxu0 0
      %1990 = vmatmul.mubr.bf16.gmra.mrb[0].mxu0 %v1850
      %v1991 = vpop.f32.mrb[0].mxu0
      %v1992 = vadd.f32 0.0, %v1991
      %v1993 = vpop.f32.mrb[0].mxu0
      %v1994 = vpop.f32.mrb[0].mxu0
      %v1995 = vadd.f32 0.0, %v1994
      %v1996 = vpop.f32.mrb[0].mxu0
      %1997 = vmatprep.mubr.bf16.mxu0 0
      %1998 = vmatmul.mubr.bf16.gmra.mrb[0].mxu0 %v1853
      %v1999 = vpop.f32.mrb[0].mxu0
      %v2000 = vadd.f32 0.0, %v1999
      %v2001 = vpop.f32.mrb[0].mxu0
      %v2002 = vpop.f32.mrb[0].mxu0
      %v2003 = vadd.f32 0.0, %v2002
      %v2004 = vpop.f32.mrb[0].mxu0
      %2005 = vmatprep.mubr.bf16.mxu0 0
      %2006 = vmatmul.mubr.bf16.gmra.mrb[0].mxu0 %v1856
      %v2007 = vpop.f32.mrb[0].mxu0
      %v2008 = vadd.f32 0.0, %v2007
      %v2009 = vpop.f32.mrb[0].mxu0
      %v2010 = vpop.f32.mrb[0].mxu0
      %v2011 = vadd.f32 0.0, %v2010
      %v2012 = vpop.f32.mrb[0].mxu0
      %2013 = vmatprep.mubr.bf16.mxu0 0
      %2014 = vmatmul.mubr.bf16.gmra.mrb[0].mxu0 %v1859
      %v2015 = vpop.f32.mrb[0].mxu0
      %v2016 = vadd.f32 0.0, %v2015
      %v2017 = vpop.f32.mrb[0].mxu0
      %v2018 = vpop.f32.mrb[0].mxu0
      %v2019 = vadd.f32 0.0, %v2018
      %v2020 = vpop.f32.mrb[0].mxu0
      %2021 = vdwg.mxu0
      %v2022 = vadd.f32 %v1651, %v1896
      %v2023 = vadd.f32 %v1652, %v1899
      %v2024 = vadd.f32 %v1653, %v1904
      %v2025 = vadd.f32 %v1654, %v1907
      %v2026 = vadd.f32 %v1655, %v1912
      %v2027 = vadd.f32 %v1656, %v1915
      %v2028 = vadd.f32 %v1657, %v1920
      %v2029 = vadd.f32 %v1658, %v1923
      %v2030 = vadd.f32 %v1659, %v1928
      %v2031 = vadd.f32 %v1660, %v1931
      %v2032 = vadd.f32 %v1661, %v1936
      %v2033 = vadd.f32 %v1662, %v1939
      %v2034 = vadd.f32 %v1663, %v1944
      %v2035 = vadd.f32 %v1664, %v1947
      %v2036 = vadd.f32 %v1665, %v1952
      %v2037 = vadd.f32 %v1666, %v1955
      %v2038 = vadd.f32 %v1667, %v1960
      %v2039 = vadd.f32 %v1668, %v1963
      %v2040 = vadd.f32 %v1669, %v1968
      %v2041 = vadd.f32 %v1670, %v1971
      %v2042 = vadd.f32 %v1671, %v1976
      %v2043 = vadd.f32 %v1672, %v1979
      %v2044 = vadd.f32 %v1673, %v1984
      %v2045 = vadd.f32 %v1674, %v1987
      %v2046 = vadd.f32 %v1675, %v1992
      %v2047 = vadd.f32 %v1676, %v1995
      %v2048 = vadd.f32 %v1677, %v2000
      %v2049 = vadd.f32 %v1678, %v2003
      %v2050 = vadd.f32 %v1679, %v2008
      %v2051 = vadd.f32 %v1680, %v2011
      %v2052 = vadd.f32 %v1681, %v2016
      %v2053 = vadd.f32 %v1682, %v2019
      %v2054 = vld [vmem:[%s1683] sm:$0xf]
      %v2055 = vld [vmem:[%s1683 + $0x4] sm:$0xf]
      %v2056 = vld [vmem:[%s1683 + $0x8] sm:$0x1]
      %v2057 = vld [vmem:[%s1683 + $0xc] sm:$0xf]
      %v2058 = vld [vmem:[%s1683 + $0x10] sm:$0xf]
      %v2059 = vld [vmem:[%s1683 + $0x14] sm:$0x1]
      %v2060 = vld [vmem:[%s1683 + $0x18] sm:$0xf]
      %v2061 = vld [vmem:[%s1683 + $0x1c] sm:$0xf]
      %v2062 = vld [vmem:[%s1683 + $0x20] sm:$0x1]
      %v2063 = vld [vmem:[%s1683 + $0x24] sm:$0xf]
      %v2064 = vld [vmem:[%s1683 + $0x28] sm:$0xf]
      %v2065 = vld [vmem:[%s1683 + $0x2c] sm:$0x1]
      %v2066 = vld [vmem:[%s1683 + $0x30] sm:$0xf]
      %v2067 = vld [vmem:[%s1683 + $0x34] sm:$0xf]
      %v2068 = vld [vmem:[%s1683 + $0x38] sm:$0x1]
      %v2069 = vld [vmem:[%s1683 + $0x3c] sm:$0xf]
      %v2070 = vld [vmem:[%s1683 + $0x40] sm:$0xf]
      %v2071 = vld [vmem:[%s1683 + $0x44] sm:$0x1]
      %v2072 = vld [vmem:[%s1683 + $0x48] sm:$0xf]
      %v2073 = vld [vmem:[%s1683 + $0x4c] sm:$0xf]
      %v2074 = vld [vmem:[%s1683 + $0x50] sm:$0x1]
      %v2075 = vld [vmem:[%s1683 + $0x54] sm:$0xf]
      %v2076 = vld [vmem:[%s1683 + $0x58] sm:$0xf]
      %v2077 = vld [vmem:[%s1683 + $0x5c] sm:$0x1]
      %v2078 = vld [vmem:[%s1683 + $0x60] sm:$0xf]
      %v2079 = vld [vmem:[%s1683 + $0x64] sm:$0xf]
      %v2080 = vld [vmem:[%s1683 + $0x68] sm:$0x1]
      %v2081 = vld [vmem:[%s1683 + $0x6c] sm:$0xf]
      %v2082 = vld [vmem:[%s1683 + $0x70] sm:$0xf]
      %v2083 = vld [vmem:[%s1683 + $0x74] sm:$0x1]
      %v2084 = vld [vmem:[%s1683 + $0x78] sm:$0xf]
      %v2085 = vld [vmem:[%s1683 + $0x7c] sm:$0xf]
      %v2086 = vld [vmem:[%s1683 + $0x80] sm:$0x1]
      %v2087 = vld [vmem:[%s1683 + $0x84] sm:$0xf]
      %v2088 = vld [vmem:[%s1683 + $0x88] sm:$0xf]
      %v2089 = vld [vmem:[%s1683 + $0x8c] sm:$0x1]
      %v2090 = vld [vmem:[%s1683 + $0x90] sm:$0xf]
      %v2091 = vld [vmem:[%s1683 + $0x94] sm:$0xf]
      %v2092 = vld [vmem:[%s1683 + $0x98] sm:$0x1]
      %v2093 = vld [vmem:[%s1683 + $0x9c] sm:$0xf]
      %v2094 = vld [vmem:[%s1683 + $0xa0] sm:$0xf]
      %v2095 = vld [vmem:[%s1683 + $0xa4] sm:$0x1]
      %v2096 = vld [vmem:[%s1683 + $0xa8] sm:$0xf]
      %v2097 = vld [vmem:[%s1683 + $0xac] sm:$0xf]
      %v2098 = vld [vmem:[%s1683 + $0xb0] sm:$0x1]
      %v2099 = vld [vmem:[%s1683 + $0xb4] sm:$0xf]
      %v2100 = vld [vmem:[%s1683 + $0xb8] sm:$0xf]
      %v2101 = vld [vmem:[%s1683 + $0xbc] sm:$0x1]
      %v2103 = vshrl.u32 %v2054, 16
      %v2105 = vrot.slane %v2103, 4
      %v2106 = vshll.u32 %v2054, 16
      %v2108 = vrot.slane %v2106, 5
      %v2109 = vor.u32 %v2105, %v2108
      %v2110 = vrot.slane %v2109, 4
      %v2112 = vshll.u32 %v2055, 16
      %v2114 = vrot.slane %v2112, 5
      %v2115 = vsel %vm253, %v2110, %v2114
      %v2116 = vshrl.u32 %v2055, 16
      %v2118 = vrot.slane %v2116, 4
      %v2119 = vor.u32 %v2118, %v2114
      %v2120 = vrot.slane %v2119, 4
      %v2122 = vshll.u32 %v2056, 16
      %v2124 = vrot.slane %v2122, 5
      %v2125 = vsel %vm253, %v2120, %v2124
      %v2127 = vshrl.u32 %v2057, 16
      %v2129 = vrot.slane %v2127, 4
      %v2130 = vshll.u32 %v2057, 16
      %v2132 = vrot.slane %v2130, 5
      %v2133 = vor.u32 %v2129, %v2132
      %v2134 = vrot.slane %v2133, 4
      %v2136 = vshll.u32 %v2058, 16
      %v2138 = vrot.slane %v2136, 5
      %v2139 = vsel %vm253, %v2134, %v2138
      %v2140 = vshrl.u32 %v2058, 16
      %v2142 = vrot.slane %v2140, 4
      %v2143 = vor.u32 %v2142, %v2138
      %v2144 = vrot.slane %v2143, 4
      %v2146 = vshll.u32 %v2059, 16
      %v2148 = vrot.slane %v2146, 5
      %v2149 = vsel %vm253, %v2144, %v2148
      %v2151 = vshrl.u32 %v2060, 16
      %v2153 = vrot.slane %v2151, 4
      %v2154 = vshll.u32 %v2060, 16
      %v2156 = vrot.slane %v2154, 5
      %v2157 = vor.u32 %v2153, %v2156
      %v2158 = vrot.slane %v2157, 4
      %v2160 = vshll.u32 %v2061, 16
      %v2162 = vrot.slane %v2160, 5
      %v2163 = vsel %vm253, %v2158, %v2162
      %v2164 = vshrl.u32 %v2061, 16
      %v2166 = vrot.slane %v2164, 4
      %v2167 = vor.u32 %v2166, %v2162
      %v2168 = vrot.slane %v2167, 4
      %v2170 = vshll.u32 %v2062, 16
      %v2172 = vrot.slane %v2170, 5
      %v2173 = vsel %vm253, %v2168, %v2172
      %v2175 = vshrl.u32 %v2063, 16
      %v2177 = vrot.slane %v2175, 4
      %v2178 = vshll.u32 %v2063, 16
      %v2180 = vrot.slane %v2178, 5
      %v2181 = vor.u32 %v2177, %v2180
      %v2182 = vrot.slane %v2181, 4
      %v2184 = vshll.u32 %v2064, 16
      %v2186 = vrot.slane %v2184, 5
      %v2187 = vsel %vm253, %v2182, %v2186
      %v2188 = vshrl.u32 %v2064, 16
      %v2190 = vrot.slane %v2188, 4
      %v2191 = vor.u32 %v2190, %v2186
      %v2192 = vrot.slane %v2191, 4
      %v2194 = vshll.u32 %v2065, 16
      %v2196 = vrot.slane %v2194, 5
      %v2197 = vsel %vm253, %v2192, %v2196
      %v2199 = vshrl.u32 %v2066, 16
      %v2201 = vrot.slane %v2199, 4
      %v2202 = vshll.u32 %v2066, 16
      %v2204 = vrot.slane %v2202, 5
      %v2205 = vor.u32 %v2201, %v2204
      %v2206 = vrot.slane %v2205, 4
      %v2208 = vshll.u32 %v2067, 16
      %v2210 = vrot.slane %v2208, 5
      %v2211 = vsel %vm253, %v2206, %v2210
      %v2212 = vshrl.u32 %v2067, 16
      %v2214 = vrot.slane %v2212, 4
      %v2215 = vor.u32 %v2214, %v2210
      %v2216 = vrot.slane %v2215, 4
      %v2218 = vshll.u32 %v2068, 16
      %v2220 = vrot.slane %v2218, 5
      %v2221 = vsel %vm253, %v2216, %v2220
      %v2223 = vshrl.u32 %v2069, 16
      %v2225 = vrot.slane %v2223, 4
      %v2226 = vshll.u32 %v2069, 16
      %v2228 = vrot.slane %v2226, 5
      %v2229 = vor.u32 %v2225, %v2228
      %v2230 = vrot.slane %v2229, 4
      %v2232 = vshll.u32 %v2070, 16
      %v2234 = vrot.slane %v2232, 5
      %v2235 = vsel %vm253, %v2230, %v2234
      %v2236 = vshrl.u32 %v2070, 16
      %v2238 = vrot.slane %v2236, 4
      %v2239 = vor.u32 %v2238, %v2234
      %v2240 = vrot.slane %v2239, 4
      %v2242 = vshll.u32 %v2071, 16
      %v2244 = vrot.slane %v2242, 5
      %v2245 = vsel %vm253, %v2240, %v2244
      %v2247 = vshrl.u32 %v2072, 16
      %v2249 = vrot.slane %v2247, 4
      %v2250 = vshll.u32 %v2072, 16
      %v2252 = vrot.slane %v2250, 5
      %v2253 = vor.u32 %v2249, %v2252
      %v2254 = vrot.slane %v2253, 4
      %v2256 = vshll.u32 %v2073, 16
      %v2258 = vrot.slane %v2256, 5
      %v2259 = vsel %vm253, %v2254, %v2258
      %v2260 = vshrl.u32 %v2073, 16
      %v2262 = vrot.slane %v2260, 4
      %v2263 = vor.u32 %v2262, %v2258
      %v2264 = vrot.slane %v2263, 4
      %v2266 = vshll.u32 %v2074, 16
      %v2268 = vrot.slane %v2266, 5
      %v2269 = vsel %vm253, %v2264, %v2268
      %v2271 = vshrl.u32 %v2075, 16
      %v2273 = vrot.slane %v2271, 4
      %v2274 = vshll.u32 %v2075, 16
      %v2276 = vrot.slane %v2274, 5
      %v2277 = vor.u32 %v2273, %v2276
      %v2278 = vrot.slane %v2277, 4
      %v2280 = vshll.u32 %v2076, 16
      %v2282 = vrot.slane %v2280, 5
      %v2283 = vsel %vm253, %v2278, %v2282
      %v2284 = vshrl.u32 %v2076, 16
      %v2286 = vrot.slane %v2284, 4
      %v2287 = vor.u32 %v2286, %v2282
      %v2288 = vrot.slane %v2287, 4
      %v2290 = vshll.u32 %v2077, 16
      %v2292 = vrot.slane %v2290, 5
      %v2293 = vsel %vm253, %v2288, %v2292
      %v2295 = vshrl.u32 %v2078, 16
      %v2297 = vrot.slane %v2295, 4
      %v2298 = vshll.u32 %v2078, 16
      %v2300 = vrot.slane %v2298, 5
      %v2301 = vor.u32 %v2297, %v2300
      %v2302 = vrot.slane %v2301, 4
      %v2304 = vshll.u32 %v2079, 16
      %v2306 = vrot.slane %v2304, 5
      %v2307 = vsel %vm253, %v2302, %v2306
      %v2308 = vshrl.u32 %v2079, 16
      %v2310 = vrot.slane %v2308, 4
      %v2311 = vor.u32 %v2310, %v2306
      %v2312 = vrot.slane %v2311, 4
      %v2314 = vshll.u32 %v2080, 16
      %v2316 = vrot.slane %v2314, 5
      %v2317 = vsel %vm253, %v2312, %v2316
      %v2319 = vshrl.u32 %v2081, 16
      %v2321 = vrot.slane %v2319, 4
      %v2322 = vshll.u32 %v2081, 16
      %v2324 = vrot.slane %v2322, 5
      %v2325 = vor.u32 %v2321, %v2324
      %v2326 = vrot.slane %v2325, 4
      %v2328 = vshll.u32 %v2082, 16
      %v2330 = vrot.slane %v2328, 5
      %v2331 = vsel %vm253, %v2326, %v2330
      %v2332 = vshrl.u32 %v2082, 16
      %v2334 = vrot.slane %v2332, 4
      %v2335 = vor.u32 %v2334, %v2330
      %v2336 = vrot.slane %v2335, 4
      %v2338 = vshll.u32 %v2083, 16
      %v2340 = vrot.slane %v2338, 5
      %v2341 = vsel %vm253, %v2336, %v2340
      %v2343 = vshrl.u32 %v2084, 16
      %v2345 = vrot.slane %v2343, 4
      %v2346 = vshll.u32 %v2084, 16
      %v2348 = vrot.slane %v2346, 5
      %v2349 = vor.u32 %v2345, %v2348
      %v2350 = vrot.slane %v2349, 4
      %v2352 = vshll.u32 %v2085, 16
      %v2354 = vrot.slane %v2352, 5
      %v2355 = vsel %vm253, %v2350, %v2354
      %v2356 = vshrl.u32 %v2085, 16
      %v2358 = vrot.slane %v2356, 4
      %v2359 = vor.u32 %v2358, %v2354
      %v2360 = vrot.slane %v2359, 4
      %v2362 = vshll.u32 %v2086, 16
      %v2364 = vrot.slane %v2362, 5
      %v2365 = vsel %vm253, %v2360, %v2364
      %v2367 = vshrl.u32 %v2087, 16
      %v2369 = vrot.slane %v2367, 4
      %v2370 = vshll.u32 %v2087, 16
      %v2372 = vrot.slane %v2370, 5
      %v2373 = vor.u32 %v2369, %v2372
      %v2374 = vrot.slane %v2373, 4
      %v2376 = vshll.u32 %v2088, 16
      %v2378 = vrot.slane %v2376, 5
      %v2379 = vsel %vm253, %v2374, %v2378
      %v2380 = vshrl.u32 %v2088, 16
      %v2382 = vrot.slane %v2380, 4
      %v2383 = vor.u32 %v2382, %v2378
      %v2384 = vrot.slane %v2383, 4
      %v2386 = vshll.u32 %v2089, 16
      %v2388 = vrot.slane %v2386, 5
      %v2389 = vsel %vm253, %v2384, %v2388
      %v2391 = vshrl.u32 %v2090, 16
      %v2393 = vrot.slane %v2391, 4
      %v2394 = vshll.u32 %v2090, 16
      %v2396 = vrot.slane %v2394, 5
      %v2397 = vor.u32 %v2393, %v2396
      %v2398 = vrot.slane %v2397, 4
      %v2400 = vshll.u32 %v2091, 16
      %v2402 = vrot.slane %v2400, 5
      %v2403 = vsel %vm253, %v2398, %v2402
      %v2404 = vshrl.u32 %v2091, 16
      %v2406 = vrot.slane %v2404, 4
      %v2407 = vor.u32 %v2406, %v2402
      %v2408 = vrot.slane %v2407, 4
      %v2410 = vshll.u32 %v2092, 16
      %v2412 = vrot.slane %v2410, 5
      %v2413 = vsel %vm253, %v2408, %v2412
      %v2415 = vshrl.u32 %v2093, 16
      %v2417 = vrot.slane %v2415, 4
      %v2418 = vshll.u32 %v2093, 16
      %v2420 = vrot.slane %v2418, 5
      %v2421 = vor.u32 %v2417, %v2420
      %v2422 = vrot.slane %v2421, 4
      %v2424 = vshll.u32 %v2094, 16
      %v2426 = vrot.slane %v2424, 5
      %v2427 = vsel %vm253, %v2422, %v2426
      %v2428 = vshrl.u32 %v2094, 16
      %v2430 = vrot.slane %v2428, 4
      %v2431 = vor.u32 %v2430, %v2426
      %v2432 = vrot.slane %v2431, 4
      %v2434 = vshll.u32 %v2095, 16
      %v2436 = vrot.slane %v2434, 5
      %v2437 = vsel %vm253, %v2432, %v2436
      %v2439 = vshrl.u32 %v2096, 16
      %v2441 = vrot.slane %v2439, 4
      %v2442 = vshll.u32 %v2096, 16
      %v2444 = vrot.slane %v2442, 5
      %v2445 = vor.u32 %v2441, %v2444
      %v2446 = vrot.slane %v2445, 4
      %v2448 = vshll.u32 %v2097, 16
      %v2450 = vrot.slane %v2448, 5
      %v2451 = vsel %vm253, %v2446, %v2450
      %v2452 = vshrl.u32 %v2097, 16
      %v2454 = vrot.slane %v2452, 4
      %v2455 = vor.u32 %v2454, %v2450
      %v2456 = vrot.slane %v2455, 4
      %v2458 = vshll.u32 %v2098, 16
      %v2460 = vrot.slane %v2458, 5
      %v2461 = vsel %vm253, %v2456, %v2460
      %v2463 = vshrl.u32 %v2099, 16
      %v2465 = vrot.slane %v2463, 4
      %v2466 = vshll.u32 %v2099, 16
      %v2468 = vrot.slane %v2466, 5
      %v2469 = vor.u32 %v2465, %v2468
      %v2470 = vrot.slane %v2469, 4
      %v2472 = vshll.u32 %v2100, 16
      %v2474 = vrot.slane %v2472, 5
      %v2475 = vsel %vm253, %v2470, %v2474
      %v2476 = vshrl.u32 %v2100, 16
      %v2478 = vrot.slane %v2476, 4
      %v2479 = vor.u32 %v2478, %v2474
      %v2480 = vrot.slane %v2479, 4
      %v2482 = vshll.u32 %v2101, 16
      %v2484 = vrot.slane %v2482, 5
      %v2485 = vsel %vm253, %v2480, %v2484
      %s2486 = scalar_lea.vmem %s1, 64
      %v2487 = vld [vmem:[%s2486] sm:$0xf]
      %v2488 = vld [vmem:[%s2486 + $0x4] sm:$0xf]
      %v2489 = vld [vmem:[%s2486 + $0x8] sm:$0xf]
      %v2490 = vld [vmem:[%s2486 + $0xc] sm:$0xf]
      %v2491 = vunpack.c.l.b16 %v2115
      %v2492 = vunpack.c.l.b16 %v2125
      %v2493 = vunpack.c.l.b16 %v2139
      %v2494 = vunpack.c.l.b16 %v2149
      %v2495 = vunpack.c.l.b16 %v2163
      %v2496 = vunpack.c.l.b16 %v2173
      %v2497 = vunpack.c.l.b16 %v2187
      %v2498 = vunpack.c.l.b16 %v2197
      %v2499 = vunpack.c.l.b16 %v2211
      %v2500 = vunpack.c.l.b16 %v2221
      %v2501 = vunpack.c.l.b16 %v2235
      %v2502 = vunpack.c.l.b16 %v2245
      %v2503 = vunpack.c.l.b16 %v2259
      %v2504 = vunpack.c.l.b16 %v2269
      %v2505 = vunpack.c.l.b16 %v2283
      %v2506 = vunpack.c.l.b16 %v2293
      %v2507 = vunpack.c.l.b16 %v2307
      %v2508 = vunpack.c.l.b16 %v2317
      %v2509 = vunpack.c.l.b16 %v2331
      %v2510 = vunpack.c.l.b16 %v2341
      %v2511 = vunpack.c.l.b16 %v2355
      %v2512 = vunpack.c.l.b16 %v2365
      %v2513 = vunpack.c.l.b16 %v2379
      %v2514 = vunpack.c.l.b16 %v2389
      %v2515 = vunpack.c.l.b16 %v2403
      %v2516 = vunpack.c.l.b16 %v2413
      %v2517 = vunpack.c.l.b16 %v2427
      %v2518 = vunpack.c.l.b16 %v2437
      %v2519 = vunpack.c.l.b16 %v2451
      %v2520 = vunpack.c.l.b16 %v2461
      %v2521 = vunpack.c.l.b16 %v2475
      %v2522 = vunpack.c.l.b16 %v2485
      %v2523 = vpack.c.b16 %v2492, %v2491
      %v2524 = vpack.c.b16 %v2494, %v2493
      %v2525 = vpack.c.b16 %v2496, %v2495
      %v2526 = vpack.c.b16 %v2498, %v2497
      %v2527 = vpack.c.b16 %v2500, %v2499
      %v2528 = vpack.c.b16 %v2502, %v2501
      %v2529 = vpack.c.b16 %v2504, %v2503
      %v2530 = vpack.c.b16 %v2506, %v2505
      %v2531 = vpack.c.b16 %v2508, %v2507
      %v2532 = vpack.c.b16 %v2510, %v2509
      %v2533 = vpack.c.b16 %v2512, %v2511
      %v2534 = vpack.c.b16 %v2514, %v2513
      %v2535 = vpack.c.b16 %v2516, %v2515
      %v2536 = vpack.c.b16 %v2518, %v2517
      %v2537 = vpack.c.b16 %v2520, %v2519
      %v2538 = vpack.c.b16 %v2522, %v2521
      %v2543 = vunpack.c.l.b16 %v2487
      %v2544 = vunpack.c.l.b16 %v2488
      %v2545 = vunpack.c.l.b16 %v2489
      %v2546 = vunpack.c.l.b16 %v2490
      %v2547 = vpack.c.b16 %v2544, %v2543
      %v2548 = vpack.c.b16 %v2546, %v2545
      %v2552 = vsel %vm703, %v2523, 0
      %v2555 = vsel %vm703, %v2524, 0
      %v2558 = vsel %vm703, %v2525, 0
      %v2561 = vsel %vm703, %v2526, 0
      %v2564 = vsel %vm703, %v2527, 0
      %v2567 = vsel %vm703, %v2528, 0
      %v2570 = vsel %vm703, %v2529, 0
      %v2573 = vsel %vm703, %v2530, 0
      %v2576 = vsel %vm703, %v2531, 0
      %v2579 = vsel %vm703, %v2532, 0
      %v2582 = vsel %vm703, %v2533, 0
      %v2585 = vsel %vm703, %v2534, 0
      %v2588 = vsel %vm703, %v2535, 0
      %v2591 = vsel %vm703, %v2536, 0
      %v2594 = vsel %vm703, %v2537, 0
      %v2597 = vsel %vm703, %v2538, 0
      %2599 = vmatprep.subr.bf16.mxu0 0
      %2600 = vmatpush1.bf16.msra.mxu0 %v2547
      %2601 = vmatprep.subr.bf16.mxu0 0
      %2602 = vmatpush1.bf16.msra.mxu0 %v2548
      %2603 = vmatprep.subr.bf16.mxu0 0
      %2604 = vmatpush1.bf16.msra.mxu0 0
      %2605 = vmatprep.subr.bf16.mxu0 0
      %2606 = vmatpush1.bf16.msra.mxu0 0
      %2607 = vmatprep.subr.bf16.mxu0 0
      %2608 = vmatpush1.bf16.msra.mxu0 0
      %2609 = vmatprep.subr.bf16.mxu0 0
      %2610 = vmatpush1.bf16.msra.mxu0 0
      %2611 = vmatprep.subr.bf16.mxu0 0
      %2612 = vmatpush1.bf16.msra.mxu0 0
      %2613 = vmatprep.subr.bf16.mxu0 0
      %2614 = vmatpush1.bf16.msra.mxu0 0
      %2615 = vmatprep.subr.bf16.mxu0 0
      %2616 = vmatpush1.bf16.msra.mxu0 0
      %2617 = vmatprep.subr.bf16.mxu0 0
      %2618 = vmatpush1.bf16.msra.mxu0 0
      %2619 = vmatprep.subr.bf16.mxu0 0
      %2620 = vmatpush1.bf16.msra.mxu0 0
      %2621 = vmatprep.subr.bf16.mxu0 0
      %2622 = vmatpush1.bf16.msra.mxu0 0
      %2623 = vmatprep.subr.bf16.mxu0 0
      %2624 = vmatpush1.bf16.msra.mxu0 0
      %2625 = vmatprep.subr.bf16.mxu0 0
      %2626 = vmatpush1.bf16.msra.mxu0 0
      %2627 = vmatprep.subr.bf16.mxu0 0
      %2628 = vmatpush1.bf16.msra.mxu0 0
      %2629 = vmatprep.subr.bf16.mxu0 0
      %2630 = vmatpush1.bf16.msra.mxu0 0
      %2631 = vmatprep.mubr.bf16.mxu0 0
      %2632 = vmatmul.mubr.bf16.gmra.mrb[0].mxu0 %v2552
      %v2633 = vpop.f32.mrb[0].mxu0
      %v2634 = vadd.f32 0.0, %v2633
      %v2635 = vpop.f32.mrb[0].mxu0
      %v2636 = vpop.f32.mrb[0].mxu0
      %v2637 = vadd.f32 0.0, %v2636
      %v2638 = vpop.f32.mrb[0].mxu0
      %2639 = vmatprep.mubr.bf16.mxu0 0
      %2640 = vmatmul.mubr.bf16.gmra.mrb[0].mxu0 %v2555
      %v2641 = vpop.f32.mrb[0].mxu0
      %v2642 = vadd.f32 0.0, %v2641
      %v2643 = vpop.f32.mrb[0].mxu0
      %v2644 = vpop.f32.mrb[0].mxu0
      %v2645 = vadd.f32 0.0, %v2644
      %v2646 = vpop.f32.mrb[0].mxu0
      %2647 = vmatprep.mubr.bf16.mxu0 0
      %2648 = vmatmul.mubr.bf16.gmra.mrb[0].mxu0 %v2558
      %v2649 = vpop.f32.mrb[0].mxu0
      %v2650 = vadd.f32 0.0, %v2649
      %v2651 = vpop.f32.mrb[0].mxu0
      %v2652 = vpop.f32.mrb[0].mxu0
      %v2653 = vadd.f32 0.0, %v2652
      %v2654 = vpop.f32.mrb[0].mxu0
      %2655 = vmatprep.mubr.bf16.mxu0 0
      %2656 = vmatmul.mubr.bf16.gmra.mrb[0].mxu0 %v2561
      %v2657 = vpop.f32.mrb[0].mxu0
      %v2658 = vadd.f32 0.0, %v2657
      %v2659 = vpop.f32.mrb[0].mxu0
      %v2660 = vpop.f32.mrb[0].mxu0
      %v2661 = vadd.f32 0.0, %v2660
      %v2662 = vpop.f32.mrb[0].mxu0
      %2663 = vmatprep.mubr.bf16.mxu0 0
      %2664 = vmatmul.mubr.bf16.gmra.mrb[0].mxu0 %v2564
      %v2665 = vpop.f32.mrb[0].mxu0
      %v2666 = vadd.f32 0.0, %v2665
      %v2667 = vpop.f32.mrb[0].mxu0
      %v2668 = vpop.f32.mrb[0].mxu0
      %v2669 = vadd.f32 0.0, %v2668
      %v2670 = vpop.f32.mrb[0].mxu0
      %2671 = vmatprep.mubr.bf16.mxu0 0
      %2672 = vmatmul.mubr.bf16.gmra.mrb[0].mxu0 %v2567
      %v2673 = vpop.f32.mrb[0].mxu0
      %v2674 = vadd.f32 0.0, %v2673
      %v2675 = vpop.f32.mrb[0].mxu0
      %v2676 = vpop.f32.mrb[0].mxu0
      %v2677 = vadd.f32 0.0, %v2676
      %v2678 = vpop.f32.mrb[0].mxu0
      %2679 = vmatprep.mubr.bf16.mxu0 0
      %2680 = vmatmul.mubr.bf16.gmra.mrb[0].mxu0 %v2570
      %v2681 = vpop.f32.mrb[0].mxu0
      %v2682 = vadd.f32 0.0, %v2681
      %v2683 = vpop.f32.mrb[0].mxu0
      %v2684 = vpop.f32.mrb[0].mxu0
      %v2685 = vadd.f32 0.0, %v2684
      %v2686 = vpop.f32.mrb[0].mxu0
      %2687 = vmatprep.mubr.bf16.mxu0 0
      %2688 = vmatmul.mubr.bf16.gmra.mrb[0].mxu0 %v2573
      %v2689 = vpop.f32.mrb[0].mxu0
      %v2690 = vadd.f32 0.0, %v2689
      %v2691 = vpop.f32.mrb[0].mxu0
      %v2692 = vpop.f32.mrb[0].mxu0
      %v2693 = vadd.f32 0.0, %v2692
      %v2694 = vpop.f32.mrb[0].mxu0
      %2695 = vmatprep.mubr.bf16.mxu0 0
      %2696 = vmatmul.mubr.bf16.gmra.mrb[0].mxu0 %v2576
      %v2697 = vpop.f32.mrb[0].mxu0
      %v2698 = vadd.f32 0.0, %v2697
      %v2699 = vpop.f32.mrb[0].mxu0
      %v2700 = vpop.f32.mrb[0].mxu0
      %v2701 = vadd.f32 0.0, %v2700
      %v2702 = vpop.f32.mrb[0].mxu0
      %2703 = vmatprep.mubr.bf16.mxu0 0
      %2704 = vmatmul.mubr.bf16.gmra.mrb[0].mxu0 %v2579
      %v2705 = vpop.f32.mrb[0].mxu0
      %v2706 = vadd.f32 0.0, %v2705
      %v2707 = vpop.f32.mrb[0].mxu0
      %v2708 = vpop.f32.mrb[0].mxu0
      %v2709 = vadd.f32 0.0, %v2708
      %v2710 = vpop.f32.mrb[0].mxu0
      %2711 = vmatprep.mubr.bf16.mxu0 0
      %2712 = vmatmul.mubr.bf16.gmra.mrb[0].mxu0 %v2582
      %v2713 = vpop.f32.mrb[0].mxu0
      %v2714 = vadd.f32 0.0, %v2713
      %v2715 = vpop.f32.mrb[0].mxu0
      %v2716 = vpop.f32.mrb[0].mxu0
      %v2717 = vadd.f32 0.0, %v2716
      %v2718 = vpop.f32.mrb[0].mxu0
      %2719 = vmatprep.mubr.bf16.mxu0 0
      %2720 = vmatmul.mubr.bf16.gmra.mrb[0].mxu0 %v2585
      %v2721 = vpop.f32.mrb[0].mxu0
      %v2722 = vadd.f32 0.0, %v2721
      %v2723 = vpop.f32.mrb[0].mxu0
      %v2724 = vpop.f32.mrb[0].mxu0
      %v2725 = vadd.f32 0.0, %v2724
      %v2726 = vpop.f32.mrb[0].mxu0
      %2727 = vmatprep.mubr.bf16.mxu0 0
      %2728 = vmatmul.mubr.bf16.gmra.mrb[0].mxu0 %v2588
      %v2729 = vpop.f32.mrb[0].mxu0
      %v2730 = vadd.f32 0.0, %v2729
      %v2731 = vpop.f32.mrb[0].mxu0
      %v2732 = vpop.f32.mrb[0].mxu0
      %v2733 = vadd.f32 0.0, %v2732
      %v2734 = vpop.f32.mrb[0].mxu0
      %2735 = vmatprep.mubr.bf16.mxu0 0
      %2736 = vmatmul.mubr.bf16.gmra.mrb[0].mxu0 %v2591
      %v2737 = vpop.f32.mrb[0].mxu0
      %v2738 = vadd.f32 0.0, %v2737
      %v2739 = vpop.f32.mrb[0].mxu0
      %v2740 = vpop.f32.mrb[0].mxu0
      %v2741 = vadd.f32 0.0, %v2740
      %v2742 = vpop.f32.mrb[0].mxu0
      %2743 = vmatprep.mubr.bf16.mxu0 0
      %2744 = vmatmul.mubr.bf16.gmra.mrb[0].mxu0 %v2594
      %v2745 = vpop.f32.mrb[0].mxu0
      %v2746 = vadd.f32 0.0, %v2745
      %v2747 = vpop.f32.mrb[0].mxu0
      %v2748 = vpop.f32.mrb[0].mxu0
      %v2749 = vadd.f32 0.0, %v2748
      %v2750 = vpop.f32.mrb[0].mxu0
      %2751 = vmatprep.mubr.bf16.mxu0 0
      %2752 = vmatmul.mubr.bf16.gmra.mrb[0].mxu0 %v2597
      %v2753 = vpop.f32.mrb[0].mxu0
      %v2754 = vadd.f32 0.0, %v2753
      %v2755 = vpop.f32.mrb[0].mxu0
      %v2756 = vpop.f32.mrb[0].mxu0
      %v2757 = vadd.f32 0.0, %v2756
      %v2758 = vpop.f32.mrb[0].mxu0
      %2759 = vdwg.mxu0
      %v2760 = vadd.f32 %v2022, %v2634
      %v2761 = vadd.f32 %v2023, %v2637
      %v2762 = vadd.f32 %v2024, %v2642
      %v2763 = vadd.f32 %v2025, %v2645
      %v2764 = vadd.f32 %v2026, %v2650
      %v2765 = vadd.f32 %v2027, %v2653
      %v2766 = vadd.f32 %v2028, %v2658
      %v2767 = vadd.f32 %v2029, %v2661
      %v2768 = vadd.f32 %v2030, %v2666
      %v2769 = vadd.f32 %v2031, %v2669
      %v2770 = vadd.f32 %v2032, %v2674
      %v2771 = vadd.f32 %v2033, %v2677
      %v2772 = vadd.f32 %v2034, %v2682
      %v2773 = vadd.f32 %v2035, %v2685
      %v2774 = vadd.f32 %v2036, %v2690
      %v2775 = vadd.f32 %v2037, %v2693
      %v2776 = vadd.f32 %v2038, %v2698
      %v2777 = vadd.f32 %v2039, %v2701
      %v2778 = vadd.f32 %v2040, %v2706
      %v2779 = vadd.f32 %v2041, %v2709
      %v2780 = vadd.f32 %v2042, %v2714
      %v2781 = vadd.f32 %v2043, %v2717
      %v2782 = vadd.f32 %v2044, %v2722
      %v2783 = vadd.f32 %v2045, %v2725
      %v2784 = vadd.f32 %v2046, %v2730
      %v2785 = vadd.f32 %v2047, %v2733
      %v2786 = vadd.f32 %v2048, %v2738
      %v2787 = vadd.f32 %v2049, %v2741
      %v2788 = vadd.f32 %v2050, %v2746
      %v2789 = vadd.f32 %v2051, %v2749
      %v2790 = vadd.f32 %v2052, %v2754
      %v2791 = vadd.f32 %v2053, %v2757
      %v2792 = vld [vmem:[%s1683] sm:$0xe]
      %v2793 = vld [vmem:[%s1683 + $0xc] sm:$0xe]
      %v2794 = vld [vmem:[%s1683 + $0x18] sm:$0xe]
      %v2795 = vld [vmem:[%s1683 + $0x24] sm:$0xe]
      %v2796 = vld [vmem:[%s1683 + $0x30] sm:$0xe]
      %v2797 = vld [vmem:[%s1683 + $0x3c] sm:$0xe]
      %v2798 = vld [vmem:[%s1683 + $0x48] sm:$0xe]
      %v2799 = vld [vmem:[%s1683 + $0x54] sm:$0xe]
      %v2800 = vld [vmem:[%s1683 + $0x60] sm:$0xe]
      %v2801 = vld [vmem:[%s1683 + $0x6c] sm:$0xe]
      %v2802 = vld [vmem:[%s1683 + $0x78] sm:$0xe]
      %v2803 = vld [vmem:[%s1683 + $0x84] sm:$0xe]
      %v2804 = vld [vmem:[%s1683 + $0x90] sm:$0xe]
      %v2805 = vld [vmem:[%s1683 + $0x9c] sm:$0xe]
      %v2806 = vld [vmem:[%s1683 + $0xa8] sm:$0xe]
      %v2807 = vld [vmem:[%s1683 + $0xb4] sm:$0xe]
      %v2856 = vrot.slane %v2792, 5
      %v2857 = vrot.slane %v2856, 4
      %v2858 = vrot.slane %v2055, 5
      %v2859 = vsel %vm1264, %v2857, %v2858
      %v2860 = vrot.slane %v2858, 4
      %v2861 = vrot.slane %v2056, 5
      %v2862 = vsel %vm1264, %v2860, %v2861
      %v2863 = vrot.slane %v2793, 5
      %v2864 = vrot.slane %v2863, 4
      %v2865 = vrot.slane %v2058, 5
      %v2866 = vsel %vm1264, %v2864, %v2865
      %v2867 = vrot.slane %v2865, 4
      %v2868 = vrot.slane %v2059, 5
      %v2869 = vsel %vm1264, %v2867, %v2868
      %v2870 = vrot.slane %v2794, 5
      %v2871 = vrot.slane %v2870, 4
      %v2872 = vrot.slane %v2061, 5
      %v2873 = vsel %vm1264, %v2871, %v2872
      %v2874 = vrot.slane %v2872, 4
      %v2875 = vrot.slane %v2062, 5
      %v2876 = vsel %vm1264, %v2874, %v2875
      %v2877 = vrot.slane %v2795, 5
      %v2878 = vrot.slane %v2877, 4
      %v2879 = vrot.slane %v2064, 5
      %v2880 = vsel %vm1264, %v2878, %v2879
      %v2881 = vrot.slane %v2879, 4
      %v2882 = vrot.slane %v2065, 5
      %v2883 = vsel %vm1264, %v2881, %v2882
      %v2884 = vrot.slane %v2796, 5
      %v2885 = vrot.slane %v2884, 4
      %v2886 = vrot.slane %v2067, 5
      %v2887 = vsel %vm1264, %v2885, %v2886
      %v2888 = vrot.slane %v2886, 4
      %v2889 = vrot.slane %v2068, 5
      %v2890 = vsel %vm1264, %v2888, %v2889
      %v2891 = vrot.slane %v2797, 5
      %v2892 = vrot.slane %v2891, 4
      %v2893 = vrot.slane %v2070, 5
      %v2894 = vsel %vm1264, %v2892, %v2893
      %v2895 = vrot.slane %v2893, 4
      %v2896 = vrot.slane %v2071, 5
      %v2897 = vsel %vm1264, %v2895, %v2896
      %v2898 = vrot.slane %v2798, 5
      %v2899 = vrot.slane %v2898, 4
      %v2900 = vrot.slane %v2073, 5
      %v2901 = vsel %vm1264, %v2899, %v2900
      %v2902 = vrot.slane %v2900, 4
      %v2903 = vrot.slane %v2074, 5
      %v2904 = vsel %vm1264, %v2902, %v2903
      %v2905 = vrot.slane %v2799, 5
      %v2906 = vrot.slane %v2905, 4
      %v2907 = vrot.slane %v2076, 5
      %v2908 = vsel %vm1264, %v2906, %v2907
      %v2909 = vrot.slane %v2907, 4
      %v2910 = vrot.slane %v2077, 5
      %v2911 = vsel %vm1264, %v2909, %v2910
      %v2912 = vrot.slane %v2800, 5
      %v2913 = vrot.slane %v2912, 4
      %v2914 = vrot.slane %v2079, 5
      %v2915 = vsel %vm1264, %v2913, %v2914
      %v2916 = vrot.slane %v2914, 4
      %v2917 = vrot.slane %v2080, 5
      %v2918 = vsel %vm1264, %v2916, %v2917
      %v2919 = vrot.slane %v2801, 5
      %v2920 = vrot.slane %v2919, 4
      %v2921 = vrot.slane %v2082, 5
      %v2922 = vsel %vm1264, %v2920, %v2921
      %v2923 = vrot.slane %v2921, 4
      %v2924 = vrot.slane %v2083, 5
      %v2925 = vsel %vm1264, %v2923, %v2924
      %v2926 = vrot.slane %v2802, 5
      %v2927 = vrot.slane %v2926, 4
      %v2928 = vrot.slane %v2085, 5
      %v2929 = vsel %vm1264, %v2927, %v2928
      %v2930 = vrot.slane %v2928, 4
      %v2931 = vrot.slane %v2086, 5
      %v2932 = vsel %vm1264, %v2930, %v2931
      %v2933 = vrot.slane %v2803, 5
      %v2934 = vrot.slane %v2933, 4
      %v2935 = vrot.slane %v2088, 5
      %v2936 = vsel %vm1264, %v2934, %v2935
      %v2937 = vrot.slane %v2935, 4
      %v2938 = vrot.slane %v2089, 5
      %v2939 = vsel %vm1264, %v2937, %v2938
      %v2940 = vrot.slane %v2804, 5
      %v2941 = vrot.slane %v2940, 4
      %v2942 = vrot.slane %v2091, 5
      %v2943 = vsel %vm1264, %v2941, %v2942
      %v2944 = vrot.slane %v2942, 4
      %v2945 = vrot.slane %v2092, 5
      %v2946 = vsel %vm1264, %v2944, %v2945
      %v2947 = vrot.slane %v2805, 5
      %v2948 = vrot.slane %v2947, 4
      %v2949 = vrot.slane %v2094, 5
      %v2950 = vsel %vm1264, %v2948, %v2949
      %v2951 = vrot.slane %v2949, 4
      %v2952 = vrot.slane %v2095, 5
      %v2953 = vsel %vm1264, %v2951, %v2952
      %v2954 = vrot.slane %v2806, 5
      %v2955 = vrot.slane %v2954, 4
      %v2956 = vrot.slane %v2097, 5
      %v2957 = vsel %vm1264, %v2955, %v2956
      %v2958 = vrot.slane %v2956, 4
      %v2959 = vrot.slane %v2098, 5
      %v2960 = vsel %vm1264, %v2958, %v2959
      %v2961 = vrot.slane %v2807, 5
      %v2962 = vrot.slane %v2961, 4
      %v2963 = vrot.slane %v2100, 5
      %v2964 = vsel %vm1264, %v2962, %v2963
      %v2965 = vrot.slane %v2963, 4
      %v2966 = vrot.slane %v2101, 5
      %v2967 = vsel %vm1264, %v2965, %v2966
      %s2968 = scalar_lea.vmem %s1, 80
      %v2969 = vld [vmem:[%s2968] sm:$0xf]
      %v2970 = vld [vmem:[%s2968 + $0x4] sm:$0xf]
      %v2971 = vld [vmem:[%s2968 + $0x8] sm:$0xf]
      %v2972 = vld [vmem:[%s2968 + $0xc] sm:$0xf]
      %v2973 = vunpack.c.l.b16 %v2859
      %v2974 = vunpack.c.l.b16 %v2862
      %v2975 = vunpack.c.l.b16 %v2866
      %v2976 = vunpack.c.l.b16 %v2869
      %v2977 = vunpack.c.l.b16 %v2873
      %v2978 = vunpack.c.l.b16 %v2876
      %v2979 = vunpack.c.l.b16 %v2880
      %v2980 = vunpack.c.l.b16 %v2883
      %v2981 = vunpack.c.l.b16 %v2887
      %v2982 = vunpack.c.l.b16 %v2890
      %v2983 = vunpack.c.l.b16 %v2894
      %v2984 = vunpack.c.l.b16 %v2897
      %v2985 = vunpack.c.l.b16 %v2901
      %v2986 = vunpack.c.l.b16 %v2904
      %v2987 = vunpack.c.l.b16 %v2908
      %v2988 = vunpack.c.l.b16 %v2911
      %v2989 = vunpack.c.l.b16 %v2915
      %v2990 = vunpack.c.l.b16 %v2918
      %v2991 = vunpack.c.l.b16 %v2922
      %v2992 = vunpack.c.l.b16 %v2925
      %v2993 = vunpack.c.l.b16 %v2929
      %v2994 = vunpack.c.l.b16 %v2932
      %v2995 = vunpack.c.l.b16 %v2936
      %v2996 = vunpack.c.l.b16 %v2939
      %v2997 = vunpack.c.l.b16 %v2943
      %v2998 = vunpack.c.l.b16 %v2946
      %v2999 = vunpack.c.l.b16 %v2950
      %v3000 = vunpack.c.l.b16 %v2953
      %v3001 = vunpack.c.l.b16 %v2957
      %v3002 = vunpack.c.l.b16 %v2960
      %v3003 = vunpack.c.l.b16 %v2964
      %v3004 = vunpack.c.l.b16 %v2967
      %v3005 = vpack.c.b16 %v2974, %v2973
      %v3006 = vpack.c.b16 %v2976, %v2975
      %v3007 = vpack.c.b16 %v2978, %v2977
      %v3008 = vpack.c.b16 %v2980, %v2979
      %v3009 = vpack.c.b16 %v2982, %v2981
      %v3010 = vpack.c.b16 %v2984, %v2983
      %v3011 = vpack.c.b16 %v2986, %v2985
      %v3012 = vpack.c.b16 %v2988, %v2987
      %v3013 = vpack.c.b16 %v2990, %v2989
      %v3014 = vpack.c.b16 %v2992, %v2991
      %v3015 = vpack.c.b16 %v2994, %v2993
      %v3016 = vpack.c.b16 %v2996, %v2995
      %v3017 = vpack.c.b16 %v2998, %v2997
      %v3018 = vpack.c.b16 %v3000, %v2999
      %v3019 = vpack.c.b16 %v3002, %v3001
      %v3020 = vpack.c.b16 %v3004, %v3003
      %v3025 = vunpack.c.l.b16 %v2969
      %v3026 = vunpack.c.l.b16 %v2970
      %v3027 = vunpack.c.l.b16 %v2971
      %v3028 = vunpack.c.l.b16 %v2972
      %v3029 = vpack.c.b16 %v3026, %v3025
      %v3030 = vpack.c.b16 %v3028, %v3027
      %v3034 = vsel %vm703, %v3005, 0
      %v3037 = vsel %vm703, %v3006, 0
      %v3040 = vsel %vm703, %v3007, 0
      %v3043 = vsel %vm703, %v3008, 0
      %v3046 = vsel %vm703, %v3009, 0
      %v3049 = vsel %vm703, %v3010, 0
      %v3052 = vsel %vm703, %v3011, 0
      %v3055 = vsel %vm703, %v3012, 0
      %v3058 = vsel %vm703, %v3013, 0
      %v3061 = vsel %vm703, %v3014, 0
      %v3064 = vsel %vm703, %v3015, 0
      %v3067 = vsel %vm703, %v3016, 0
      %v3070 = vsel %vm703, %v3017, 0
      %v3073 = vsel %vm703, %v3018, 0
      %v3076 = vsel %vm703, %v3019, 0
      %v3079 = vsel %vm703, %v3020, 0
      %3081 = vmatprep.subr.bf16.mxu0 0
      %3082 = vmatpush1.bf16.msra.mxu0 %v3029
      %3083 = vmatprep.subr.bf16.mxu0 0
      %3084 = vmatpush1.bf16.msra.mxu0 %v3030
      %3085 = vmatprep.subr.bf16.mxu0 0
      %3086 = vmatpush1.bf16.msra.mxu0 0
      %3087 = vmatprep.subr.bf16.mxu0 0
      %3088 = vmatpush1.bf16.msra.mxu0 0
      %3089 = vmatprep.subr.bf16.mxu0 0
      %3090 = vmatpush1.bf16.msra.mxu0 0
      %3091 = vmatprep.subr.bf16.mxu0 0
      %3092 = vmatpush1.bf16.msra.mxu0 0
      %3093 = vmatprep.subr.bf16.mxu0 0
      %3094 = vmatpush1.bf16.msra.mxu0 0
      %3095 = vmatprep.subr.bf16.mxu0 0
      %3096 = vmatpush1.bf16.msra.mxu0 0
      %3097 = vmatprep.subr.bf16.mxu0 0
      %3098 = vmatpush1.bf16.msra.mxu0 0
      %3099 = vmatprep.subr.bf16.mxu0 0
      %3100 = vmatpush1.bf16.msra.mxu0 0
      %3101 = vmatprep.subr.bf16.mxu0 0
      %3102 = vmatpush1.bf16.msra.mxu0 0
      %3103 = vmatprep.subr.bf16.mxu0 0
      %3104 = vmatpush1.bf16.msra.mxu0 0
      %3105 = vmatprep.subr.bf16.mxu0 0
      %3106 = vmatpush1.bf16.msra.mxu0 0
      %3107 = vmatprep.subr.bf16.mxu0 0
      %3108 = vmatpush1.bf16.msra.mxu0 0
      %3109 = vmatprep.subr.bf16.mxu0 0
      %3110 = vmatpush1.bf16.msra.mxu0 0
      %3111 = vmatprep.subr.bf16.mxu0 0
      %3112 = vmatpush1.bf16.msra.mxu0 0
      %3113 = vmatprep.mubr.bf16.mxu0 0
      %3114 = vmatmul.mubr.bf16.gmra.mrb[0].mxu0 %v3034
      %v3115 = vpop.f32.mrb[0].mxu0
      %v3116 = vadd.f32 0.0, %v3115
      %v3117 = vpop.f32.mrb[0].mxu0
      %v3118 = vpop.f32.mrb[0].mxu0
      %v3119 = vadd.f32 0.0, %v3118
      %v3120 = vpop.f32.mrb[0].mxu0
      %3121 = vmatprep.mubr.bf16.mxu0 0
      %3122 = vmatmul.mubr.bf16.gmra.mrb[0].mxu0 %v3037
      %v3123 = vpop.f32.mrb[0].mxu0
      %v3124 = vadd.f32 0.0, %v3123
      %v3125 = vpop.f32.mrb[0].mxu0
      %v3126 = vpop.f32.mrb[0].mxu0
      %v3127 = vadd.f32 0.0, %v3126
      %v3128 = vpop.f32.mrb[0].mxu0
      %3129 = vmatprep.mubr.bf16.mxu0 0
      %3130 = vmatmul.mubr.bf16.gmra.mrb[0].mxu0 %v3040
      %v3131 = vpop.f32.mrb[0].mxu0
      %v3132 = vadd.f32 0.0, %v3131
      %v3133 = vpop.f32.mrb[0].mxu0
      %v3134 = vpop.f32.mrb[0].mxu0
      %v3135 = vadd.f32 0.0, %v3134
      %v3136 = vpop.f32.mrb[0].mxu0
      %3137 = vmatprep.mubr.bf16.mxu0 0
      %3138 = vmatmul.mubr.bf16.gmra.mrb[0].mxu0 %v3043
      %v3139 = vpop.f32.mrb[0].mxu0
      %v3140 = vadd.f32 0.0, %v3139
      %v3141 = vpop.f32.mrb[0].mxu0
      %v3142 = vpop.f32.mrb[0].mxu0
      %v3143 = vadd.f32 0.0, %v3142
      %v3144 = vpop.f32.mrb[0].mxu0
      %3145 = vmatprep.mubr.bf16.mxu0 0
      %3146 = vmatmul.mubr.bf16.gmra.mrb[0].mxu0 %v3046
      %v3147 = vpop.f32.mrb[0].mxu0
      %v3148 = vadd.f32 0.0, %v3147
      %v3149 = vpop.f32.mrb[0].mxu0
      %v3150 = vpop.f32.mrb[0].mxu0
      %v3151 = vadd.f32 0.0, %v3150
      %v3152 = vpop.f32.mrb[0].mxu0
      %3153 = vmatprep.mubr.bf16.mxu0 0
      %3154 = vmatmul.mubr.bf16.gmra.mrb[0].mxu0 %v3049
      %v3155 = vpop.f32.mrb[0].mxu0
      %v3156 = vadd.f32 0.0, %v3155
      %v3157 = vpop.f32.mrb[0].mxu0
      %v3158 = vpop.f32.mrb[0].mxu0
      %v3159 = vadd.f32 0.0, %v3158
      %v3160 = vpop.f32.mrb[0].mxu0
      %3161 = vmatprep.mubr.bf16.mxu0 0
      %3162 = vmatmul.mubr.bf16.gmra.mrb[0].mxu0 %v3052
      %v3163 = vpop.f32.mrb[0].mxu0
      %v3164 = vadd.f32 0.0, %v3163
      %v3165 = vpop.f32.mrb[0].mxu0
      %v3166 = vpop.f32.mrb[0].mxu0
      %v3167 = vadd.f32 0.0, %v3166
      %v3168 = vpop.f32.mrb[0].mxu0
      %3169 = vmatprep.mubr.bf16.mxu0 0
      %3170 = vmatmul.mubr.bf16.gmra.mrb[0].mxu0 %v3055
      %v3171 = vpop.f32.mrb[0].mxu0
      %v3172 = vadd.f32 0.0, %v3171
      %v3173 = vpop.f32.mrb[0].mxu0
      %v3174 = vpop.f32.mrb[0].mxu0
      %v3175 = vadd.f32 0.0, %v3174
      %v3176 = vpop.f32.mrb[0].mxu0
      %3177 = vmatprep.mubr.bf16.mxu0 0
      %3178 = vmatmul.mubr.bf16.gmra.mrb[0].mxu0 %v3058
      %v3179 = vpop.f32.mrb[0].mxu0
      %v3180 = vadd.f32 0.0, %v3179
      %v3181 = vpop.f32.mrb[0].mxu0
      %v3182 = vpop.f32.mrb[0].mxu0
      %v3183 = vadd.f32 0.0, %v3182
      %v3184 = vpop.f32.mrb[0].mxu0
      %3185 = vmatprep.mubr.bf16.mxu0 0
      %3186 = vmatmul.mubr.bf16.gmra.mrb[0].mxu0 %v3061
      %v3187 = vpop.f32.mrb[0].mxu0
      %v3188 = vadd.f32 0.0, %v3187
      %v3189 = vpop.f32.mrb[0].mxu0
      %v3190 = vpop.f32.mrb[0].mxu0
      %v3191 = vadd.f32 0.0, %v3190
      %v3192 = vpop.f32.mrb[0].mxu0
      %3193 = vmatprep.mubr.bf16.mxu0 0
      %3194 = vmatmul.mubr.bf16.gmra.mrb[0].mxu0 %v3064
      %v3195 = vpop.f32.mrb[0].mxu0
      %v3196 = vadd.f32 0.0, %v3195
      %v3197 = vpop.f32.mrb[0].mxu0
      %v3198 = vpop.f32.mrb[0].mxu0
      %v3199 = vadd.f32 0.0, %v3198
      %v3200 = vpop.f32.mrb[0].mxu0
      %3201 = vmatprep.mubr.bf16.mxu0 0
      %3202 = vmatmul.mubr.bf16.gmra.mrb[0].mxu0 %v3067
      %v3203 = vpop.f32.mrb[0].mxu0
      %v3204 = vadd.f32 0.0, %v3203
      %v3205 = vpop.f32.mrb[0].mxu0
      %v3206 = vpop.f32.mrb[0].mxu0
      %v3207 = vadd.f32 0.0, %v3206
      %v3208 = vpop.f32.mrb[0].mxu0
      %3209 = vmatprep.mubr.bf16.mxu0 0
      %3210 = vmatmul.mubr.bf16.gmra.mrb[0].mxu0 %v3070
      %v3211 = vpop.f32.mrb[0].mxu0
      %v3212 = vadd.f32 0.0, %v3211
      %v3213 = vpop.f32.mrb[0].mxu0
      %v3214 = vpop.f32.mrb[0].mxu0
      %v3215 = vadd.f32 0.0, %v3214
      %v3216 = vpop.f32.mrb[0].mxu0
      %3217 = vmatprep.mubr.bf16.mxu0 0
      %3218 = vmatmul.mubr.bf16.gmra.mrb[0].mxu0 %v3073
      %v3219 = vpop.f32.mrb[0].mxu0
      %v3220 = vadd.f32 0.0, %v3219
      %v3221 = vpop.f32.mrb[0].mxu0
      %v3222 = vpop.f32.mrb[0].mxu0
      %v3223 = vadd.f32 0.0, %v3222
      %v3224 = vpop.f32.mrb[0].mxu0
      %3225 = vmatprep.mubr.bf16.mxu0 0
      %3226 = vmatmul.mubr.bf16.gmra.mrb[0].mxu0 %v3076
      %v3227 = vpop.f32.mrb[0].mxu0
      %v3228 = vadd.f32 0.0, %v3227
      %v3229 = vpop.f32.mrb[0].mxu0
      %v3230 = vpop.f32.mrb[0].mxu0
      %v3231 = vadd.f32 0.0, %v3230
      %v3232 = vpop.f32.mrb[0].mxu0
      %3233 = vmatprep.mubr.bf16.mxu0 0
      %3234 = vmatmul.mubr.bf16.gmra.mrb[0].mxu0 %v3079
      %v3235 = vpop.f32.mrb[0].mxu0
      %v3236 = vadd.f32 0.0, %v3235
      %v3237 = vpop.f32.mrb[0].mxu0
      %v3238 = vpop.f32.mrb[0].mxu0
      %v3239 = vadd.f32 0.0, %v3238
      %v3240 = vpop.f32.mrb[0].mxu0
      %3241 = vdwg.mxu0
      %v3242 = vadd.f32 %v2760, %v3116
      %v3243 = vadd.f32 %v2761, %v3119
      %v3244 = vadd.f32 %v2762, %v3124
      %v3245 = vadd.f32 %v2763, %v3127
      %v3246 = vadd.f32 %v2764, %v3132
      %v3247 = vadd.f32 %v2765, %v3135
      %v3248 = vadd.f32 %v2766, %v3140
      %v3249 = vadd.f32 %v2767, %v3143
      %v3250 = vadd.f32 %v2768, %v3148
      %v3251 = vadd.f32 %v2769, %v3151
      %v3252 = vadd.f32 %v2770, %v3156
      %v3253 = vadd.f32 %v2771, %v3159
      %v3254 = vadd.f32 %v2772, %v3164
      %v3255 = vadd.f32 %v2773, %v3167
      %v3256 = vadd.f32 %v2774, %v3172
      %v3257 = vadd.f32 %v2775, %v3175
      %v3258 = vadd.f32 %v2776, %v3180
      %v3259 = vadd.f32 %v2777, %v3183
      %v3260 = vadd.f32 %v2778, %v3188
      %v3261 = vadd.f32 %v2779, %v3191
      %v3262 = vadd.f32 %v2780, %v3196
      %v3263 = vadd.f32 %v2781, %v3199
      %v3264 = vadd.f32 %v2782, %v3204
      %v3265 = vadd.f32 %v2783, %v3207
      %v3266 = vadd.f32 %v2784, %v3212
      %v3267 = vadd.f32 %v2785, %v3215
      %v3268 = vadd.f32 %v2786, %v3220
      %v3269 = vadd.f32 %v2787, %v3223
      %v3270 = vadd.f32 %v2788, %v3228
      %v3271 = vadd.f32 %v2789, %v3231
      %v3272 = vadd.f32 %v2790, %v3236
      %v3273 = vadd.f32 %v2791, %v3239
      %s3274 = scalar_lea.vmem %s192, 24
      %v3275 = vld [vmem:[%s3274] sm:$0xf]
      %v3276 = vld [vmem:[%s3274 + $0x4] sm:$0xf]
      %v3277 = vld [vmem:[%s3274 + $0xc] sm:$0xf]
      %v3278 = vld [vmem:[%s3274 + $0x10] sm:$0xf]
      %v3279 = vld [vmem:[%s3274 + $0x18] sm:$0xf]
      %v3280 = vld [vmem:[%s3274 + $0x1c] sm:$0xf]
      %v3281 = vld [vmem:[%s3274 + $0x24] sm:$0xf]
      %v3282 = vld [vmem:[%s3274 + $0x28] sm:$0xf]
      %v3283 = vld [vmem:[%s3274 + $0x30] sm:$0xf]
      %v3284 = vld [vmem:[%s3274 + $0x34] sm:$0xf]
      %v3285 = vld [vmem:[%s3274 + $0x3c] sm:$0xf]
      %v3286 = vld [vmem:[%s3274 + $0x40] sm:$0xf]
      %v3287 = vld [vmem:[%s3274 + $0x48] sm:$0xf]
      %v3288 = vld [vmem:[%s3274 + $0x4c] sm:$0xf]
      %v3289 = vld [vmem:[%s3274 + $0x54] sm:$0xf]
      %v3290 = vld [vmem:[%s3274 + $0x58] sm:$0xf]
      %v3291 = vld [vmem:[%s3274 + $0x60] sm:$0xf]
      %v3292 = vld [vmem:[%s3274 + $0x64] sm:$0xf]
      %v3293 = vld [vmem:[%s3274 + $0x6c] sm:$0xf]
      %v3294 = vld [vmem:[%s3274 + $0x70] sm:$0xf]
      %v3295 = vld [vmem:[%s3274 + $0x78] sm:$0xf]
      %v3296 = vld [vmem:[%s3274 + $0x7c] sm:$0xf]
      %v3297 = vld [vmem:[%s3274 + $0x84] sm:$0xf]
      %v3298 = vld [vmem:[%s3274 + $0x88] sm:$0xf]
      %v3299 = vld [vmem:[%s3274 + $0x90] sm:$0xf]
      %v3300 = vld [vmem:[%s3274 + $0x94] sm:$0xf]
      %v3301 = vld [vmem:[%s3274 + $0x9c] sm:$0xf]
      %v3302 = vld [vmem:[%s3274 + $0xa0] sm:$0xf]
      %v3303 = vld [vmem:[%s3274 + $0xa8] sm:$0xf]
      %v3304 = vld [vmem:[%s3274 + $0xac] sm:$0xf]
      %v3305 = vld [vmem:[%s3274 + $0xb4] sm:$0xf]
      %v3306 = vld [vmem:[%s3274 + $0xb8] sm:$0xf]
      %s3307 = scalar_lea.vmem %s1, 96
      %v3308 = vld [vmem:[%s3307] sm:$0xf]
      %v3309 = vld [vmem:[%s3307 + $0x4] sm:$0xf]
      %v3310 = vld [vmem:[%s3307 + $0x8] sm:$0xf]
      %v3311 = vld [vmem:[%s3307 + $0xc] sm:$0xf]
      %v3344 = vunpack.c.l.b16 %v3275
      %v3345 = vunpack.c.l.b16 %v3276
      %v3346 = vunpack.c.l.b16 %v3277
      %v3347 = vunpack.c.l.b16 %v3278
      %v3348 = vunpack.c.l.b16 %v3279
      %v3349 = vunpack.c.l.b16 %v3280
      %v3350 = vunpack.c.l.b16 %v3281
      %v3351 = vunpack.c.l.b16 %v3282
      %v3352 = vunpack.c.l.b16 %v3283
      %v3353 = vunpack.c.l.b16 %v3284
      %v3354 = vunpack.c.l.b16 %v3285
      %v3355 = vunpack.c.l.b16 %v3286
      %v3356 = vunpack.c.l.b16 %v3287
      %v3357 = vunpack.c.l.b16 %v3288
      %v3358 = vunpack.c.l.b16 %v3289
      %v3359 = vunpack.c.l.b16 %v3290
      %v3360 = vunpack.c.l.b16 %v3291
      %v3361 = vunpack.c.l.b16 %v3292
      %v3362 = vunpack.c.l.b16 %v3293
      %v3363 = vunpack.c.l.b16 %v3294
      %v3364 = vunpack.c.l.b16 %v3295
      %v3365 = vunpack.c.l.b16 %v3296
      %v3366 = vunpack.c.l.b16 %v3297
      %v3367 = vunpack.c.l.b16 %v3298
      %v3368 = vunpack.c.l.b16 %v3299
      %v3369 = vunpack.c.l.b16 %v3300
      %v3370 = vunpack.c.l.b16 %v3301
      %v3371 = vunpack.c.l.b16 %v3302
      %v3372 = vunpack.c.l.b16 %v3303
      %v3373 = vunpack.c.l.b16 %v3304
      %v3374 = vunpack.c.l.b16 %v3305
      %v3375 = vunpack.c.l.b16 %v3306
      %v3376 = vpack.c.b16 %v3345, %v3344
      %v3377 = vpack.c.b16 %v3347, %v3346
      %v3378 = vpack.c.b16 %v3349, %v3348
      %v3379 = vpack.c.b16 %v3351, %v3350
      %v3380 = vpack.c.b16 %v3353, %v3352
      %v3381 = vpack.c.b16 %v3355, %v3354
      %v3382 = vpack.c.b16 %v3357, %v3356
      %v3383 = vpack.c.b16 %v3359, %v3358
      %v3384 = vpack.c.b16 %v3361, %v3360
      %v3385 = vpack.c.b16 %v3363, %v3362
      %v3386 = vpack.c.b16 %v3365, %v3364
      %v3387 = vpack.c.b16 %v3367, %v3366
      %v3388 = vpack.c.b16 %v3369, %v3368
      %v3389 = vpack.c.b16 %v3371, %v3370
      %v3390 = vpack.c.b16 %v3373, %v3372
      %v3391 = vpack.c.b16 %v3375, %v3374
      %v3396 = vunpack.c.l.b16 %v3308
      %v3397 = vunpack.c.l.b16 %v3309
      %v3398 = vunpack.c.l.b16 %v3310
      %v3399 = vunpack.c.l.b16 %v3311
      %v3400 = vpack.c.b16 %v3397, %v3396
      %v3401 = vpack.c.b16 %v3399, %v3398
      %v3405 = vsel %vm703, %v3376, 0
      %v3408 = vsel %vm703, %v3377, 0
      %v3411 = vsel %vm703, %v3378, 0
      %v3414 = vsel %vm703, %v3379, 0
      %v3417 = vsel %vm703, %v3380, 0
      %v3420 = vsel %vm703, %v3381, 0
      %v3423 = vsel %vm703, %v3382, 0
      %v3426 = vsel %vm703, %v3383, 0
      %v3429 = vsel %vm703, %v3384, 0
      %v3432 = vsel %vm703, %v3385, 0
      %v3435 = vsel %vm703, %v3386, 0
      %v3438 = vsel %vm703, %v3387, 0
      %v3441 = vsel %vm703, %v3388, 0
      %v3444 = vsel %vm703, %v3389, 0
      %v3447 = vsel %vm703, %v3390, 0
      %v3450 = vsel %vm703, %v3391, 0
      %3452 = vmatprep.subr.bf16.mxu0 0
      %3453 = vmatpush1.bf16.msra.mxu0 %v3400
      %3454 = vmatprep.subr.bf16.mxu0 0
      %3455 = vmatpush1.bf16.msra.mxu0 %v3401
      %3456 = vmatprep.subr.bf16.mxu0 0
      %3457 = vmatpush1.bf16.msra.mxu0 0
      %3458 = vmatprep.subr.bf16.mxu0 0
      %3459 = vmatpush1.bf16.msra.mxu0 0
      %3460 = vmatprep.subr.bf16.mxu0 0
      %3461 = vmatpush1.bf16.msra.mxu0 0
      %3462 = vmatprep.subr.bf16.mxu0 0
      %3463 = vmatpush1.bf16.msra.mxu0 0
      %3464 = vmatprep.subr.bf16.mxu0 0
      %3465 = vmatpush1.bf16.msra.mxu0 0
      %3466 = vmatprep.subr.bf16.mxu0 0
      %3467 = vmatpush1.bf16.msra.mxu0 0
      %3468 = vmatprep.subr.bf16.mxu0 0
      %3469 = vmatpush1.bf16.msra.mxu0 0
      %3470 = vmatprep.subr.bf16.mxu0 0
      %3471 = vmatpush1.bf16.msra.mxu0 0
      %3472 = vmatprep.subr.bf16.mxu0 0
      %3473 = vmatpush1.bf16.msra.mxu0 0
      %3474 = vmatprep.subr.bf16.mxu0 0
      %3475 = vmatpush1.bf16.msra.mxu0 0
      %3476 = vmatprep.subr.bf16.mxu0 0
      %3477 = vmatpush1.bf16.msra.mxu0 0
      %3478 = vmatprep.subr.bf16.mxu0 0
      %3479 = vmatpush1.bf16.msra.mxu0 0
      %3480 = vmatprep.subr.bf16.mxu0 0
      %3481 = vmatpush1.bf16.msra.mxu0 0
      %3482 = vmatprep.subr.bf16.mxu0 0
      %3483 = vmatpush1.bf16.msra.mxu0 0
      %3484 = vmatprep.mubr.bf16.mxu0 0
      %3485 = vmatmul.mubr.bf16.gmra.mrb[0].mxu0 %v3405
      %v3486 = vpop.f32.mrb[0].mxu0
      %v3487 = vadd.f32 0.0, %v3486
      %v3488 = vpop.f32.mrb[0].mxu0
      %v3489 = vpop.f32.mrb[0].mxu0
      %v3490 = vadd.f32 0.0, %v3489
      %v3491 = vpop.f32.mrb[0].mxu0
      %3492 = vmatprep.mubr.bf16.mxu0 0
      %3493 = vmatmul.mubr.bf16.gmra.mrb[0].mxu0 %v3408
      %v3494 = vpop.f32.mrb[0].mxu0
      %v3495 = vadd.f32 0.0, %v3494
      %v3496 = vpop.f32.mrb[0].mxu0
      %v3497 = vpop.f32.mrb[0].mxu0
      %v3498 = vadd.f32 0.0, %v3497
      %v3499 = vpop.f32.mrb[0].mxu0
      %3500 = vmatprep.mubr.bf16.mxu0 0
      %3501 = vmatmul.mubr.bf16.gmra.mrb[0].mxu0 %v3411
      %v3502 = vpop.f32.mrb[0].mxu0
      %v3503 = vadd.f32 0.0, %v3502
      %v3504 = vpop.f32.mrb[0].mxu0
      %v3505 = vpop.f32.mrb[0].mxu0
      %v3506 = vadd.f32 0.0, %v3505
      %v3507 = vpop.f32.mrb[0].mxu0
      %3508 = vmatprep.mubr.bf16.mxu0 0
      %3509 = vmatmul.mubr.bf16.gmra.mrb[0].mxu0 %v3414
      %v3510 = vpop.f32.mrb[0].mxu0
      %v3511 = vadd.f32 0.0, %v3510
      %v3512 = vpop.f32.mrb[0].mxu0
      %v3513 = vpop.f32.mrb[0].mxu0
      %v3514 = vadd.f32 0.0, %v3513
      %v3515 = vpop.f32.mrb[0].mxu0
      %3516 = vmatprep.mubr.bf16.mxu0 0
      %3517 = vmatmul.mubr.bf16.gmra.mrb[0].mxu0 %v3417
      %v3518 = vpop.f32.mrb[0].mxu0
      %v3519 = vadd.f32 0.0, %v3518
      %v3520 = vpop.f32.mrb[0].mxu0
      %v3521 = vpop.f32.mrb[0].mxu0
      %v3522 = vadd.f32 0.0, %v3521
      %v3523 = vpop.f32.mrb[0].mxu0
      %3524 = vmatprep.mubr.bf16.mxu0 0
      %3525 = vmatmul.mubr.bf16.gmra.mrb[0].mxu0 %v3420
      %v3526 = vpop.f32.mrb[0].mxu0
      %v3527 = vadd.f32 0.0, %v3526
      %v3528 = vpop.f32.mrb[0].mxu0
      %v3529 = vpop.f32.mrb[0].mxu0
      %v3530 = vadd.f32 0.0, %v3529
      %v3531 = vpop.f32.mrb[0].mxu0
      %3532 = vmatprep.mubr.bf16.mxu0 0
      %3533 = vmatmul.mubr.bf16.gmra.mrb[0].mxu0 %v3423
      %v3534 = vpop.f32.mrb[0].mxu0
      %v3535 = vadd.f32 0.0, %v3534
      %v3536 = vpop.f32.mrb[0].mxu0
      %v3537 = vpop.f32.mrb[0].mxu0
      %v3538 = vadd.f32 0.0, %v3537
      %v3539 = vpop.f32.mrb[0].mxu0
      %3540 = vmatprep.mubr.bf16.mxu0 0
      %3541 = vmatmul.mubr.bf16.gmra.mrb[0].mxu0 %v3426
      %v3542 = vpop.f32.mrb[0].mxu0
      %v3543 = vadd.f32 0.0, %v3542
      %v3544 = vpop.f32.mrb[0].mxu0
      %v3545 = vpop.f32.mrb[0].mxu0
      %v3546 = vadd.f32 0.0, %v3545
      %v3547 = vpop.f32.mrb[0].mxu0
      %3548 = vmatprep.mubr.bf16.mxu0 0
      %3549 = vmatmul.mubr.bf16.gmra.mrb[0].mxu0 %v3429
      %v3550 = vpop.f32.mrb[0].mxu0
      %v3551 = vadd.f32 0.0, %v3550
      %v3552 = vpop.f32.mrb[0].mxu0
      %v3553 = vpop.f32.mrb[0].mxu0
      %v3554 = vadd.f32 0.0, %v3553
      %v3555 = vpop.f32.mrb[0].mxu0
      %3556 = vmatprep.mubr.bf16.mxu0 0
      %3557 = vmatmul.mubr.bf16.gmra.mrb[0].mxu0 %v3432
      %v3558 = vpop.f32.mrb[0].mxu0
      %v3559 = vadd.f32 0.0, %v3558
      %v3560 = vpop.f32.mrb[0].mxu0
      %v3561 = vpop.f32.mrb[0].mxu0
      %v3562 = vadd.f32 0.0, %v3561
      %v3563 = vpop.f32.mrb[0].mxu0
      %3564 = vmatprep.mubr.bf16.mxu0 0
      %3565 = vmatmul.mubr.bf16.gmra.mrb[0].mxu0 %v3435
      %v3566 = vpop.f32.mrb[0].mxu0
      %v3567 = vadd.f32 0.0, %v3566
      %v3568 = vpop.f32.mrb[0].mxu0
      %v3569 = vpop.f32.mrb[0].mxu0
      %v3570 = vadd.f32 0.0, %v3569
      %v3571 = vpop.f32.mrb[0].mxu0
      %3572 = vmatprep.mubr.bf16.mxu0 0
      %3573 = vmatmul.mubr.bf16.gmra.mrb[0].mxu0 %v3438
      %v3574 = vpop.f32.mrb[0].mxu0
      %v3575 = vadd.f32 0.0, %v3574
      %v3576 = vpop.f32.mrb[0].mxu0
      %v3577 = vpop.f32.mrb[0].mxu0
      %v3578 = vadd.f32 0.0, %v3577
      %v3579 = vpop.f32.mrb[0].mxu0
      %3580 = vmatprep.mubr.bf16.mxu0 0
      %3581 = vmatmul.mubr.bf16.gmra.mrb[0].mxu0 %v3441
      %v3582 = vpop.f32.mrb[0].mxu0
      %v3583 = vadd.f32 0.0, %v3582
      %v3584 = vpop.f32.mrb[0].mxu0
      %v3585 = vpop.f32.mrb[0].mxu0
      %v3586 = vadd.f32 0.0, %v3585
      %v3587 = vpop.f32.mrb[0].mxu0
      %3588 = vmatprep.mubr.bf16.mxu0 0
      %3589 = vmatmul.mubr.bf16.gmra.mrb[0].mxu0 %v3444
      %v3590 = vpop.f32.mrb[0].mxu0
      %v3591 = vadd.f32 0.0, %v3590
      %v3592 = vpop.f32.mrb[0].mxu0
      %v3593 = vpop.f32.mrb[0].mxu0
      %v3594 = vadd.f32 0.0, %v3593
      %v3595 = vpop.f32.mrb[0].mxu0
      %3596 = vmatprep.mubr.bf16.mxu0 0
      %3597 = vmatmul.mubr.bf16.gmra.mrb[0].mxu0 %v3447
      %v3598 = vpop.f32.mrb[0].mxu0
      %v3599 = vadd.f32 0.0, %v3598
      %v3600 = vpop.f32.mrb[0].mxu0
      %v3601 = vpop.f32.mrb[0].mxu0
      %v3602 = vadd.f32 0.0, %v3601
      %v3603 = vpop.f32.mrb[0].mxu0
      %3604 = vmatprep.mubr.bf16.mxu0 0
      %3605 = vmatmul.mubr.bf16.gmra.mrb[0].mxu0 %v3450
      %v3606 = vpop.f32.mrb[0].mxu0
      %v3607 = vadd.f32 0.0, %v3606
      %v3608 = vpop.f32.mrb[0].mxu0
      %v3609 = vpop.f32.mrb[0].mxu0
      %v3610 = vadd.f32 0.0, %v3609
      %v3611 = vpop.f32.mrb[0].mxu0
      %3612 = vdwg.mxu0
      %v3613 = vadd.f32 %v3242, %v3487
      %v3614 = vadd.f32 %v3243, %v3490
      %v3615 = vadd.f32 %v3244, %v3495
      %v3616 = vadd.f32 %v3245, %v3498
      %v3617 = vadd.f32 %v3246, %v3503
      %v3618 = vadd.f32 %v3247, %v3506
      %v3619 = vadd.f32 %v3248, %v3511
      %v3620 = vadd.f32 %v3249, %v3514
      %v3621 = vadd.f32 %v3250, %v3519
      %v3622 = vadd.f32 %v3251, %v3522
      %v3623 = vadd.f32 %v3252, %v3527
      %v3624 = vadd.f32 %v3253, %v3530
      %v3625 = vadd.f32 %v3254, %v3535
      %v3626 = vadd.f32 %v3255, %v3538
      %v3627 = vadd.f32 %v3256, %v3543
      %v3628 = vadd.f32 %v3257, %v3546
      %v3629 = vadd.f32 %v3258, %v3551
      %v3630 = vadd.f32 %v3259, %v3554
      %v3631 = vadd.f32 %v3260, %v3559
      %v3632 = vadd.f32 %v3261, %v3562
      %v3633 = vadd.f32 %v3262, %v3567
      %v3634 = vadd.f32 %v3263, %v3570
      %v3635 = vadd.f32 %v3264, %v3575
      %v3636 = vadd.f32 %v3265, %v3578
      %v3637 = vadd.f32 %v3266, %v3583
      %v3638 = vadd.f32 %v3267, %v3586
      %v3639 = vadd.f32 %v3268, %v3591
      %v3640 = vadd.f32 %v3269, %v3594
      %v3641 = vadd.f32 %v3270, %v3599
      %v3642 = vadd.f32 %v3271, %v3602
      %v3643 = vadd.f32 %v3272, %v3607
      %v3644 = vadd.f32 %v3273, %v3610
      %v3645 = vld [vmem:[%s3274] sm:$0xf]
      %v3646 = vld [vmem:[%s3274 + $0x4] sm:$0xf]
      %v3647 = vld [vmem:[%s3274 + $0x8] sm:$0x1]
      %v3648 = vld [vmem:[%s3274 + $0xc] sm:$0xf]
      %v3649 = vld [vmem:[%s3274 + $0x10] sm:$0xf]
      %v3650 = vld [vmem:[%s3274 + $0x14] sm:$0x1]
      %v3651 = vld [vmem:[%s3274 + $0x18] sm:$0xf]
      %v3652 = vld [vmem:[%s3274 + $0x1c] sm:$0xf]
      %v3653 = vld [vmem:[%s3274 + $0x20] sm:$0x1]
      %v3654 = vld [vmem:[%s3274 + $0x24] sm:$0xf]
      %v3655 = vld [vmem:[%s3274 + $0x28] sm:$0xf]
      %v3656 = vld [vmem:[%s3274 + $0x2c] sm:$0x1]
      %v3657 = vld [vmem:[%s3274 + $0x30] sm:$0xf]
      %v3658 = vld [vmem:[%s3274 + $0x34] sm:$0xf]
      %v3659 = vld [vmem:[%s3274 + $0x38] sm:$0x1]
      %v3660 = vld [vmem:[%s3274 + $0x3c] sm:$0xf]
      %v3661 = vld [vmem:[%s3274 + $0x40] sm:$0xf]
      %v3662 = vld [vmem:[%s3274 + $0x44] sm:$0x1]
      %v3663 = vld [vmem:[%s3274 + $0x48] sm:$0xf]
      %v3664 = vld [vmem:[%s3274 + $0x4c] sm:$0xf]
      %v3665 = vld [vmem:[%s3274 + $0x50] sm:$0x1]
      %v3666 = vld [vmem:[%s3274 + $0x54] sm:$0xf]
      %v3667 = vld [vmem:[%s3274 + $0x58] sm:$0xf]
      %v3668 = vld [vmem:[%s3274 + $0x5c] sm:$0x1]
      %v3669 = vld [vmem:[%s3274 + $0x60] sm:$0xf]
      %v3670 = vld [vmem:[%s3274 + $0x64] sm:$0xf]
      %v3671 = vld [vmem:[%s3274 + $0x68] sm:$0x1]
      %v3672 = vld [vmem:[%s3274 + $0x6c] sm:$0xf]
      %v3673 = vld [vmem:[%s3274 + $0x70] sm:$0xf]
      %v3674 = vld [vmem:[%s3274 + $0x74] sm:$0x1]
      %v3675 = vld [vmem:[%s3274 + $0x78] sm:$0xf]
      %v3676 = vld [vmem:[%s3274 + $0x7c] sm:$0xf]
      %v3677 = vld [vmem:[%s3274 + $0x80] sm:$0x1]
      %v3678 = vld [vmem:[%s3274 + $0x84] sm:$0xf]
      %v3679 = vld [vmem:[%s3274 + $0x88] sm:$0xf]
      %v3680 = vld [vmem:[%s3274 + $0x8c] sm:$0x1]
      %v3681 = vld [vmem:[%s3274 + $0x90] sm:$0xf]
      %v3682 = vld [vmem:[%s3274 + $0x94] sm:$0xf]
      %v3683 = vld [vmem:[%s3274 + $0x98] sm:$0x1]
      %v3684 = vld [vmem:[%s3274 + $0x9c] sm:$0xf]
      %v3685 = vld [vmem:[%s3274 + $0xa0] sm:$0xf]
      %v3686 = vld [vmem:[%s3274 + $0xa4] sm:$0x1]
      %v3687 = vld [vmem:[%s3274 + $0xa8] sm:$0xf]
      %v3688 = vld [vmem:[%s3274 + $0xac] sm:$0xf]
      %v3689 = vld [vmem:[%s3274 + $0xb0] sm:$0x1]
      %v3690 = vld [vmem:[%s3274 + $0xb4] sm:$0xf]
      %v3691 = vld [vmem:[%s3274 + $0xb8] sm:$0xf]
      %v3692 = vld [vmem:[%s3274 + $0xbc] sm:$0x1]
      %v3694 = vshrl.u32 %v3645, 16
      %v3696 = vrot.slane %v3694, 4
      %v3697 = vshll.u32 %v3645, 16
      %v3699 = vrot.slane %v3697, 5
      %v3700 = vor.u32 %v3696, %v3699
      %v3701 = vrot.slane %v3700, 4
      %v3703 = vshll.u32 %v3646, 16
      %v3705 = vrot.slane %v3703, 5
      %v3706 = vsel %vm253, %v3701, %v3705
      %v3707 = vshrl.u32 %v3646, 16
      %v3709 = vrot.slane %v3707, 4
      %v3710 = vor.u32 %v3709, %v3705
      %v3711 = vrot.slane %v3710, 4
      %v3713 = vshll.u32 %v3647, 16
      %v3715 = vrot.slane %v3713, 5
      %v3716 = vsel %vm253, %v3711, %v3715
      %v3718 = vshrl.u32 %v3648, 16
      %v3720 = vrot.slane %v3718, 4
      %v3721 = vshll.u32 %v3648, 16
      %v3723 = vrot.slane %v3721, 5
      %v3724 = vor.u32 %v3720, %v3723
      %v3725 = vrot.slane %v3724, 4
      %v3727 = vshll.u32 %v3649, 16
      %v3729 = vrot.slane %v3727, 5
      %v3730 = vsel %vm253, %v3725, %v3729
      %v3731 = vshrl.u32 %v3649, 16
      %v3733 = vrot.slane %v3731, 4
      %v3734 = vor.u32 %v3733, %v3729
      %v3735 = vrot.slane %v3734, 4
      %v3737 = vshll.u32 %v3650, 16
      %v3739 = vrot.slane %v3737, 5
      %v3740 = vsel %vm253, %v3735, %v3739
      %v3742 = vshrl.u32 %v3651, 16
      %v3744 = vrot.slane %v3742, 4
      %v3745 = vshll.u32 %v3651, 16
      %v3747 = vrot.slane %v3745, 5
      %v3748 = vor.u32 %v3744, %v3747
      %v3749 = vrot.slane %v3748, 4
      %v3751 = vshll.u32 %v3652, 16
      %v3753 = vrot.slane %v3751, 5
      %v3754 = vsel %vm253, %v3749, %v3753
      %v3755 = vshrl.u32 %v3652, 16
      %v3757 = vrot.slane %v3755, 4
      %v3758 = vor.u32 %v3757, %v3753
      %v3759 = vrot.slane %v3758, 4
      %v3761 = vshll.u32 %v3653, 16
      %v3763 = vrot.slane %v3761, 5
      %v3764 = vsel %vm253, %v3759, %v3763
      %v3766 = vshrl.u32 %v3654, 16
      %v3768 = vrot.slane %v3766, 4
      %v3769 = vshll.u32 %v3654, 16
      %v3771 = vrot.slane %v3769, 5
      %v3772 = vor.u32 %v3768, %v3771
      %v3773 = vrot.slane %v3772, 4
      %v3775 = vshll.u32 %v3655, 16
      %v3777 = vrot.slane %v3775, 5
      %v3778 = vsel %vm253, %v3773, %v3777
      %v3779 = vshrl.u32 %v3655, 16
      %v3781 = vrot.slane %v3779, 4
      %v3782 = vor.u32 %v3781, %v3777
      %v3783 = vrot.slane %v3782, 4
      %v3785 = vshll.u32 %v3656, 16
      %v3787 = vrot.slane %v3785, 5
      %v3788 = vsel %vm253, %v3783, %v3787
      %v3790 = vshrl.u32 %v3657, 16
      %v3792 = vrot.slane %v3790, 4
      %v3793 = vshll.u32 %v3657, 16
      %v3795 = vrot.slane %v3793, 5
      %v3796 = vor.u32 %v3792, %v3795
      %v3797 = vrot.slane %v3796, 4
      %v3799 = vshll.u32 %v3658, 16
      %v3801 = vrot.slane %v3799, 5
      %v3802 = vsel %vm253, %v3797, %v3801
      %v3803 = vshrl.u32 %v3658, 16
      %v3805 = vrot.slane %v3803, 4
      %v3806 = vor.u32 %v3805, %v3801
      %v3807 = vrot.slane %v3806, 4
      %v3809 = vshll.u32 %v3659, 16
      %v3811 = vrot.slane %v3809, 5
      %v3812 = vsel %vm253, %v3807, %v3811
      %v3814 = vshrl.u32 %v3660, 16
      %v3816 = vrot.slane %v3814, 4
      %v3817 = vshll.u32 %v3660, 16
      %v3819 = vrot.slane %v3817, 5
      %v3820 = vor.u32 %v3816, %v3819
      %v3821 = vrot.slane %v3820, 4
      %v3823 = vshll.u32 %v3661, 16
      %v3825 = vrot.slane %v3823, 5
      %v3826 = vsel %vm253, %v3821, %v3825
      %v3827 = vshrl.u32 %v3661, 16
      %v3829 = vrot.slane %v3827, 4
      %v3830 = vor.u32 %v3829, %v3825
      %v3831 = vrot.slane %v3830, 4
      %v3833 = vshll.u32 %v3662, 16
      %v3835 = vrot.slane %v3833, 5
      %v3836 = vsel %vm253, %v3831, %v3835
      %v3838 = vshrl.u32 %v3663, 16
      %v3840 = vrot.slane %v3838, 4
      %v3841 = vshll.u32 %v3663, 16
      %v3843 = vrot.slane %v3841, 5
      %v3844 = vor.u32 %v3840, %v3843
      %v3845 = vrot.slane %v3844, 4
      %v3847 = vshll.u32 %v3664, 16
      %v3849 = vrot.slane %v3847, 5
      %v3850 = vsel %vm253, %v3845, %v3849
      %v3851 = vshrl.u32 %v3664, 16
      %v3853 = vrot.slane %v3851, 4
      %v3854 = vor.u32 %v3853, %v3849
      %v3855 = vrot.slane %v3854, 4
      %v3857 = vshll.u32 %v3665, 16
      %v3859 = vrot.slane %v3857, 5
      %v3860 = vsel %vm253, %v3855, %v3859
      %v3862 = vshrl.u32 %v3666, 16
      %v3864 = vrot.slane %v3862, 4
      %v3865 = vshll.u32 %v3666, 16
      %v3867 = vrot.slane %v3865, 5
      %v3868 = vor.u32 %v3864, %v3867
      %v3869 = vrot.slane %v3868, 4
      %v3871 = vshll.u32 %v3667, 16
      %v3873 = vrot.slane %v3871, 5
      %v3874 = vsel %vm253, %v3869, %v3873
      %v3875 = vshrl.u32 %v3667, 16
      %v3877 = vrot.slane %v3875, 4
      %v3878 = vor.u32 %v3877, %v3873
      %v3879 = vrot.slane %v3878, 4
      %v3881 = vshll.u32 %v3668, 16
      %v3883 = vrot.slane %v3881, 5
      %v3884 = vsel %vm253, %v3879, %v3883
      %v3886 = vshrl.u32 %v3669, 16
      %v3888 = vrot.slane %v3886, 4
      %v3889 = vshll.u32 %v3669, 16
      %v3891 = vrot.slane %v3889, 5
      %v3892 = vor.u32 %v3888, %v3891
      %v3893 = vrot.slane %v3892, 4
      %v3895 = vshll.u32 %v3670, 16
      %v3897 = vrot.slane %v3895, 5
      %v3898 = vsel %vm253, %v3893, %v3897
      %v3899 = vshrl.u32 %v3670, 16
      %v3901 = vrot.slane %v3899, 4
      %v3902 = vor.u32 %v3901, %v3897
      %v3903 = vrot.slane %v3902, 4
      %v3905 = vshll.u32 %v3671, 16
      %v3907 = vrot.slane %v3905, 5
      %v3908 = vsel %vm253, %v3903, %v3907
      %v3910 = vshrl.u32 %v3672, 16
      %v3912 = vrot.slane %v3910, 4
      %v3913 = vshll.u32 %v3672, 16
      %v3915 = vrot.slane %v3913, 5
      %v3916 = vor.u32 %v3912, %v3915
      %v3917 = vrot.slane %v3916, 4
      %v3919 = vshll.u32 %v3673, 16
      %v3921 = vrot.slane %v3919, 5
      %v3922 = vsel %vm253, %v3917, %v3921
      %v3923 = vshrl.u32 %v3673, 16
      %v3925 = vrot.slane %v3923, 4
      %v3926 = vor.u32 %v3925, %v3921
      %v3927 = vrot.slane %v3926, 4
      %v3929 = vshll.u32 %v3674, 16
      %v3931 = vrot.slane %v3929, 5
      %v3932 = vsel %vm253, %v3927, %v3931
      %v3934 = vshrl.u32 %v3675, 16
      %v3936 = vrot.slane %v3934, 4
      %v3937 = vshll.u32 %v3675, 16
      %v3939 = vrot.slane %v3937, 5
      %v3940 = vor.u32 %v3936, %v3939
      %v3941 = vrot.slane %v3940, 4
      %v3943 = vshll.u32 %v3676, 16
      %v3945 = vrot.slane %v3943, 5
      %v3946 = vsel %vm253, %v3941, %v3945
      %v3947 = vshrl.u32 %v3676, 16
      %v3949 = vrot.slane %v3947, 4
      %v3950 = vor.u32 %v3949, %v3945
      %v3951 = vrot.slane %v3950, 4
      %v3953 = vshll.u32 %v3677, 16
      %v3955 = vrot.slane %v3953, 5
      %v3956 = vsel %vm253, %v3951, %v3955
      %v3958 = vshrl.u32 %v3678, 16
      %v3960 = vrot.slane %v3958, 4
      %v3961 = vshll.u32 %v3678, 16
      %v3963 = vrot.slane %v3961, 5
      %v3964 = vor.u32 %v3960, %v3963
      %v3965 = vrot.slane %v3964, 4
      %v3967 = vshll.u32 %v3679, 16
      %v3969 = vrot.slane %v3967, 5
      %v3970 = vsel %vm253, %v3965, %v3969
      %v3971 = vshrl.u32 %v3679, 16
      %v3973 = vrot.slane %v3971, 4
      %v3974 = vor.u32 %v3973, %v3969
      %v3975 = vrot.slane %v3974, 4
      %v3977 = vshll.u32 %v3680, 16
      %v3979 = vrot.slane %v3977, 5
      %v3980 = vsel %vm253, %v3975, %v3979
      %v3982 = vshrl.u32 %v3681, 16
      %v3984 = vrot.slane %v3982, 4
      %v3985 = vshll.u32 %v3681, 16
      %v3987 = vrot.slane %v3985, 5
      %v3988 = vor.u32 %v3984, %v3987
      %v3989 = vrot.slane %v3988, 4
      %v3991 = vshll.u32 %v3682, 16
      %v3993 = vrot.slane %v3991, 5
      %v3994 = vsel %vm253, %v3989, %v3993
      %v3995 = vshrl.u32 %v3682, 16
      %v3997 = vrot.slane %v3995, 4
      %v3998 = vor.u32 %v3997, %v3993
      %v3999 = vrot.slane %v3998, 4
      %v4001 = vshll.u32 %v3683, 16
      %v4003 = vrot.slane %v4001, 5
      %v4004 = vsel %vm253, %v3999, %v4003
      %v4006 = vshrl.u32 %v3684, 16
      %v4008 = vrot.slane %v4006, 4
      %v4009 = vshll.u32 %v3684, 16
      %v4011 = vrot.slane %v4009, 5
      %v4012 = vor.u32 %v4008, %v4011
      %v4013 = vrot.slane %v4012, 4
      %v4015 = vshll.u32 %v3685, 16
      %v4017 = vrot.slane %v4015, 5
      %v4018 = vsel %vm253, %v4013, %v4017
      %v4019 = vshrl.u32 %v3685, 16
      %v4021 = vrot.slane %v4019, 4
      %v4022 = vor.u32 %v4021, %v4017
      %v4023 = vrot.slane %v4022, 4
      %v4025 = vshll.u32 %v3686, 16
      %v4027 = vrot.slane %v4025, 5
      %v4028 = vsel %vm253, %v4023, %v4027
      %v4030 = vshrl.u32 %v3687, 16
      %v4032 = vrot.slane %v4030, 4
      %v4033 = vshll.u32 %v3687, 16
      %v4035 = vrot.slane %v4033, 5
      %v4036 = vor.u32 %v4032, %v4035
      %v4037 = vrot.slane %v4036, 4
      %v4039 = vshll.u32 %v3688, 16
      %v4041 = vrot.slane %v4039, 5
      %v4042 = vsel %vm253, %v4037, %v4041
      %v4043 = vshrl.u32 %v3688, 16
      %v4045 = vrot.slane %v4043, 4
      %v4046 = vor.u32 %v4045, %v4041
      %v4047 = vrot.slane %v4046, 4
      %v4049 = vshll.u32 %v3689, 16
      %v4051 = vrot.slane %v4049, 5
      %v4052 = vsel %vm253, %v4047, %v4051
      %v4054 = vshrl.u32 %v3690, 16
      %v4056 = vrot.slane %v4054, 4
      %v4057 = vshll.u32 %v3690, 16
      %v4059 = vrot.slane %v4057, 5
      %v4060 = vor.u32 %v4056, %v4059
      %v4061 = vrot.slane %v4060, 4
      %v4063 = vshll.u32 %v3691, 16
      %v4065 = vrot.slane %v4063, 5
      %v4066 = vsel %vm253, %v4061, %v4065
      %v4067 = vshrl.u32 %v3691, 16
      %v4069 = vrot.slane %v4067, 4
      %v4070 = vor.u32 %v4069, %v4065
      %v4071 = vrot.slane %v4070, 4
      %v4073 = vshll.u32 %v3692, 16
      %v4075 = vrot.slane %v4073, 5
      %v4076 = vsel %vm253, %v4071, %v4075
      %s4077 = scalar_lea.vmem %s1, 112
      %v4078 = vld [vmem:[%s4077] sm:$0xf]
      %v4079 = vld [vmem:[%s4077 + $0x4] sm:$0xf]
      %v4080 = vld [vmem:[%s4077 + $0x8] sm:$0xf]
      %v4081 = vld [vmem:[%s4077 + $0xc] sm:$0xf]
      %v4082 = vunpack.c.l.b16 %v3706
      %v4083 = vunpack.c.l.b16 %v3716
      %v4084 = vunpack.c.l.b16 %v3730
      %v4085 = vunpack.c.l.b16 %v3740
      %v4086 = vunpack.c.l.b16 %v3754
      %v4087 = vunpack.c.l.b16 %v3764
      %v4088 = vunpack.c.l.b16 %v3778
      %v4089 = vunpack.c.l.b16 %v3788
      %v4090 = vunpack.c.l.b16 %v3802
      %v4091 = vunpack.c.l.b16 %v3812
      %v4092 = vunpack.c.l.b16 %v3826
      %v4093 = vunpack.c.l.b16 %v3836
      %v4094 = vunpack.c.l.b16 %v3850
      %v4095 = vunpack.c.l.b16 %v3860
      %v4096 = vunpack.c.l.b16 %v3874
      %v4097 = vunpack.c.l.b16 %v3884
      %v4098 = vunpack.c.l.b16 %v3898
      %v4099 = vunpack.c.l.b16 %v3908
      %v4100 = vunpack.c.l.b16 %v3922
      %v4101 = vunpack.c.l.b16 %v3932
      %v4102 = vunpack.c.l.b16 %v3946
      %v4103 = vunpack.c.l.b16 %v3956
      %v4104 = vunpack.c.l.b16 %v3970
      %v4105 = vunpack.c.l.b16 %v3980
      %v4106 = vunpack.c.l.b16 %v3994
      %v4107 = vunpack.c.l.b16 %v4004
      %v4108 = vunpack.c.l.b16 %v4018
      %v4109 = vunpack.c.l.b16 %v4028
      %v4110 = vunpack.c.l.b16 %v4042
      %v4111 = vunpack.c.l.b16 %v4052
      %v4112 = vunpack.c.l.b16 %v4066
      %v4113 = vunpack.c.l.b16 %v4076
      %v4114 = vpack.c.b16 %v4083, %v4082
      %v4115 = vpack.c.b16 %v4085, %v4084
      %v4116 = vpack.c.b16 %v4087, %v4086
      %v4117 = vpack.c.b16 %v4089, %v4088
      %v4118 = vpack.c.b16 %v4091, %v4090
      %v4119 = vpack.c.b16 %v4093, %v4092
      %v4120 = vpack.c.b16 %v4095, %v4094
      %v4121 = vpack.c.b16 %v4097, %v4096
      %v4122 = vpack.c.b16 %v4099, %v4098
      %v4123 = vpack.c.b16 %v4101, %v4100
      %v4124 = vpack.c.b16 %v4103, %v4102
      %v4125 = vpack.c.b16 %v4105, %v4104
      %v4126 = vpack.c.b16 %v4107, %v4106
      %v4127 = vpack.c.b16 %v4109, %v4108
      %v4128 = vpack.c.b16 %v4111, %v4110
      %v4129 = vpack.c.b16 %v4113, %v4112
      %v4134 = vunpack.c.l.b16 %v4078
      %v4135 = vunpack.c.l.b16 %v4079
      %v4136 = vunpack.c.l.b16 %v4080
      %v4137 = vunpack.c.l.b16 %v4081
      %v4138 = vpack.c.b16 %v4135, %v4134
      %v4139 = vpack.c.b16 %v4137, %v4136
      %v4143 = vsel %vm703, %v4114, 0
      %v4146 = vsel %vm703, %v4115, 0
      %v4149 = vsel %vm703, %v4116, 0
      %v4152 = vsel %vm703, %v4117, 0
      %v4155 = vsel %vm703, %v4118, 0
      %v4158 = vsel %vm703, %v4119, 0
      %v4161 = vsel %vm703, %v4120, 0
      %v4164 = vsel %vm703, %v4121, 0
      %v4167 = vsel %vm703, %v4122, 0
      %v4170 = vsel %vm703, %v4123, 0
      %v4173 = vsel %vm703, %v4124, 0
      %v4176 = vsel %vm703, %v4125, 0
      %v4179 = vsel %vm703, %v4126, 0
      %v4182 = vsel %vm703, %v4127, 0
      %v4185 = vsel %vm703, %v4128, 0
      %v4188 = vsel %vm703, %v4129, 0
      %4190 = vmatprep.subr.bf16.mxu0 0
      %4191 = vmatpush1.bf16.msra.mxu0 %v4138
      %4192 = vmatprep.subr.bf16.mxu0 0
      %4193 = vmatpush1.bf16.msra.mxu0 %v4139
      %4194 = vmatprep.subr.bf16.mxu0 0
      %4195 = vmatpush1.bf16.msra.mxu0 0
      %4196 = vmatprep.subr.bf16.mxu0 0
      %4197 = vmatpush1.bf16.msra.mxu0 0
      %4198 = vmatprep.subr.bf16.mxu0 0
      %4199 = vmatpush1.bf16.msra.mxu0 0
      %4200 = vmatprep.subr.bf16.mxu0 0
      %4201 = vmatpush1.bf16.msra.mxu0 0
      %4202 = vmatprep.subr.bf16.mxu0 0
      %4203 = vmatpush1.bf16.msra.mxu0 0
      %4204 = vmatprep.subr.bf16.mxu0 0
      %4205 = vmatpush1.bf16.msra.mxu0 0
      %4206 = vmatprep.subr.bf16.mxu0 0
      %4207 = vmatpush1.bf16.msra.mxu0 0
      %4208 = vmatprep.subr.bf16.mxu0 0
      %4209 = vmatpush1.bf16.msra.mxu0 0
      %4210 = vmatprep.subr.bf16.mxu0 0
      %4211 = vmatpush1.bf16.msra.mxu0 0
      %4212 = vmatprep.subr.bf16.mxu0 0
      %4213 = vmatpush1.bf16.msra.mxu0 0
      %4214 = vmatprep.subr.bf16.mxu0 0
      %4215 = vmatpush1.bf16.msra.mxu0 0
      %4216 = vmatprep.subr.bf16.mxu0 0
      %4217 = vmatpush1.bf16.msra.mxu0 0
      %4218 = vmatprep.subr.bf16.mxu0 0
      %4219 = vmatpush1.bf16.msra.mxu0 0
      %4220 = vmatprep.subr.bf16.mxu0 0
      %4221 = vmatpush1.bf16.msra.mxu0 0
      %4222 = vmatprep.mubr.bf16.mxu0 0
      %4223 = vmatmul.mubr.bf16.gmra.mrb[0].mxu0 %v4143
      %v4224 = vpop.f32.mrb[0].mxu0
      %v4225 = vadd.f32 0.0, %v4224
      %v4226 = vpop.f32.mrb[0].mxu0
      %v4227 = vpop.f32.mrb[0].mxu0
      %v4228 = vadd.f32 0.0, %v4227
      %v4229 = vpop.f32.mrb[0].mxu0
      %4230 = vmatprep.mubr.bf16.mxu0 0
      %4231 = vmatmul.mubr.bf16.gmra.mrb[0].mxu0 %v4146
      %v4232 = vpop.f32.mrb[0].mxu0
      %v4233 = vadd.f32 0.0, %v4232
      %v4234 = vpop.f32.mrb[0].mxu0
      %v4235 = vpop.f32.mrb[0].mxu0
      %v4236 = vadd.f32 0.0, %v4235
      %v4237 = vpop.f32.mrb[0].mxu0
      %4238 = vmatprep.mubr.bf16.mxu0 0
      %4239 = vmatmul.mubr.bf16.gmra.mrb[0].mxu0 %v4149
      %v4240 = vpop.f32.mrb[0].mxu0
      %v4241 = vadd.f32 0.0, %v4240
      %v4242 = vpop.f32.mrb[0].mxu0
      %v4243 = vpop.f32.mrb[0].mxu0
      %v4244 = vadd.f32 0.0, %v4243
      %v4245 = vpop.f32.mrb[0].mxu0
      %4246 = vmatprep.mubr.bf16.mxu0 0
      %4247 = vmatmul.mubr.bf16.gmra.mrb[0].mxu0 %v4152
      %v4248 = vpop.f32.mrb[0].mxu0
      %v4249 = vadd.f32 0.0, %v4248
      %v4250 = vpop.f32.mrb[0].mxu0
      %v4251 = vpop.f32.mrb[0].mxu0
      %v4252 = vadd.f32 0.0, %v4251
      %v4253 = vpop.f32.mrb[0].mxu0
      %4254 = vmatprep.mubr.bf16.mxu0 0
      %4255 = vmatmul.mubr.bf16.gmra.mrb[0].mxu0 %v4155
      %v4256 = vpop.f32.mrb[0].mxu0
      %v4257 = vadd.f32 0.0, %v4256
      %v4258 = vpop.f32.mrb[0].mxu0
      %v4259 = vpop.f32.mrb[0].mxu0
      %v4260 = vadd.f32 0.0, %v4259
      %v4261 = vpop.f32.mrb[0].mxu0
      %4262 = vmatprep.mubr.bf16.mxu0 0
      %4263 = vmatmul.mubr.bf16.gmra.mrb[0].mxu0 %v4158
      %v4264 = vpop.f32.mrb[0].mxu0
      %v4265 = vadd.f32 0.0, %v4264
      %v4266 = vpop.f32.mrb[0].mxu0
      %v4267 = vpop.f32.mrb[0].mxu0
      %v4268 = vadd.f32 0.0, %v4267
      %v4269 = vpop.f32.mrb[0].mxu0
      %4270 = vmatprep.mubr.bf16.mxu0 0
      %4271 = vmatmul.mubr.bf16.gmra.mrb[0].mxu0 %v4161
      %v4272 = vpop.f32.mrb[0].mxu0
      %v4273 = vadd.f32 0.0, %v4272
      %v4274 = vpop.f32.mrb[0].mxu0
      %v4275 = vpop.f32.mrb[0].mxu0
      %v4276 = vadd.f32 0.0, %v4275
      %v4277 = vpop.f32.mrb[0].mxu0
      %4278 = vmatprep.mubr.bf16.mxu0 0
      %4279 = vmatmul.mubr.bf16.gmra.mrb[0].mxu0 %v4164
      %v4280 = vpop.f32.mrb[0].mxu0
      %v4281 = vadd.f32 0.0, %v4280
      %v4282 = vpop.f32.mrb[0].mxu0
      %v4283 = vpop.f32.mrb[0].mxu0
      %v4284 = vadd.f32 0.0, %v4283
      %v4285 = vpop.f32.mrb[0].mxu0
      %4286 = vmatprep.mubr.bf16.mxu0 0
      %4287 = vmatmul.mubr.bf16.gmra.mrb[0].mxu0 %v4167
      %v4288 = vpop.f32.mrb[0].mxu0
      %v4289 = vadd.f32 0.0, %v4288
      %v4290 = vpop.f32.mrb[0].mxu0
      %v4291 = vpop.f32.mrb[0].mxu0
      %v4292 = vadd.f32 0.0, %v4291
      %v4293 = vpop.f32.mrb[0].mxu0
      %4294 = vmatprep.mubr.bf16.mxu0 0
      %4295 = vmatmul.mubr.bf16.gmra.mrb[0].mxu0 %v4170
      %v4296 = vpop.f32.mrb[0].mxu0
      %v4297 = vadd.f32 0.0, %v4296
      %v4298 = vpop.f32.mrb[0].mxu0
      %v4299 = vpop.f32.mrb[0].mxu0
      %v4300 = vadd.f32 0.0, %v4299
      %v4301 = vpop.f32.mrb[0].mxu0
      %4302 = vmatprep.mubr.bf16.mxu0 0
      %4303 = vmatmul.mubr.bf16.gmra.mrb[0].mxu0 %v4173
      %v4304 = vpop.f32.mrb[0].mxu0
      %v4305 = vadd.f32 0.0, %v4304
      %v4306 = vpop.f32.mrb[0].mxu0
      %v4307 = vpop.f32.mrb[0].mxu0
      %v4308 = vadd.f32 0.0, %v4307
      %v4309 = vpop.f32.mrb[0].mxu0
      %4310 = vmatprep.mubr.bf16.mxu0 0
      %4311 = vmatmul.mubr.bf16.gmra.mrb[0].mxu0 %v4176
      %v4312 = vpop.f32.mrb[0].mxu0
      %v4313 = vadd.f32 0.0, %v4312
      %v4314 = vpop.f32.mrb[0].mxu0
      %v4315 = vpop.f32.mrb[0].mxu0
      %v4316 = vadd.f32 0.0, %v4315
      %v4317 = vpop.f32.mrb[0].mxu0
      %4318 = vmatprep.mubr.bf16.mxu0 0
      %4319 = vmatmul.mubr.bf16.gmra.mrb[0].mxu0 %v4179
      %v4320 = vpop.f32.mrb[0].mxu0
      %v4321 = vadd.f32 0.0, %v4320
      %v4322 = vpop.f32.mrb[0].mxu0
      %v4323 = vpop.f32.mrb[0].mxu0
      %v4324 = vadd.f32 0.0, %v4323
      %v4325 = vpop.f32.mrb[0].mxu0
      %4326 = vmatprep.mubr.bf16.mxu0 0
      %4327 = vmatmul.mubr.bf16.gmra.mrb[0].mxu0 %v4182
      %v4328 = vpop.f32.mrb[0].mxu0
      %v4329 = vadd.f32 0.0, %v4328
      %v4330 = vpop.f32.mrb[0].mxu0
      %v4331 = vpop.f32.mrb[0].mxu0
      %v4332 = vadd.f32 0.0, %v4331
      %v4333 = vpop.f32.mrb[0].mxu0
      %4334 = vmatprep.mubr.bf16.mxu0 0
      %4335 = vmatmul.mubr.bf16.gmra.mrb[0].mxu0 %v4185
      %v4336 = vpop.f32.mrb[0].mxu0
      %v4337 = vadd.f32 0.0, %v4336
      %v4338 = vpop.f32.mrb[0].mxu0
      %v4339 = vpop.f32.mrb[0].mxu0
      %v4340 = vadd.f32 0.0, %v4339
      %v4341 = vpop.f32.mrb[0].mxu0
      %4342 = vmatprep.mubr.bf16.mxu0 0
      %4343 = vmatmul.mubr.bf16.gmra.mrb[0].mxu0 %v4188
      %v4344 = vpop.f32.mrb[0].mxu0
      %v4345 = vadd.f32 0.0, %v4344
      %v4346 = vpop.f32.mrb[0].mxu0
      %v4347 = vpop.f32.mrb[0].mxu0
      %v4348 = vadd.f32 0.0, %v4347
      %v4349 = vpop.f32.mrb[0].mxu0
      %4350 = vdwg.mxu0
      %v4351 = vadd.f32 %v3613, %v4225
      %v4352 = vadd.f32 %v3614, %v4228
      %v4353 = vadd.f32 %v3615, %v4233
      %v4354 = vadd.f32 %v3616, %v4236
      %v4355 = vadd.f32 %v3617, %v4241
      %v4356 = vadd.f32 %v3618, %v4244
      %v4357 = vadd.f32 %v3619, %v4249
      %v4358 = vadd.f32 %v3620, %v4252
      %v4359 = vadd.f32 %v3621, %v4257
      %v4360 = vadd.f32 %v3622, %v4260
      %v4361 = vadd.f32 %v3623, %v4265
      %v4362 = vadd.f32 %v3624, %v4268
      %v4363 = vadd.f32 %v3625, %v4273
      %v4364 = vadd.f32 %v3626, %v4276
      %v4365 = vadd.f32 %v3627, %v4281
      %v4366 = vadd.f32 %v3628, %v4284
      %v4367 = vadd.f32 %v3629, %v4289
      %v4368 = vadd.f32 %v3630, %v4292
      %v4369 = vadd.f32 %v3631, %v4297
      %v4370 = vadd.f32 %v3632, %v4300
      %v4371 = vadd.f32 %v3633, %v4305
      %v4372 = vadd.f32 %v3634, %v4308
      %v4373 = vadd.f32 %v3635, %v4313
      %v4374 = vadd.f32 %v3636, %v4316
      %v4375 = vadd.f32 %v3637, %v4321
      %v4376 = vadd.f32 %v3638, %v4324
      %v4377 = vadd.f32 %v3639, %v4329
      %v4378 = vadd.f32 %v3640, %v4332
      %v4379 = vadd.f32 %v3641, %v4337
      %v4380 = vadd.f32 %v3642, %v4340
      %v4381 = vadd.f32 %v3643, %v4345
      %v4382 = vadd.f32 %v3644, %v4348
      %v4383 = vld [vmem:[%s3274] sm:$0xe]
      %v4384 = vld [vmem:[%s3274 + $0xc] sm:$0xe]
      %v4385 = vld [vmem:[%s3274 + $0x18] sm:$0xe]
      %v4386 = vld [vmem:[%s3274 + $0x24] sm:$0xe]
      %v4387 = vld [vmem:[%s3274 + $0x30] sm:$0xe]
      %v4388 = vld [vmem:[%s3274 + $0x3c] sm:$0xe]
      %v4389 = vld [vmem:[%s3274 + $0x48] sm:$0xe]
      %v4390 = vld [vmem:[%s3274 + $0x54] sm:$0xe]
      %v4391 = vld [vmem:[%s3274 + $0x60] sm:$0xe]
      %v4392 = vld [vmem:[%s3274 + $0x6c] sm:$0xe]
      %v4393 = vld [vmem:[%s3274 + $0x78] sm:$0xe]
      %v4394 = vld [vmem:[%s3274 + $0x84] sm:$0xe]
      %v4395 = vld [vmem:[%s3274 + $0x90] sm:$0xe]
      %v4396 = vld [vmem:[%s3274 + $0x9c] sm:$0xe]
      %v4397 = vld [vmem:[%s3274 + $0xa8] sm:$0xe]
      %v4398 = vld [vmem:[%s3274 + $0xb4] sm:$0xe]
      %v4447 = vrot.slane %v4383, 5
      %v4448 = vrot.slane %v4447, 4
      %v4449 = vrot.slane %v3646, 5
      %v4450 = vsel %vm1264, %v4448, %v4449
      %v4451 = vrot.slane %v4449, 4
      %v4452 = vrot.slane %v3647, 5
      %v4453 = vsel %vm1264, %v4451, %v4452
      %v4454 = vrot.slane %v4384, 5
      %v4455 = vrot.slane %v4454, 4
      %v4456 = vrot.slane %v3649, 5
      %v4457 = vsel %vm1264, %v4455, %v4456
      %v4458 = vrot.slane %v4456, 4
      %v4459 = vrot.slane %v3650, 5
      %v4460 = vsel %vm1264, %v4458, %v4459
      %v4461 = vrot.slane %v4385, 5
      %v4462 = vrot.slane %v4461, 4
      %v4463 = vrot.slane %v3652, 5
      %v4464 = vsel %vm1264, %v4462, %v4463
      %v4465 = vrot.slane %v4463, 4
      %v4466 = vrot.slane %v3653, 5
      %v4467 = vsel %vm1264, %v4465, %v4466
      %v4468 = vrot.slane %v4386, 5
      %v4469 = vrot.slane %v4468, 4
      %v4470 = vrot.slane %v3655, 5
      %v4471 = vsel %vm1264, %v4469, %v4470
      %v4472 = vrot.slane %v4470, 4
      %v4473 = vrot.slane %v3656, 5
      %v4474 = vsel %vm1264, %v4472, %v4473
      %v4475 = vrot.slane %v4387, 5
      %v4476 = vrot.slane %v4475, 4
      %v4477 = vrot.slane %v3658, 5
      %v4478 = vsel %vm1264, %v4476, %v4477
      %v4479 = vrot.slane %v4477, 4
      %v4480 = vrot.slane %v3659, 5
      %v4481 = vsel %vm1264, %v4479, %v4480
      %v4482 = vrot.slane %v4388, 5
      %v4483 = vrot.slane %v4482, 4
      %v4484 = vrot.slane %v3661, 5
      %v4485 = vsel %vm1264, %v4483, %v4484
      %v4486 = vrot.slane %v4484, 4
      %v4487 = vrot.slane %v3662, 5
      %v4488 = vsel %vm1264, %v4486, %v4487
      %v4489 = vrot.slane %v4389, 5
      %v4490 = vrot.slane %v4489, 4
      %v4491 = vrot.slane %v3664, 5
      %v4492 = vsel %vm1264, %v4490, %v4491
      %v4493 = vrot.slane %v4491, 4
      %v4494 = vrot.slane %v3665, 5
      %v4495 = vsel %vm1264, %v4493, %v4494
      %v4496 = vrot.slane %v4390, 5
      %v4497 = vrot.slane %v4496, 4
      %v4498 = vrot.slane %v3667, 5
      %v4499 = vsel %vm1264, %v4497, %v4498
      %v4500 = vrot.slane %v4498, 4
      %v4501 = vrot.slane %v3668, 5
      %v4502 = vsel %vm1264, %v4500, %v4501
      %v4503 = vrot.slane %v4391, 5
      %v4504 = vrot.slane %v4503, 4
      %v4505 = vrot.slane %v3670, 5
      %v4506 = vsel %vm1264, %v4504, %v4505
      %v4507 = vrot.slane %v4505, 4
      %v4508 = vrot.slane %v3671, 5
      %v4509 = vsel %vm1264, %v4507, %v4508
      %v4510 = vrot.slane %v4392, 5
      %v4511 = vrot.slane %v4510, 4
      %v4512 = vrot.slane %v3673, 5
      %v4513 = vsel %vm1264, %v4511, %v4512
      %v4514 = vrot.slane %v4512, 4
      %v4515 = vrot.slane %v3674, 5
      %v4516 = vsel %vm1264, %v4514, %v4515
      %v4517 = vrot.slane %v4393, 5
      %v4518 = vrot.slane %v4517, 4
      %v4519 = vrot.slane %v3676, 5
      %v4520 = vsel %vm1264, %v4518, %v4519
      %v4521 = vrot.slane %v4519, 4
      %v4522 = vrot.slane %v3677, 5
      %v4523 = vsel %vm1264, %v4521, %v4522
      %v4524 = vrot.slane %v4394, 5
      %v4525 = vrot.slane %v4524, 4
      %v4526 = vrot.slane %v3679, 5
      %v4527 = vsel %vm1264, %v4525, %v4526
      %v4528 = vrot.slane %v4526, 4
      %v4529 = vrot.slane %v3680, 5
      %v4530 = vsel %vm1264, %v4528, %v4529
      %v4531 = vrot.slane %v4395, 5
      %v4532 = vrot.slane %v4531, 4
      %v4533 = vrot.slane %v3682, 5
      %v4534 = vsel %vm1264, %v4532, %v4533
      %v4535 = vrot.slane %v4533, 4
      %v4536 = vrot.slane %v3683, 5
      %v4537 = vsel %vm1264, %v4535, %v4536
      %v4538 = vrot.slane %v4396, 5
      %v4539 = vrot.slane %v4538, 4
      %v4540 = vrot.slane %v3685, 5
      %v4541 = vsel %vm1264, %v4539, %v4540
      %v4542 = vrot.slane %v4540, 4
      %v4543 = vrot.slane %v3686, 5
      %v4544 = vsel %vm1264, %v4542, %v4543
      %v4545 = vrot.slane %v4397, 5
      %v4546 = vrot.slane %v4545, 4
      %v4547 = vrot.slane %v3688, 5
      %v4548 = vsel %vm1264, %v4546, %v4547
      %v4549 = vrot.slane %v4547, 4
      %v4550 = vrot.slane %v3689, 5
      %v4551 = vsel %vm1264, %v4549, %v4550
      %v4552 = vrot.slane %v4398, 5
      %v4553 = vrot.slane %v4552, 4
      %v4554 = vrot.slane %v3691, 5
      %v4555 = vsel %vm1264, %v4553, %v4554
      %v4556 = vrot.slane %v4554, 4
      %v4557 = vrot.slane %v3692, 5
      %v4558 = vsel %vm1264, %v4556, %v4557
      %s4559 = scalar_lea.vmem %s1, 128
      %v4560 = vld [vmem:[%s4559] sm:$0xf]
      %v4561 = vld [vmem:[%s4559 + $0x4] sm:$0xf]
      %v4562 = vld [vmem:[%s4559 + $0x8] sm:$0xf]
      %v4563 = vld [vmem:[%s4559 + $0xc] sm:$0xf]
      %v4564 = vunpack.c.l.b16 %v4450
      %v4565 = vunpack.c.l.b16 %v4453
      %v4566 = vunpack.c.l.b16 %v4457
      %v4567 = vunpack.c.l.b16 %v4460
      %v4568 = vunpack.c.l.b16 %v4464
      %v4569 = vunpack.c.l.b16 %v4467
      %v4570 = vunpack.c.l.b16 %v4471
      %v4571 = vunpack.c.l.b16 %v4474
      %v4572 = vunpack.c.l.b16 %v4478
      %v4573 = vunpack.c.l.b16 %v4481
      %v4574 = vunpack.c.l.b16 %v4485
      %v4575 = vunpack.c.l.b16 %v4488
      %v4576 = vunpack.c.l.b16 %v4492
      %v4577 = vunpack.c.l.b16 %v4495
      %v4578 = vunpack.c.l.b16 %v4499
      %v4579 = vunpack.c.l.b16 %v4502
      %v4580 = vunpack.c.l.b16 %v4506
      %v4581 = vunpack.c.l.b16 %v4509
      %v4582 = vunpack.c.l.b16 %v4513
      %v4583 = vunpack.c.l.b16 %v4516
      %v4584 = vunpack.c.l.b16 %v4520
      %v4585 = vunpack.c.l.b16 %v4523
      %v4586 = vunpack.c.l.b16 %v4527
      %v4587 = vunpack.c.l.b16 %v4530
      %v4588 = vunpack.c.l.b16 %v4534
      %v4589 = vunpack.c.l.b16 %v4537
      %v4590 = vunpack.c.l.b16 %v4541
      %v4591 = vunpack.c.l.b16 %v4544
      %v4592 = vunpack.c.l.b16 %v4548
      %v4593 = vunpack.c.l.b16 %v4551
      %v4594 = vunpack.c.l.b16 %v4555
      %v4595 = vunpack.c.l.b16 %v4558
      %v4596 = vpack.c.b16 %v4565, %v4564
      %v4597 = vpack.c.b16 %v4567, %v4566
      %v4598 = vpack.c.b16 %v4569, %v4568
      %v4599 = vpack.c.b16 %v4571, %v4570
      %v4600 = vpack.c.b16 %v4573, %v4572
      %v4601 = vpack.c.b16 %v4575, %v4574
      %v4602 = vpack.c.b16 %v4577, %v4576
      %v4603 = vpack.c.b16 %v4579, %v4578
      %v4604 = vpack.c.b16 %v4581, %v4580
      %v4605 = vpack.c.b16 %v4583, %v4582
      %v4606 = vpack.c.b16 %v4585, %v4584
      %v4607 = vpack.c.b16 %v4587, %v4586
      %v4608 = vpack.c.b16 %v4589, %v4588
      %v4609 = vpack.c.b16 %v4591, %v4590
      %v4610 = vpack.c.b16 %v4593, %v4592
      %v4611 = vpack.c.b16 %v4595, %v4594
      %v4616 = vunpack.c.l.b16 %v4560
      %v4617 = vunpack.c.l.b16 %v4561
      %v4618 = vunpack.c.l.b16 %v4562
      %v4619 = vunpack.c.l.b16 %v4563
      %v4620 = vpack.c.b16 %v4617, %v4616
      %v4621 = vpack.c.b16 %v4619, %v4618
      %v4625 = vsel %vm703, %v4596, 0
      %v4628 = vsel %vm703, %v4597, 0
      %v4631 = vsel %vm703, %v4598, 0
      %v4634 = vsel %vm703, %v4599, 0
      %v4637 = vsel %vm703, %v4600, 0
      %v4640 = vsel %vm703, %v4601, 0
      %v4643 = vsel %vm703, %v4602, 0
      %v4646 = vsel %vm703, %v4603, 0
      %v4649 = vsel %vm703, %v4604, 0
      %v4652 = vsel %vm703, %v4605, 0
      %v4655 = vsel %vm703, %v4606, 0
      %v4658 = vsel %vm703, %v4607, 0
      %v4661 = vsel %vm703, %v4608, 0
      %v4664 = vsel %vm703, %v4609, 0
      %v4667 = vsel %vm703, %v4610, 0
      %v4670 = vsel %vm703, %v4611, 0
      %4672 = vmatprep.subr.bf16.mxu0 0
      %4673 = vmatpush1.bf16.msra.mxu0 %v4620
      %4674 = vmatprep.subr.bf16.mxu0 0
      %4675 = vmatpush1.bf16.msra.mxu0 %v4621
      %4676 = vmatprep.subr.bf16.mxu0 0
      %4677 = vmatpush1.bf16.msra.mxu0 0
      %4678 = vmatprep.subr.bf16.mxu0 0
      %4679 = vmatpush1.bf16.msra.mxu0 0
      %4680 = vmatprep.subr.bf16.mxu0 0
      %4681 = vmatpush1.bf16.msra.mxu0 0
      %4682 = vmatprep.subr.bf16.mxu0 0
      %4683 = vmatpush1.bf16.msra.mxu0 0
      %4684 = vmatprep.subr.bf16.mxu0 0
      %4685 = vmatpush1.bf16.msra.mxu0 0
      %4686 = vmatprep.subr.bf16.mxu0 0
      %4687 = vmatpush1.bf16.msra.mxu0 0
      %4688 = vmatprep.subr.bf16.mxu0 0
      %4689 = vmatpush1.bf16.msra.mxu0 0
      %4690 = vmatprep.subr.bf16.mxu0 0
      %4691 = vmatpush1.bf16.msra.mxu0 0
      %4692 = vmatprep.subr.bf16.mxu0 0
      %4693 = vmatpush1.bf16.msra.mxu0 0
      %4694 = vmatprep.subr.bf16.mxu0 0
      %4695 = vmatpush1.bf16.msra.mxu0 0
      %4696 = vmatprep.subr.bf16.mxu0 0
      %4697 = vmatpush1.bf16.msra.mxu0 0
      %4698 = vmatprep.subr.bf16.mxu0 0
      %4699 = vmatpush1.bf16.msra.mxu0 0
      %4700 = vmatprep.subr.bf16.mxu0 0
      %4701 = vmatpush1.bf16.msra.mxu0 0
      %4702 = vmatprep.subr.bf16.mxu0 0
      %4703 = vmatpush1.bf16.msra.mxu0 0
      %4704 = vmatprep.mubr.bf16.mxu0 0
      %4705 = vmatmul.mubr.bf16.gmra.mrb[0].mxu0 %v4625
      %v4706 = vpop.f32.mrb[0].mxu0
      %v4707 = vadd.f32 0.0, %v4706
      %v4708 = vpop.f32.mrb[0].mxu0
      %v4709 = vpop.f32.mrb[0].mxu0
      %v4710 = vadd.f32 0.0, %v4709
      %v4711 = vpop.f32.mrb[0].mxu0
      %4712 = vmatprep.mubr.bf16.mxu0 0
      %4713 = vmatmul.mubr.bf16.gmra.mrb[0].mxu0 %v4628
      %v4714 = vpop.f32.mrb[0].mxu0
      %v4715 = vadd.f32 0.0, %v4714
      %v4716 = vpop.f32.mrb[0].mxu0
      %v4717 = vpop.f32.mrb[0].mxu0
      %v4718 = vadd.f32 0.0, %v4717
      %v4719 = vpop.f32.mrb[0].mxu0
      %4720 = vmatprep.mubr.bf16.mxu0 0
      %4721 = vmatmul.mubr.bf16.gmra.mrb[0].mxu0 %v4631
      %v4722 = vpop.f32.mrb[0].mxu0
      %v4723 = vadd.f32 0.0, %v4722
      %v4724 = vpop.f32.mrb[0].mxu0
      %v4725 = vpop.f32.mrb[0].mxu0
      %v4726 = vadd.f32 0.0, %v4725
      %v4727 = vpop.f32.mrb[0].mxu0
      %4728 = vmatprep.mubr.bf16.mxu0 0
      %4729 = vmatmul.mubr.bf16.gmra.mrb[0].mxu0 %v4634
      %v4730 = vpop.f32.mrb[0].mxu0
      %v4731 = vadd.f32 0.0, %v4730
      %v4732 = vpop.f32.mrb[0].mxu0
      %v4733 = vpop.f32.mrb[0].mxu0
      %v4734 = vadd.f32 0.0, %v4733
      %v4735 = vpop.f32.mrb[0].mxu0
      %4736 = vmatprep.mubr.bf16.mxu0 0
      %4737 = vmatmul.mubr.bf16.gmra.mrb[0].mxu0 %v4637
      %v4738 = vpop.f32.mrb[0].mxu0
      %v4739 = vadd.f32 0.0, %v4738
      %v4740 = vpop.f32.mrb[0].mxu0
      %v4741 = vpop.f32.mrb[0].mxu0
      %v4742 = vadd.f32 0.0, %v4741
      %v4743 = vpop.f32.mrb[0].mxu0
      %4744 = vmatprep.mubr.bf16.mxu0 0
      %4745 = vmatmul.mubr.bf16.gmra.mrb[0].mxu0 %v4640
      %v4746 = vpop.f32.mrb[0].mxu0
      %v4747 = vadd.f32 0.0, %v4746
      %v4748 = vpop.f32.mrb[0].mxu0
      %v4749 = vpop.f32.mrb[0].mxu0
      %v4750 = vadd.f32 0.0, %v4749
      %v4751 = vpop.f32.mrb[0].mxu0
      %4752 = vmatprep.mubr.bf16.mxu0 0
      %4753 = vmatmul.mubr.bf16.gmra.mrb[0].mxu0 %v4643
      %v4754 = vpop.f32.mrb[0].mxu0
      %v4755 = vadd.f32 0.0, %v4754
      %v4756 = vpop.f32.mrb[0].mxu0
      %v4757 = vpop.f32.mrb[0].mxu0
      %v4758 = vadd.f32 0.0, %v4757
      %v4759 = vpop.f32.mrb[0].mxu0
      %4760 = vmatprep.mubr.bf16.mxu0 0
      %4761 = vmatmul.mubr.bf16.gmra.mrb[0].mxu0 %v4646
      %v4762 = vpop.f32.mrb[0].mxu0
      %v4763 = vadd.f32 0.0, %v4762
      %v4764 = vpop.f32.mrb[0].mxu0
      %v4765 = vpop.f32.mrb[0].mxu0
      %v4766 = vadd.f32 0.0, %v4765
      %v4767 = vpop.f32.mrb[0].mxu0
      %4768 = vmatprep.mubr.bf16.mxu0 0
      %4769 = vmatmul.mubr.bf16.gmra.mrb[0].mxu0 %v4649
      %v4770 = vpop.f32.mrb[0].mxu0
      %v4771 = vadd.f32 0.0, %v4770
      %v4772 = vpop.f32.mrb[0].mxu0
      %v4773 = vpop.f32.mrb[0].mxu0
      %v4774 = vadd.f32 0.0, %v4773
      %v4775 = vpop.f32.mrb[0].mxu0
      %4776 = vmatprep.mubr.bf16.mxu0 0
      %4777 = vmatmul.mubr.bf16.gmra.mrb[0].mxu0 %v4652
      %v4778 = vpop.f32.mrb[0].mxu0
      %v4779 = vadd.f32 0.0, %v4778
      %v4780 = vpop.f32.mrb[0].mxu0
      %v4781 = vpop.f32.mrb[0].mxu0
      %v4782 = vadd.f32 0.0, %v4781
      %v4783 = vpop.f32.mrb[0].mxu0
      %4784 = vmatprep.mubr.bf16.mxu0 0
      %4785 = vmatmul.mubr.bf16.gmra.mrb[0].mxu0 %v4655
      %v4786 = vpop.f32.mrb[0].mxu0
      %v4787 = vadd.f32 0.0, %v4786
      %v4788 = vpop.f32.mrb[0].mxu0
      %v4789 = vpop.f32.mrb[0].mxu0
      %v4790 = vadd.f32 0.0, %v4789
      %v4791 = vpop.f32.mrb[0].mxu0
      %4792 = vmatprep.mubr.bf16.mxu0 0
      %4793 = vmatmul.mubr.bf16.gmra.mrb[0].mxu0 %v4658
      %v4794 = vpop.f32.mrb[0].mxu0
      %v4795 = vadd.f32 0.0, %v4794
      %v4796 = vpop.f32.mrb[0].mxu0
      %v4797 = vpop.f32.mrb[0].mxu0
      %v4798 = vadd.f32 0.0, %v4797
      %v4799 = vpop.f32.mrb[0].mxu0
      %4800 = vmatprep.mubr.bf16.mxu0 0
      %4801 = vmatmul.mubr.bf16.gmra.mrb[0].mxu0 %v4661
      %v4802 = vpop.f32.mrb[0].mxu0
      %v4803 = vadd.f32 0.0, %v4802
      %v4804 = vpop.f32.mrb[0].mxu0
      %v4805 = vpop.f32.mrb[0].mxu0
      %v4806 = vadd.f32 0.0, %v4805
      %v4807 = vpop.f32.mrb[0].mxu0
      %4808 = vmatprep.mubr.bf16.mxu0 0
      %4809 = vmatmul.mubr.bf16.gmra.mrb[0].mxu0 %v4664
      %v4810 = vpop.f32.mrb[0].mxu0
      %v4811 = vadd.f32 0.0, %v4810
      %v4812 = vpop.f32.mrb[0].mxu0
      %v4813 = vpop.f32.mrb[0].mxu0
      %v4814 = vadd.f32 0.0, %v4813
      %v4815 = vpop.f32.mrb[0].mxu0
      %4816 = vmatprep.mubr.bf16.mxu0 0
      %4817 = vmatmul.mubr.bf16.gmra.mrb[0].mxu0 %v4667
      %v4818 = vpop.f32.mrb[0].mxu0
      %v4819 = vadd.f32 0.0, %v4818
      %v4820 = vpop.f32.mrb[0].mxu0
      %v4821 = vpop.f32.mrb[0].mxu0
      %v4822 = vadd.f32 0.0, %v4821
      %v4823 = vpop.f32.mrb[0].mxu0
      %4824 = vmatprep.mubr.bf16.mxu0 0
      %4825 = vmatmul.mubr.bf16.gmra.mrb[0].mxu0 %v4670
      %v4826 = vpop.f32.mrb[0].mxu0
      %v4827 = vadd.f32 0.0, %v4826
      %v4828 = vpop.f32.mrb[0].mxu0
      %v4829 = vpop.f32.mrb[0].mxu0
      %v4830 = vadd.f32 0.0, %v4829
      %v4831 = vpop.f32.mrb[0].mxu0
      %4832 = vdwg.mxu0
      %v4833 = vadd.f32 %v4351, %v4707
      %v4834 = vadd.f32 %v4352, %v4710
      %v4835 = vadd.f32 %v4353, %v4715
      %v4836 = vadd.f32 %v4354, %v4718
      %v4837 = vadd.f32 %v4355, %v4723
      %v4838 = vadd.f32 %v4356, %v4726
      %v4839 = vadd.f32 %v4357, %v4731
      %v4840 = vadd.f32 %v4358, %v4734
      %v4841 = vadd.f32 %v4359, %v4739
      %v4842 = vadd.f32 %v4360, %v4742
      %v4843 = vadd.f32 %v4361, %v4747
      %v4844 = vadd.f32 %v4362, %v4750
      %v4845 = vadd.f32 %v4363, %v4755
      %v4846 = vadd.f32 %v4364, %v4758
      %v4847 = vadd.f32 %v4365, %v4763
      %v4848 = vadd.f32 %v4366, %v4766
      %v4849 = vadd.f32 %v4367, %v4771
      %v4850 = vadd.f32 %v4368, %v4774
      %v4851 = vadd.f32 %v4369, %v4779
      %v4852 = vadd.f32 %v4370, %v4782
      %v4853 = vadd.f32 %v4371, %v4787
      %v4854 = vadd.f32 %v4372, %v4790
      %v4855 = vadd.f32 %v4373, %v4795
      %v4856 = vadd.f32 %v4374, %v4798
      %v4857 = vadd.f32 %v4375, %v4803
      %v4858 = vadd.f32 %v4376, %v4806
      %v4859 = vadd.f32 %v4377, %v4811
      %v4860 = vadd.f32 %v4378, %v4814
      %v4861 = vadd.f32 %v4379, %v4819
      %v4862 = vadd.f32 %v4380, %v4822
      %v4863 = vadd.f32 %v4381, %v4827
      %v4864 = vadd.f32 %v4382, %v4830
      %v4865 = vld [vmem:[%s2] sm:$0x1]
      %v4867 = vlaneseq
      %v4868 = vshrl.u32 %v4867, 7
      %v4869 = vsub.s32 0, %v4868
      %v4870 = vrot.slane %v4865, %v4869
      %v4872 = vmul.f32 %v4833, %v4870
      %v4873 = vmul.f32 %v4834, %v4870
      %v4874 = vmul.f32 %v4835, %v4870
      %v4875 = vmul.f32 %v4836, %v4870
      %v4876 = vmul.f32 %v4837, %v4870
      %v4877 = vmul.f32 %v4838, %v4870
      %v4878 = vmul.f32 %v4839, %v4870
      %v4879 = vmul.f32 %v4840, %v4870
      %v4880 = vmul.f32 %v4841, %v4870
      %v4881 = vmul.f32 %v4842, %v4870
      %v4882 = vmul.f32 %v4843, %v4870
      %v4883 = vmul.f32 %v4844, %v4870
      %v4884 = vmul.f32 %v4845, %v4870
      %v4885 = vmul.f32 %v4846, %v4870
      %v4886 = vmul.f32 %v4847, %v4870
      %v4887 = vmul.f32 %v4848, %v4870
      %v4888 = vmul.f32 %v4849, %v4870
      %v4889 = vmul.f32 %v4850, %v4870
      %v4890 = vmul.f32 %v4851, %v4870
      %v4891 = vmul.f32 %v4852, %v4870
      %v4892 = vmul.f32 %v4853, %v4870
      %v4893 = vmul.f32 %v4854, %v4870
      %v4894 = vmul.f32 %v4855, %v4870
      %v4895 = vmul.f32 %v4856, %v4870
      %v4896 = vmul.f32 %v4857, %v4870
      %v4897 = vmul.f32 %v4858, %v4870
      %v4898 = vmul.f32 %v4859, %v4870
      %v4899 = vmul.f32 %v4860, %v4870
      %v4900 = vmul.f32 %v4861, %v4870
      %v4901 = vmul.f32 %v4862, %v4870
      %v4902 = vmul.f32 %v4863, %v4870
      %v4903 = vmul.f32 %v4864, %v4870
      %v4904 = vld [vmem:[%s3] sm:$0x1]
      %v4906 = vlaneseq
      %v4907 = vshrl.u32 %v4906, 7
      %v4908 = vsub.s32 0, %v4907
      %v4909 = vrot.slane %v4904, %v4908
      %v4911 = vadd.f32 %v4872, %v4909
      %v4912 = vadd.f32 %v4873, %v4909
      %v4913 = vadd.f32 %v4874, %v4909
      %v4914 = vadd.f32 %v4875, %v4909
      %v4915 = vadd.f32 %v4876, %v4909
      %v4916 = vadd.f32 %v4877, %v4909
      %v4917 = vadd.f32 %v4878, %v4909
      %v4918 = vadd.f32 %v4879, %v4909
      %v4919 = vadd.f32 %v4880, %v4909
      %v4920 = vadd.f32 %v4881, %v4909
      %v4921 = vadd.f32 %v4882, %v4909
      %v4922 = vadd.f32 %v4883, %v4909
      %v4923 = vadd.f32 %v4884, %v4909
      %v4924 = vadd.f32 %v4885, %v4909
      %v4925 = vadd.f32 %v4886, %v4909
      %v4926 = vadd.f32 %v4887, %v4909
      %v4927 = vadd.f32 %v4888, %v4909
      %v4928 = vadd.f32 %v4889, %v4909
      %v4929 = vadd.f32 %v4890, %v4909
      %v4930 = vadd.f32 %v4891, %v4909
      %v4931 = vadd.f32 %v4892, %v4909
      %v4932 = vadd.f32 %v4893, %v4909
      %v4933 = vadd.f32 %v4894, %v4909
      %v4934 = vadd.f32 %v4895, %v4909
      %v4935 = vadd.f32 %v4896, %v4909
      %v4936 = vadd.f32 %v4897, %v4909
      %v4937 = vadd.f32 %v4898, %v4909
      %v4938 = vadd.f32 %v4899, %v4909
      %v4939 = vadd.f32 %v4900, %v4909
      %v4940 = vadd.f32 %v4901, %v4909
      %v4941 = vadd.f32 %v4902, %v4909
      %v4942 = vadd.f32 %v4903, %v4909
      %v4943 = vmax.f32 %v4911, 0.0
      %v4944 = vmax.f32 %v4912, 0.0
      %v4945 = vmax.f32 %v4913, 0.0
      %v4946 = vmax.f32 %v4914, 0.0
      %v4947 = vmax.f32 %v4915, 0.0
      %v4948 = vmax.f32 %v4916, 0.0
      %v4949 = vmax.f32 %v4917, 0.0
      %v4950 = vmax.f32 %v4918, 0.0
      %v4951 = vmax.f32 %v4919, 0.0
      %v4952 = vmax.f32 %v4920, 0.0
      %v4953 = vmax.f32 %v4921, 0.0
      %v4954 = vmax.f32 %v4922, 0.0
      %v4955 = vmax.f32 %v4923, 0.0
      %v4956 = vmax.f32 %v4924, 0.0
      %v4957 = vmax.f32 %v4925, 0.0
      %v4958 = vmax.f32 %v4926, 0.0
      %v4959 = vmax.f32 %v4927, 0.0
      %v4960 = vmax.f32 %v4928, 0.0
      %v4961 = vmax.f32 %v4929, 0.0
      %v4962 = vmax.f32 %v4930, 0.0
      %v4963 = vmax.f32 %v4931, 0.0
      %v4964 = vmax.f32 %v4932, 0.0
      %v4965 = vmax.f32 %v4933, 0.0
      %v4966 = vmax.f32 %v4934, 0.0
      %v4967 = vmax.f32 %v4935, 0.0
      %v4968 = vmax.f32 %v4936, 0.0
      %v4969 = vmax.f32 %v4937, 0.0
      %v4970 = vmax.f32 %v4938, 0.0
      %v4971 = vmax.f32 %v4939, 0.0
      %v4972 = vmax.f32 %v4940, 0.0
      %v4973 = vmax.f32 %v4941, 0.0
      %v4974 = vmax.f32 %v4942, 0.0
      %v4975 = vpack.c.bf16 %v4944, %v4943
      %v4976 = vpack.c.bf16 %v4946, %v4945
      %v4977 = vpack.c.bf16 %v4948, %v4947
      %v4978 = vpack.c.bf16 %v4950, %v4949
      %v4979 = vpack.c.bf16 %v4952, %v4951
      %v4980 = vpack.c.bf16 %v4954, %v4953
      %v4981 = vpack.c.bf16 %v4956, %v4955
      %v4982 = vpack.c.bf16 %v4958, %v4957
      %v4983 = vpack.c.bf16 %v4960, %v4959
      %v4984 = vpack.c.bf16 %v4962, %v4961
      %v4985 = vpack.c.bf16 %v4964, %v4963
      %v4986 = vpack.c.bf16 %v4966, %v4965
      %v4987 = vpack.c.bf16 %v4968, %v4967
      %v4988 = vpack.c.bf16 %v4970, %v4969
      %v4989 = vpack.c.bf16 %v4972, %v4971
      %v4990 = vpack.c.bf16 %v4974, %v4973
      %v5007 = vunpack.c.l.b16 %v4975
      %v5008 = vunpack.c.h.b16 %v4975
      %v5009 = vunpack.c.l.b16 %v4976
      %v5010 = vunpack.c.h.b16 %v4976
      %v5011 = vunpack.c.l.b16 %v4977
      %v5012 = vunpack.c.h.b16 %v4977
      %v5013 = vunpack.c.l.b16 %v4978
      %v5014 = vunpack.c.h.b16 %v4978
      %v5015 = vunpack.c.l.b16 %v4979
      %v5016 = vunpack.c.h.b16 %v4979
      %v5017 = vunpack.c.l.b16 %v4980
      %v5018 = vunpack.c.h.b16 %v4980
      %v5019 = vunpack.c.l.b16 %v4981
      %v5020 = vunpack.c.h.b16 %v4981
      %v5021 = vunpack.c.l.b16 %v4982
      %v5022 = vunpack.c.h.b16 %v4982
      %v5023 = vunpack.c.l.b16 %v4983
      %v5024 = vunpack.c.h.b16 %v4983
      %v5025 = vunpack.c.l.b16 %v4984
      %v5026 = vunpack.c.h.b16 %v4984
      %v5027 = vunpack.c.l.b16 %v4985
      %v5028 = vunpack.c.h.b16 %v4985
      %v5029 = vunpack.c.l.b16 %v4986
      %v5030 = vunpack.c.h.b16 %v4986
      %v5031 = vunpack.c.l.b16 %v4987
      %v5032 = vunpack.c.h.b16 %v4987
      %v5033 = vunpack.c.l.b16 %v4988
      %v5034 = vunpack.c.h.b16 %v4988
      %v5035 = vunpack.c.l.b16 %v4989
      %v5036 = vunpack.c.h.b16 %v4989
      %v5037 = vunpack.c.l.b16 %v4990
      %v5038 = vunpack.c.h.b16 %v4990
      %v5039 = vpack.c.b16 %v5007, %v5007
      %v5040 = vpack.c.b16 %v5008, %v5008
      %v5041 = vpack.c.b16 %v5009, %v5009
      %v5042 = vpack.c.b16 %v5010, %v5010
      %v5043 = vpack.c.b16 %v5011, %v5011
      %v5044 = vpack.c.b16 %v5012, %v5012
      %v5045 = vpack.c.b16 %v5013, %v5013
      %v5046 = vpack.c.b16 %v5014, %v5014
      %v5047 = vpack.c.b16 %v5015, %v5015
      %v5048 = vpack.c.b16 %v5016, %v5016
      %v5049 = vpack.c.b16 %v5017, %v5017
      %v5050 = vpack.c.b16 %v5018, %v5018
      %v5051 = vpack.c.b16 %v5019, %v5019
      %v5052 = vpack.c.b16 %v5020, %v5020
      %v5053 = vpack.c.b16 %v5021, %v5021
      %v5054 = vpack.c.b16 %v5022, %v5022
      %v5055 = vpack.c.b16 %v5023, %v5023
      %v5056 = vpack.c.b16 %v5024, %v5024
      %v5057 = vpack.c.b16 %v5025, %v5025
      %v5058 = vpack.c.b16 %v5026, %v5026
      %v5059 = vpack.c.b16 %v5027, %v5027
      %v5060 = vpack.c.b16 %v5028, %v5028
      %v5061 = vpack.c.b16 %v5029, %v5029
      %v5062 = vpack.c.b16 %v5030, %v5030
      %v5063 = vpack.c.b16 %v5031, %v5031
      %v5064 = vpack.c.b16 %v5032, %v5032
      %v5065 = vpack.c.b16 %v5033, %v5033
      %v5066 = vpack.c.b16 %v5034, %v5034
      %v5067 = vpack.c.b16 %v5035, %v5035
      %v5068 = vpack.c.b16 %v5036, %v5036
      %v5069 = vpack.c.b16 %v5037, %v5037
      %v5070 = vpack.c.b16 %v5038, %v5038
      %vm5103 = vcmask 257024
      %5104 = vst.msk [vmem:[%s197] sm:$0xf] %vm5103, %v5039
      %5105 = vst.msk [vmem:[%s197 + $0x4] sm:$0xf] %vm5103, %v5040
      %5106 = vst.msk [vmem:[%s197 + $0x8] sm:$0xf] %vm5103, %v5041
      %5107 = vst.msk [vmem:[%s197 + $0xc] sm:$0xf] %vm5103, %v5042
      %5108 = vst.msk [vmem:[%s197 + $0x10] sm:$0xf] %vm5103, %v5043
      %5109 = vst.msk [vmem:[%s197 + $0x14] sm:$0xf] %vm5103, %v5044
      %5110 = vst.msk [vmem:[%s197 + $0x18] sm:$0xf] %vm5103, %v5045
      %5111 = vst.msk [vmem:[%s197 + $0x1c] sm:$0xf] %vm5103, %v5046
      %5112 = vst.msk [vmem:[%s197 + $0x20] sm:$0xf] %vm5103, %v5047
      %5113 = vst.msk [vmem:[%s197 + $0x24] sm:$0xf] %vm5103, %v5048
      %5114 = vst.msk [vmem:[%s197 + $0x28] sm:$0xf] %vm5103, %v5049
      %5115 = vst.msk [vmem:[%s197 + $0x2c] sm:$0xf] %vm5103, %v5050
      %5116 = vst.msk [vmem:[%s197 + $0x30] sm:$0xf] %vm5103, %v5051
      %5117 = vst.msk [vmem:[%s197 + $0x34] sm:$0xf] %vm5103, %v5052
      %5118 = vst.msk [vmem:[%s197 + $0x38] sm:$0xf] %vm5103, %v5053
      %5119 = vst.msk [vmem:[%s197 + $0x3c] sm:$0xf] %vm5103, %v5054
      %5120 = vst.msk [vmem:[%s197 + $0x40] sm:$0xf] %vm5103, %v5055
      %5121 = vst.msk [vmem:[%s197 + $0x44] sm:$0xf] %vm5103, %v5056
      %5122 = vst.msk [vmem:[%s197 + $0x48] sm:$0xf] %vm5103, %v5057
      %5123 = vst.msk [vmem:[%s197 + $0x4c] sm:$0xf] %vm5103, %v5058
      %5124 = vst.msk [vmem:[%s197 + $0x50] sm:$0xf] %vm5103, %v5059
      %5125 = vst.msk [vmem:[%s197 + $0x54] sm:$0xf] %vm5103, %v5060
      %5126 = vst.msk [vmem:[%s197 + $0x58] sm:$0xf] %vm5103, %v5061
      %5127 = vst.msk [vmem:[%s197 + $0x5c] sm:$0xf] %vm5103, %v5062
      %5128 = vst.msk [vmem:[%s197 + $0x60] sm:$0xf] %vm5103, %v5063
      %5129 = vst.msk [vmem:[%s197 + $0x64] sm:$0xf] %vm5103, %v5064
      %5130 = vst.msk [vmem:[%s197 + $0x68] sm:$0xf] %vm5103, %v5065
      %5131 = vst.msk [vmem:[%s197 + $0x6c] sm:$0xf] %vm5103, %v5066
      %5132 = vst.msk [vmem:[%s197 + $0x70] sm:$0xf] %vm5103, %v5067
      %5133 = vst.msk [vmem:[%s197 + $0x74] sm:$0xf] %vm5103, %v5068
      %5134 = vst.msk [vmem:[%s197 + $0x78] sm:$0xf] %vm5103, %v5069
      %5135 = vst.msk [vmem:[%s197 + $0x7c] sm:$0xf] %vm5103, %v5070
      %p5136 = scmp.lt.s32.totalorder %s15, 1
      %s5137 = scalar_select %p5136, %s15, 1
      %s5138 = smul.addr %s5137, 32
      %s5139 = smul.addr %s5138, 4
      %s5140 = scalar_lea.vmem %s4, %s5139
      // Predicated region
      $region37: #{bottleneck_forward.5} parent=35 // pred_check
        %p5141 = pneg %p122
      $region38: #{bottleneck_forward.5} parent=35 // pred_check_branch
        %5143 = sbr.rel (%p5141) target = $region40
      $region39: #{bottleneck_forward.5} parent=35 // pred_region
        _
      $region40: #{bottleneck_forward.5} parent=35 // pred_fallthru
        _
    $region36: #{bottleneck_forward.5} parent=5 // pred_fallthru
      _
    %p5144 = scmp.le.s32.totalorder 2, %s10
    // Predicated region
    $region41: #{bottleneck_forward.5} parent=5 // pred_check
      %p5145 = pneg %p5144
    $region42: #{bottleneck_forward.5} parent=5 // pred_check_branch
      %5147 = sbr.rel (%p5145) target = $region44
    $region43: #{bottleneck_forward.5} parent=5 // pred_region
      %s5148 = ssub.s32 %s10, 2
      // Predicated region
      $region45: #{bottleneck_forward.5} parent=43 // pred_check
        %p5149 = pneg %p128
      $region46: #{bottleneck_forward.5} parent=43 // pred_check_branch
        %5151 = sbr.rel (%p5149) target = $region48
      $region47: #{bottleneck_forward.5} parent=43 // pred_region
        %p5152 = scmp.lt.s32.totalorder %s16, 1
        %s5153 = scalar_select %p5152, %s16, 1
        %s5154 = smul.addr %s5153, 32
        %s5155 = smul.addr %s5154, 4
        %s5156 = scalar_lea.vmem %s4, %s5155
      $region48: #{bottleneck_forward.5} parent=43 // pred_fallthru
        _
    $region44: #{bottleneck_forward.5} parent=5 // pred_fallthru
      _
  $region6: #{bottleneck_forward.5} parent=0 // loop_footer
    %s14 = sadd.s32 1, %s10
  $region7: #{bottleneck_forward.5} parent=0 // loop_footer_branch
    %9 = sbr.rel target = $region3
  $region8: #{bottleneck_forward.5} parent=0 // loop_exit
    _

</llo_original>
